<compile_context>
chip_gen: v6e
topology: v6e:2x2x1
jax: 0.10.0
libtpu: 0.0.40
codegen_flags: <defaults>
</compile_context>

<pallas_src>
import functools

import jax
import jax.numpy as jnp
import numpy as np
from jax.experimental import pallas as pl
from jax.experimental.pallas import tpu as pltpu


N_LAYERS = 10
DIMS = [10000] + [64] * 9 + [3]  # in/out dims of fc1..fc10


def mlp_kernel(*refs):
    """refs = (x_ref, w1, b1, w2, b2, ..., w10, b10, out_ref).

    x_ref is a (TB, 10000) bf16 batch tile; weights/biases are whole
    (VMEM-resident) arrays.  The full network runs per tile.
    """
    x_ref = refs[0]
    out_ref = refs[-1]
    params = refs[1:-1]

    # Layer 1: bf16 x / bf16 W1 on the MXU, f32 accumulation.
    w1 = params[0][...]                      # (10000, 64) bf16
    b1 = params[1][...]                      # (1, 64) f32
    h = jnp.dot(x_ref[...], w1, preferred_element_type=jnp.float32) + b1
    h = jnp.maximum(h, 0.0)

    # Layers 2..10 (small 64-wide layers, f32 — tiny, hidden under the x DMA).
    for i in range(1, N_LAYERS):
        w = params[2 * i][...]
        b = params[2 * i + 1][...]
        h = jnp.dot(h, w, preferred_element_type=jnp.float32) + b
        if i < N_LAYERS - 1:
            h = jnp.maximum(h, 0.0)  # ReLU on all but the last layer

    # log_softmax along the last dim (size 3), max-shifted for stability.
    m = jnp.max(h, axis=-1, keepdims=True)
    lse = jnp.log(jnp.sum(jnp.exp(h - m), axis=-1, keepdims=True)) + m
    out_ref[...] = (h - lse).astype(out_ref.dtype)


def _round_up(n, m):
    return ((n + m - 1) // m) * m


@functools.partial(jax.jit, static_argnames=("max_tile",))
def mlp_forward(x, params_flat, *, max_tile=512):
    """x: (B, 10000) bf16; params_flat: [w1, b1, ..., w10, b10] with
    w1 bf16 (10000, 64), other w_i f32 (in_i, out_i), b_i f32 (1, out_i)."""
    assert max_tile % 8 == 0
    B = x.shape[0]

    # Batch tile: multiple of 8, <= max_tile; pad the batch to a multiple of it
    # so the grid never degenerates into a single oversized block.
    tb = min(max_tile, _round_up(B, 8))
    Bp = _round_up(B, tb)
    if Bp != B:
        x = jnp.pad(x, ((0, Bp - B), (0, 0)))  # zero rows, sliced off below
    grid = (Bp // tb,)

    # Batch tile streams (double-buffered); params pinned via constant index_map.
    x_spec = pl.BlockSpec((tb, DIMS[0]), lambda i: (i, 0))
    out_spec = pl.BlockSpec((tb, DIMS[-1]), lambda i: (i, 0))
    param_specs = [pl.BlockSpec(p.shape, lambda i: (0, 0)) for p in params_flat]
    # TODO(synk): single-buffer the pinned params (pipeline_mode=pl.Buffered(1))
    # once verified on the target jax version; saves ~1.4 MiB of VMEM.

    # VMEM budget: x/out double-buffered + (conservatively double-buffered)
    # params + 8 MiB headroom for activations / Mosaic scratch.  Cap at 48 MiB
    # so v7x (64 MiB per TC) keeps slack; v5e/v6e (128 MiB) are unconstrained.
    vmem_need = (
        2 * tb * DIMS[0] * x.dtype.itemsize
        + 2 * tb * DIMS[-1] * 4
        + 2 * sum(int(np.prod(p.shape)) * p.dtype.itemsize for p in params_flat)
        + (8 << 20)
    )
    vmem_limit = int(min(48 << 20, max(24 << 20, vmem_need)))

    out = pl.pallas_call(
        mlp_kernel,
        out_shape=jax.ShapeDtypeStruct((Bp, DIMS[-1]), jnp.float32),
        grid=grid,
        in_specs=[x_spec] + param_specs,
        out_specs=out_spec,
        compiler_params=pltpu.CompilerParams(
            dimension_semantics=("parallel",),  # shard batch tiles across TCs (v7x)
            vmem_limit_bytes=vmem_limit,
        ),
    )(x, *params_flat)

    if Bp != B:
        out = out[:B]
    return out


def init_params(key):
    """Deterministic init mimicking PyTorch Linear (uniform +/- 1/sqrt(fan_in)).
    Weights returned pre-transposed to (in, out); W1 stored in bf16."""
    params = []
    for i in range(N_LAYERS):
        fan_in, fan_out = DIMS[i], DIMS[i + 1]
        key, kw, kb = jax.random.split(key, 3)
        bound = 1.0 / np.sqrt(fan_in)
        w = jax.random.uniform(kw, (fan_in, fan_out), jnp.float32, -bound, bound)
        if i == 0:
            w = w.astype(jnp.bfloat16)  # big weight -> bf16 halves its HBM traffic
        b = jax.random.uniform(kb, (1, fan_out), jnp.float32, -bound, bound)
        params.extend([w, b])
    return params


def reference_forward(x, params_flat):
    """Pure-numpy f32 reference matching the kernel's bf16 layer-1 operands."""
    x_np = np.asarray(jnp.asarray(x, jnp.float32))            # bf16 -> f32
    w1 = np.asarray(jnp.asarray(params_flat[0], jnp.float32))  # bf16 -> f32
    b1 = np.asarray(params_flat[1], dtype=np.float32)
    h = np.maximum(x_np @ w1 + b1, 0.0)
    for i in range(1, N_LAYERS):
        w = np.asarray(params_flat[2 * i], dtype=np.float32)
        b = np.asarray(params_flat[2 * i + 1], dtype=np.float32)
        h = h @ w + b
        if i < N_LAYERS - 1:
            h = np.maximum(h, 0.0)
    m = h.max(axis=-1, keepdims=True)
    lse = np.log(np.exp(h - m).sum(axis=-1, keepdims=True)) + m
    return h - lse


if __name__ == "__main__":
    key = jax.random.PRNGKey(0)
    key, kx = jax.random.split(key)

    # B=48 with a 32-row tile exercises both the multi-step grid (pipelining /
    # megacore path) and the batch-padding + slice-back path (48 -> 64 -> 48).
    B = 48
    x = jax.random.normal(kx, (B, DIMS[0]), dtype=jnp.bfloat16)  # producer emits bf16
    params = init_params(key)

    out = mlp_forward(x, params, max_tile=32)
    out = jax.block_until_ready(out)

    ref = reference_forward(x, params)
    assert out.shape == (B, 3), out.shape
    np.testing.assert_allclose(np.asarray(out), ref, rtol=2e-3, atol=2e-3)

    print("KERNEL_OK")
</pallas_src>

<mosaic_0001>
module attributes {stable_mosaic.version = 11 : i64} {
  func.func @mlp_kernel(%arg0: i32, %arg1: memref<32x10000xbf16, #tpu.memory_space<vmem>>, %arg2: memref<10000x64xbf16, #tpu.memory_space<vmem>>, %arg3: memref<1x64xf32, #tpu.memory_space<vmem>>, %arg4: memref<64x64xf32, #tpu.memory_space<vmem>>, %arg5: memref<1x64xf32, #tpu.memory_space<vmem>>, %arg6: memref<64x64xf32, #tpu.memory_space<vmem>>, %arg7: memref<1x64xf32, #tpu.memory_space<vmem>>, %arg8: memref<64x64xf32, #tpu.memory_space<vmem>>, %arg9: memref<1x64xf32, #tpu.memory_space<vmem>>, %arg10: memref<64x64xf32, #tpu.memory_space<vmem>>, %arg11: memref<1x64xf32, #tpu.memory_space<vmem>>, %arg12: memref<64x64xf32, #tpu.memory_space<vmem>>, %arg13: memref<1x64xf32, #tpu.memory_space<vmem>>, %arg14: memref<64x64xf32, #tpu.memory_space<vmem>>, %arg15: memref<1x64xf32, #tpu.memory_space<vmem>>, %arg16: memref<64x64xf32, #tpu.memory_space<vmem>>, %arg17: memref<1x64xf32, #tpu.memory_space<vmem>>, %arg18: memref<64x64xf32, #tpu.memory_space<vmem>>, %arg19: memref<1x64xf32, #tpu.memory_space<vmem>>, %arg20: memref<64x3xf32, #tpu.memory_space<vmem>>, %arg21: memref<1x3xf32, #tpu.memory_space<vmem>>, %arg22: memref<32x3xf32, #tpu.memory_space<vmem>>) attributes {dimension_semantics = [#tpu.dimension_semantics<parallel>], iteration_bounds = array<i64: 2>, scalar_prefetch = 0 : i64, scratch_operands = 0 : i64, tpu.core_type = #tpu.core_type<tc>, window_params = [{transform_indices = @transform_0, window_bounds = array<i64: 32, 10000>}, {pipeline_mode = #tpu.pipeline_mode<synchronous>, transform_indices = @transform_1, window_bounds = array<i64: 10000, 64>}, {pipeline_mode = #tpu.pipeline_mode<synchronous>, transform_indices = @transform_2, window_bounds = array<i64: 1, 64>}, {pipeline_mode = #tpu.pipeline_mode<synchronous>, transform_indices = @transform_3, window_bounds = array<i64: 64, 64>}, {pipeline_mode = #tpu.pipeline_mode<synchronous>, transform_indices = @transform_4, window_bounds = array<i64: 1, 64>}, {pipeline_mode = #tpu.pipeline_mode<synchronous>, transform_indices = @transform_5, window_bounds = array<i64: 64, 64>}, {pipeline_mode = #tpu.pipeline_mode<synchronous>, transform_indices = @transform_6, window_bounds = array<i64: 1, 64>}, {pipeline_mode = #tpu.pipeline_mode<synchronous>, transform_indices = @transform_7, window_bounds = array<i64: 64, 64>}, {pipeline_mode = #tpu.pipeline_mode<synchronous>, transform_indices = @transform_8, window_bounds = array<i64: 1, 64>}, {pipeline_mode = #tpu.pipeline_mode<synchronous>, transform_indices = @transform_9, window_bounds = array<i64: 64, 64>}, {pipeline_mode = #tpu.pipeline_mode<synchronous>, transform_indices = @transform_10, window_bounds = array<i64: 1, 64>}, {pipeline_mode = #tpu.pipeline_mode<synchronous>, transform_indices = @transform_11, window_bounds = array<i64: 64, 64>}, {pipeline_mode = #tpu.pipeline_mode<synchronous>, transform_indices = @transform_12, window_bounds = array<i64: 1, 64>}, {pipeline_mode = #tpu.pipeline_mode<synchronous>, transform_indices = @transform_13, window_bounds = array<i64: 64, 64>}, {pipeline_mode = #tpu.pipeline_mode<synchronous>, transform_indices = @transform_14, window_bounds = array<i64: 1, 64>}, {pipeline_mode = #tpu.pipeline_mode<synchronous>, transform_indices = @transform_15, window_bounds = array<i64: 64, 64>}, {pipeline_mode = #tpu.pipeline_mode<synchronous>, transform_indices = @transform_16, window_bounds = array<i64: 1, 64>}, {pipeline_mode = #tpu.pipeline_mode<synchronous>, transform_indices = @transform_17, window_bounds = array<i64: 64, 64>}, {pipeline_mode = #tpu.pipeline_mode<synchronous>, transform_indices = @transform_18, window_bounds = array<i64: 1, 64>}, {pipeline_mode = #tpu.pipeline_mode<synchronous>, transform_indices = @transform_19, window_bounds = array<i64: 64, 3>}, {pipeline_mode = #tpu.pipeline_mode<synchronous>, transform_indices = @transform_20, window_bounds = array<i64: 1, 3>}, {transform_indices = @transform_21, window_bounds = array<i64: 32, 3>}]} {
    %c0 = arith.constant 0 : index
    %c0_0 = arith.constant 0 : index
    %0 = vector.load %arg2[%c0, %c0_0] : memref<10000x64xbf16, #tpu.memory_space<vmem>>, vector<10000x64xbf16>
    %c0_1 = arith.constant 0 : index
    %c0_2 = arith.constant 0 : index
    %1 = vector.load %arg3[%c0_1, %c0_2] : memref<1x64xf32, #tpu.memory_space<vmem>>, vector<1x64xf32>
    %c0_3 = arith.constant 0 : index
    %c0_4 = arith.constant 0 : index
    %2 = vector.load %arg1[%c0_3, %c0_4] : memref<32x10000xbf16, #tpu.memory_space<vmem>>, vector<32x10000xbf16>
    %cst = arith.constant dense<0.000000e+00> : vector<32x64xf32>
    %3 = tpu.matmul %2, %0, %cst {dimension_numbers = #tpu.dot_dimension_numbers<[1], [0], [0], [1], [0, 0, 1, 1], [], []>} : vector<32x10000xbf16>, vector<10000x64xbf16>, vector<32x64xf32> -> vector<32x64xf32>
    %4 = vector.broadcast %1 : vector<1x64xf32> to vector<32x64xf32>
    %5 = arith.addf %3, %4 : vector<32x64xf32>
    %cst_5 = arith.constant 0.000000e+00 : f32
    %6 = vector.broadcast %cst_5 : f32 to vector<32x64xf32>
    %7 = arith.maximumf %5, %6 : vector<32x64xf32>
    %c0_6 = arith.constant 0 : index
    %c0_7 = arith.constant 0 : index
    %8 = vector.load %arg4[%c0_6, %c0_7] : memref<64x64xf32, #tpu.memory_space<vmem>>, vector<64x64xf32>
    %c0_8 = arith.constant 0 : index
    %c0_9 = arith.constant 0 : index
    %9 = vector.load %arg5[%c0_8, %c0_9] : memref<1x64xf32, #tpu.memory_space<vmem>>, vector<1x64xf32>
    %cst_10 = arith.constant dense<0.000000e+00> : vector<32x64xf32>
    %10 = tpu.matmul %7, %8, %cst_10 {dimension_numbers = #tpu.dot_dimension_numbers<[1], [0], [0], [1], [0, 0, 1, 1], [], []>} : vector<32x64xf32>, vector<64x64xf32>, vector<32x64xf32> -> vector<32x64xf32>
    %11 = vector.broadcast %9 : vector<1x64xf32> to vector<32x64xf32>
    %12 = arith.addf %10, %11 : vector<32x64xf32>
    %cst_11 = arith.constant 0.000000e+00 : f32
    %13 = vector.broadcast %cst_11 : f32 to vector<32x64xf32>
    %14 = arith.maximumf %12, %13 : vector<32x64xf32>
    %c0_12 = arith.constant 0 : index
    %c0_13 = arith.constant 0 : index
    %15 = vector.load %arg6[%c0_12, %c0_13] : memref<64x64xf32, #tpu.memory_space<vmem>>, vector<64x64xf32>
    %c0_14 = arith.constant 0 : index
    %c0_15 = arith.constant 0 : index
    %16 = vector.load %arg7[%c0_14, %c0_15] : memref<1x64xf32, #tpu.memory_space<vmem>>, vector<1x64xf32>
    %cst_16 = arith.constant dense<0.000000e+00> : vector<32x64xf32>
    %17 = tpu.matmul %14, %15, %cst_16 {dimension_numbers = #tpu.dot_dimension_numbers<[1], [0], [0], [1], [0, 0, 1, 1], [], []>} : vector<32x64xf32>, vector<64x64xf32>, vector<32x64xf32> -> vector<32x64xf32>
    %18 = vector.broadcast %16 : vector<1x64xf32> to vector<32x64xf32>
    %19 = arith.addf %17, %18 : vector<32x64xf32>
    %cst_17 = arith.constant 0.000000e+00 : f32
    %20 = vector.broadcast %cst_17 : f32 to vector<32x64xf32>
    %21 = arith.maximumf %19, %20 : vector<32x64xf32>
    %c0_18 = arith.constant 0 : index
    %c0_19 = arith.constant 0 : index
    %22 = vector.load %arg8[%c0_18, %c0_19] : memref<64x64xf32, #tpu.memory_space<vmem>>, vector<64x64xf32>
    %c0_20 = arith.constant 0 : index
    %c0_21 = arith.constant 0 : index
    %23 = vector.load %arg9[%c0_20, %c0_21] : memref<1x64xf32, #tpu.memory_space<vmem>>, vector<1x64xf32>
    %cst_22 = arith.constant dense<0.000000e+00> : vector<32x64xf32>
    %24 = tpu.matmul %21, %22, %cst_22 {dimension_numbers = #tpu.dot_dimension_numbers<[1], [0], [0], [1], [0, 0, 1, 1], [], []>} : vector<32x64xf32>, vector<64x64xf32>, vector<32x64xf32> -> vector<32x64xf32>
    %25 = vector.broadcast %23 : vector<1x64xf32> to vector<32x64xf32>
    %26 = arith.addf %24, %25 : vector<32x64xf32>
    %cst_23 = arith.constant 0.000000e+00 : f32
    %27 = vector.broadcast %cst_23 : f32 to vector<32x64xf32>
    %28 = arith.maximumf %26, %27 : vector<32x64xf32>
    %c0_24 = arith.constant 0 : index
    %c0_25 = arith.constant 0 : index
    %29 = vector.load %arg10[%c0_24, %c0_25] : memref<64x64xf32, #tpu.memory_space<vmem>>, vector<64x64xf32>
    %c0_26 = arith.constant 0 : index
    %c0_27 = arith.constant 0 : index
    %30 = vector.load %arg11[%c0_26, %c0_27] : memref<1x64xf32, #tpu.memory_space<vmem>>, vector<1x64xf32>
    %cst_28 = arith.constant dense<0.000000e+00> : vector<32x64xf32>
    %31 = tpu.matmul %28, %29, %cst_28 {dimension_numbers = #tpu.dot_dimension_numbers<[1], [0], [0], [1], [0, 0, 1, 1], [], []>} : vector<32x64xf32>, vector<64x64xf32>, vector<32x64xf32> -> vector<32x64xf32>
    %32 = vector.broadcast %30 : vector<1x64xf32> to vector<32x64xf32>
    %33 = arith.addf %31, %32 : vector<32x64xf32>
    %cst_29 = arith.constant 0.000000e+00 : f32
    %34 = vector.broadcast %cst_29 : f32 to vector<32x64xf32>
    %35 = arith.maximumf %33, %34 : vector<32x64xf32>
    %c0_30 = arith.constant 0 : index
    %c0_31 = arith.constant 0 : index
    %36 = vector.load %arg12[%c0_30, %c0_31] : memref<64x64xf32, #tpu.memory_space<vmem>>, vector<64x64xf32>
    %c0_32 = arith.constant 0 : index
    %c0_33 = arith.constant 0 : index
    %37 = vector.load %arg13[%c0_32, %c0_33] : memref<1x64xf32, #tpu.memory_space<vmem>>, vector<1x64xf32>
    %cst_34 = arith.constant dense<0.000000e+00> : vector<32x64xf32>
    %38 = tpu.matmul %35, %36, %cst_34 {dimension_numbers = #tpu.dot_dimension_numbers<[1], [0], [0], [1], [0, 0, 1, 1], [], []>} : vector<32x64xf32>, vector<64x64xf32>, vector<32x64xf32> -> vector<32x64xf32>
    %39 = vector.broadcast %37 : vector<1x64xf32> to vector<32x64xf32>
    %40 = arith.addf %38, %39 : vector<32x64xf32>
    %cst_35 = arith.constant 0.000000e+00 : f32
    %41 = vector.broadcast %cst_35 : f32 to vector<32x64xf32>
    %42 = arith.maximumf %40, %41 : vector<32x64xf32>
    %c0_36 = arith.constant 0 : index
    %c0_37 = arith.constant 0 : index
    %43 = vector.load %arg14[%c0_36, %c0_37] : memref<64x64xf32, #tpu.memory_space<vmem>>, vector<64x64xf32>
    %c0_38 = arith.constant 0 : index
    %c0_39 = arith.constant 0 : index
    %44 = vector.load %arg15[%c0_38, %c0_39] : memref<1x64xf32, #tpu.memory_space<vmem>>, vector<1x64xf32>
    %cst_40 = arith.constant dense<0.000000e+00> : vector<32x64xf32>
    %45 = tpu.matmul %42, %43, %cst_40 {dimension_numbers = #tpu.dot_dimension_numbers<[1], [0], [0], [1], [0, 0, 1, 1], [], []>} : vector<32x64xf32>, vector<64x64xf32>, vector<32x64xf32> -> vector<32x64xf32>
    %46 = vector.broadcast %44 : vector<1x64xf32> to vector<32x64xf32>
    %47 = arith.addf %45, %46 : vector<32x64xf32>
    %cst_41 = arith.constant 0.000000e+00 : f32
    %48 = vector.broadcast %cst_41 : f32 to vector<32x64xf32>
    %49 = arith.maximumf %47, %48 : vector<32x64xf32>
    %c0_42 = arith.constant 0 : index
    %c0_43 = arith.constant 0 : index
    %50 = vector.load %arg16[%c0_42, %c0_43] : memref<64x64xf32, #tpu.memory_space<vmem>>, vector<64x64xf32>
    %c0_44 = arith.constant 0 : index
    %c0_45 = arith.constant 0 : index
    %51 = vector.load %arg17[%c0_44, %c0_45] : memref<1x64xf32, #tpu.memory_space<vmem>>, vector<1x64xf32>
    %cst_46 = arith.constant dense<0.000000e+00> : vector<32x64xf32>
    %52 = tpu.matmul %49, %50, %cst_46 {dimension_numbers = #tpu.dot_dimension_numbers<[1], [0], [0], [1], [0, 0, 1, 1], [], []>} : vector<32x64xf32>, vector<64x64xf32>, vector<32x64xf32> -> vector<32x64xf32>
    %53 = vector.broadcast %51 : vector<1x64xf32> to vector<32x64xf32>
    %54 = arith.addf %52, %53 : vector<32x64xf32>
    %cst_47 = arith.constant 0.000000e+00 : f32
    %55 = vector.broadcast %cst_47 : f32 to vector<32x64xf32>
    %56 = arith.maximumf %54, %55 : vector<32x64xf32>
    %c0_48 = arith.constant 0 : index
    %c0_49 = arith.constant 0 : index
    %57 = vector.load %arg18[%c0_48, %c0_49] : memref<64x64xf32, #tpu.memory_space<vmem>>, vector<64x64xf32>
    %c0_50 = arith.constant 0 : index
    %c0_51 = arith.constant 0 : index
    %58 = vector.load %arg19[%c0_50, %c0_51] : memref<1x64xf32, #tpu.memory_space<vmem>>, vector<1x64xf32>
    %cst_52 = arith.constant dense<0.000000e+00> : vector<32x64xf32>
    %59 = tpu.matmul %56, %57, %cst_52 {dimension_numbers = #tpu.dot_dimension_numbers<[1], [0], [0], [1], [0, 0, 1, 1], [], []>} : vector<32x64xf32>, vector<64x64xf32>, vector<32x64xf32> -> vector<32x64xf32>
    %60 = vector.broadcast %58 : vector<1x64xf32> to vector<32x64xf32>
    %61 = arith.addf %59, %60 : vector<32x64xf32>
    %cst_53 = arith.constant 0.000000e+00 : f32
    %62 = vector.broadcast %cst_53 : f32 to vector<32x64xf32>
    %63 = arith.maximumf %61, %62 : vector<32x64xf32>
    %c0_54 = arith.constant 0 : index
    %c0_55 = arith.constant 0 : index
    %64 = vector.load %arg20[%c0_54, %c0_55] : memref<64x3xf32, #tpu.memory_space<vmem>>, vector<64x3xf32>
    %c0_56 = arith.constant 0 : index
    %c0_57 = arith.constant 0 : index
    %65 = vector.load %arg21[%c0_56, %c0_57] : memref<1x3xf32, #tpu.memory_space<vmem>>, vector<1x3xf32>
    %cst_58 = arith.constant dense<0.000000e+00> : vector<32x3xf32>
    %66 = tpu.matmul %63, %64, %cst_58 {dimension_numbers = #tpu.dot_dimension_numbers<[1], [0], [0], [1], [0, 0, 1, 1], [], []>} : vector<32x64xf32>, vector<64x3xf32>, vector<32x3xf32> -> vector<32x3xf32>
    %67 = vector.broadcast %65 : vector<1x3xf32> to vector<32x3xf32>
    %68 = arith.addf %66, %67 : vector<32x3xf32>
    %cst_59 = arith.constant dense<0xFF800000> : vector<32xf32>
    %69 = vector.multi_reduction <maximumf>, %68, %cst_59 [1] : vector<32x3xf32> to vector<32xf32>
    %70 = vector.shape_cast %69 : vector<32xf32> to vector<32x1xf32>
    %71 = vector.broadcast %70 : vector<32x1xf32> to vector<32x3xf32>
    %72 = arith.subf %68, %71 : vector<32x3xf32>
    %73 = math.exp %72 : vector<32x3xf32>
    %cst_60 = arith.constant dense<0.000000e+00> : vector<32xf32>
    %74 = vector.multi_reduction <add>, %73, %cst_60 [1] : vector<32x3xf32> to vector<32xf32>
    %75 = vector.shape_cast %74 : vector<32xf32> to vector<32x1xf32>
    %76 = math.log %75 : vector<32x1xf32>
    %77 = arith.addf %76, %70 : vector<32x1xf32>
    %78 = vector.broadcast %77 : vector<32x1xf32> to vector<32x3xf32>
    %79 = arith.subf %68, %78 : vector<32x3xf32>
    %c0_61 = arith.constant 0 : index
    %c0_62 = arith.constant 0 : index
    %80 = vector.load %arg22[%c0_61, %c0_62] : memref<32x3xf32, #tpu.memory_space<vmem>>, vector<32x3xf32>
    tpu.vector_store %arg22[%c0_61, %c0_62], %79 {strides = array<i32>} : memref<32x3xf32, #tpu.memory_space<vmem>>, vector<32x3xf32>,
    return
  }
  func.func @transform_0(%arg0: i32) -> (i32, i32) {
    %c0_i32 = arith.constant 0 : i32
    %c0_i32_0 = arith.constant 0 : i32
    return %arg0, %c0_i32 : i32, i32
  }
  func.func @transform_1(%arg0: i32) -> (i32, i32) {
    %c0_i32 = arith.constant 0 : i32
    %c0_i32_0 = arith.constant 0 : i32
    %c0_i32_1 = arith.constant 0 : i32
    return %c0_i32, %c0_i32_0 : i32, i32
  }
  func.func @transform_2(%arg0: i32) -> (i32, i32) {
    %c0_i32 = arith.constant 0 : i32
    %c0_i32_0 = arith.constant 0 : i32
    %c0_i32_1 = arith.constant 0 : i32
    return %c0_i32, %c0_i32_0 : i32, i32
  }
  func.func @transform_3(%arg0: i32) -> (i32, i32) {
    %c0_i32 = arith.constant 0 : i32
    %c0_i32_0 = arith.constant 0 : i32
    %c0_i32_1 = arith.constant 0 : i32
    return %c0_i32, %c0_i32_0 : i32, i32
  }
  func.func @transform_4(%arg0: i32) -> (i32, i32) {
    %c0_i32 = arith.constant 0 : i32
    %c0_i32_0 = arith.constant 0 : i32
    %c0_i32_1 = arith.constant 0 : i32
    return %c0_i32, %c0_i32_0 : i32, i32
  }
  func.func @transform_5(%arg0: i32) -> (i32, i32) {
    %c0_i32 = arith.constant 0 : i32
    %c0_i32_0 = arith.constant 0 : i32
    %c0_i32_1 = arith.constant 0 : i32
    return %c0_i32, %c0_i32_0 : i32, i32
  }
  func.func @transform_6(%arg0: i32) -> (i32, i32) {
    %c0_i32 = arith.constant 0 : i32
    %c0_i32_0 = arith.constant 0 : i32
    %c0_i32_1 = arith.constant 0 : i32
    return %c0_i32, %c0_i32_0 : i32, i32
  }
  func.func @transform_7(%arg0: i32) -> (i32, i32) {
    %c0_i32 = arith.constant 0 : i32
    %c0_i32_0 = arith.constant 0 : i32
    %c0_i32_1 = arith.constant 0 : i32
    return %c0_i32, %c0_i32_0 : i32, i32
  }
  func.func @transform_8(%arg0: i32) -> (i32, i32) {
    %c0_i32 = arith.constant 0 : i32
    %c0_i32_0 = arith.constant 0 : i32
    %c0_i32_1 = arith.constant 0 : i32
    return %c0_i32, %c0_i32_0 : i32, i32
  }
  func.func @transform_9(%arg0: i32) -> (i32, i32) {
    %c0_i32 = arith.constant 0 : i32
    %c0_i32_0 = arith.constant 0 : i32
    %c0_i32_1 = arith.constant 0 : i32
    return %c0_i32, %c0_i32_0 : i32, i32
  }
  func.func @transform_10(%arg0: i32) -> (i32, i32) {
    %c0_i32 = arith.constant 0 : i32
    %c0_i32_0 = arith.constant 0 : i32
    %c0_i32_1 = arith.constant 0 : i32
    return %c0_i32, %c0_i32_0 : i32, i32
  }
  func.func @transform_11(%arg0: i32) -> (i32, i32) {
    %c0_i32 = arith.constant 0 : i32
    %c0_i32_0 = arith.constant 0 : i32
    %c0_i32_1 = arith.constant 0 : i32
    return %c0_i32, %c0_i32_0 : i32, i32
  }
  func.func @transform_12(%arg0: i32) -> (i32, i32) {
    %c0_i32 = arith.constant 0 : i32
    %c0_i32_0 = arith.constant 0 : i32
    %c0_i32_1 = arith.constant 0 : i32
    return %c0_i32, %c0_i32_0 : i32, i32
  }
  func.func @transform_13(%arg0: i32) -> (i32, i32) {
    %c0_i32 = arith.constant 0 : i32
    %c0_i32_0 = arith.constant 0 : i32
    %c0_i32_1 = arith.constant 0 : i32
    return %c0_i32, %c0_i32_0 : i32, i32
  }
  func.func @transform_14(%arg0: i32) -> (i32, i32) {
    %c0_i32 = arith.constant 0 : i32
    %c0_i32_0 = arith.constant 0 : i32
    %c0_i32_1 = arith.constant 0 : i32
    return %c0_i32, %c0_i32_0 : i32, i32
  }
  func.func @transform_15(%arg0: i32) -> (i32, i32) {
    %c0_i32 = arith.constant 0 : i32
    %c0_i32_0 = arith.constant 0 : i32
    %c0_i32_1 = arith.constant 0 : i32
    return %c0_i32, %c0_i32_0 : i32, i32
  }
  func.func @transform_16(%arg0: i32) -> (i32, i32) {
    %c0_i32 = arith.constant 0 : i32
    %c0_i32_0 = arith.constant 0 : i32
    %c0_i32_1 = arith.constant 0 : i32
    return %c0_i32, %c0_i32_0 : i32, i32
  }
  func.func @transform_17(%arg0: i32) -> (i32, i32) {
    %c0_i32 = arith.constant 0 : i32
    %c0_i32_0 = arith.constant 0 : i32
    %c0_i32_1 = arith.constant 0 : i32
    return %c0_i32, %c0_i32_0 : i32, i32
  }
  func.func @transform_18(%arg0: i32) -> (i32, i32) {
    %c0_i32 = arith.constant 0 : i32
    %c0_i32_0 = arith.constant 0 : i32
    %c0_i32_1 = arith.constant 0 : i32
    return %c0_i32, %c0_i32_0 : i32, i32
  }
  func.func @transform_19(%arg0: i32) -> (i32, i32) {
    %c0_i32 = arith.constant 0 : i32
    %c0_i32_0 = arith.constant 0 : i32
    %c0_i32_1 = arith.constant 0 : i32
    return %c0_i32, %c0_i32_0 : i32, i32
  }
  func.func @transform_20(%arg0: i32) -> (i32, i32) {
    %c0_i32 = arith.constant 0 : i32
    %c0_i32_0 = arith.constant 0 : i32
    %c0_i32_1 = arith.constant 0 : i32
    return %c0_i32, %c0_i32_0 : i32, i32
  }
  func.func @transform_21(%arg0: i32) -> (i32, i32) {
    %c0_i32 = arith.constant 0 : i32
    %c0_i32_0 = arith.constant 0 : i32
    return %arg0, %c0_i32 : i32, i32
  }
}

</mosaic_0001>

<llo_original>
// kernel: mlp_forward.1
$region0: #{mlp_forward.1}
  #allocation0 [shape = 'u32[]', space=smem, size = 0x4, offset = 0x4, fixed_abs, tag = 'smem constant byte address 0x4 - core index']
  #allocation1 [shape = 'u32[144,128]{1,0:T(1,128)}', space=vmem, size = 0x12000, scoped, tag = 'internal scratch']
  %s0 = inlined_call_operand.vmem [shape: bf16[64,10000], index: 0, kind: input, shape index: {}]
  %s1 = inlined_call_operand.vmem [shape: bf16[10000,64], index: 1, kind: input, shape index: {}]
  %s2 = inlined_call_operand.vmem [shape: f32[1,64], index: 2, kind: input, shape index: {}]
  %s3 = inlined_call_operand.vmem [shape: f32[64,64], index: 3, kind: input, shape index: {}]
  %s4 = inlined_call_operand.vmem [shape: f32[1,64], index: 4, kind: input, shape index: {}]
  %s5 = inlined_call_operand.vmem [shape: f32[64,64], index: 5, kind: input, shape index: {}]
  %s6 = inlined_call_operand.vmem [shape: f32[1,64], index: 6, kind: input, shape index: {}]
  %s7 = inlined_call_operand.vmem [shape: f32[64,64], index: 7, kind: input, shape index: {}]
  %s8 = inlined_call_operand.vmem [shape: f32[1,64], index: 8, kind: input, shape index: {}]
  %s9 = inlined_call_operand.vmem [shape: f32[64,64], index: 9, kind: input, shape index: {}]
  %s10 = inlined_call_operand.vmem [shape: f32[1,64], index: 10, kind: input, shape index: {}]
  %s11 = inlined_call_operand.vmem [shape: f32[64,64], index: 11, kind: input, shape index: {}]
  %s12 = inlined_call_operand.vmem [shape: f32[1,64], index: 12, kind: input, shape index: {}]
  %s13 = inlined_call_operand.vmem [shape: f32[64,64], index: 13, kind: input, shape index: {}]
  %s14 = inlined_call_operand.vmem [shape: f32[1,64], index: 14, kind: input, shape index: {}]
  %s15 = inlined_call_operand.vmem [shape: f32[64,64], index: 15, kind: input, shape index: {}]
  %s16 = inlined_call_operand.vmem [shape: f32[1,64], index: 16, kind: input, shape index: {}]
  %s17 = inlined_call_operand.vmem [shape: f32[64,64], index: 17, kind: input, shape index: {}]
  %s18 = inlined_call_operand.vmem [shape: f32[1,64], index: 18, kind: input, shape index: {}]
  %s19 = inlined_call_operand.vmem [shape: f32[64,3], index: 19, kind: input, shape index: {}]
  %s20 = inlined_call_operand.vmem [shape: f32[1,3], index: 20, kind: input, shape index: {}]
  %s21 = inlined_call_operand.vmem [shape: f32[64,3], index: 21, kind: output, shape index: {}]
  %s22 = sld [smem:[#allocation0]]
  $region117: #{mlp_forward.1} parent=0
    _
  %s24 = ssub.s32 1, %s22
  %s25 = scalar_select 0, %s24, %s22
  loop: start=0, step=1, limit=4
  $region2: #{mlp_forward.1} parent=0 // loop_pre_header
    _
  $region3: #{mlp_forward.1} parent=0 // loop_header
    %s27 = sphi 0, %s31
    %p28 = scmp.ge.s32.totalorder %s27, 4
    %s37 = sphi 0, %s39
    %s40 = sphi 0, %s37
    %s41 = sphi 0, %s40
    %s57 = sphi 0, %s41
    %s61 = sphi 0, %s61
    %s63 = sphi 0, %s61
    %s64 = sphi 0, %s63
    %s78 = sphi 0, %s64
    %s82 = sphi 0, %s82
    %s84 = sphi 0, %s82
    %s85 = sphi 0, %s84
    %s99 = sphi 0, %s85
    %s103 = sphi 0, %s103
    %s105 = sphi 0, %s103
    %s106 = sphi 0, %s105
    %s120 = sphi 0, %s106
    %s124 = sphi 0, %s124
    %s126 = sphi 0, %s124
    %s127 = sphi 0, %s126
    %s141 = sphi 0, %s127
    %s145 = sphi 0, %s145
    %s147 = sphi 0, %s145
    %s148 = sphi 0, %s147
    %s162 = sphi 0, %s148
    %s166 = sphi 0, %s166
    %s168 = sphi 0, %s166
    %s169 = sphi 0, %s168
    %s183 = sphi 0, %s169
    %s187 = sphi 0, %s187
    %s189 = sphi 0, %s187
    %s190 = sphi 0, %s189
    %s204 = sphi 0, %s190
    %s208 = sphi 0, %s208
    %s210 = sphi 0, %s208
    %s211 = sphi 0, %s210
    %s225 = sphi 0, %s211
    %s229 = sphi 0, %s229
    %s231 = sphi 0, %s229
    %s232 = sphi 0, %s231
    %s246 = sphi 0, %s232
    %s250 = sphi 0, %s250
    %s252 = sphi 0, %s250
    %s253 = sphi 0, %s252
    %s267 = sphi 0, %s253
    %s271 = sphi 0, %s271
    %s273 = sphi 0, %s271
    %s274 = sphi 0, %s273
    %s288 = sphi 0, %s274
    %s292 = sphi 0, %s292
    %s294 = sphi 0, %s292
    %s295 = sphi 0, %s294
    %s309 = sphi 0, %s295
    %s313 = sphi 0, %s313
    %s315 = sphi 0, %s313
    %s316 = sphi 0, %s315
    %s330 = sphi 0, %s316
    %s334 = sphi 0, %s334
    %s336 = sphi 0, %s334
    %s337 = sphi 0, %s336
    %s351 = sphi 0, %s337
    %s355 = sphi 0, %s355
    %s357 = sphi 0, %s355
    %s358 = sphi 0, %s357
    %s372 = sphi 0, %s358
    %s376 = sphi 0, %s376
    %s378 = sphi 0, %s376
    %s379 = sphi 0, %s378
    %s393 = sphi 0, %s379
    %s397 = sphi 0, %s397
    %s399 = sphi 0, %s397
    %s400 = sphi 0, %s399
    %s414 = sphi 0, %s400
    %s418 = sphi 0, %s418
    %s420 = sphi 0, %s418
    %s421 = sphi 0, %s420
    %s435 = sphi 0, %s421
    %s439 = sphi 0, %s439
    %s441 = sphi 0, %s439
    %s442 = sphi 0, %s441
    %s456 = sphi 0, %s442
    %s460 = sphi 0, %s460
    %s462 = sphi 0, %s460
    %s463 = sphi 0, %s462
    %s477 = sphi 0, %s463
    %s483 = sphi 0, %s485
    %s486 = sphi 0, %s483
    %s487 = sphi 0, %s486
    %s503 = sphi 0, %s487
  $region4: #{mlp_forward.1} parent=0 // loop_header_branch
    %30 = sbr.rel (%p28) target = $region8
  $region5: #{mlp_forward.1} parent=0 // loop_body
    %s32 = ssub.s32 %s27, 1
    %s33 = ssub.s32 %s27, 2
    %s34 = sadd.s32 %s27, 1
    %s35 = ssub.s32 %s27, %s34
    %p36 = scmp.eq.s32.totalorder %s35, 0
    %s38 = sadd.s32 %s37, 1
    %s39 = scalar_select %p36, %s37, %s38
    %p42 = pneg %p36
    %p43 = scmp.eq.s32.totalorder %s27, 1
    %p44 = por %p42, %p43
    %p45 = scmp.ne.s32.totalorder %s37, %s40
    %p46 = scmp.eq.s32.totalorder %s27, 0
    %p47 = por %p45, %p46
    %p48 = scmp.ne.s32.totalorder %s37, %s40
    %p49 = scmp.eq.s32.totalorder %s32, 1
    %p50 = por %p48, %p49
    %p51 = scmp.ne.s32.totalorder %s40, %s41
    %p52 = scmp.eq.s32.totalorder %s32, 0
    %p53 = por %p51, %p52
    %p54 = scmp.ne.s32.totalorder %s40, %s41
    %p55 = scmp.eq.s32.totalorder %s33, 1
    %p56 = por %p54, %p55
    %p58 = scmp.ne.s32.totalorder %s41, %s57
    %p59 = scmp.eq.s32.totalorder %s33, 0
    %p60 = por %p58, %p59
    %s62 = sadd.s32 %s61, 1
    %p65 = scmp.eq.s32.totalorder %s27, 1
    %p66 = scmp.ne.s32.totalorder %s61, %s63
    %p67 = scmp.eq.s32.totalorder %s27, 0
    %p68 = por %p66, %p67
    %p69 = scmp.ne.s32.totalorder %s61, %s63
    %p70 = scmp.eq.s32.totalorder %s32, 1
    %p71 = por %p69, %p70
    %p72 = scmp.ne.s32.totalorder %s63, %s64
    %p73 = scmp.eq.s32.totalorder %s32, 0
    %p74 = por %p72, %p73
    %p75 = scmp.ne.s32.totalorder %s63, %s64
    %p76 = scmp.eq.s32.totalorder %s33, 1
    %p77 = por %p75, %p76
    %p79 = scmp.ne.s32.totalorder %s64, %s78
    %p80 = scmp.eq.s32.totalorder %s33, 0
    %p81 = por %p79, %p80
    %s83 = sadd.s32 %s82, 1
    %p86 = scmp.eq.s32.totalorder %s27, 1
    %p87 = scmp.ne.s32.totalorder %s82, %s84
    %p88 = scmp.eq.s32.totalorder %s27, 0
    %p89 = por %p87, %p88
    %p90 = scmp.ne.s32.totalorder %s82, %s84
    %p91 = scmp.eq.s32.totalorder %s32, 1
    %p92 = por %p90, %p91
    %p93 = scmp.ne.s32.totalorder %s84, %s85
    %p94 = scmp.eq.s32.totalorder %s32, 0
    %p95 = por %p93, %p94
    %p96 = scmp.ne.s32.totalorder %s84, %s85
    %p97 = scmp.eq.s32.totalorder %s33, 1
    %p98 = por %p96, %p97
    %p100 = scmp.ne.s32.totalorder %s85, %s99
    %p101 = scmp.eq.s32.totalorder %s33, 0
    %p102 = por %p100, %p101
    %s104 = sadd.s32 %s103, 1
    %p107 = scmp.eq.s32.totalorder %s27, 1
    %p108 = scmp.ne.s32.totalorder %s103, %s105
    %p109 = scmp.eq.s32.totalorder %s27, 0
    %p110 = por %p108, %p109
    %p111 = scmp.ne.s32.totalorder %s103, %s105
    %p112 = scmp.eq.s32.totalorder %s32, 1
    %p113 = por %p111, %p112
    %p114 = scmp.ne.s32.totalorder %s105, %s106
    %p115 = scmp.eq.s32.totalorder %s32, 0
    %p116 = por %p114, %p115
    %p117 = scmp.ne.s32.totalorder %s105, %s106
    %p118 = scmp.eq.s32.totalorder %s33, 1
    %p119 = por %p117, %p118
    %p121 = scmp.ne.s32.totalorder %s106, %s120
    %p122 = scmp.eq.s32.totalorder %s33, 0
    %p123 = por %p121, %p122
    %s125 = sadd.s32 %s124, 1
    %p128 = scmp.eq.s32.totalorder %s27, 1
    %p129 = scmp.ne.s32.totalorder %s124, %s126
    %p130 = scmp.eq.s32.totalorder %s27, 0
    %p131 = por %p129, %p130
    %p132 = scmp.ne.s32.totalorder %s124, %s126
    %p133 = scmp.eq.s32.totalorder %s32, 1
    %p134 = por %p132, %p133
    %p135 = scmp.ne.s32.totalorder %s126, %s127
    %p136 = scmp.eq.s32.totalorder %s32, 0
    %p137 = por %p135, %p136
    %p138 = scmp.ne.s32.totalorder %s126, %s127
    %p139 = scmp.eq.s32.totalorder %s33, 1
    %p140 = por %p138, %p139
    %p142 = scmp.ne.s32.totalorder %s127, %s141
    %p143 = scmp.eq.s32.totalorder %s33, 0
    %p144 = por %p142, %p143
    %s146 = sadd.s32 %s145, 1
    %p149 = scmp.eq.s32.totalorder %s27, 1
    %p150 = scmp.ne.s32.totalorder %s145, %s147
    %p151 = scmp.eq.s32.totalorder %s27, 0
    %p152 = por %p150, %p151
    %p153 = scmp.ne.s32.totalorder %s145, %s147
    %p154 = scmp.eq.s32.totalorder %s32, 1
    %p155 = por %p153, %p154
    %p156 = scmp.ne.s32.totalorder %s147, %s148
    %p157 = scmp.eq.s32.totalorder %s32, 0
    %p158 = por %p156, %p157
    %p159 = scmp.ne.s32.totalorder %s147, %s148
    %p160 = scmp.eq.s32.totalorder %s33, 1
    %p161 = por %p159, %p160
    %p163 = scmp.ne.s32.totalorder %s148, %s162
    %p164 = scmp.eq.s32.totalorder %s33, 0
    %p165 = por %p163, %p164
    %s167 = sadd.s32 %s166, 1
    %p170 = scmp.eq.s32.totalorder %s27, 1
    %p171 = scmp.ne.s32.totalorder %s166, %s168
    %p172 = scmp.eq.s32.totalorder %s27, 0
    %p173 = por %p171, %p172
    %p174 = scmp.ne.s32.totalorder %s166, %s168
    %p175 = scmp.eq.s32.totalorder %s32, 1
    %p176 = por %p174, %p175
    %p177 = scmp.ne.s32.totalorder %s168, %s169
    %p178 = scmp.eq.s32.totalorder %s32, 0
    %p179 = por %p177, %p178
    %p180 = scmp.ne.s32.totalorder %s168, %s169
    %p181 = scmp.eq.s32.totalorder %s33, 1
    %p182 = por %p180, %p181
    %p184 = scmp.ne.s32.totalorder %s169, %s183
    %p185 = scmp.eq.s32.totalorder %s33, 0
    %p186 = por %p184, %p185
    %s188 = sadd.s32 %s187, 1
    %p191 = scmp.eq.s32.totalorder %s27, 1
    %p192 = scmp.ne.s32.totalorder %s187, %s189
    %p193 = scmp.eq.s32.totalorder %s27, 0
    %p194 = por %p192, %p193
    %p195 = scmp.ne.s32.totalorder %s187, %s189
    %p196 = scmp.eq.s32.totalorder %s32, 1
    %p197 = por %p195, %p196
    %p198 = scmp.ne.s32.totalorder %s189, %s190
    %p199 = scmp.eq.s32.totalorder %s32, 0
    %p200 = por %p198, %p199
    %p201 = scmp.ne.s32.totalorder %s189, %s190
    %p202 = scmp.eq.s32.totalorder %s33, 1
    %p203 = por %p201, %p202
    %p205 = scmp.ne.s32.totalorder %s190, %s204
    %p206 = scmp.eq.s32.totalorder %s33, 0
    %p207 = por %p205, %p206
    %s209 = sadd.s32 %s208, 1
    %p212 = scmp.eq.s32.totalorder %s27, 1
    %p213 = scmp.ne.s32.totalorder %s208, %s210
    %p214 = scmp.eq.s32.totalorder %s27, 0
    %p215 = por %p213, %p214
    %p216 = scmp.ne.s32.totalorder %s208, %s210
    %p217 = scmp.eq.s32.totalorder %s32, 1
    %p218 = por %p216, %p217
    %p219 = scmp.ne.s32.totalorder %s210, %s211
    %p220 = scmp.eq.s32.totalorder %s32, 0
    %p221 = por %p219, %p220
    %p222 = scmp.ne.s32.totalorder %s210, %s211
    %p223 = scmp.eq.s32.totalorder %s33, 1
    %p224 = por %p222, %p223
    %p226 = scmp.ne.s32.totalorder %s211, %s225
    %p227 = scmp.eq.s32.totalorder %s33, 0
    %p228 = por %p226, %p227
    %s230 = sadd.s32 %s229, 1
    %p233 = scmp.eq.s32.totalorder %s27, 1
    %p234 = scmp.ne.s32.totalorder %s229, %s231
    %p235 = scmp.eq.s32.totalorder %s27, 0
    %p236 = por %p234, %p235
    %p237 = scmp.ne.s32.totalorder %s229, %s231
    %p238 = scmp.eq.s32.totalorder %s32, 1
    %p239 = por %p237, %p238
    %p240 = scmp.ne.s32.totalorder %s231, %s232
    %p241 = scmp.eq.s32.totalorder %s32, 0
    %p242 = por %p240, %p241
    %p243 = scmp.ne.s32.totalorder %s231, %s232
    %p244 = scmp.eq.s32.totalorder %s33, 1
    %p245 = por %p243, %p244
    %p247 = scmp.ne.s32.totalorder %s232, %s246
    %p248 = scmp.eq.s32.totalorder %s33, 0
    %p249 = por %p247, %p248
    %s251 = sadd.s32 %s250, 1
    %p254 = scmp.eq.s32.totalorder %s27, 1
    %p255 = scmp.ne.s32.totalorder %s250, %s252
    %p256 = scmp.eq.s32.totalorder %s27, 0
    %p257 = por %p255, %p256
    %p258 = scmp.ne.s32.totalorder %s250, %s252
    %p259 = scmp.eq.s32.totalorder %s32, 1
    %p260 = por %p258, %p259
    %p261 = scmp.ne.s32.totalorder %s252, %s253
    %p262 = scmp.eq.s32.totalorder %s32, 0
    %p263 = por %p261, %p262
    %p264 = scmp.ne.s32.totalorder %s252, %s253
    %p265 = scmp.eq.s32.totalorder %s33, 1
    %p266 = por %p264, %p265
    %p268 = scmp.ne.s32.totalorder %s253, %s267
    %p269 = scmp.eq.s32.totalorder %s33, 0
    %p270 = por %p268, %p269
    %s272 = sadd.s32 %s271, 1
    %p275 = scmp.eq.s32.totalorder %s27, 1
    %p276 = scmp.ne.s32.totalorder %s271, %s273
    %p277 = scmp.eq.s32.totalorder %s27, 0
    %p278 = por %p276, %p277
    %p279 = scmp.ne.s32.totalorder %s271, %s273
    %p280 = scmp.eq.s32.totalorder %s32, 1
    %p281 = por %p279, %p280
    %p282 = scmp.ne.s32.totalorder %s273, %s274
    %p283 = scmp.eq.s32.totalorder %s32, 0
    %p284 = por %p282, %p283
    %p285 = scmp.ne.s32.totalorder %s273, %s274
    %p286 = scmp.eq.s32.totalorder %s33, 1
    %p287 = por %p285, %p286
    %p289 = scmp.ne.s32.totalorder %s274, %s288
    %p290 = scmp.eq.s32.totalorder %s33, 0
    %p291 = por %p289, %p290
    %s293 = sadd.s32 %s292, 1
    %p296 = scmp.eq.s32.totalorder %s27, 1
    %p297 = scmp.ne.s32.totalorder %s292, %s294
    %p298 = scmp.eq.s32.totalorder %s27, 0
    %p299 = por %p297, %p298
    %p300 = scmp.ne.s32.totalorder %s292, %s294
    %p301 = scmp.eq.s32.totalorder %s32, 1
    %p302 = por %p300, %p301
    %p303 = scmp.ne.s32.totalorder %s294, %s295
    %p304 = scmp.eq.s32.totalorder %s32, 0
    %p305 = por %p303, %p304
    %p306 = scmp.ne.s32.totalorder %s294, %s295
    %p307 = scmp.eq.s32.totalorder %s33, 1
    %p308 = por %p306, %p307
    %p310 = scmp.ne.s32.totalorder %s295, %s309
    %p311 = scmp.eq.s32.totalorder %s33, 0
    %p312 = por %p310, %p311
    %s314 = sadd.s32 %s313, 1
    %p317 = scmp.eq.s32.totalorder %s27, 1
    %p318 = scmp.ne.s32.totalorder %s313, %s315
    %p319 = scmp.eq.s32.totalorder %s27, 0
    %p320 = por %p318, %p319
    %p321 = scmp.ne.s32.totalorder %s313, %s315
    %p322 = scmp.eq.s32.totalorder %s32, 1
    %p323 = por %p321, %p322
    %p324 = scmp.ne.s32.totalorder %s315, %s316
    %p325 = scmp.eq.s32.totalorder %s32, 0
    %p326 = por %p324, %p325
    %p327 = scmp.ne.s32.totalorder %s315, %s316
    %p328 = scmp.eq.s32.totalorder %s33, 1
    %p329 = por %p327, %p328
    %p331 = scmp.ne.s32.totalorder %s316, %s330
    %p332 = scmp.eq.s32.totalorder %s33, 0
    %p333 = por %p331, %p332
    %s335 = sadd.s32 %s334, 1
    %p338 = scmp.eq.s32.totalorder %s27, 1
    %p339 = scmp.ne.s32.totalorder %s334, %s336
    %p340 = scmp.eq.s32.totalorder %s27, 0
    %p341 = por %p339, %p340
    %p342 = scmp.ne.s32.totalorder %s334, %s336
    %p343 = scmp.eq.s32.totalorder %s32, 1
    %p344 = por %p342, %p343
    %p345 = scmp.ne.s32.totalorder %s336, %s337
    %p346 = scmp.eq.s32.totalorder %s32, 0
    %p347 = por %p345, %p346
    %p348 = scmp.ne.s32.totalorder %s336, %s337
    %p349 = scmp.eq.s32.totalorder %s33, 1
    %p350 = por %p348, %p349
    %p352 = scmp.ne.s32.totalorder %s337, %s351
    %p353 = scmp.eq.s32.totalorder %s33, 0
    %p354 = por %p352, %p353
    %s356 = sadd.s32 %s355, 1
    %p359 = scmp.eq.s32.totalorder %s27, 1
    %p360 = scmp.ne.s32.totalorder %s355, %s357
    %p361 = scmp.eq.s32.totalorder %s27, 0
    %p362 = por %p360, %p361
    %p363 = scmp.ne.s32.totalorder %s355, %s357
    %p364 = scmp.eq.s32.totalorder %s32, 1
    %p365 = por %p363, %p364
    %p366 = scmp.ne.s32.totalorder %s357, %s358
    %p367 = scmp.eq.s32.totalorder %s32, 0
    %p368 = por %p366, %p367
    %p369 = scmp.ne.s32.totalorder %s357, %s358
    %p370 = scmp.eq.s32.totalorder %s33, 1
    %p371 = por %p369, %p370
    %p373 = scmp.ne.s32.totalorder %s358, %s372
    %p374 = scmp.eq.s32.totalorder %s33, 0
    %p375 = por %p373, %p374
    %s377 = sadd.s32 %s376, 1
    %p380 = scmp.eq.s32.totalorder %s27, 1
    %p381 = scmp.ne.s32.totalorder %s376, %s378
    %p382 = scmp.eq.s32.totalorder %s27, 0
    %p383 = por %p381, %p382
    %p384 = scmp.ne.s32.totalorder %s376, %s378
    %p385 = scmp.eq.s32.totalorder %s32, 1
    %p386 = por %p384, %p385
    %p387 = scmp.ne.s32.totalorder %s378, %s379
    %p388 = scmp.eq.s32.totalorder %s32, 0
    %p389 = por %p387, %p388
    %p390 = scmp.ne.s32.totalorder %s378, %s379
    %p391 = scmp.eq.s32.totalorder %s33, 1
    %p392 = por %p390, %p391
    %p394 = scmp.ne.s32.totalorder %s379, %s393
    %p395 = scmp.eq.s32.totalorder %s33, 0
    %p396 = por %p394, %p395
    %s398 = sadd.s32 %s397, 1
    %p401 = scmp.eq.s32.totalorder %s27, 1
    %p402 = scmp.ne.s32.totalorder %s397, %s399
    %p403 = scmp.eq.s32.totalorder %s27, 0
    %p404 = por %p402, %p403
    %p405 = scmp.ne.s32.totalorder %s397, %s399
    %p406 = scmp.eq.s32.totalorder %s32, 1
    %p407 = por %p405, %p406
    %p408 = scmp.ne.s32.totalorder %s399, %s400
    %p409 = scmp.eq.s32.totalorder %s32, 0
    %p410 = por %p408, %p409
    %p411 = scmp.ne.s32.totalorder %s399, %s400
    %p412 = scmp.eq.s32.totalorder %s33, 1
    %p413 = por %p411, %p412
    %p415 = scmp.ne.s32.totalorder %s400, %s414
    %p416 = scmp.eq.s32.totalorder %s33, 0
    %p417 = por %p415, %p416
    %s419 = sadd.s32 %s418, 1
    %p422 = scmp.eq.s32.totalorder %s27, 1
    %p423 = scmp.ne.s32.totalorder %s418, %s420
    %p424 = scmp.eq.s32.totalorder %s27, 0
    %p425 = por %p423, %p424
    %p426 = scmp.ne.s32.totalorder %s418, %s420
    %p427 = scmp.eq.s32.totalorder %s32, 1
    %p428 = por %p426, %p427
    %p429 = scmp.ne.s32.totalorder %s420, %s421
    %p430 = scmp.eq.s32.totalorder %s32, 0
    %p431 = por %p429, %p430
    %p432 = scmp.ne.s32.totalorder %s420, %s421
    %p433 = scmp.eq.s32.totalorder %s33, 1
    %p434 = por %p432, %p433
    %p436 = scmp.ne.s32.totalorder %s421, %s435
    %p437 = scmp.eq.s32.totalorder %s33, 0
    %p438 = por %p436, %p437
    %s440 = sadd.s32 %s439, 1
    %p443 = scmp.eq.s32.totalorder %s27, 1
    %p444 = scmp.ne.s32.totalorder %s439, %s441
    %p445 = scmp.eq.s32.totalorder %s27, 0
    %p446 = por %p444, %p445
    %p447 = scmp.ne.s32.totalorder %s439, %s441
    %p448 = scmp.eq.s32.totalorder %s32, 1
    %p449 = por %p447, %p448
    %p450 = scmp.ne.s32.totalorder %s441, %s442
    %p451 = scmp.eq.s32.totalorder %s32, 0
    %p452 = por %p450, %p451
    %p453 = scmp.ne.s32.totalorder %s441, %s442
    %p454 = scmp.eq.s32.totalorder %s33, 1
    %p455 = por %p453, %p454
    %p457 = scmp.ne.s32.totalorder %s442, %s456
    %p458 = scmp.eq.s32.totalorder %s33, 0
    %p459 = por %p457, %p458
    %s461 = sadd.s32 %s460, 1
    %p464 = scmp.eq.s32.totalorder %s27, 1
    %p465 = scmp.ne.s32.totalorder %s460, %s462
    %p466 = scmp.eq.s32.totalorder %s27, 0
    %p467 = por %p465, %p466
    %p468 = scmp.ne.s32.totalorder %s460, %s462
    %p469 = scmp.eq.s32.totalorder %s32, 1
    %p470 = por %p468, %p469
    %p471 = scmp.ne.s32.totalorder %s462, %s463
    %p472 = scmp.eq.s32.totalorder %s32, 0
    %p473 = por %p471, %p472
    %p474 = scmp.ne.s32.totalorder %s462, %s463
    %p475 = scmp.eq.s32.totalorder %s33, 1
    %p476 = por %p474, %p475
    %p478 = scmp.ne.s32.totalorder %s463, %s477
    %p479 = scmp.eq.s32.totalorder %s33, 0
    %p480 = por %p478, %p479
    %s481 = ssub.s32 %s27, %s34
    %p482 = scmp.eq.s32.totalorder %s481, 0
    %s484 = sadd.s32 %s483, 1
    %s485 = scalar_select %p482, %s483, %s484
    %p488 = pneg %p482
    %p489 = scmp.eq.s32.totalorder %s27, 1
    %p490 = por %p488, %p489
    %p491 = scmp.ne.s32.totalorder %s483, %s486
    %p492 = scmp.eq.s32.totalorder %s27, 0
    %p493 = por %p491, %p492
    %p494 = scmp.ne.s32.totalorder %s483, %s486
    %p495 = scmp.eq.s32.totalorder %s32, 1
    %p496 = por %p494, %p495
    %p497 = scmp.ne.s32.totalorder %s486, %s487
    %p498 = scmp.eq.s32.totalorder %s32, 0
    %p499 = por %p497, %p498
    %p500 = scmp.ne.s32.totalorder %s486, %s487
    %p501 = scmp.eq.s32.totalorder %s33, 1
    %p502 = por %p500, %p501
    %p504 = scmp.ne.s32.totalorder %s487, %s503
    %p505 = scmp.eq.s32.totalorder %s33, 0
    %p506 = por %p504, %p505
    %p507 = scmp.le.s32.totalorder 1, %s27
    %p508 = scmp.lt.s32.totalorder %s27, 3
    %p509 = pnand %p507, %p508
    %p510 = pneg %p509
    // Predicated region
    $region9: #{mlp_forward.1} parent=5 // pred_check
      _
    $region10: #{mlp_forward.1} parent=5 // pred_check_branch
      %512 = sbr.rel (%p509) target = $region12
    $region11: #{mlp_forward.1} parent=5 // pred_region
      %s513 = ssub.s32 %s27, 1
      // Predicated region
      $region13: #{mlp_forward.1} parent=11 // pred_check
        %p514 = pneg %p74
      $region14: #{mlp_forward.1} parent=11 // pred_check_branch
        %516 = sbr.rel (%p514) target = $region16
      $region15: #{mlp_forward.1} parent=11 // pred_region
        _
      $region16: #{mlp_forward.1} parent=11 // pred_fallthru
        _
      // Predicated region
      $region17: #{mlp_forward.1} parent=11 // pred_check
        %p517 = pneg %p95
      $region18: #{mlp_forward.1} parent=11 // pred_check_branch
        %519 = sbr.rel (%p517) target = $region20
      $region19: #{mlp_forward.1} parent=11 // pred_region
        _
      $region20: #{mlp_forward.1} parent=11 // pred_fallthru
        _
      // Predicated region
      $region21: #{mlp_forward.1} parent=11 // pred_check
        %p520 = pneg %p116
      $region22: #{mlp_forward.1} parent=11 // pred_check_branch
        %522 = sbr.rel (%p520) target = $region24
      $region23: #{mlp_forward.1} parent=11 // pred_region
        _
      $region24: #{mlp_forward.1} parent=11 // pred_fallthru
        _
      // Predicated region
      $region25: #{mlp_forward.1} parent=11 // pred_check
        %p523 = pneg %p137
      $region26: #{mlp_forward.1} parent=11 // pred_check_branch
        %525 = sbr.rel (%p523) target = $region28
      $region27: #{mlp_forward.1} parent=11 // pred_region
        _
      $region28: #{mlp_forward.1} parent=11 // pred_fallthru
        _
      // Predicated region
      $region29: #{mlp_forward.1} parent=11 // pred_check
        %p526 = pneg %p158
      $region30: #{mlp_forward.1} parent=11 // pred_check_branch
        %528 = sbr.rel (%p526) target = $region32
      $region31: #{mlp_forward.1} parent=11 // pred_region
        _
      $region32: #{mlp_forward.1} parent=11 // pred_fallthru
        _
      // Predicated region
      $region33: #{mlp_forward.1} parent=11 // pred_check
        %p529 = pneg %p179
      $region34: #{mlp_forward.1} parent=11 // pred_check_branch
        %531 = sbr.rel (%p529) target = $region36
      $region35: #{mlp_forward.1} parent=11 // pred_region
        _
      $region36: #{mlp_forward.1} parent=11 // pred_fallthru
        _
      // Predicated region
      $region37: #{mlp_forward.1} parent=11 // pred_check
        %p532 = pneg %p200
      $region38: #{mlp_forward.1} parent=11 // pred_check_branch
        %534 = sbr.rel (%p532) target = $region40
      $region39: #{mlp_forward.1} parent=11 // pred_region
        _
      $region40: #{mlp_forward.1} parent=11 // pred_fallthru
        _
      // Predicated region
      $region41: #{mlp_forward.1} parent=11 // pred_check
        %p535 = pneg %p221
      $region42: #{mlp_forward.1} parent=11 // pred_check_branch
        %537 = sbr.rel (%p535) target = $region44
      $region43: #{mlp_forward.1} parent=11 // pred_region
        _
      $region44: #{mlp_forward.1} parent=11 // pred_fallthru
        _
      // Predicated region
      $region45: #{mlp_forward.1} parent=11 // pred_check
        %p538 = pneg %p242
      $region46: #{mlp_forward.1} parent=11 // pred_check_branch
        %540 = sbr.rel (%p538) target = $region48
      $region47: #{mlp_forward.1} parent=11 // pred_region
        _
      $region48: #{mlp_forward.1} parent=11 // pred_fallthru
        _
      // Predicated region
      $region49: #{mlp_forward.1} parent=11 // pred_check
        %p541 = pneg %p263
      $region50: #{mlp_forward.1} parent=11 // pred_check_branch
        %543 = sbr.rel (%p541) target = $region52
      $region51: #{mlp_forward.1} parent=11 // pred_region
        _
      $region52: #{mlp_forward.1} parent=11 // pred_fallthru
        _
      // Predicated region
      $region53: #{mlp_forward.1} parent=11 // pred_check
        %p544 = pneg %p284
      $region54: #{mlp_forward.1} parent=11 // pred_check_branch
        %546 = sbr.rel (%p544) target = $region56
      $region55: #{mlp_forward.1} parent=11 // pred_region
        _
      $region56: #{mlp_forward.1} parent=11 // pred_fallthru
        _
      // Predicated region
      $region57: #{mlp_forward.1} parent=11 // pred_check
        %p547 = pneg %p305
      $region58: #{mlp_forward.1} parent=11 // pred_check_branch
        %549 = sbr.rel (%p547) target = $region60
      $region59: #{mlp_forward.1} parent=11 // pred_region
        _
      $region60: #{mlp_forward.1} parent=11 // pred_fallthru
        _
      // Predicated region
      $region61: #{mlp_forward.1} parent=11 // pred_check
        %p550 = pneg %p326
      $region62: #{mlp_forward.1} parent=11 // pred_check_branch
        %552 = sbr.rel (%p550) target = $region64
      $region63: #{mlp_forward.1} parent=11 // pred_region
        _
      $region64: #{mlp_forward.1} parent=11 // pred_fallthru
        _
      // Predicated region
      $region65: #{mlp_forward.1} parent=11 // pred_check
        %p553 = pneg %p347
      $region66: #{mlp_forward.1} parent=11 // pred_check_branch
        %555 = sbr.rel (%p553) target = $region68
      $region67: #{mlp_forward.1} parent=11 // pred_region
        _
      $region68: #{mlp_forward.1} parent=11 // pred_fallthru
        _
      // Predicated region
      $region69: #{mlp_forward.1} parent=11 // pred_check
        %p556 = pneg %p368
      $region70: #{mlp_forward.1} parent=11 // pred_check_branch
        %558 = sbr.rel (%p556) target = $region72
      $region71: #{mlp_forward.1} parent=11 // pred_region
        _
      $region72: #{mlp_forward.1} parent=11 // pred_fallthru
        _
      // Predicated region
      $region73: #{mlp_forward.1} parent=11 // pred_check
        %p559 = pneg %p389
      $region74: #{mlp_forward.1} parent=11 // pred_check_branch
        %561 = sbr.rel (%p559) target = $region76
      $region75: #{mlp_forward.1} parent=11 // pred_region
        _
      $region76: #{mlp_forward.1} parent=11 // pred_fallthru
        _
      // Predicated region
      $region77: #{mlp_forward.1} parent=11 // pred_check
        %p562 = pneg %p410
      $region78: #{mlp_forward.1} parent=11 // pred_check_branch
        %564 = sbr.rel (%p562) target = $region80
      $region79: #{mlp_forward.1} parent=11 // pred_region
        _
      $region80: #{mlp_forward.1} parent=11 // pred_fallthru
        _
      // Predicated region
      $region81: #{mlp_forward.1} parent=11 // pred_check
        %p565 = pneg %p431
      $region82: #{mlp_forward.1} parent=11 // pred_check_branch
        %567 = sbr.rel (%p565) target = $region84
      $region83: #{mlp_forward.1} parent=11 // pred_region
        _
      $region84: #{mlp_forward.1} parent=11 // pred_fallthru
        _
      // Predicated region
      $region85: #{mlp_forward.1} parent=11 // pred_check
        %p568 = pneg %p452
      $region86: #{mlp_forward.1} parent=11 // pred_check_branch
        %570 = sbr.rel (%p568) target = $region88
      $region87: #{mlp_forward.1} parent=11 // pred_region
        _
      $region88: #{mlp_forward.1} parent=11 // pred_fallthru
        _
      // Predicated region
      $region89: #{mlp_forward.1} parent=11 // pred_check
        %p571 = pneg %p473
      $region90: #{mlp_forward.1} parent=11 // pred_check_branch
        %573 = sbr.rel (%p571) target = $region92
      $region91: #{mlp_forward.1} parent=11 // pred_region
        _
      $region92: #{mlp_forward.1} parent=11 // pred_fallthru
        _
    $region12: #{mlp_forward.1} parent=5 // pred_fallthru
      _
    %p574 = scmp.lt.s32.totalorder %s27, 2
    // Predicated region
    $region93: #{mlp_forward.1} parent=5 // pred_check
      %p575 = pneg %p574
    $region94: #{mlp_forward.1} parent=5 // pred_check_branch
      %577 = sbr.rel (%p575) target = $region96
    $region95: #{mlp_forward.1} parent=5 // pred_region
      // Predicated region
      $region97: #{mlp_forward.1} parent=95 // pred_check
        %p578 = pneg %p47
      $region98: #{mlp_forward.1} parent=95 // pred_check_branch
        %580 = sbr.rel (%p578) target = $region100
      $region99: #{mlp_forward.1} parent=95 // pred_region
        %s581 = smul.u32 4, %s27
        %p582 = scmp.lt.s32.totalorder %s581, 7
        %s583 = scalar_select %p582, %s581, 7
        %s584 = smul.addr %s583, 79
        %s585 = smul.addr %s584, 4
        %s586 = scalar_lea.vmem %s0, %s585
        %s587 = smul.u32 4, %s27
      $region100: #{mlp_forward.1} parent=95 // pred_fallthru
        _
    $region96: #{mlp_forward.1} parent=5 // pred_fallthru
      _
    %p588 = scmp.le.s32.totalorder 1, %s27
    %p589 = scmp.lt.s32.totalorder %s27, 3
    %p590 = pnand %p588, %p589
    %p591 = pneg %p590
    // Predicated region
    $region101: #{mlp_forward.1} parent=5 // pred_check
      _
    $region102: #{mlp_forward.1} parent=5 // pred_check_branch
      %593 = sbr.rel (%p590) target = $region104
    $region103: #{mlp_forward.1} parent=5 // pred_region
      %s594 = ssub.s32 %s27, 1
      %s595 = smul.u32 4, %s32
      %p596 = scmp.lt.s32.totalorder %s595, 7
      %s597 = scalar_select %p596, %s595, 7
      %s598 = smul.addr %s597, 79
      %s599 = smul.addr %s598, 4
      %s600 = scalar_lea.vmem %s0, %s599
      %p601 = pneg %p53
      %p602 = pneg %p50
      %p603 = pneg %p74
      %p604 = pneg %p71
      %p605 = pneg %p95
      %p606 = pneg %p92
      %p607 = pneg %p116
      %p608 = pneg %p113
      %p609 = pneg %p137
      %p610 = pneg %p134
      %p611 = pneg %p158
      %p612 = pneg %p155
      %p613 = pneg %p179
      %p614 = pneg %p176
      %p615 = pneg %p200
      %p616 = pneg %p197
      %p617 = pneg %p221
      %p618 = pneg %p218
      %p619 = pneg %p242
      %p620 = pneg %p239
      %p621 = pneg %p263
      %p622 = pneg %p260
      %p623 = pneg %p284
      %p624 = pneg %p281
      %p625 = pneg %p305
      %p626 = pneg %p302
      %p627 = pneg %p326
      %p628 = pneg %p323
      %p629 = pneg %p347
      %p630 = pneg %p344
      %p631 = pneg %p368
      %p632 = pneg %p365
      %p633 = pneg %p389
      %p634 = pneg %p386
      %p635 = pneg %p410
      %p636 = pneg %p407
      %p637 = pneg %p431
      %p638 = pneg %p428
      %p639 = pneg %p452
      %p640 = pneg %p449
      %p641 = pneg %p473
      %p642 = pneg %p470
      %p643 = pneg %p499
      %p644 = pneg %p496
      %s645 = smul.u32 4, %s32
      %p646 = scmp.lt.s32.totalorder %s645, 7
      %s647 = scalar_select %p646, %s645, 7
      %s648 = smul.addr %s647, 8
      %s649 = scalar_lea.vmem %s21, %s648
      %s650 = smul.u32 4, %s32
      %p651 = scmp.lt.s32.totalorder %s650, 7
      %s652 = scalar_select %p651, %s650, 7
      %s653 = smul.addr %s652, 79
      %s654 = smul.addr %s653, 4
      %s655 = scalar_lea.vmem %s0, %s654
      %s656 = smul.u32 4, %s32
      %s657 = smul.u32 4, %s32
      %p658 = scmp.lt.s32.totalorder %s657, 7
      %s659 = scalar_select %p658, %s657, 7
      %s660 = smul.addr %s659, 8
      %s661 = scalar_lea.vmem %s21, %s660
      %s662 = smul.u32 4, %s32
      %v664 = vld [vmem:[%s1] sm:$0xf]
      %v665 = vld [vmem:[%s1 + $0x4] sm:$0xf]
      %v666 = vld [vmem:[%s1 + $0x8] sm:$0xf]
      %v667 = vld [vmem:[%s1 + $0xc] sm:$0xf]
      %v668 = vld [vmem:[%s1 + $0x10] sm:$0xf]
      %v669 = vld [vmem:[%s1 + $0x14] sm:$0xf]
      %v670 = vld [vmem:[%s1 + $0x18] sm:$0xf]
      %v671 = vld [vmem:[%s1 + $0x1c] sm:$0xf]
      %v672 = vld [vmem:[%s1 + $0x20] sm:$0xf]
      %v673 = vld [vmem:[%s1 + $0x24] sm:$0xf]
      %v674 = vld [vmem:[%s1 + $0x28] sm:$0xf]
      %v675 = vld [vmem:[%s1 + $0x2c] sm:$0xf]
      %v676 = vld [vmem:[%s1 + $0x30] sm:$0xf]
      %v677 = vld [vmem:[%s1 + $0x34] sm:$0xf]
      %v678 = vld [vmem:[%s1 + $0x38] sm:$0xf]
      %v679 = vld [vmem:[%s1 + $0x3c] sm:$0xf]
      %v680 = vld [vmem:[%s1 + $0x40] sm:$0xf]
      %v681 = vld [vmem:[%s1 + $0x44] sm:$0xf]
      %v682 = vld [vmem:[%s1 + $0x48] sm:$0xf]
      %v683 = vld [vmem:[%s1 + $0x4c] sm:$0xf]
      %v684 = vld [vmem:[%s1 + $0x50] sm:$0xf]
      %v685 = vld [vmem:[%s1 + $0x54] sm:$0xf]
      %v686 = vld [vmem:[%s1 + $0x58] sm:$0xf]
      %v687 = vld [vmem:[%s1 + $0x5c] sm:$0xf]
      %v688 = vld [vmem:[%s1 + $0x60] sm:$0xf]
      %v689 = vld [vmem:[%s1 + $0x64] sm:$0xf]
      %v690 = vld [vmem:[%s1 + $0x68] sm:$0xf]
      %v691 = vld [vmem:[%s1 + $0x6c] sm:$0xf]
      %v692 = vld [vmem:[%s1 + $0x70] sm:$0xf]
      %v693 = vld [vmem:[%s1 + $0x74] sm:$0xf]
      %v694 = vld [vmem:[%s1 + $0x78] sm:$0xf]
      %v695 = vld [vmem:[%s1 + $0x7c] sm:$0xf]
      %v696 = vld [vmem:[%s1 + $0x80] sm:$0xf]
      %v697 = vld [vmem:[%s1 + $0x84] sm:$0xf]
      %v698 = vld [vmem:[%s1 + $0x88] sm:$0xf]
      %v699 = vld [vmem:[%s1 + $0x8c] sm:$0xf]
      %v700 = vld [vmem:[%s1 + $0x90] sm:$0xf]
      %v701 = vld [vmem:[%s1 + $0x94] sm:$0xf]
      %v702 = vld [vmem:[%s1 + $0x98] sm:$0xf]
      %v703 = vld [vmem:[%s1 + $0x9c] sm:$0xf]
      %v704 = vld [vmem:[%s1 + $0xa0] sm:$0xf]
      %v705 = vld [vmem:[%s1 + $0xa4] sm:$0xf]
      %v706 = vld [vmem:[%s1 + $0xa8] sm:$0xf]
      %v707 = vld [vmem:[%s1 + $0xac] sm:$0xf]
      %v708 = vld [vmem:[%s1 + $0xb0] sm:$0xf]
      %v709 = vld [vmem:[%s1 + $0xb4] sm:$0xf]
      %v710 = vld [vmem:[%s1 + $0xb8] sm:$0xf]
      %v711 = vld [vmem:[%s1 + $0xbc] sm:$0xf]
      %v712 = vld [vmem:[%s1 + $0xc0] sm:$0xf]
      %v713 = vld [vmem:[%s1 + $0xc4] sm:$0xf]
      %v714 = vld [vmem:[%s1 + $0xc8] sm:$0xf]
      %v715 = vld [vmem:[%s1 + $0xcc] sm:$0xf]
      %v716 = vld [vmem:[%s1 + $0xd0] sm:$0xf]
      %v717 = vld [vmem:[%s1 + $0xd4] sm:$0xf]
      %v718 = vld [vmem:[%s1 + $0xd8] sm:$0xf]
      %v719 = vld [vmem:[%s1 + $0xdc] sm:$0xf]
      %v720 = vld [vmem:[%s1 + $0xe0] sm:$0xf]
      %v721 = vld [vmem:[%s1 + $0xe4] sm:$0xf]
      %v722 = vld [vmem:[%s1 + $0xe8] sm:$0xf]
      %v723 = vld [vmem:[%s1 + $0xec] sm:$0xf]
      %v724 = vld [vmem:[%s1 + $0xf0] sm:$0xf]
      %v725 = vld [vmem:[%s1 + $0xf4] sm:$0xf]
      %v726 = vld [vmem:[%s1 + $0xf8] sm:$0xf]
      %v727 = vld [vmem:[%s1 + $0xfc] sm:$0xf]
      %v728 = vld [vmem:[%s1 + $0x100] sm:$0xf]
      %v729 = vld [vmem:[%s1 + $0x104] sm:$0xf]
      %v730 = vld [vmem:[%s1 + $0x108] sm:$0xf]
      %v731 = vld [vmem:[%s1 + $0x10c] sm:$0xf]
      %v732 = vld [vmem:[%s1 + $0x110] sm:$0xf]
      %v733 = vld [vmem:[%s1 + $0x114] sm:$0xf]
      %v734 = vld [vmem:[%s1 + $0x118] sm:$0xf]
      %v735 = vld [vmem:[%s1 + $0x11c] sm:$0xf]
      %v736 = vld [vmem:[%s1 + $0x120] sm:$0xf]
      %v737 = vld [vmem:[%s1 + $0x124] sm:$0xf]
      %v738 = vld [vmem:[%s1 + $0x128] sm:$0xf]
      %v739 = vld [vmem:[%s1 + $0x12c] sm:$0xf]
      %v740 = vld [vmem:[%s1 + $0x130] sm:$0xf]
      %v741 = vld [vmem:[%s1 + $0x134] sm:$0xf]
      %v742 = vld [vmem:[%s1 + $0x138] sm:$0xf]
      %v743 = vld [vmem:[%s1 + $0x13c] sm:$0xf]
      %v744 = vld [vmem:[%s1 + $0x140] sm:$0xf]
      %v745 = vld [vmem:[%s1 + $0x144] sm:$0xf]
      %v746 = vld [vmem:[%s1 + $0x148] sm:$0xf]
      %v747 = vld [vmem:[%s1 + $0x14c] sm:$0xf]
      %v748 = vld [vmem:[%s1 + $0x150] sm:$0xf]
      %v749 = vld [vmem:[%s1 + $0x154] sm:$0xf]
      %v750 = vld [vmem:[%s1 + $0x158] sm:$0xf]
      %v751 = vld [vmem:[%s1 + $0x15c] sm:$0xf]
      %v752 = vld [vmem:[%s1 + $0x160] sm:$0xf]
      %v753 = vld [vmem:[%s1 + $0x164] sm:$0xf]
      %v754 = vld [vmem:[%s1 + $0x168] sm:$0xf]
      %v755 = vld [vmem:[%s1 + $0x16c] sm:$0xf]
      %v756 = vld [vmem:[%s1 + $0x170] sm:$0xf]
      %v757 = vld [vmem:[%s1 + $0x174] sm:$0xf]
      %v758 = vld [vmem:[%s1 + $0x178] sm:$0xf]
      %v759 = vld [vmem:[%s1 + $0x17c] sm:$0xf]
      %v760 = vld [vmem:[%s1 + $0x180] sm:$0xf]
      %v761 = vld [vmem:[%s1 + $0x184] sm:$0xf]
      %v762 = vld [vmem:[%s1 + $0x188] sm:$0xf]
      %v763 = vld [vmem:[%s1 + $0x18c] sm:$0xf]
      %v764 = vld [vmem:[%s1 + $0x190] sm:$0xf]
      %v765 = vld [vmem:[%s1 + $0x194] sm:$0xf]
      %v766 = vld [vmem:[%s1 + $0x198] sm:$0xf]
      %v767 = vld [vmem:[%s1 + $0x19c] sm:$0xf]
      %v768 = vld [vmem:[%s1 + $0x1a0] sm:$0xf]
      %v769 = vld [vmem:[%s1 + $0x1a4] sm:$0xf]
      %v770 = vld [vmem:[%s1 + $0x1a8] sm:$0xf]
      %v771 = vld [vmem:[%s1 + $0x1ac] sm:$0xf]
      %v772 = vld [vmem:[%s1 + $0x1b0] sm:$0xf]
      %v773 = vld [vmem:[%s1 + $0x1b4] sm:$0xf]
      %v774 = vld [vmem:[%s1 + $0x1b8] sm:$0xf]
      %v775 = vld [vmem:[%s1 + $0x1bc] sm:$0xf]
      %v776 = vld [vmem:[%s1 + $0x1c0] sm:$0xf]
      %v777 = vld [vmem:[%s1 + $0x1c4] sm:$0xf]
      %v778 = vld [vmem:[%s1 + $0x1c8] sm:$0xf]
      %v779 = vld [vmem:[%s1 + $0x1cc] sm:$0xf]
      %v780 = vld [vmem:[%s1 + $0x1d0] sm:$0xf]
      %v781 = vld [vmem:[%s1 + $0x1d4] sm:$0xf]
      %v782 = vld [vmem:[%s1 + $0x1d8] sm:$0xf]
      %v783 = vld [vmem:[%s1 + $0x1dc] sm:$0xf]
      %v784 = vld [vmem:[%s1 + $0x1e0] sm:$0xf]
      %v785 = vld [vmem:[%s1 + $0x1e4] sm:$0xf]
      %v786 = vld [vmem:[%s1 + $0x1e8] sm:$0xf]
      %v787 = vld [vmem:[%s1 + $0x1ec] sm:$0xf]
      %v788 = vld [vmem:[%s1 + $0x1f0] sm:$0xf]
      %v789 = vld [vmem:[%s1 + $0x1f4] sm:$0xf]
      %v790 = vld [vmem:[%s1 + $0x1f8] sm:$0xf]
      %v791 = vld [vmem:[%s1 + $0x1fc] sm:$0xf]
      %v792 = vld [vmem:[%s1 + $0x200] sm:$0xf]
      %v793 = vld [vmem:[%s1 + $0x204] sm:$0xf]
      %v794 = vld [vmem:[%s1 + $0x208] sm:$0xf]
      %v795 = vld [vmem:[%s1 + $0x20c] sm:$0xf]
      %v796 = vld [vmem:[%s1 + $0x210] sm:$0xf]
      %v797 = vld [vmem:[%s1 + $0x214] sm:$0xf]
      %v798 = vld [vmem:[%s1 + $0x218] sm:$0xf]
      %v799 = vld [vmem:[%s1 + $0x21c] sm:$0xf]
      %v800 = vld [vmem:[%s1 + $0x220] sm:$0xf]
      %v801 = vld [vmem:[%s1 + $0x224] sm:$0xf]
      %v802 = vld [vmem:[%s1 + $0x228] sm:$0xf]
      %v803 = vld [vmem:[%s1 + $0x22c] sm:$0xf]
      %v804 = vld [vmem:[%s1 + $0x230] sm:$0xf]
      %v805 = vld [vmem:[%s1 + $0x234] sm:$0xf]
      %v806 = vld [vmem:[%s1 + $0x238] sm:$0xf]
      %v807 = vld [vmem:[%s1 + $0x23c] sm:$0xf]
      %v808 = vld [vmem:[%s1 + $0x240] sm:$0xf]
      %v809 = vld [vmem:[%s1 + $0x244] sm:$0xf]
      %v810 = vld [vmem:[%s1 + $0x248] sm:$0xf]
      %v811 = vld [vmem:[%s1 + $0x24c] sm:$0xf]
      %v812 = vld [vmem:[%s1 + $0x250] sm:$0xf]
      %v813 = vld [vmem:[%s1 + $0x254] sm:$0xf]
      %v814 = vld [vmem:[%s1 + $0x258] sm:$0xf]
      %v815 = vld [vmem:[%s1 + $0x25c] sm:$0xf]
      %v816 = vld [vmem:[%s1 + $0x260] sm:$0xf]
      %v817 = vld [vmem:[%s1 + $0x264] sm:$0xf]
      %v818 = vld [vmem:[%s1 + $0x268] sm:$0xf]
      %v819 = vld [vmem:[%s1 + $0x26c] sm:$0xf]
      %v820 = vld [vmem:[%s1 + $0x270] sm:$0xf]
      %v821 = vld [vmem:[%s1 + $0x274] sm:$0xf]
      %v822 = vld [vmem:[%s1 + $0x278] sm:$0xf]
      %v823 = vld [vmem:[%s1 + $0x27c] sm:$0xf]
      %v824 = vld [vmem:[%s1 + $0x280] sm:$0xf]
      %v825 = vld [vmem:[%s1 + $0x284] sm:$0xf]
      %v826 = vld [vmem:[%s1 + $0x288] sm:$0xf]
      %v827 = vld [vmem:[%s1 + $0x28c] sm:$0xf]
      %v828 = vld [vmem:[%s1 + $0x290] sm:$0xf]
      %v829 = vld [vmem:[%s1 + $0x294] sm:$0xf]
      %v830 = vld [vmem:[%s1 + $0x298] sm:$0xf]
      %v831 = vld [vmem:[%s1 + $0x29c] sm:$0xf]
      %v832 = vld [vmem:[%s1 + $0x2a0] sm:$0xf]
      %v833 = vld [vmem:[%s1 + $0x2a4] sm:$0xf]
      %v834 = vld [vmem:[%s1 + $0x2a8] sm:$0xf]
      %v835 = vld [vmem:[%s1 + $0x2ac] sm:$0xf]
      %v836 = vld [vmem:[%s1 + $0x2b0] sm:$0xf]
      %v837 = vld [vmem:[%s1 + $0x2b4] sm:$0xf]
      %v838 = vld [vmem:[%s1 + $0x2b8] sm:$0xf]
      %v839 = vld [vmem:[%s1 + $0x2bc] sm:$0xf]
      %v840 = vld [vmem:[%s1 + $0x2c0] sm:$0xf]
      %v841 = vld [vmem:[%s1 + $0x2c4] sm:$0xf]
      %v842 = vld [vmem:[%s1 + $0x2c8] sm:$0xf]
      %v843 = vld [vmem:[%s1 + $0x2cc] sm:$0xf]
      %v844 = vld [vmem:[%s1 + $0x2d0] sm:$0xf]
      %v845 = vld [vmem:[%s1 + $0x2d4] sm:$0xf]
      %v846 = vld [vmem:[%s1 + $0x2d8] sm:$0xf]
      %v847 = vld [vmem:[%s1 + $0x2dc] sm:$0xf]
      %v848 = vld [vmem:[%s1 + $0x2e0] sm:$0xf]
      %v849 = vld [vmem:[%s1 + $0x2e4] sm:$0xf]
      %v850 = vld [vmem:[%s1 + $0x2e8] sm:$0xf]
      %v851 = vld [vmem:[%s1 + $0x2ec] sm:$0xf]
      %v852 = vld [vmem:[%s1 + $0x2f0] sm:$0xf]
      %v853 = vld [vmem:[%s1 + $0x2f4] sm:$0xf]
      %v854 = vld [vmem:[%s1 + $0x2f8] sm:$0xf]
      %v855 = vld [vmem:[%s1 + $0x2fc] sm:$0xf]
      %v856 = vld [vmem:[%s1 + $0x300] sm:$0xf]
      %v857 = vld [vmem:[%s1 + $0x304] sm:$0xf]
      %v858 = vld [vmem:[%s1 + $0x308] sm:$0xf]
      %v859 = vld [vmem:[%s1 + $0x30c] sm:$0xf]
      %v860 = vld [vmem:[%s1 + $0x310] sm:$0xf]
      %v861 = vld [vmem:[%s1 + $0x314] sm:$0xf]
      %v862 = vld [vmem:[%s1 + $0x318] sm:$0xf]
      %v863 = vld [vmem:[%s1 + $0x31c] sm:$0xf]
      %v864 = vld [vmem:[%s1 + $0x320] sm:$0xf]
      %v865 = vld [vmem:[%s1 + $0x324] sm:$0xf]
      %v866 = vld [vmem:[%s1 + $0x328] sm:$0xf]
      %v867 = vld [vmem:[%s1 + $0x32c] sm:$0xf]
      %v868 = vld [vmem:[%s1 + $0x330] sm:$0xf]
      %v869 = vld [vmem:[%s1 + $0x334] sm:$0xf]
      %v870 = vld [vmem:[%s1 + $0x338] sm:$0xf]
      %v871 = vld [vmem:[%s1 + $0x33c] sm:$0xf]
      %v872 = vld [vmem:[%s1 + $0x340] sm:$0xf]
      %v873 = vld [vmem:[%s1 + $0x344] sm:$0xf]
      %v874 = vld [vmem:[%s1 + $0x348] sm:$0xf]
      %v875 = vld [vmem:[%s1 + $0x34c] sm:$0xf]
      %v876 = vld [vmem:[%s1 + $0x350] sm:$0xf]
      %v877 = vld [vmem:[%s1 + $0x354] sm:$0xf]
      %v878 = vld [vmem:[%s1 + $0x358] sm:$0xf]
      %v879 = vld [vmem:[%s1 + $0x35c] sm:$0xf]
      %v880 = vld [vmem:[%s1 + $0x360] sm:$0xf]
      %v881 = vld [vmem:[%s1 + $0x364] sm:$0xf]
      %v882 = vld [vmem:[%s1 + $0x368] sm:$0xf]
      %v883 = vld [vmem:[%s1 + $0x36c] sm:$0xf]
      %v884 = vld [vmem:[%s1 + $0x370] sm:$0xf]
      %v885 = vld [vmem:[%s1 + $0x374] sm:$0xf]
      %v886 = vld [vmem:[%s1 + $0x378] sm:$0xf]
      %v887 = vld [vmem:[%s1 + $0x37c] sm:$0xf]
      %v888 = vld [vmem:[%s1 + $0x380] sm:$0xf]
      %v889 = vld [vmem:[%s1 + $0x384] sm:$0xf]
      %v890 = vld [vmem:[%s1 + $0x388] sm:$0xf]
      %v891 = vld [vmem:[%s1 + $0x38c] sm:$0xf]
      %v892 = vld [vmem:[%s1 + $0x390] sm:$0xf]
      %v893 = vld [vmem:[%s1 + $0x394] sm:$0xf]
      %v894 = vld [vmem:[%s1 + $0x398] sm:$0xf]
      %v895 = vld [vmem:[%s1 + $0x39c] sm:$0xf]
      %v896 = vld [vmem:[%s1 + $0x3a0] sm:$0xf]
      %v897 = vld [vmem:[%s1 + $0x3a4] sm:$0xf]
      %v898 = vld [vmem:[%s1 + $0x3a8] sm:$0xf]
      %v899 = vld [vmem:[%s1 + $0x3ac] sm:$0xf]
      %v900 = vld [vmem:[%s1 + $0x3b0] sm:$0xf]
      %v901 = vld [vmem:[%s1 + $0x3b4] sm:$0xf]
      %v902 = vld [vmem:[%s1 + $0x3b8] sm:$0xf]
      %v903 = vld [vmem:[%s1 + $0x3bc] sm:$0xf]
      %v904 = vld [vmem:[%s1 + $0x3c0] sm:$0xf]
      %v905 = vld [vmem:[%s1 + $0x3c4] sm:$0xf]
      %v906 = vld [vmem:[%s1 + $0x3c8] sm:$0xf]
      %v907 = vld [vmem:[%s1 + $0x3cc] sm:$0xf]
      %v908 = vld [vmem:[%s1 + $0x3d0] sm:$0xf]
      %v909 = vld [vmem:[%s1 + $0x3d4] sm:$0xf]
      %v910 = vld [vmem:[%s1 + $0x3d8] sm:$0xf]
      %v911 = vld [vmem:[%s1 + $0x3dc] sm:$0xf]
      %v912 = vld [vmem:[%s1 + $0x3e0] sm:$0xf]
      %v913 = vld [vmem:[%s1 + $0x3e4] sm:$0xf]
      %v914 = vld [vmem:[%s1 + $0x3e8] sm:$0xf]
      %v915 = vld [vmem:[%s1 + $0x3ec] sm:$0xf]
      %v916 = vld [vmem:[%s1 + $0x3f0] sm:$0xf]
      %v917 = vld [vmem:[%s1 + $0x3f4] sm:$0xf]
      %v918 = vld [vmem:[%s1 + $0x3f8] sm:$0xf]
      %v919 = vld [vmem:[%s1 + $0x3fc] sm:$0xf]
      %v920 = vld [vmem:[%s1 + $0x400] sm:$0xf]
      %v921 = vld [vmem:[%s1 + $0x404] sm:$0xf]
      %v922 = vld [vmem:[%s1 + $0x408] sm:$0xf]
      %v923 = vld [vmem:[%s1 + $0x40c] sm:$0xf]
      %v924 = vld [vmem:[%s1 + $0x410] sm:$0xf]
      %v925 = vld [vmem:[%s1 + $0x414] sm:$0xf]
      %v926 = vld [vmem:[%s1 + $0x418] sm:$0xf]
      %v927 = vld [vmem:[%s1 + $0x41c] sm:$0xf]
      %v928 = vld [vmem:[%s1 + $0x420] sm:$0xf]
      %v929 = vld [vmem:[%s1 + $0x424] sm:$0xf]
      %v930 = vld [vmem:[%s1 + $0x428] sm:$0xf]
      %v931 = vld [vmem:[%s1 + $0x42c] sm:$0xf]
      %v932 = vld [vmem:[%s1 + $0x430] sm:$0xf]
      %v933 = vld [vmem:[%s1 + $0x434] sm:$0xf]
      %v934 = vld [vmem:[%s1 + $0x438] sm:$0xf]
      %v935 = vld [vmem:[%s1 + $0x43c] sm:$0xf]
      %v936 = vld [vmem:[%s1 + $0x440] sm:$0xf]
      %v937 = vld [vmem:[%s1 + $0x444] sm:$0xf]
      %v938 = vld [vmem:[%s1 + $0x448] sm:$0xf]
      %v939 = vld [vmem:[%s1 + $0x44c] sm:$0xf]
      %v940 = vld [vmem:[%s1 + $0x450] sm:$0xf]
      %v941 = vld [vmem:[%s1 + $0x454] sm:$0xf]
      %v942 = vld [vmem:[%s1 + $0x458] sm:$0xf]
      %v943 = vld [vmem:[%s1 + $0x45c] sm:$0xf]
      %v944 = vld [vmem:[%s1 + $0x460] sm:$0xf]
      %v945 = vld [vmem:[%s1 + $0x464] sm:$0xf]
      %v946 = vld [vmem:[%s1 + $0x468] sm:$0xf]
      %v947 = vld [vmem:[%s1 + $0x46c] sm:$0xf]
      %v948 = vld [vmem:[%s1 + $0x470] sm:$0xf]
      %v949 = vld [vmem:[%s1 + $0x474] sm:$0xf]
      %v950 = vld [vmem:[%s1 + $0x478] sm:$0xf]
      %v951 = vld [vmem:[%s1 + $0x47c] sm:$0xf]
      %v952 = vld [vmem:[%s1 + $0x480] sm:$0xf]
      %v953 = vld [vmem:[%s1 + $0x484] sm:$0xf]
      %v954 = vld [vmem:[%s1 + $0x488] sm:$0xf]
      %v955 = vld [vmem:[%s1 + $0x48c] sm:$0xf]
      %v956 = vld [vmem:[%s1 + $0x490] sm:$0xf]
      %v957 = vld [vmem:[%s1 + $0x494] sm:$0xf]
      %v958 = vld [vmem:[%s1 + $0x498] sm:$0xf]
      %v959 = vld [vmem:[%s1 + $0x49c] sm:$0xf]
      %v960 = vld [vmem:[%s1 + $0x4a0] sm:$0xf]
      %v961 = vld [vmem:[%s1 + $0x4a4] sm:$0xf]
      %v962 = vld [vmem:[%s1 + $0x4a8] sm:$0xf]
      %v963 = vld [vmem:[%s1 + $0x4ac] sm:$0xf]
      %v964 = vld [vmem:[%s1 + $0x4b0] sm:$0xf]
      %v965 = vld [vmem:[%s1 + $0x4b4] sm:$0xf]
      %v966 = vld [vmem:[%s1 + $0x4b8] sm:$0xf]
      %v967 = vld [vmem:[%s1 + $0x4bc] sm:$0xf]
      %v968 = vld [vmem:[%s1 + $0x4c0] sm:$0xf]
      %v969 = vld [vmem:[%s1 + $0x4c4] sm:$0xf]
      %v970 = vld [vmem:[%s1 + $0x4c8] sm:$0xf]
      %v971 = vld [vmem:[%s1 + $0x4cc] sm:$0xf]
      %v972 = vld [vmem:[%s1 + $0x4d0] sm:$0xf]
      %v973 = vld [vmem:[%s1 + $0x4d4] sm:$0xf]
      %v974 = vld [vmem:[%s1 + $0x4d8] sm:$0xf]
      %v975 = vld [vmem:[%s1 + $0x4dc] sm:$0xf]
      %v976 = vld [vmem:[%s1 + $0x4e0] sm:$0xf]
      %v977 = vld [vmem:[%s1 + $0x4e4] sm:$0xf]
      %v978 = vld [vmem:[%s1 + $0x4e8] sm:$0xf]
      %v979 = vld [vmem:[%s1 + $0x4ec] sm:$0xf]
      %v980 = vld [vmem:[%s1 + $0x4f0] sm:$0xf]
      %v981 = vld [vmem:[%s1 + $0x4f4] sm:$0xf]
      %v982 = vld [vmem:[%s1 + $0x4f8] sm:$0xf]
      %v983 = vld [vmem:[%s1 + $0x4fc] sm:$0xf]
      %v984 = vld [vmem:[%s1 + $0x500] sm:$0xf]
      %v985 = vld [vmem:[%s1 + $0x504] sm:$0xf]
      %v986 = vld [vmem:[%s1 + $0x508] sm:$0xf]
      %v987 = vld [vmem:[%s1 + $0x50c] sm:$0xf]
      %v988 = vld [vmem:[%s1 + $0x510] sm:$0xf]
      %v989 = vld [vmem:[%s1 + $0x514] sm:$0xf]
      %v990 = vld [vmem:[%s1 + $0x518] sm:$0xf]
      %v991 = vld [vmem:[%s1 + $0x51c] sm:$0xf]
      %v992 = vld [vmem:[%s1 + $0x520] sm:$0xf]
      %v993 = vld [vmem:[%s1 + $0x524] sm:$0xf]
      %v994 = vld [vmem:[%s1 + $0x528] sm:$0xf]
      %v995 = vld [vmem:[%s1 + $0x52c] sm:$0xf]
      %v996 = vld [vmem:[%s1 + $0x530] sm:$0xf]
      %v997 = vld [vmem:[%s1 + $0x534] sm:$0xf]
      %v998 = vld [vmem:[%s1 + $0x538] sm:$0xf]
      %v999 = vld [vmem:[%s1 + $0x53c] sm:$0xf]
      %v1000 = vld [vmem:[%s1 + $0x540] sm:$0xf]
      %v1001 = vld [vmem:[%s1 + $0x544] sm:$0xf]
      %v1002 = vld [vmem:[%s1 + $0x548] sm:$0xf]
      %v1003 = vld [vmem:[%s1 + $0x54c] sm:$0xf]
      %v1004 = vld [vmem:[%s1 + $0x550] sm:$0xf]
      %v1005 = vld [vmem:[%s1 + $0x554] sm:$0xf]
      %v1006 = vld [vmem:[%s1 + $0x558] sm:$0xf]
      %v1007 = vld [vmem:[%s1 + $0x55c] sm:$0xf]
      %v1008 = vld [vmem:[%s1 + $0x560] sm:$0xf]
      %v1009 = vld [vmem:[%s1 + $0x564] sm:$0xf]
      %v1010 = vld [vmem:[%s1 + $0x568] sm:$0xf]
      %v1011 = vld [vmem:[%s1 + $0x56c] sm:$0xf]
      %v1012 = vld [vmem:[%s1 + $0x570] sm:$0xf]
      %v1013 = vld [vmem:[%s1 + $0x574] sm:$0xf]
      %v1014 = vld [vmem:[%s1 + $0x578] sm:$0xf]
      %v1015 = vld [vmem:[%s1 + $0x57c] sm:$0xf]
      %v1016 = vld [vmem:[%s1 + $0x580] sm:$0xf]
      %v1017 = vld [vmem:[%s1 + $0x584] sm:$0xf]
      %v1018 = vld [vmem:[%s1 + $0x588] sm:$0xf]
      %v1019 = vld [vmem:[%s1 + $0x58c] sm:$0xf]
      %v1020 = vld [vmem:[%s1 + $0x590] sm:$0xf]
      %v1021 = vld [vmem:[%s1 + $0x594] sm:$0xf]
      %v1022 = vld [vmem:[%s1 + $0x598] sm:$0xf]
      %v1023 = vld [vmem:[%s1 + $0x59c] sm:$0xf]
      %v1024 = vld [vmem:[%s1 + $0x5a0] sm:$0xf]
      %v1025 = vld [vmem:[%s1 + $0x5a4] sm:$0xf]
      %v1026 = vld [vmem:[%s1 + $0x5a8] sm:$0xf]
      %v1027 = vld [vmem:[%s1 + $0x5ac] sm:$0xf]
      %v1028 = vld [vmem:[%s1 + $0x5b0] sm:$0xf]
      %v1029 = vld [vmem:[%s1 + $0x5b4] sm:$0xf]
      %v1030 = vld [vmem:[%s1 + $0x5b8] sm:$0xf]
      %v1031 = vld [vmem:[%s1 + $0x5bc] sm:$0xf]
      %v1032 = vld [vmem:[%s1 + $0x5c0] sm:$0xf]
      %v1033 = vld [vmem:[%s1 + $0x5c4] sm:$0xf]
      %v1034 = vld [vmem:[%s1 + $0x5c8] sm:$0xf]
      %v1035 = vld [vmem:[%s1 + $0x5cc] sm:$0xf]
      %v1036 = vld [vmem:[%s1 + $0x5d0] sm:$0xf]
      %v1037 = vld [vmem:[%s1 + $0x5d4] sm:$0xf]
      %v1038 = vld [vmem:[%s1 + $0x5d8] sm:$0xf]
      %v1039 = vld [vmem:[%s1 + $0x5dc] sm:$0xf]
      %v1040 = vld [vmem:[%s1 + $0x5e0] sm:$0xf]
      %v1041 = vld [vmem:[%s1 + $0x5e4] sm:$0xf]
      %v1042 = vld [vmem:[%s1 + $0x5e8] sm:$0xf]
      %v1043 = vld [vmem:[%s1 + $0x5ec] sm:$0xf]
      %v1044 = vld [vmem:[%s1 + $0x5f0] sm:$0xf]
      %v1045 = vld [vmem:[%s1 + $0x5f4] sm:$0xf]
      %v1046 = vld [vmem:[%s1 + $0x5f8] sm:$0xf]
      %v1047 = vld [vmem:[%s1 + $0x5fc] sm:$0xf]
      %v1048 = vld [vmem:[%s1 + $0x600] sm:$0xf]
      %v1049 = vld [vmem:[%s1 + $0x604] sm:$0xf]
      %v1050 = vld [vmem:[%s1 + $0x608] sm:$0xf]
      %v1051 = vld [vmem:[%s1 + $0x60c] sm:$0xf]
      %v1052 = vld [vmem:[%s1 + $0x610] sm:$0xf]
      %v1053 = vld [vmem:[%s1 + $0x614] sm:$0xf]
      %v1054 = vld [vmem:[%s1 + $0x618] sm:$0xf]
      %v1055 = vld [vmem:[%s1 + $0x61c] sm:$0xf]
      %v1056 = vld [vmem:[%s1 + $0x620] sm:$0xf]
      %v1057 = vld [vmem:[%s1 + $0x624] sm:$0xf]
      %v1058 = vld [vmem:[%s1 + $0x628] sm:$0xf]
      %v1059 = vld [vmem:[%s1 + $0x62c] sm:$0xf]
      %v1060 = vld [vmem:[%s1 + $0x630] sm:$0xf]
      %v1061 = vld [vmem:[%s1 + $0x634] sm:$0xf]
      %v1062 = vld [vmem:[%s1 + $0x638] sm:$0xf]
      %v1063 = vld [vmem:[%s1 + $0x63c] sm:$0xf]
      %v1064 = vld [vmem:[%s1 + $0x640] sm:$0xf]
      %v1065 = vld [vmem:[%s1 + $0x644] sm:$0xf]
      %v1066 = vld [vmem:[%s1 + $0x648] sm:$0xf]
      %v1067 = vld [vmem:[%s1 + $0x64c] sm:$0xf]
      %v1068 = vld [vmem:[%s1 + $0x650] sm:$0xf]
      %v1069 = vld [vmem:[%s1 + $0x654] sm:$0xf]
      %v1070 = vld [vmem:[%s1 + $0x658] sm:$0xf]
      %v1071 = vld [vmem:[%s1 + $0x65c] sm:$0xf]
      %v1072 = vld [vmem:[%s1 + $0x660] sm:$0xf]
      %v1073 = vld [vmem:[%s1 + $0x664] sm:$0xf]
      %v1074 = vld [vmem:[%s1 + $0x668] sm:$0xf]
      %v1075 = vld [vmem:[%s1 + $0x66c] sm:$0xf]
      %v1076 = vld [vmem:[%s1 + $0x670] sm:$0xf]
      %v1077 = vld [vmem:[%s1 + $0x674] sm:$0xf]
      %v1078 = vld [vmem:[%s1 + $0x678] sm:$0xf]
      %v1079 = vld [vmem:[%s1 + $0x67c] sm:$0xf]
      %v1080 = vld [vmem:[%s1 + $0x680] sm:$0xf]
      %v1081 = vld [vmem:[%s1 + $0x684] sm:$0xf]
      %v1082 = vld [vmem:[%s1 + $0x688] sm:$0xf]
      %v1083 = vld [vmem:[%s1 + $0x68c] sm:$0xf]
      %v1084 = vld [vmem:[%s1 + $0x690] sm:$0xf]
      %v1085 = vld [vmem:[%s1 + $0x694] sm:$0xf]
      %v1086 = vld [vmem:[%s1 + $0x698] sm:$0xf]
      %v1087 = vld [vmem:[%s1 + $0x69c] sm:$0xf]
      %v1088 = vld [vmem:[%s1 + $0x6a0] sm:$0xf]
      %v1089 = vld [vmem:[%s1 + $0x6a4] sm:$0xf]
      %v1090 = vld [vmem:[%s1 + $0x6a8] sm:$0xf]
      %v1091 = vld [vmem:[%s1 + $0x6ac] sm:$0xf]
      %v1092 = vld [vmem:[%s1 + $0x6b0] sm:$0xf]
      %v1093 = vld [vmem:[%s1 + $0x6b4] sm:$0xf]
      %v1094 = vld [vmem:[%s1 + $0x6b8] sm:$0xf]
      %v1095 = vld [vmem:[%s1 + $0x6bc] sm:$0xf]
      %v1096 = vld [vmem:[%s1 + $0x6c0] sm:$0xf]
      %v1097 = vld [vmem:[%s1 + $0x6c4] sm:$0xf]
      %v1098 = vld [vmem:[%s1 + $0x6c8] sm:$0xf]
      %v1099 = vld [vmem:[%s1 + $0x6cc] sm:$0xf]
      %v1100 = vld [vmem:[%s1 + $0x6d0] sm:$0xf]
      %v1101 = vld [vmem:[%s1 + $0x6d4] sm:$0xf]
      %v1102 = vld [vmem:[%s1 + $0x6d8] sm:$0xf]
      %v1103 = vld [vmem:[%s1 + $0x6dc] sm:$0xf]
      %v1104 = vld [vmem:[%s1 + $0x6e0] sm:$0xf]
      %v1105 = vld [vmem:[%s1 + $0x6e4] sm:$0xf]
      %v1106 = vld [vmem:[%s1 + $0x6e8] sm:$0xf]
      %v1107 = vld [vmem:[%s1 + $0x6ec] sm:$0xf]
      %v1108 = vld [vmem:[%s1 + $0x6f0] sm:$0xf]
      %v1109 = vld [vmem:[%s1 + $0x6f4] sm:$0xf]
      %v1110 = vld [vmem:[%s1 + $0x6f8] sm:$0xf]
      %v1111 = vld [vmem:[%s1 + $0x6fc] sm:$0xf]
      %v1112 = vld [vmem:[%s1 + $0x700] sm:$0xf]
      %v1113 = vld [vmem:[%s1 + $0x704] sm:$0xf]
      %v1114 = vld [vmem:[%s1 + $0x708] sm:$0xf]
      %v1115 = vld [vmem:[%s1 + $0x70c] sm:$0xf]
      %v1116 = vld [vmem:[%s1 + $0x710] sm:$0xf]
      %v1117 = vld [vmem:[%s1 + $0x714] sm:$0xf]
      %v1118 = vld [vmem:[%s1 + $0x718] sm:$0xf]
      %v1119 = vld [vmem:[%s1 + $0x71c] sm:$0xf]
      %v1120 = vld [vmem:[%s1 + $0x720] sm:$0xf]
      %v1121 = vld [vmem:[%s1 + $0x724] sm:$0xf]
      %v1122 = vld [vmem:[%s1 + $0x728] sm:$0xf]
      %v1123 = vld [vmem:[%s1 + $0x72c] sm:$0xf]
      %v1124 = vld [vmem:[%s1 + $0x730] sm:$0xf]
      %v1125 = vld [vmem:[%s1 + $0x734] sm:$0xf]
      %v1126 = vld [vmem:[%s1 + $0x738] sm:$0xf]
      %v1127 = vld [vmem:[%s1 + $0x73c] sm:$0xf]
      %v1128 = vld [vmem:[%s1 + $0x740] sm:$0xf]
      %v1129 = vld [vmem:[%s1 + $0x744] sm:$0xf]
      %v1130 = vld [vmem:[%s1 + $0x748] sm:$0xf]
      %v1131 = vld [vmem:[%s1 + $0x74c] sm:$0xf]
      %v1132 = vld [vmem:[%s1 + $0x750] sm:$0xf]
      %v1133 = vld [vmem:[%s1 + $0x754] sm:$0xf]
      %v1134 = vld [vmem:[%s1 + $0x758] sm:$0xf]
      %v1135 = vld [vmem:[%s1 + $0x75c] sm:$0xf]
      %v1136 = vld [vmem:[%s1 + $0x760] sm:$0xf]
      %v1137 = vld [vmem:[%s1 + $0x764] sm:$0xf]
      %v1138 = vld [vmem:[%s1 + $0x768] sm:$0xf]
      %v1139 = vld [vmem:[%s1 + $0x76c] sm:$0xf]
      %v1140 = vld [vmem:[%s1 + $0x770] sm:$0xf]
      %v1141 = vld [vmem:[%s1 + $0x774] sm:$0xf]
      %v1142 = vld [vmem:[%s1 + $0x778] sm:$0xf]
      %v1143 = vld [vmem:[%s1 + $0x77c] sm:$0xf]
      %v1144 = vld [vmem:[%s1 + $0x780] sm:$0xf]
      %v1145 = vld [vmem:[%s1 + $0x784] sm:$0xf]
      %v1146 = vld [vmem:[%s1 + $0x788] sm:$0xf]
      %v1147 = vld [vmem:[%s1 + $0x78c] sm:$0xf]
      %v1148 = vld [vmem:[%s1 + $0x790] sm:$0xf]
      %v1149 = vld [vmem:[%s1 + $0x794] sm:$0xf]
      %v1150 = vld [vmem:[%s1 + $0x798] sm:$0xf]
      %v1151 = vld [vmem:[%s1 + $0x79c] sm:$0xf]
      %v1152 = vld [vmem:[%s1 + $0x7a0] sm:$0xf]
      %v1153 = vld [vmem:[%s1 + $0x7a4] sm:$0xf]
      %v1154 = vld [vmem:[%s1 + $0x7a8] sm:$0xf]
      %v1155 = vld [vmem:[%s1 + $0x7ac] sm:$0xf]
      %v1156 = vld [vmem:[%s1 + $0x7b0] sm:$0xf]
      %v1157 = vld [vmem:[%s1 + $0x7b4] sm:$0xf]
      %v1158 = vld [vmem:[%s1 + $0x7b8] sm:$0xf]
      %v1159 = vld [vmem:[%s1 + $0x7bc] sm:$0xf]
      %v1160 = vld [vmem:[%s1 + $0x7c0] sm:$0xf]
      %v1161 = vld [vmem:[%s1 + $0x7c4] sm:$0xf]
      %v1162 = vld [vmem:[%s1 + $0x7c8] sm:$0xf]
      %v1163 = vld [vmem:[%s1 + $0x7cc] sm:$0xf]
      %v1164 = vld [vmem:[%s1 + $0x7d0] sm:$0xf]
      %v1165 = vld [vmem:[%s1 + $0x7d4] sm:$0xf]
      %v1166 = vld [vmem:[%s1 + $0x7d8] sm:$0xf]
      %v1167 = vld [vmem:[%s1 + $0x7dc] sm:$0xf]
      %v1168 = vld [vmem:[%s1 + $0x7e0] sm:$0xf]
      %v1169 = vld [vmem:[%s1 + $0x7e4] sm:$0xf]
      %v1170 = vld [vmem:[%s1 + $0x7e8] sm:$0xf]
      %v1171 = vld [vmem:[%s1 + $0x7ec] sm:$0xf]
      %v1172 = vld [vmem:[%s1 + $0x7f0] sm:$0xf]
      %v1173 = vld [vmem:[%s1 + $0x7f4] sm:$0xf]
      %v1174 = vld [vmem:[%s1 + $0x7f8] sm:$0xf]
      %v1175 = vld [vmem:[%s1 + $0x7fc] sm:$0xf]
      %v1176 = vld [vmem:[%s1 + $0x800] sm:$0xf]
      %v1177 = vld [vmem:[%s1 + $0x804] sm:$0xf]
      %v1178 = vld [vmem:[%s1 + $0x808] sm:$0xf]
      %v1179 = vld [vmem:[%s1 + $0x80c] sm:$0xf]
      %v1180 = vld [vmem:[%s1 + $0x810] sm:$0xf]
      %v1181 = vld [vmem:[%s1 + $0x814] sm:$0xf]
      %v1182 = vld [vmem:[%s1 + $0x818] sm:$0xf]
      %v1183 = vld [vmem:[%s1 + $0x81c] sm:$0xf]
      %v1184 = vld [vmem:[%s1 + $0x820] sm:$0xf]
      %v1185 = vld [vmem:[%s1 + $0x824] sm:$0xf]
      %v1186 = vld [vmem:[%s1 + $0x828] sm:$0xf]
      %v1187 = vld [vmem:[%s1 + $0x82c] sm:$0xf]
      %v1188 = vld [vmem:[%s1 + $0x830] sm:$0xf]
      %v1189 = vld [vmem:[%s1 + $0x834] sm:$0xf]
      %v1190 = vld [vmem:[%s1 + $0x838] sm:$0xf]
      %v1191 = vld [vmem:[%s1 + $0x83c] sm:$0xf]
      %v1192 = vld [vmem:[%s1 + $0x840] sm:$0xf]
      %v1193 = vld [vmem:[%s1 + $0x844] sm:$0xf]
      %v1194 = vld [vmem:[%s1 + $0x848] sm:$0xf]
      %v1195 = vld [vmem:[%s1 + $0x84c] sm:$0xf]
      %v1196 = vld [vmem:[%s1 + $0x850] sm:$0xf]
      %v1197 = vld [vmem:[%s1 + $0x854] sm:$0xf]
      %v1198 = vld [vmem:[%s1 + $0x858] sm:$0xf]
      %v1199 = vld [vmem:[%s1 + $0x85c] sm:$0xf]
      %v1200 = vld [vmem:[%s1 + $0x860] sm:$0xf]
      %v1201 = vld [vmem:[%s1 + $0x864] sm:$0xf]
      %v1202 = vld [vmem:[%s1 + $0x868] sm:$0xf]
      %v1203 = vld [vmem:[%s1 + $0x86c] sm:$0xf]
      %v1204 = vld [vmem:[%s1 + $0x870] sm:$0xf]
      %v1205 = vld [vmem:[%s1 + $0x874] sm:$0xf]
      %v1206 = vld [vmem:[%s1 + $0x878] sm:$0xf]
      %v1207 = vld [vmem:[%s1 + $0x87c] sm:$0xf]
      %v1208 = vld [vmem:[%s1 + $0x880] sm:$0xf]
      %v1209 = vld [vmem:[%s1 + $0x884] sm:$0xf]
      %v1210 = vld [vmem:[%s1 + $0x888] sm:$0xf]
      %v1211 = vld [vmem:[%s1 + $0x88c] sm:$0xf]
      %v1212 = vld [vmem:[%s1 + $0x890] sm:$0xf]
      %v1213 = vld [vmem:[%s1 + $0x894] sm:$0xf]
      %v1214 = vld [vmem:[%s1 + $0x898] sm:$0xf]
      %v1215 = vld [vmem:[%s1 + $0x89c] sm:$0xf]
      %v1216 = vld [vmem:[%s1 + $0x8a0] sm:$0xf]
      %v1217 = vld [vmem:[%s1 + $0x8a4] sm:$0xf]
      %v1218 = vld [vmem:[%s1 + $0x8a8] sm:$0xf]
      %v1219 = vld [vmem:[%s1 + $0x8ac] sm:$0xf]
      %v1220 = vld [vmem:[%s1 + $0x8b0] sm:$0xf]
      %v1221 = vld [vmem:[%s1 + $0x8b4] sm:$0xf]
      %v1222 = vld [vmem:[%s1 + $0x8b8] sm:$0xf]
      %v1223 = vld [vmem:[%s1 + $0x8bc] sm:$0xf]
      %v1224 = vld [vmem:[%s1 + $0x8c0] sm:$0xf]
      %v1225 = vld [vmem:[%s1 + $0x8c4] sm:$0xf]
      %v1226 = vld [vmem:[%s1 + $0x8c8] sm:$0xf]
      %v1227 = vld [vmem:[%s1 + $0x8cc] sm:$0xf]
      %v1228 = vld [vmem:[%s1 + $0x8d0] sm:$0xf]
      %v1229 = vld [vmem:[%s1 + $0x8d4] sm:$0xf]
      %v1230 = vld [vmem:[%s1 + $0x8d8] sm:$0xf]
      %v1231 = vld [vmem:[%s1 + $0x8dc] sm:$0xf]
      %v1232 = vld [vmem:[%s1 + $0x8e0] sm:$0xf]
      %v1233 = vld [vmem:[%s1 + $0x8e4] sm:$0xf]
      %v1234 = vld [vmem:[%s1 + $0x8e8] sm:$0xf]
      %v1235 = vld [vmem:[%s1 + $0x8ec] sm:$0xf]
      %v1236 = vld [vmem:[%s1 + $0x8f0] sm:$0xf]
      %v1237 = vld [vmem:[%s1 + $0x8f4] sm:$0xf]
      %v1238 = vld [vmem:[%s1 + $0x8f8] sm:$0xf]
      %v1239 = vld [vmem:[%s1 + $0x8fc] sm:$0xf]
      %v1240 = vld [vmem:[%s1 + $0x900] sm:$0xf]
      %v1241 = vld [vmem:[%s1 + $0x904] sm:$0xf]
      %v1242 = vld [vmem:[%s1 + $0x908] sm:$0xf]
      %v1243 = vld [vmem:[%s1 + $0x90c] sm:$0xf]
      %v1244 = vld [vmem:[%s1 + $0x910] sm:$0xf]
      %v1245 = vld [vmem:[%s1 + $0x914] sm:$0xf]
      %v1246 = vld [vmem:[%s1 + $0x918] sm:$0xf]
      %v1247 = vld [vmem:[%s1 + $0x91c] sm:$0xf]
      %v1248 = vld [vmem:[%s1 + $0x920] sm:$0xf]
      %v1249 = vld [vmem:[%s1 + $0x924] sm:$0xf]
      %v1250 = vld [vmem:[%s1 + $0x928] sm:$0xf]
      %v1251 = vld [vmem:[%s1 + $0x92c] sm:$0xf]
      %v1252 = vld [vmem:[%s1 + $0x930] sm:$0xf]
      %v1253 = vld [vmem:[%s1 + $0x934] sm:$0xf]
      %v1254 = vld [vmem:[%s1 + $0x938] sm:$0xf]
      %v1255 = vld [vmem:[%s1 + $0x93c] sm:$0xf]
      %v1256 = vld [vmem:[%s1 + $0x940] sm:$0xf]
      %v1257 = vld [vmem:[%s1 + $0x944] sm:$0xf]
      %v1258 = vld [vmem:[%s1 + $0x948] sm:$0xf]
      %v1259 = vld [vmem:[%s1 + $0x94c] sm:$0xf]
      %v1260 = vld [vmem:[%s1 + $0x950] sm:$0xf]
      %v1261 = vld [vmem:[%s1 + $0x954] sm:$0xf]
      %v1262 = vld [vmem:[%s1 + $0x958] sm:$0xf]
      %v1263 = vld [vmem:[%s1 + $0x95c] sm:$0xf]
      %v1264 = vld [vmem:[%s1 + $0x960] sm:$0xf]
      %v1265 = vld [vmem:[%s1 + $0x964] sm:$0xf]
      %v1266 = vld [vmem:[%s1 + $0x968] sm:$0xf]
      %v1267 = vld [vmem:[%s1 + $0x96c] sm:$0xf]
      %v1268 = vld [vmem:[%s1 + $0x970] sm:$0xf]
      %v1269 = vld [vmem:[%s1 + $0x974] sm:$0xf]
      %v1270 = vld [vmem:[%s1 + $0x978] sm:$0xf]
      %v1271 = vld [vmem:[%s1 + $0x97c] sm:$0xf]
      %v1272 = vld [vmem:[%s1 + $0x980] sm:$0xf]
      %v1273 = vld [vmem:[%s1 + $0x984] sm:$0xf]
      %v1274 = vld [vmem:[%s1 + $0x988] sm:$0xf]
      %v1275 = vld [vmem:[%s1 + $0x98c] sm:$0xf]
      %v1276 = vld [vmem:[%s1 + $0x990] sm:$0xf]
      %v1277 = vld [vmem:[%s1 + $0x994] sm:$0xf]
      %v1278 = vld [vmem:[%s1 + $0x998] sm:$0xf]
      %v1279 = vld [vmem:[%s1 + $0x99c] sm:$0xf]
      %v1280 = vld [vmem:[%s1 + $0x9a0] sm:$0xf]
      %v1281 = vld [vmem:[%s1 + $0x9a4] sm:$0xf]
      %v1282 = vld [vmem:[%s1 + $0x9a8] sm:$0xf]
      %v1283 = vld [vmem:[%s1 + $0x9ac] sm:$0xf]
      %v1284 = vld [vmem:[%s1 + $0x9b0] sm:$0xf]
      %v1285 = vld [vmem:[%s1 + $0x9b4] sm:$0xf]
      %v1286 = vld [vmem:[%s1 + $0x9b8] sm:$0xf]
      %v1287 = vld [vmem:[%s1 + $0x9bc] sm:$0xf]
      %v1288 = vld [vmem:[%s1 + $0x9c0] sm:$0xf]
      %v1289 = vld [vmem:[%s1 + $0x9c4] sm:$0xf]
      %v1290 = vld [vmem:[%s1 + $0x9c8] sm:$0xf]
      %v1291 = vld [vmem:[%s1 + $0x9cc] sm:$0xf]
      %v1292 = vld [vmem:[%s1 + $0x9d0] sm:$0xf]
      %v1293 = vld [vmem:[%s1 + $0x9d4] sm:$0xf]
      %v1294 = vld [vmem:[%s1 + $0x9d8] sm:$0xf]
      %v1295 = vld [vmem:[%s1 + $0x9dc] sm:$0xf]
      %v1296 = vld [vmem:[%s1 + $0x9e0] sm:$0xf]
      %v1297 = vld [vmem:[%s1 + $0x9e4] sm:$0xf]
      %v1298 = vld [vmem:[%s1 + $0x9e8] sm:$0xf]
      %v1299 = vld [vmem:[%s1 + $0x9ec] sm:$0xf]
      %v1300 = vld [vmem:[%s1 + $0x9f0] sm:$0xf]
      %v1301 = vld [vmem:[%s1 + $0x9f4] sm:$0xf]
      %v1302 = vld [vmem:[%s1 + $0x9f8] sm:$0xf]
      %v1303 = vld [vmem:[%s1 + $0x9fc] sm:$0xf]
      %v1304 = vld [vmem:[%s1 + $0xa00] sm:$0xf]
      %v1305 = vld [vmem:[%s1 + $0xa04] sm:$0xf]
      %v1306 = vld [vmem:[%s1 + $0xa08] sm:$0xf]
      %v1307 = vld [vmem:[%s1 + $0xa0c] sm:$0xf]
      %v1308 = vld [vmem:[%s1 + $0xa10] sm:$0xf]
      %v1309 = vld [vmem:[%s1 + $0xa14] sm:$0xf]
      %v1310 = vld [vmem:[%s1 + $0xa18] sm:$0xf]
      %v1311 = vld [vmem:[%s1 + $0xa1c] sm:$0xf]
      %v1312 = vld [vmem:[%s1 + $0xa20] sm:$0xf]
      %v1313 = vld [vmem:[%s1 + $0xa24] sm:$0xf]
      %v1314 = vld [vmem:[%s1 + $0xa28] sm:$0xf]
      %v1315 = vld [vmem:[%s1 + $0xa2c] sm:$0xf]
      %v1316 = vld [vmem:[%s1 + $0xa30] sm:$0xf]
      %v1317 = vld [vmem:[%s1 + $0xa34] sm:$0xf]
      %v1318 = vld [vmem:[%s1 + $0xa38] sm:$0xf]
      %v1319 = vld [vmem:[%s1 + $0xa3c] sm:$0xf]
      %v1320 = vld [vmem:[%s1 + $0xa40] sm:$0xf]
      %v1321 = vld [vmem:[%s1 + $0xa44] sm:$0xf]
      %v1322 = vld [vmem:[%s1 + $0xa48] sm:$0xf]
      %v1323 = vld [vmem:[%s1 + $0xa4c] sm:$0xf]
      %v1324 = vld [vmem:[%s1 + $0xa50] sm:$0xf]
      %v1325 = vld [vmem:[%s1 + $0xa54] sm:$0xf]
      %v1326 = vld [vmem:[%s1 + $0xa58] sm:$0xf]
      %v1327 = vld [vmem:[%s1 + $0xa5c] sm:$0xf]
      %v1328 = vld [vmem:[%s1 + $0xa60] sm:$0xf]
      %v1329 = vld [vmem:[%s1 + $0xa64] sm:$0xf]
      %v1330 = vld [vmem:[%s1 + $0xa68] sm:$0xf]
      %v1331 = vld [vmem:[%s1 + $0xa6c] sm:$0xf]
      %v1332 = vld [vmem:[%s1 + $0xa70] sm:$0xf]
      %v1333 = vld [vmem:[%s1 + $0xa74] sm:$0xf]
      %v1334 = vld [vmem:[%s1 + $0xa78] sm:$0xf]
      %v1335 = vld [vmem:[%s1 + $0xa7c] sm:$0xf]
      %v1336 = vld [vmem:[%s1 + $0xa80] sm:$0xf]
      %v1337 = vld [vmem:[%s1 + $0xa84] sm:$0xf]
      %v1338 = vld [vmem:[%s1 + $0xa88] sm:$0xf]
      %v1339 = vld [vmem:[%s1 + $0xa8c] sm:$0xf]
      %v1340 = vld [vmem:[%s1 + $0xa90] sm:$0xf]
      %v1341 = vld [vmem:[%s1 + $0xa94] sm:$0xf]
      %v1342 = vld [vmem:[%s1 + $0xa98] sm:$0xf]
      %v1343 = vld [vmem:[%s1 + $0xa9c] sm:$0xf]
      %v1344 = vld [vmem:[%s1 + $0xaa0] sm:$0xf]
      %v1345 = vld [vmem:[%s1 + $0xaa4] sm:$0xf]
      %v1346 = vld [vmem:[%s1 + $0xaa8] sm:$0xf]
      %v1347 = vld [vmem:[%s1 + $0xaac] sm:$0xf]
      %v1348 = vld [vmem:[%s1 + $0xab0] sm:$0xf]
      %v1349 = vld [vmem:[%s1 + $0xab4] sm:$0xf]
      %v1350 = vld [vmem:[%s1 + $0xab8] sm:$0xf]
      %v1351 = vld [vmem:[%s1 + $0xabc] sm:$0xf]
      %v1352 = vld [vmem:[%s1 + $0xac0] sm:$0xf]
      %v1353 = vld [vmem:[%s1 + $0xac4] sm:$0xf]
      %v1354 = vld [vmem:[%s1 + $0xac8] sm:$0xf]
      %v1355 = vld [vmem:[%s1 + $0xacc] sm:$0xf]
      %v1356 = vld [vmem:[%s1 + $0xad0] sm:$0xf]
      %v1357 = vld [vmem:[%s1 + $0xad4] sm:$0xf]
      %v1358 = vld [vmem:[%s1 + $0xad8] sm:$0xf]
      %v1359 = vld [vmem:[%s1 + $0xadc] sm:$0xf]
      %v1360 = vld [vmem:[%s1 + $0xae0] sm:$0xf]
      %v1361 = vld [vmem:[%s1 + $0xae4] sm:$0xf]
      %v1362 = vld [vmem:[%s1 + $0xae8] sm:$0xf]
      %v1363 = vld [vmem:[%s1 + $0xaec] sm:$0xf]
      %v1364 = vld [vmem:[%s1 + $0xaf0] sm:$0xf]
      %v1365 = vld [vmem:[%s1 + $0xaf4] sm:$0xf]
      %v1366 = vld [vmem:[%s1 + $0xaf8] sm:$0xf]
      %v1367 = vld [vmem:[%s1 + $0xafc] sm:$0xf]
      %v1368 = vld [vmem:[%s1 + $0xb00] sm:$0xf]
      %v1369 = vld [vmem:[%s1 + $0xb04] sm:$0xf]
      %v1370 = vld [vmem:[%s1 + $0xb08] sm:$0xf]
      %v1371 = vld [vmem:[%s1 + $0xb0c] sm:$0xf]
      %v1372 = vld [vmem:[%s1 + $0xb10] sm:$0xf]
      %v1373 = vld [vmem:[%s1 + $0xb14] sm:$0xf]
      %v1374 = vld [vmem:[%s1 + $0xb18] sm:$0xf]
      %v1375 = vld [vmem:[%s1 + $0xb1c] sm:$0xf]
      %v1376 = vld [vmem:[%s1 + $0xb20] sm:$0xf]
      %v1377 = vld [vmem:[%s1 + $0xb24] sm:$0xf]
      %v1378 = vld [vmem:[%s1 + $0xb28] sm:$0xf]
      %v1379 = vld [vmem:[%s1 + $0xb2c] sm:$0xf]
      %v1380 = vld [vmem:[%s1 + $0xb30] sm:$0xf]
      %v1381 = vld [vmem:[%s1 + $0xb34] sm:$0xf]
      %v1382 = vld [vmem:[%s1 + $0xb38] sm:$0xf]
      %v1383 = vld [vmem:[%s1 + $0xb3c] sm:$0xf]
      %v1384 = vld [vmem:[%s1 + $0xb40] sm:$0xf]
      %v1385 = vld [vmem:[%s1 + $0xb44] sm:$0xf]
      %v1386 = vld [vmem:[%s1 + $0xb48] sm:$0xf]
      %v1387 = vld [vmem:[%s1 + $0xb4c] sm:$0xf]
      %v1388 = vld [vmem:[%s1 + $0xb50] sm:$0xf]
      %v1389 = vld [vmem:[%s1 + $0xb54] sm:$0xf]
      %v1390 = vld [vmem:[%s1 + $0xb58] sm:$0xf]
      %v1391 = vld [vmem:[%s1 + $0xb5c] sm:$0xf]
      %v1392 = vld [vmem:[%s1 + $0xb60] sm:$0xf]
      %v1393 = vld [vmem:[%s1 + $0xb64] sm:$0xf]
      %v1394 = vld [vmem:[%s1 + $0xb68] sm:$0xf]
      %v1395 = vld [vmem:[%s1 + $0xb6c] sm:$0xf]
      %v1396 = vld [vmem:[%s1 + $0xb70] sm:$0xf]
      %v1397 = vld [vmem:[%s1 + $0xb74] sm:$0xf]
      %v1398 = vld [vmem:[%s1 + $0xb78] sm:$0xf]
      %v1399 = vld [vmem:[%s1 + $0xb7c] sm:$0xf]
      %v1400 = vld [vmem:[%s1 + $0xb80] sm:$0xf]
      %v1401 = vld [vmem:[%s1 + $0xb84] sm:$0xf]
      %v1402 = vld [vmem:[%s1 + $0xb88] sm:$0xf]
      %v1403 = vld [vmem:[%s1 + $0xb8c] sm:$0xf]
      %v1404 = vld [vmem:[%s1 + $0xb90] sm:$0xf]
      %v1405 = vld [vmem:[%s1 + $0xb94] sm:$0xf]
      %v1406 = vld [vmem:[%s1 + $0xb98] sm:$0xf]
      %v1407 = vld [vmem:[%s1 + $0xb9c] sm:$0xf]
      %v1408 = vld [vmem:[%s1 + $0xba0] sm:$0xf]
      %v1409 = vld [vmem:[%s1 + $0xba4] sm:$0xf]
      %v1410 = vld [vmem:[%s1 + $0xba8] sm:$0xf]
      %v1411 = vld [vmem:[%s1 + $0xbac] sm:$0xf]
      %v1412 = vld [vmem:[%s1 + $0xbb0] sm:$0xf]
      %v1413 = vld [vmem:[%s1 + $0xbb4] sm:$0xf]
      %v1414 = vld [vmem:[%s1 + $0xbb8] sm:$0xf]
      %v1415 = vld [vmem:[%s1 + $0xbbc] sm:$0xf]
      %v1416 = vld [vmem:[%s1 + $0xbc0] sm:$0xf]
      %v1417 = vld [vmem:[%s1 + $0xbc4] sm:$0xf]
      %v1418 = vld [vmem:[%s1 + $0xbc8] sm:$0xf]
      %v1419 = vld [vmem:[%s1 + $0xbcc] sm:$0xf]
      %v1420 = vld [vmem:[%s1 + $0xbd0] sm:$0xf]
      %v1421 = vld [vmem:[%s1 + $0xbd4] sm:$0xf]
      %v1422 = vld [vmem:[%s1 + $0xbd8] sm:$0xf]
      %v1423 = vld [vmem:[%s1 + $0xbdc] sm:$0xf]
      %v1424 = vld [vmem:[%s1 + $0xbe0] sm:$0xf]
      %v1425 = vld [vmem:[%s1 + $0xbe4] sm:$0xf]
      %v1426 = vld [vmem:[%s1 + $0xbe8] sm:$0xf]
      %v1427 = vld [vmem:[%s1 + $0xbec] sm:$0xf]
      %v1428 = vld [vmem:[%s1 + $0xbf0] sm:$0xf]
      %v1429 = vld [vmem:[%s1 + $0xbf4] sm:$0xf]
      %v1430 = vld [vmem:[%s1 + $0xbf8] sm:$0xf]
      %v1431 = vld [vmem:[%s1 + $0xbfc] sm:$0xf]
      %v1432 = vld [vmem:[%s1 + $0xc00] sm:$0xf]
      %v1433 = vld [vmem:[%s1 + $0xc04] sm:$0xf]
      %v1434 = vld [vmem:[%s1 + $0xc08] sm:$0xf]
      %v1435 = vld [vmem:[%s1 + $0xc0c] sm:$0xf]
      %v1436 = vld [vmem:[%s1 + $0xc10] sm:$0xf]
      %v1437 = vld [vmem:[%s1 + $0xc14] sm:$0xf]
      %v1438 = vld [vmem:[%s1 + $0xc18] sm:$0xf]
      %v1439 = vld [vmem:[%s1 + $0xc1c] sm:$0xf]
      %v1440 = vld [vmem:[%s1 + $0xc20] sm:$0xf]
      %v1441 = vld [vmem:[%s1 + $0xc24] sm:$0xf]
      %v1442 = vld [vmem:[%s1 + $0xc28] sm:$0xf]
      %v1443 = vld [vmem:[%s1 + $0xc2c] sm:$0xf]
      %v1444 = vld [vmem:[%s1 + $0xc30] sm:$0xf]
      %v1445 = vld [vmem:[%s1 + $0xc34] sm:$0xf]
      %v1446 = vld [vmem:[%s1 + $0xc38] sm:$0xf]
      %v1447 = vld [vmem:[%s1 + $0xc3c] sm:$0xf]
      %v1448 = vld [vmem:[%s1 + $0xc40] sm:$0xf]
      %v1449 = vld [vmem:[%s1 + $0xc44] sm:$0xf]
      %v1450 = vld [vmem:[%s1 + $0xc48] sm:$0xf]
      %v1451 = vld [vmem:[%s1 + $0xc4c] sm:$0xf]
      %v1452 = vld [vmem:[%s1 + $0xc50] sm:$0xf]
      %v1453 = vld [vmem:[%s1 + $0xc54] sm:$0xf]
      %v1454 = vld [vmem:[%s1 + $0xc58] sm:$0xf]
      %v1455 = vld [vmem:[%s1 + $0xc5c] sm:$0xf]
      %v1456 = vld [vmem:[%s1 + $0xc60] sm:$0xf]
      %v1457 = vld [vmem:[%s1 + $0xc64] sm:$0xf]
      %v1458 = vld [vmem:[%s1 + $0xc68] sm:$0xf]
      %v1459 = vld [vmem:[%s1 + $0xc6c] sm:$0xf]
      %v1460 = vld [vmem:[%s1 + $0xc70] sm:$0xf]
      %v1461 = vld [vmem:[%s1 + $0xc74] sm:$0xf]
      %v1462 = vld [vmem:[%s1 + $0xc78] sm:$0xf]
      %v1463 = vld [vmem:[%s1 + $0xc7c] sm:$0xf]
      %v1464 = vld [vmem:[%s1 + $0xc80] sm:$0xf]
      %v1465 = vld [vmem:[%s1 + $0xc84] sm:$0xf]
      %v1466 = vld [vmem:[%s1 + $0xc88] sm:$0xf]
      %v1467 = vld [vmem:[%s1 + $0xc8c] sm:$0xf]
      %v1468 = vld [vmem:[%s1 + $0xc90] sm:$0xf]
      %v1469 = vld [vmem:[%s1 + $0xc94] sm:$0xf]
      %v1470 = vld [vmem:[%s1 + $0xc98] sm:$0xf]
      %v1471 = vld [vmem:[%s1 + $0xc9c] sm:$0xf]
      %v1472 = vld [vmem:[%s1 + $0xca0] sm:$0xf]
      %v1473 = vld [vmem:[%s1 + $0xca4] sm:$0xf]
      %v1474 = vld [vmem:[%s1 + $0xca8] sm:$0xf]
      %v1475 = vld [vmem:[%s1 + $0xcac] sm:$0xf]
      %v1476 = vld [vmem:[%s1 + $0xcb0] sm:$0xf]
      %v1477 = vld [vmem:[%s1 + $0xcb4] sm:$0xf]
      %v1478 = vld [vmem:[%s1 + $0xcb8] sm:$0xf]
      %v1479 = vld [vmem:[%s1 + $0xcbc] sm:$0xf]
      %v1480 = vld [vmem:[%s1 + $0xcc0] sm:$0xf]
      %v1481 = vld [vmem:[%s1 + $0xcc4] sm:$0xf]
      %v1482 = vld [vmem:[%s1 + $0xcc8] sm:$0xf]
      %v1483 = vld [vmem:[%s1 + $0xccc] sm:$0xf]
      %v1484 = vld [vmem:[%s1 + $0xcd0] sm:$0xf]
      %v1485 = vld [vmem:[%s1 + $0xcd4] sm:$0xf]
      %v1486 = vld [vmem:[%s1 + $0xcd8] sm:$0xf]
      %v1487 = vld [vmem:[%s1 + $0xcdc] sm:$0xf]
      %v1488 = vld [vmem:[%s1 + $0xce0] sm:$0xf]
      %v1489 = vld [vmem:[%s1 + $0xce4] sm:$0xf]
      %v1490 = vld [vmem:[%s1 + $0xce8] sm:$0xf]
      %v1491 = vld [vmem:[%s1 + $0xcec] sm:$0xf]
      %v1492 = vld [vmem:[%s1 + $0xcf0] sm:$0xf]
      %v1493 = vld [vmem:[%s1 + $0xcf4] sm:$0xf]
      %v1494 = vld [vmem:[%s1 + $0xcf8] sm:$0xf]
      %v1495 = vld [vmem:[%s1 + $0xcfc] sm:$0xf]
      %v1496 = vld [vmem:[%s1 + $0xd00] sm:$0xf]
      %v1497 = vld [vmem:[%s1 + $0xd04] sm:$0xf]
      %v1498 = vld [vmem:[%s1 + $0xd08] sm:$0xf]
      %v1499 = vld [vmem:[%s1 + $0xd0c] sm:$0xf]
      %v1500 = vld [vmem:[%s1 + $0xd10] sm:$0xf]
      %v1501 = vld [vmem:[%s1 + $0xd14] sm:$0xf]
      %v1502 = vld [vmem:[%s1 + $0xd18] sm:$0xf]
      %v1503 = vld [vmem:[%s1 + $0xd1c] sm:$0xf]
      %v1504 = vld [vmem:[%s1 + $0xd20] sm:$0xf]
      %v1505 = vld [vmem:[%s1 + $0xd24] sm:$0xf]
      %v1506 = vld [vmem:[%s1 + $0xd28] sm:$0xf]
      %v1507 = vld [vmem:[%s1 + $0xd2c] sm:$0xf]
      %v1508 = vld [vmem:[%s1 + $0xd30] sm:$0xf]
      %v1509 = vld [vmem:[%s1 + $0xd34] sm:$0xf]
      %v1510 = vld [vmem:[%s1 + $0xd38] sm:$0xf]
      %v1511 = vld [vmem:[%s1 + $0xd3c] sm:$0xf]
      %v1512 = vld [vmem:[%s1 + $0xd40] sm:$0xf]
      %v1513 = vld [vmem:[%s1 + $0xd44] sm:$0xf]
      %v1514 = vld [vmem:[%s1 + $0xd48] sm:$0xf]
      %v1515 = vld [vmem:[%s1 + $0xd4c] sm:$0xf]
      %v1516 = vld [vmem:[%s1 + $0xd50] sm:$0xf]
      %v1517 = vld [vmem:[%s1 + $0xd54] sm:$0xf]
      %v1518 = vld [vmem:[%s1 + $0xd58] sm:$0xf]
      %v1519 = vld [vmem:[%s1 + $0xd5c] sm:$0xf]
      %v1520 = vld [vmem:[%s1 + $0xd60] sm:$0xf]
      %v1521 = vld [vmem:[%s1 + $0xd64] sm:$0xf]
      %v1522 = vld [vmem:[%s1 + $0xd68] sm:$0xf]
      %v1523 = vld [vmem:[%s1 + $0xd6c] sm:$0xf]
      %v1524 = vld [vmem:[%s1 + $0xd70] sm:$0xf]
      %v1525 = vld [vmem:[%s1 + $0xd74] sm:$0xf]
      %v1526 = vld [vmem:[%s1 + $0xd78] sm:$0xf]
      %v1527 = vld [vmem:[%s1 + $0xd7c] sm:$0xf]
      %v1528 = vld [vmem:[%s1 + $0xd80] sm:$0xf]
      %v1529 = vld [vmem:[%s1 + $0xd84] sm:$0xf]
      %v1530 = vld [vmem:[%s1 + $0xd88] sm:$0xf]
      %v1531 = vld [vmem:[%s1 + $0xd8c] sm:$0xf]
      %v1532 = vld [vmem:[%s1 + $0xd90] sm:$0xf]
      %v1533 = vld [vmem:[%s1 + $0xd94] sm:$0xf]
      %v1534 = vld [vmem:[%s1 + $0xd98] sm:$0xf]
      %v1535 = vld [vmem:[%s1 + $0xd9c] sm:$0xf]
      %v1536 = vld [vmem:[%s1 + $0xda0] sm:$0xf]
      %v1537 = vld [vmem:[%s1 + $0xda4] sm:$0xf]
      %v1538 = vld [vmem:[%s1 + $0xda8] sm:$0xf]
      %v1539 = vld [vmem:[%s1 + $0xdac] sm:$0xf]
      %v1540 = vld [vmem:[%s1 + $0xdb0] sm:$0xf]
      %v1541 = vld [vmem:[%s1 + $0xdb4] sm:$0xf]
      %v1542 = vld [vmem:[%s1 + $0xdb8] sm:$0xf]
      %v1543 = vld [vmem:[%s1 + $0xdbc] sm:$0xf]
      %v1544 = vld [vmem:[%s1 + $0xdc0] sm:$0xf]
      %v1545 = vld [vmem:[%s1 + $0xdc4] sm:$0xf]
      %v1546 = vld [vmem:[%s1 + $0xdc8] sm:$0xf]
      %v1547 = vld [vmem:[%s1 + $0xdcc] sm:$0xf]
      %v1548 = vld [vmem:[%s1 + $0xdd0] sm:$0xf]
      %v1549 = vld [vmem:[%s1 + $0xdd4] sm:$0xf]
      %v1550 = vld [vmem:[%s1 + $0xdd8] sm:$0xf]
      %v1551 = vld [vmem:[%s1 + $0xddc] sm:$0xf]
      %v1552 = vld [vmem:[%s1 + $0xde0] sm:$0xf]
      %v1553 = vld [vmem:[%s1 + $0xde4] sm:$0xf]
      %v1554 = vld [vmem:[%s1 + $0xde8] sm:$0xf]
      %v1555 = vld [vmem:[%s1 + $0xdec] sm:$0xf]
      %v1556 = vld [vmem:[%s1 + $0xdf0] sm:$0xf]
      %v1557 = vld [vmem:[%s1 + $0xdf4] sm:$0xf]
      %v1558 = vld [vmem:[%s1 + $0xdf8] sm:$0xf]
      %v1559 = vld [vmem:[%s1 + $0xdfc] sm:$0xf]
      %v1560 = vld [vmem:[%s1 + $0xe00] sm:$0xf]
      %v1561 = vld [vmem:[%s1 + $0xe04] sm:$0xf]
      %v1562 = vld [vmem:[%s1 + $0xe08] sm:$0xf]
      %v1563 = vld [vmem:[%s1 + $0xe0c] sm:$0xf]
      %v1564 = vld [vmem:[%s1 + $0xe10] sm:$0xf]
      %v1565 = vld [vmem:[%s1 + $0xe14] sm:$0xf]
      %v1566 = vld [vmem:[%s1 + $0xe18] sm:$0xf]
      %v1567 = vld [vmem:[%s1 + $0xe1c] sm:$0xf]
      %v1568 = vld [vmem:[%s1 + $0xe20] sm:$0xf]
      %v1569 = vld [vmem:[%s1 + $0xe24] sm:$0xf]
      %v1570 = vld [vmem:[%s1 + $0xe28] sm:$0xf]
      %v1571 = vld [vmem:[%s1 + $0xe2c] sm:$0xf]
      %v1572 = vld [vmem:[%s1 + $0xe30] sm:$0xf]
      %v1573 = vld [vmem:[%s1 + $0xe34] sm:$0xf]
      %v1574 = vld [vmem:[%s1 + $0xe38] sm:$0xf]
      %v1575 = vld [vmem:[%s1 + $0xe3c] sm:$0xf]
      %v1576 = vld [vmem:[%s1 + $0xe40] sm:$0xf]
      %v1577 = vld [vmem:[%s1 + $0xe44] sm:$0xf]
      %v1578 = vld [vmem:[%s1 + $0xe48] sm:$0xf]
      %v1579 = vld [vmem:[%s1 + $0xe4c] sm:$0xf]
      %v1580 = vld [vmem:[%s1 + $0xe50] sm:$0xf]
      %v1581 = vld [vmem:[%s1 + $0xe54] sm:$0xf]
      %v1582 = vld [vmem:[%s1 + $0xe58] sm:$0xf]
      %v1583 = vld [vmem:[%s1 + $0xe5c] sm:$0xf]
      %v1584 = vld [vmem:[%s1 + $0xe60] sm:$0xf]
      %v1585 = vld [vmem:[%s1 + $0xe64] sm:$0xf]
      %v1586 = vld [vmem:[%s1 + $0xe68] sm:$0xf]
      %v1587 = vld [vmem:[%s1 + $0xe6c] sm:$0xf]
      %v1588 = vld [vmem:[%s1 + $0xe70] sm:$0xf]
      %v1589 = vld [vmem:[%s1 + $0xe74] sm:$0xf]
      %v1590 = vld [vmem:[%s1 + $0xe78] sm:$0xf]
      %v1591 = vld [vmem:[%s1 + $0xe7c] sm:$0xf]
      %v1592 = vld [vmem:[%s1 + $0xe80] sm:$0xf]
      %v1593 = vld [vmem:[%s1 + $0xe84] sm:$0xf]
      %v1594 = vld [vmem:[%s1 + $0xe88] sm:$0xf]
      %v1595 = vld [vmem:[%s1 + $0xe8c] sm:$0xf]
      %v1596 = vld [vmem:[%s1 + $0xe90] sm:$0xf]
      %v1597 = vld [vmem:[%s1 + $0xe94] sm:$0xf]
      %v1598 = vld [vmem:[%s1 + $0xe98] sm:$0xf]
      %v1599 = vld [vmem:[%s1 + $0xe9c] sm:$0xf]
      %v1600 = vld [vmem:[%s1 + $0xea0] sm:$0xf]
      %v1601 = vld [vmem:[%s1 + $0xea4] sm:$0xf]
      %v1602 = vld [vmem:[%s1 + $0xea8] sm:$0xf]
      %v1603 = vld [vmem:[%s1 + $0xeac] sm:$0xf]
      %v1604 = vld [vmem:[%s1 + $0xeb0] sm:$0xf]
      %v1605 = vld [vmem:[%s1 + $0xeb4] sm:$0xf]
      %v1606 = vld [vmem:[%s1 + $0xeb8] sm:$0xf]
      %v1607 = vld [vmem:[%s1 + $0xebc] sm:$0xf]
      %v1608 = vld [vmem:[%s1 + $0xec0] sm:$0xf]
      %v1609 = vld [vmem:[%s1 + $0xec4] sm:$0xf]
      %v1610 = vld [vmem:[%s1 + $0xec8] sm:$0xf]
      %v1611 = vld [vmem:[%s1 + $0xecc] sm:$0xf]
      %v1612 = vld [vmem:[%s1 + $0xed0] sm:$0xf]
      %v1613 = vld [vmem:[%s1 + $0xed4] sm:$0xf]
      %v1614 = vld [vmem:[%s1 + $0xed8] sm:$0xf]
      %v1615 = vld [vmem:[%s1 + $0xedc] sm:$0xf]
      %v1616 = vld [vmem:[%s1 + $0xee0] sm:$0xf]
      %v1617 = vld [vmem:[%s1 + $0xee4] sm:$0xf]
      %v1618 = vld [vmem:[%s1 + $0xee8] sm:$0xf]
      %v1619 = vld [vmem:[%s1 + $0xeec] sm:$0xf]
      %v1620 = vld [vmem:[%s1 + $0xef0] sm:$0xf]
      %v1621 = vld [vmem:[%s1 + $0xef4] sm:$0xf]
      %v1622 = vld [vmem:[%s1 + $0xef8] sm:$0xf]
      %v1623 = vld [vmem:[%s1 + $0xefc] sm:$0xf]
      %v1624 = vld [vmem:[%s1 + $0xf00] sm:$0xf]
      %v1625 = vld [vmem:[%s1 + $0xf04] sm:$0xf]
      %v1626 = vld [vmem:[%s1 + $0xf08] sm:$0xf]
      %v1627 = vld [vmem:[%s1 + $0xf0c] sm:$0xf]
      %v1628 = vld [vmem:[%s1 + $0xf10] sm:$0xf]
      %v1629 = vld [vmem:[%s1 + $0xf14] sm:$0xf]
      %v1630 = vld [vmem:[%s1 + $0xf18] sm:$0xf]
      %v1631 = vld [vmem:[%s1 + $0xf1c] sm:$0xf]
      %v1632 = vld [vmem:[%s1 + $0xf20] sm:$0xf]
      %v1633 = vld [vmem:[%s1 + $0xf24] sm:$0xf]
      %v1634 = vld [vmem:[%s1 + $0xf28] sm:$0xf]
      %v1635 = vld [vmem:[%s1 + $0xf2c] sm:$0xf]
      %v1636 = vld [vmem:[%s1 + $0xf30] sm:$0xf]
      %v1637 = vld [vmem:[%s1 + $0xf34] sm:$0xf]
      %v1638 = vld [vmem:[%s1 + $0xf38] sm:$0xf]
      %v1639 = vld [vmem:[%s1 + $0xf3c] sm:$0xf]
      %v1640 = vld [vmem:[%s1 + $0xf40] sm:$0xf]
      %v1641 = vld [vmem:[%s1 + $0xf44] sm:$0xf]
      %v1642 = vld [vmem:[%s1 + $0xf48] sm:$0xf]
      %v1643 = vld [vmem:[%s1 + $0xf4c] sm:$0xf]
      %v1644 = vld [vmem:[%s1 + $0xf50] sm:$0xf]
      %v1645 = vld [vmem:[%s1 + $0xf54] sm:$0xf]
      %v1646 = vld [vmem:[%s1 + $0xf58] sm:$0xf]
      %v1647 = vld [vmem:[%s1 + $0xf5c] sm:$0xf]
      %v1648 = vld [vmem:[%s1 + $0xf60] sm:$0xf]
      %v1649 = vld [vmem:[%s1 + $0xf64] sm:$0xf]
      %v1650 = vld [vmem:[%s1 + $0xf68] sm:$0xf]
      %v1651 = vld [vmem:[%s1 + $0xf6c] sm:$0xf]
      %v1652 = vld [vmem:[%s1 + $0xf70] sm:$0xf]
      %v1653 = vld [vmem:[%s1 + $0xf74] sm:$0xf]
      %v1654 = vld [vmem:[%s1 + $0xf78] sm:$0xf]
      %v1655 = vld [vmem:[%s1 + $0xf7c] sm:$0xf]
      %v1656 = vld [vmem:[%s1 + $0xf80] sm:$0xf]
      %v1657 = vld [vmem:[%s1 + $0xf84] sm:$0xf]
      %v1658 = vld [vmem:[%s1 + $0xf88] sm:$0xf]
      %v1659 = vld [vmem:[%s1 + $0xf8c] sm:$0xf]
      %v1660 = vld [vmem:[%s1 + $0xf90] sm:$0xf]
      %v1661 = vld [vmem:[%s1 + $0xf94] sm:$0xf]
      %v1662 = vld [vmem:[%s1 + $0xf98] sm:$0xf]
      %v1663 = vld [vmem:[%s1 + $0xf9c] sm:$0xf]
      %v1664 = vld [vmem:[%s1 + $0xfa0] sm:$0xf]
      %v1665 = vld [vmem:[%s1 + $0xfa4] sm:$0xf]
      %v1666 = vld [vmem:[%s1 + $0xfa8] sm:$0xf]
      %v1667 = vld [vmem:[%s1 + $0xfac] sm:$0xf]
      %v1668 = vld [vmem:[%s1 + $0xfb0] sm:$0xf]
      %v1669 = vld [vmem:[%s1 + $0xfb4] sm:$0xf]
      %v1670 = vld [vmem:[%s1 + $0xfb8] sm:$0xf]
      %v1671 = vld [vmem:[%s1 + $0xfbc] sm:$0xf]
      %v1672 = vld [vmem:[%s1 + $0xfc0] sm:$0xf]
      %v1673 = vld [vmem:[%s1 + $0xfc4] sm:$0xf]
      %v1674 = vld [vmem:[%s1 + $0xfc8] sm:$0xf]
      %v1675 = vld [vmem:[%s1 + $0xfcc] sm:$0xf]
      %v1676 = vld [vmem:[%s1 + $0xfd0] sm:$0xf]
      %v1677 = vld [vmem:[%s1 + $0xfd4] sm:$0xf]
      %v1678 = vld [vmem:[%s1 + $0xfd8] sm:$0xf]
      %v1679 = vld [vmem:[%s1 + $0xfdc] sm:$0xf]
      %v1680 = vld [vmem:[%s1 + $0xfe0] sm:$0xf]
      %v1681 = vld [vmem:[%s1 + $0xfe4] sm:$0xf]
      %v1682 = vld [vmem:[%s1 + $0xfe8] sm:$0xf]
      %v1683 = vld [vmem:[%s1 + $0xfec] sm:$0xf]
      %v1684 = vld [vmem:[%s1 + $0xff0] sm:$0xf]
      %v1685 = vld [vmem:[%s1 + $0xff4] sm:$0xf]
      %v1686 = vld [vmem:[%s1 + $0xff8] sm:$0xf]
      %v1687 = vld [vmem:[%s1 + $0xffc] sm:$0xf]
      %v1688 = vld [vmem:[%s1 + $0x1000] sm:$0xf]
      %v1689 = vld [vmem:[%s1 + $0x1004] sm:$0xf]
      %v1690 = vld [vmem:[%s1 + $0x1008] sm:$0xf]
      %v1691 = vld [vmem:[%s1 + $0x100c] sm:$0xf]
      %v1692 = vld [vmem:[%s1 + $0x1010] sm:$0xf]
      %v1693 = vld [vmem:[%s1 + $0x1014] sm:$0xf]
      %v1694 = vld [vmem:[%s1 + $0x1018] sm:$0xf]
      %v1695 = vld [vmem:[%s1 + $0x101c] sm:$0xf]
      %v1696 = vld [vmem:[%s1 + $0x1020] sm:$0xf]
      %v1697 = vld [vmem:[%s1 + $0x1024] sm:$0xf]
      %v1698 = vld [vmem:[%s1 + $0x1028] sm:$0xf]
      %v1699 = vld [vmem:[%s1 + $0x102c] sm:$0xf]
      %v1700 = vld [vmem:[%s1 + $0x1030] sm:$0xf]
      %v1701 = vld [vmem:[%s1 + $0x1034] sm:$0xf]
      %v1702 = vld [vmem:[%s1 + $0x1038] sm:$0xf]
      %v1703 = vld [vmem:[%s1 + $0x103c] sm:$0xf]
      %v1704 = vld [vmem:[%s1 + $0x1040] sm:$0xf]
      %v1705 = vld [vmem:[%s1 + $0x1044] sm:$0xf]
      %v1706 = vld [vmem:[%s1 + $0x1048] sm:$0xf]
      %v1707 = vld [vmem:[%s1 + $0x104c] sm:$0xf]
      %v1708 = vld [vmem:[%s1 + $0x1050] sm:$0xf]
      %v1709 = vld [vmem:[%s1 + $0x1054] sm:$0xf]
      %v1710 = vld [vmem:[%s1 + $0x1058] sm:$0xf]
      %v1711 = vld [vmem:[%s1 + $0x105c] sm:$0xf]
      %v1712 = vld [vmem:[%s1 + $0x1060] sm:$0xf]
      %v1713 = vld [vmem:[%s1 + $0x1064] sm:$0xf]
      %v1714 = vld [vmem:[%s1 + $0x1068] sm:$0xf]
      %v1715 = vld [vmem:[%s1 + $0x106c] sm:$0xf]
      %v1716 = vld [vmem:[%s1 + $0x1070] sm:$0xf]
      %v1717 = vld [vmem:[%s1 + $0x1074] sm:$0xf]
      %v1718 = vld [vmem:[%s1 + $0x1078] sm:$0xf]
      %v1719 = vld [vmem:[%s1 + $0x107c] sm:$0xf]
      %v1720 = vld [vmem:[%s1 + $0x1080] sm:$0xf]
      %v1721 = vld [vmem:[%s1 + $0x1084] sm:$0xf]
      %v1722 = vld [vmem:[%s1 + $0x1088] sm:$0xf]
      %v1723 = vld [vmem:[%s1 + $0x108c] sm:$0xf]
      %v1724 = vld [vmem:[%s1 + $0x1090] sm:$0xf]
      %v1725 = vld [vmem:[%s1 + $0x1094] sm:$0xf]
      %v1726 = vld [vmem:[%s1 + $0x1098] sm:$0xf]
      %v1727 = vld [vmem:[%s1 + $0x109c] sm:$0xf]
      %v1728 = vld [vmem:[%s1 + $0x10a0] sm:$0xf]
      %v1729 = vld [vmem:[%s1 + $0x10a4] sm:$0xf]
      %v1730 = vld [vmem:[%s1 + $0x10a8] sm:$0xf]
      %v1731 = vld [vmem:[%s1 + $0x10ac] sm:$0xf]
      %v1732 = vld [vmem:[%s1 + $0x10b0] sm:$0xf]
      %v1733 = vld [vmem:[%s1 + $0x10b4] sm:$0xf]
      %v1734 = vld [vmem:[%s1 + $0x10b8] sm:$0xf]
      %v1735 = vld [vmem:[%s1 + $0x10bc] sm:$0xf]
      %v1736 = vld [vmem:[%s1 + $0x10c0] sm:$0xf]
      %v1737 = vld [vmem:[%s1 + $0x10c4] sm:$0xf]
      %v1738 = vld [vmem:[%s1 + $0x10c8] sm:$0xf]
      %v1739 = vld [vmem:[%s1 + $0x10cc] sm:$0xf]
      %v1740 = vld [vmem:[%s1 + $0x10d0] sm:$0xf]
      %v1741 = vld [vmem:[%s1 + $0x10d4] sm:$0xf]
      %v1742 = vld [vmem:[%s1 + $0x10d8] sm:$0xf]
      %v1743 = vld [vmem:[%s1 + $0x10dc] sm:$0xf]
      %v1744 = vld [vmem:[%s1 + $0x10e0] sm:$0xf]
      %v1745 = vld [vmem:[%s1 + $0x10e4] sm:$0xf]
      %v1746 = vld [vmem:[%s1 + $0x10e8] sm:$0xf]
      %v1747 = vld [vmem:[%s1 + $0x10ec] sm:$0xf]
      %v1748 = vld [vmem:[%s1 + $0x10f0] sm:$0xf]
      %v1749 = vld [vmem:[%s1 + $0x10f4] sm:$0xf]
      %v1750 = vld [vmem:[%s1 + $0x10f8] sm:$0xf]
      %v1751 = vld [vmem:[%s1 + $0x10fc] sm:$0xf]
      %v1752 = vld [vmem:[%s1 + $0x1100] sm:$0xf]
      %v1753 = vld [vmem:[%s1 + $0x1104] sm:$0xf]
      %v1754 = vld [vmem:[%s1 + $0x1108] sm:$0xf]
      %v1755 = vld [vmem:[%s1 + $0x110c] sm:$0xf]
      %v1756 = vld [vmem:[%s1 + $0x1110] sm:$0xf]
      %v1757 = vld [vmem:[%s1 + $0x1114] sm:$0xf]
      %v1758 = vld [vmem:[%s1 + $0x1118] sm:$0xf]
      %v1759 = vld [vmem:[%s1 + $0x111c] sm:$0xf]
      %v1760 = vld [vmem:[%s1 + $0x1120] sm:$0xf]
      %v1761 = vld [vmem:[%s1 + $0x1124] sm:$0xf]
      %v1762 = vld [vmem:[%s1 + $0x1128] sm:$0xf]
      %v1763 = vld [vmem:[%s1 + $0x112c] sm:$0xf]
      %v1764 = vld [vmem:[%s1 + $0x1130] sm:$0xf]
      %v1765 = vld [vmem:[%s1 + $0x1134] sm:$0xf]
      %v1766 = vld [vmem:[%s1 + $0x1138] sm:$0xf]
      %v1767 = vld [vmem:[%s1 + $0x113c] sm:$0xf]
      %v1768 = vld [vmem:[%s1 + $0x1140] sm:$0xf]
      %v1769 = vld [vmem:[%s1 + $0x1144] sm:$0xf]
      %v1770 = vld [vmem:[%s1 + $0x1148] sm:$0xf]
      %v1771 = vld [vmem:[%s1 + $0x114c] sm:$0xf]
      %v1772 = vld [vmem:[%s1 + $0x1150] sm:$0xf]
      %v1773 = vld [vmem:[%s1 + $0x1154] sm:$0xf]
      %v1774 = vld [vmem:[%s1 + $0x1158] sm:$0xf]
      %v1775 = vld [vmem:[%s1 + $0x115c] sm:$0xf]
      %v1776 = vld [vmem:[%s1 + $0x1160] sm:$0xf]
      %v1777 = vld [vmem:[%s1 + $0x1164] sm:$0xf]
      %v1778 = vld [vmem:[%s1 + $0x1168] sm:$0xf]
      %v1779 = vld [vmem:[%s1 + $0x116c] sm:$0xf]
      %v1780 = vld [vmem:[%s1 + $0x1170] sm:$0xf]
      %v1781 = vld [vmem:[%s1 + $0x1174] sm:$0xf]
      %v1782 = vld [vmem:[%s1 + $0x1178] sm:$0xf]
      %v1783 = vld [vmem:[%s1 + $0x117c] sm:$0xf]
      %v1784 = vld [vmem:[%s1 + $0x1180] sm:$0xf]
      %v1785 = vld [vmem:[%s1 + $0x1184] sm:$0xf]
      %v1786 = vld [vmem:[%s1 + $0x1188] sm:$0xf]
      %v1787 = vld [vmem:[%s1 + $0x118c] sm:$0xf]
      %v1788 = vld [vmem:[%s1 + $0x1190] sm:$0xf]
      %v1789 = vld [vmem:[%s1 + $0x1194] sm:$0xf]
      %v1790 = vld [vmem:[%s1 + $0x1198] sm:$0xf]
      %v1791 = vld [vmem:[%s1 + $0x119c] sm:$0xf]
      %v1792 = vld [vmem:[%s1 + $0x11a0] sm:$0xf]
      %v1793 = vld [vmem:[%s1 + $0x11a4] sm:$0xf]
      %v1794 = vld [vmem:[%s1 + $0x11a8] sm:$0xf]
      %v1795 = vld [vmem:[%s1 + $0x11ac] sm:$0xf]
      %v1796 = vld [vmem:[%s1 + $0x11b0] sm:$0xf]
      %v1797 = vld [vmem:[%s1 + $0x11b4] sm:$0xf]
      %v1798 = vld [vmem:[%s1 + $0x11b8] sm:$0xf]
      %v1799 = vld [vmem:[%s1 + $0x11bc] sm:$0xf]
      %v1800 = vld [vmem:[%s1 + $0x11c0] sm:$0xf]
      %v1801 = vld [vmem:[%s1 + $0x11c4] sm:$0xf]
      %v1802 = vld [vmem:[%s1 + $0x11c8] sm:$0xf]
      %v1803 = vld [vmem:[%s1 + $0x11cc] sm:$0xf]
      %v1804 = vld [vmem:[%s1 + $0x11d0] sm:$0xf]
      %v1805 = vld [vmem:[%s1 + $0x11d4] sm:$0xf]
      %v1806 = vld [vmem:[%s1 + $0x11d8] sm:$0xf]
      %v1807 = vld [vmem:[%s1 + $0x11dc] sm:$0xf]
      %v1808 = vld [vmem:[%s1 + $0x11e0] sm:$0xf]
      %v1809 = vld [vmem:[%s1 + $0x11e4] sm:$0xf]
      %v1810 = vld [vmem:[%s1 + $0x11e8] sm:$0xf]
      %v1811 = vld [vmem:[%s1 + $0x11ec] sm:$0xf]
      %v1812 = vld [vmem:[%s1 + $0x11f0] sm:$0xf]
      %v1813 = vld [vmem:[%s1 + $0x11f4] sm:$0xf]
      %v1814 = vld [vmem:[%s1 + $0x11f8] sm:$0xf]
      %v1815 = vld [vmem:[%s1 + $0x11fc] sm:$0xf]
      %v1816 = vld [vmem:[%s1 + $0x1200] sm:$0xf]
      %v1817 = vld [vmem:[%s1 + $0x1204] sm:$0xf]
      %v1818 = vld [vmem:[%s1 + $0x1208] sm:$0xf]
      %v1819 = vld [vmem:[%s1 + $0x120c] sm:$0xf]
      %v1820 = vld [vmem:[%s1 + $0x1210] sm:$0xf]
      %v1821 = vld [vmem:[%s1 + $0x1214] sm:$0xf]
      %v1822 = vld [vmem:[%s1 + $0x1218] sm:$0xf]
      %v1823 = vld [vmem:[%s1 + $0x121c] sm:$0xf]
      %v1824 = vld [vmem:[%s1 + $0x1220] sm:$0xf]
      %v1825 = vld [vmem:[%s1 + $0x1224] sm:$0xf]
      %v1826 = vld [vmem:[%s1 + $0x1228] sm:$0xf]
      %v1827 = vld [vmem:[%s1 + $0x122c] sm:$0xf]
      %v1828 = vld [vmem:[%s1 + $0x1230] sm:$0xf]
      %v1829 = vld [vmem:[%s1 + $0x1234] sm:$0xf]
      %v1830 = vld [vmem:[%s1 + $0x1238] sm:$0xf]
      %v1831 = vld [vmem:[%s1 + $0x123c] sm:$0xf]
      %v1832 = vld [vmem:[%s1 + $0x1240] sm:$0xf]
      %v1833 = vld [vmem:[%s1 + $0x1244] sm:$0xf]
      %v1834 = vld [vmem:[%s1 + $0x1248] sm:$0xf]
      %v1835 = vld [vmem:[%s1 + $0x124c] sm:$0xf]
      %v1836 = vld [vmem:[%s1 + $0x1250] sm:$0xf]
      %v1837 = vld [vmem:[%s1 + $0x1254] sm:$0xf]
      %v1838 = vld [vmem:[%s1 + $0x1258] sm:$0xf]
      %v1839 = vld [vmem:[%s1 + $0x125c] sm:$0xf]
      %v1840 = vld [vmem:[%s1 + $0x1260] sm:$0xf]
      %v1841 = vld [vmem:[%s1 + $0x1264] sm:$0xf]
      %v1842 = vld [vmem:[%s1 + $0x1268] sm:$0xf]
      %v1843 = vld [vmem:[%s1 + $0x126c] sm:$0xf]
      %v1844 = vld [vmem:[%s1 + $0x1270] sm:$0xf]
      %v1845 = vld [vmem:[%s1 + $0x1274] sm:$0xf]
      %v1846 = vld [vmem:[%s1 + $0x1278] sm:$0xf]
      %v1847 = vld [vmem:[%s1 + $0x127c] sm:$0xf]
      %v1848 = vld [vmem:[%s1 + $0x1280] sm:$0xf]
      %v1849 = vld [vmem:[%s1 + $0x1284] sm:$0xf]
      %v1850 = vld [vmem:[%s1 + $0x1288] sm:$0xf]
      %v1851 = vld [vmem:[%s1 + $0x128c] sm:$0xf]
      %v1852 = vld [vmem:[%s1 + $0x1290] sm:$0xf]
      %v1853 = vld [vmem:[%s1 + $0x1294] sm:$0xf]
      %v1854 = vld [vmem:[%s1 + $0x1298] sm:$0xf]
      %v1855 = vld [vmem:[%s1 + $0x129c] sm:$0xf]
      %v1856 = vld [vmem:[%s1 + $0x12a0] sm:$0xf]
      %v1857 = vld [vmem:[%s1 + $0x12a4] sm:$0xf]
      %v1858 = vld [vmem:[%s1 + $0x12a8] sm:$0xf]
      %v1859 = vld [vmem:[%s1 + $0x12ac] sm:$0xf]
      %v1860 = vld [vmem:[%s1 + $0x12b0] sm:$0xf]
      %v1861 = vld [vmem:[%s1 + $0x12b4] sm:$0xf]
      %v1862 = vld [vmem:[%s1 + $0x12b8] sm:$0xf]
      %v1863 = vld [vmem:[%s1 + $0x12bc] sm:$0xf]
      %v1864 = vld [vmem:[%s1 + $0x12c0] sm:$0xf]
      %v1865 = vld [vmem:[%s1 + $0x12c4] sm:$0xf]
      %v1866 = vld [vmem:[%s1 + $0x12c8] sm:$0xf]
      %v1867 = vld [vmem:[%s1 + $0x12cc] sm:$0xf]
      %v1868 = vld [vmem:[%s1 + $0x12d0] sm:$0xf]
      %v1869 = vld [vmem:[%s1 + $0x12d4] sm:$0xf]
      %v1870 = vld [vmem:[%s1 + $0x12d8] sm:$0xf]
      %v1871 = vld [vmem:[%s1 + $0x12dc] sm:$0xf]
      %v1872 = vld [vmem:[%s1 + $0x12e0] sm:$0xf]
      %v1873 = vld [vmem:[%s1 + $0x12e4] sm:$0xf]
      %v1874 = vld [vmem:[%s1 + $0x12e8] sm:$0xf]
      %v1875 = vld [vmem:[%s1 + $0x12ec] sm:$0xf]
      %v1876 = vld [vmem:[%s1 + $0x12f0] sm:$0xf]
      %v1877 = vld [vmem:[%s1 + $0x12f4] sm:$0xf]
      %v1878 = vld [vmem:[%s1 + $0x12f8] sm:$0xf]
      %v1879 = vld [vmem:[%s1 + $0x12fc] sm:$0xf]
      %v1880 = vld [vmem:[%s1 + $0x1300] sm:$0xf]
      %v1881 = vld [vmem:[%s1 + $0x1304] sm:$0xf]
      %v1882 = vld [vmem:[%s1 + $0x1308] sm:$0xf]
      %v1883 = vld [vmem:[%s1 + $0x130c] sm:$0xf]
      %v1884 = vld [vmem:[%s1 + $0x1310] sm:$0xf]
      %v1885 = vld [vmem:[%s1 + $0x1314] sm:$0xf]
      %v1886 = vld [vmem:[%s1 + $0x1318] sm:$0xf]
      %v1887 = vld [vmem:[%s1 + $0x131c] sm:$0xf]
      %v1888 = vld [vmem:[%s1 + $0x1320] sm:$0xf]
      %v1889 = vld [vmem:[%s1 + $0x1324] sm:$0xf]
      %v1890 = vld [vmem:[%s1 + $0x1328] sm:$0xf]
      %v1891 = vld [vmem:[%s1 + $0x132c] sm:$0xf]
      %v1892 = vld [vmem:[%s1 + $0x1330] sm:$0xf]
      %v1893 = vld [vmem:[%s1 + $0x1334] sm:$0xf]
      %v1894 = vld [vmem:[%s1 + $0x1338] sm:$0xf]
      %v1895 = vld [vmem:[%s1 + $0x133c] sm:$0xf]
      %v1896 = vld [vmem:[%s1 + $0x1340] sm:$0xf]
      %v1897 = vld [vmem:[%s1 + $0x1344] sm:$0xf]
      %v1898 = vld [vmem:[%s1 + $0x1348] sm:$0xf]
      %v1899 = vld [vmem:[%s1 + $0x134c] sm:$0xf]
      %v1900 = vld [vmem:[%s1 + $0x1350] sm:$0xf]
      %v1901 = vld [vmem:[%s1 + $0x1354] sm:$0xf]
      %v1902 = vld [vmem:[%s1 + $0x1358] sm:$0xf]
      %v1903 = vld [vmem:[%s1 + $0x135c] sm:$0xf]
      %v1904 = vld [vmem:[%s1 + $0x1360] sm:$0xf]
      %v1905 = vld [vmem:[%s1 + $0x1364] sm:$0xf]
      %v1906 = vld [vmem:[%s1 + $0x1368] sm:$0xf]
      %v1907 = vld [vmem:[%s1 + $0x136c] sm:$0xf]
      %v1908 = vld [vmem:[%s1 + $0x1370] sm:$0xf]
      %v1909 = vld [vmem:[%s1 + $0x1374] sm:$0xf]
      %v1910 = vld [vmem:[%s1 + $0x1378] sm:$0xf]
      %v1911 = vld [vmem:[%s1 + $0x137c] sm:$0xf]
      %v1912 = vld [vmem:[%s1 + $0x1380] sm:$0xf]
      %v1913 = vld [vmem:[%s1 + $0x1384] sm:$0xf]
      %v1914 = vld [vmem:[%s2] sm:$0x1]
      %v1915 = vld [vmem:[%s655] sm:$0xff]
      %v1916 = vld [vmem:[%s655 + $0x8] sm:$0xff]
      %v1917 = vld [vmem:[%s655 + $0x10] sm:$0xff]
      %v1918 = vld [vmem:[%s655 + $0x18] sm:$0xff]
      %v1919 = vld [vmem:[%s655 + $0x20] sm:$0xff]
      %v1920 = vld [vmem:[%s655 + $0x28] sm:$0xff]
      %v1921 = vld [vmem:[%s655 + $0x30] sm:$0xff]
      %v1922 = vld [vmem:[%s655 + $0x38] sm:$0xff]
      %v1923 = vld [vmem:[%s655 + $0x40] sm:$0xff]
      %v1924 = vld [vmem:[%s655 + $0x48] sm:$0xff]
      %v1925 = vld [vmem:[%s655 + $0x50] sm:$0xff]
      %v1926 = vld [vmem:[%s655 + $0x58] sm:$0xff]
      %v1927 = vld [vmem:[%s655 + $0x60] sm:$0xff]
      %v1928 = vld [vmem:[%s655 + $0x68] sm:$0xff]
      %v1929 = vld [vmem:[%s655 + $0x70] sm:$0xff]
      %v1930 = vld [vmem:[%s655 + $0x78] sm:$0xff]
      %v1931 = vld [vmem:[%s655 + $0x80] sm:$0xff]
      %v1932 = vld [vmem:[%s655 + $0x88] sm:$0xff]
      %v1933 = vld [vmem:[%s655 + $0x90] sm:$0xff]
      %v1934 = vld [vmem:[%s655 + $0x98] sm:$0xff]
      %v1935 = vld [vmem:[%s655 + $0xa0] sm:$0xff]
      %v1936 = vld [vmem:[%s655 + $0xa8] sm:$0xff]
      %v1937 = vld [vmem:[%s655 + $0xb0] sm:$0xff]
      %v1938 = vld [vmem:[%s655 + $0xb8] sm:$0xff]
      %v1939 = vld [vmem:[%s655 + $0xc0] sm:$0xff]
      %v1940 = vld [vmem:[%s655 + $0xc8] sm:$0xff]
      %v1941 = vld [vmem:[%s655 + $0xd0] sm:$0xff]
      %v1942 = vld [vmem:[%s655 + $0xd8] sm:$0xff]
      %v1943 = vld [vmem:[%s655 + $0xe0] sm:$0xff]
      %v1944 = vld [vmem:[%s655 + $0xe8] sm:$0xff]
      %v1945 = vld [vmem:[%s655 + $0xf0] sm:$0xff]
      %v1946 = vld [vmem:[%s655 + $0xf8] sm:$0xff]
      %v1947 = vld [vmem:[%s655 + $0x100] sm:$0xff]
      %v1948 = vld [vmem:[%s655 + $0x108] sm:$0xff]
      %v1949 = vld [vmem:[%s655 + $0x110] sm:$0xff]
      %v1950 = vld [vmem:[%s655 + $0x118] sm:$0xff]
      %v1951 = vld [vmem:[%s655 + $0x120] sm:$0xff]
      %v1952 = vld [vmem:[%s655 + $0x128] sm:$0xff]
      %v1953 = vld [vmem:[%s655 + $0x130] sm:$0xff]
      %v1954 = vld [vmem:[%s655 + $0x138] sm:$0xf]
      %v1955 = vld [vmem:[%s655 + $0x13c] sm:$0xff]
      %v1956 = vld [vmem:[%s655 + $0x144] sm:$0xff]
      %v1957 = vld [vmem:[%s655 + $0x14c] sm:$0xff]
      %v1958 = vld [vmem:[%s655 + $0x154] sm:$0xff]
      %v1959 = vld [vmem:[%s655 + $0x15c] sm:$0xff]
      %v1960 = vld [vmem:[%s655 + $0x164] sm:$0xff]
      %v1961 = vld [vmem:[%s655 + $0x16c] sm:$0xff]
      %v1962 = vld [vmem:[%s655 + $0x174] sm:$0xff]
      %v1963 = vld [vmem:[%s655 + $0x17c] sm:$0xff]
      %v1964 = vld [vmem:[%s655 + $0x184] sm:$0xff]
      %v1965 = vld [vmem:[%s655 + $0x18c] sm:$0xff]
      %v1966 = vld [vmem:[%s655 + $0x194] sm:$0xff]
      %v1967 = vld [vmem:[%s655 + $0x19c] sm:$0xff]
      %v1968 = vld [vmem:[%s655 + $0x1a4] sm:$0xff]
      %v1969 = vld [vmem:[%s655 + $0x1ac] sm:$0xff]
      %v1970 = vld [vmem:[%s655 + $0x1b4] sm:$0xff]
      %v1971 = vld [vmem:[%s655 + $0x1bc] sm:$0xff]
      %v1972 = vld [vmem:[%s655 + $0x1c4] sm:$0xff]
      %v1973 = vld [vmem:[%s655 + $0x1cc] sm:$0xff]
      %v1974 = vld [vmem:[%s655 + $0x1d4] sm:$0xff]
      %v1975 = vld [vmem:[%s655 + $0x1dc] sm:$0xff]
      %v1976 = vld [vmem:[%s655 + $0x1e4] sm:$0xff]
      %v1977 = vld [vmem:[%s655 + $0x1ec] sm:$0xff]
      %v1978 = vld [vmem:[%s655 + $0x1f4] sm:$0xff]
      %v1979 = vld [vmem:[%s655 + $0x1fc] sm:$0xff]
      %v1980 = vld [vmem:[%s655 + $0x204] sm:$0xff]
      %v1981 = vld [vmem:[%s655 + $0x20c] sm:$0xff]
      %v1982 = vld [vmem:[%s655 + $0x214] sm:$0xff]
      %v1983 = vld [vmem:[%s655 + $0x21c] sm:$0xff]
      %v1984 = vld [vmem:[%s655 + $0x224] sm:$0xff]
      %v1985 = vld [vmem:[%s655 + $0x22c] sm:$0xff]
      %v1986 = vld [vmem:[%s655 + $0x234] sm:$0xff]
      %v1987 = vld [vmem:[%s655 + $0x23c] sm:$0xff]
      %v1988 = vld [vmem:[%s655 + $0x244] sm:$0xff]
      %v1989 = vld [vmem:[%s655 + $0x24c] sm:$0xff]
      %v1990 = vld [vmem:[%s655 + $0x254] sm:$0xff]
      %v1991 = vld [vmem:[%s655 + $0x25c] sm:$0xff]
      %v1992 = vld [vmem:[%s655 + $0x264] sm:$0xff]
      %v1993 = vld [vmem:[%s655 + $0x26c] sm:$0xff]
      %v1994 = vld [vmem:[%s655 + $0x274] sm:$0xf]
      %v1995 = vld [vmem:[%s655 + $0x278] sm:$0xff]
      %v1996 = vld [vmem:[%s655 + $0x280] sm:$0xff]
      %v1997 = vld [vmem:[%s655 + $0x288] sm:$0xff]
      %v1998 = vld [vmem:[%s655 + $0x290] sm:$0xff]
      %v1999 = vld [vmem:[%s655 + $0x298] sm:$0xff]
      %v2000 = vld [vmem:[%s655 + $0x2a0] sm:$0xff]
      %v2001 = vld [vmem:[%s655 + $0x2a8] sm:$0xff]
      %v2002 = vld [vmem:[%s655 + $0x2b0] sm:$0xff]
      %v2003 = vld [vmem:[%s655 + $0x2b8] sm:$0xff]
      %v2004 = vld [vmem:[%s655 + $0x2c0] sm:$0xff]
      %v2005 = vld [vmem:[%s655 + $0x2c8] sm:$0xff]
      %v2006 = vld [vmem:[%s655 + $0x2d0] sm:$0xff]
      %v2007 = vld [vmem:[%s655 + $0x2d8] sm:$0xff]
      %v2008 = vld [vmem:[%s655 + $0x2e0] sm:$0xff]
      %v2009 = vld [vmem:[%s655 + $0x2e8] sm:$0xff]
      %v2010 = vld [vmem:[%s655 + $0x2f0] sm:$0xff]
      %v2011 = vld [vmem:[%s655 + $0x2f8] sm:$0xff]
      %v2012 = vld [vmem:[%s655 + $0x300] sm:$0xff]
      %v2013 = vld [vmem:[%s655 + $0x308] sm:$0xff]
      %v2014 = vld [vmem:[%s655 + $0x310] sm:$0xff]
      %v2015 = vld [vmem:[%s655 + $0x318] sm:$0xff]
      %v2016 = vld [vmem:[%s655 + $0x320] sm:$0xff]
      %v2017 = vld [vmem:[%s655 + $0x328] sm:$0xff]
      %v2018 = vld [vmem:[%s655 + $0x330] sm:$0xff]
      %v2019 = vld [vmem:[%s655 + $0x338] sm:$0xff]
      %v2020 = vld [vmem:[%s655 + $0x340] sm:$0xff]
      %v2021 = vld [vmem:[%s655 + $0x348] sm:$0xff]
      %v2022 = vld [vmem:[%s655 + $0x350] sm:$0xff]
      %v2023 = vld [vmem:[%s655 + $0x358] sm:$0xff]
      %v2024 = vld [vmem:[%s655 + $0x360] sm:$0xff]
      %v2025 = vld [vmem:[%s655 + $0x368] sm:$0xff]
      %v2026 = vld [vmem:[%s655 + $0x370] sm:$0xff]
      %v2027 = vld [vmem:[%s655 + $0x378] sm:$0xff]
      %v2028 = vld [vmem:[%s655 + $0x380] sm:$0xff]
      %v2029 = vld [vmem:[%s655 + $0x388] sm:$0xff]
      %v2030 = vld [vmem:[%s655 + $0x390] sm:$0xff]
      %v2031 = vld [vmem:[%s655 + $0x398] sm:$0xff]
      %v2032 = vld [vmem:[%s655 + $0x3a0] sm:$0xff]
      %v2033 = vld [vmem:[%s655 + $0x3a8] sm:$0xff]
      %v2034 = vld [vmem:[%s655 + $0x3b0] sm:$0xf]
      %v2035 = vld [vmem:[%s655 + $0x3b4] sm:$0xff]
      %v2036 = vld [vmem:[%s655 + $0x3bc] sm:$0xff]
      %v2037 = vld [vmem:[%s655 + $0x3c4] sm:$0xff]
      %v2038 = vld [vmem:[%s655 + $0x3cc] sm:$0xff]
      %v2039 = vld [vmem:[%s655 + $0x3d4] sm:$0xff]
      %v2040 = vld [vmem:[%s655 + $0x3dc] sm:$0xff]
      %v2041 = vld [vmem:[%s655 + $0x3e4] sm:$0xff]
      %v2042 = vld [vmem:[%s655 + $0x3ec] sm:$0xff]
      %v2043 = vld [vmem:[%s655 + $0x3f4] sm:$0xff]
      %v2044 = vld [vmem:[%s655 + $0x3fc] sm:$0xff]
      %v2045 = vld [vmem:[%s655 + $0x404] sm:$0xff]
      %v2046 = vld [vmem:[%s655 + $0x40c] sm:$0xff]
      %v2047 = vld [vmem:[%s655 + $0x414] sm:$0xff]
      %v2048 = vld [vmem:[%s655 + $0x41c] sm:$0xff]
      %v2049 = vld [vmem:[%s655 + $0x424] sm:$0xff]
      %v2050 = vld [vmem:[%s655 + $0x42c] sm:$0xff]
      %v2051 = vld [vmem:[%s655 + $0x434] sm:$0xff]
      %v2052 = vld [vmem:[%s655 + $0x43c] sm:$0xff]
      %v2053 = vld [vmem:[%s655 + $0x444] sm:$0xff]
      %v2054 = vld [vmem:[%s655 + $0x44c] sm:$0xff]
      %v2055 = vld [vmem:[%s655 + $0x454] sm:$0xff]
      %v2056 = vld [vmem:[%s655 + $0x45c] sm:$0xff]
      %v2057 = vld [vmem:[%s655 + $0x464] sm:$0xff]
      %v2058 = vld [vmem:[%s655 + $0x46c] sm:$0xff]
      %v2059 = vld [vmem:[%s655 + $0x474] sm:$0xff]
      %v2060 = vld [vmem:[%s655 + $0x47c] sm:$0xff]
      %v2061 = vld [vmem:[%s655 + $0x484] sm:$0xff]
      %v2062 = vld [vmem:[%s655 + $0x48c] sm:$0xff]
      %v2063 = vld [vmem:[%s655 + $0x494] sm:$0xff]
      %v2064 = vld [vmem:[%s655 + $0x49c] sm:$0xff]
      %v2065 = vld [vmem:[%s655 + $0x4a4] sm:$0xff]
      %v2066 = vld [vmem:[%s655 + $0x4ac] sm:$0xff]
      %v2067 = vld [vmem:[%s655 + $0x4b4] sm:$0xff]
      %v2068 = vld [vmem:[%s655 + $0x4bc] sm:$0xff]
      %v2069 = vld [vmem:[%s655 + $0x4c4] sm:$0xff]
      %v2070 = vld [vmem:[%s655 + $0x4cc] sm:$0xff]
      %v2071 = vld [vmem:[%s655 + $0x4d4] sm:$0xff]
      %v2072 = vld [vmem:[%s655 + $0x4dc] sm:$0xff]
      %v2073 = vld [vmem:[%s655 + $0x4e4] sm:$0xff]
      %v2074 = vld [vmem:[%s655 + $0x4ec] sm:$0xf]
      %v2076 = vlaneseq
      %v2077 = vshrl.u32 %v2076, 7
      %v2078 = vsub.s32 0, %v2077
      %v2079 = vrot.slane %v1914, %v2078
      %v2241 = vunpack.c.l.b16 %v1915
      %v2242 = vunpack.c.h.b16 %v1915
      %v2243 = vunpack.c.l.b16 %v1916
      %v2244 = vunpack.c.h.b16 %v1916
      %v2245 = vunpack.c.l.b16 %v1917
      %v2246 = vunpack.c.h.b16 %v1917
      %v2247 = vunpack.c.l.b16 %v1918
      %v2248 = vunpack.c.h.b16 %v1918
      %v2249 = vunpack.c.l.b16 %v1919
      %v2250 = vunpack.c.h.b16 %v1919
      %v2251 = vunpack.c.l.b16 %v1920
      %v2252 = vunpack.c.h.b16 %v1920
      %v2253 = vunpack.c.l.b16 %v1921
      %v2254 = vunpack.c.h.b16 %v1921
      %v2255 = vunpack.c.l.b16 %v1922
      %v2256 = vunpack.c.h.b16 %v1922
      %v2257 = vunpack.c.l.b16 %v1923
      %v2258 = vunpack.c.h.b16 %v1923
      %v2259 = vunpack.c.l.b16 %v1924
      %v2260 = vunpack.c.h.b16 %v1924
      %v2261 = vunpack.c.l.b16 %v1925
      %v2262 = vunpack.c.h.b16 %v1925
      %v2263 = vunpack.c.l.b16 %v1926
      %v2264 = vunpack.c.h.b16 %v1926
      %v2265 = vunpack.c.l.b16 %v1927
      %v2266 = vunpack.c.h.b16 %v1927
      %v2267 = vunpack.c.l.b16 %v1928
      %v2268 = vunpack.c.h.b16 %v1928
      %v2269 = vunpack.c.l.b16 %v1929
      %v2270 = vunpack.c.h.b16 %v1929
      %v2271 = vunpack.c.l.b16 %v1930
      %v2272 = vunpack.c.h.b16 %v1930
      %v2273 = vunpack.c.l.b16 %v1931
      %v2274 = vunpack.c.h.b16 %v1931
      %v2275 = vunpack.c.l.b16 %v1932
      %v2276 = vunpack.c.h.b16 %v1932
      %v2277 = vunpack.c.l.b16 %v1933
      %v2278 = vunpack.c.h.b16 %v1933
      %v2279 = vunpack.c.l.b16 %v1934
      %v2280 = vunpack.c.h.b16 %v1934
      %v2281 = vunpack.c.l.b16 %v1935
      %v2282 = vunpack.c.h.b16 %v1935
      %v2283 = vunpack.c.l.b16 %v1936
      %v2284 = vunpack.c.h.b16 %v1936
      %v2285 = vunpack.c.l.b16 %v1937
      %v2286 = vunpack.c.h.b16 %v1937
      %v2287 = vunpack.c.l.b16 %v1938
      %v2288 = vunpack.c.h.b16 %v1938
      %v2289 = vunpack.c.l.b16 %v1939
      %v2290 = vunpack.c.h.b16 %v1939
      %v2291 = vunpack.c.l.b16 %v1940
      %v2292 = vunpack.c.h.b16 %v1940
      %v2293 = vunpack.c.l.b16 %v1941
      %v2294 = vunpack.c.h.b16 %v1941
      %v2295 = vunpack.c.l.b16 %v1942
      %v2296 = vunpack.c.h.b16 %v1942
      %v2297 = vunpack.c.l.b16 %v1943
      %v2298 = vunpack.c.h.b16 %v1943
      %v2299 = vunpack.c.l.b16 %v1944
      %v2300 = vunpack.c.h.b16 %v1944
      %v2301 = vunpack.c.l.b16 %v1945
      %v2302 = vunpack.c.h.b16 %v1945
      %v2303 = vunpack.c.l.b16 %v1946
      %v2304 = vunpack.c.h.b16 %v1946
      %v2305 = vunpack.c.l.b16 %v1947
      %v2306 = vunpack.c.h.b16 %v1947
      %v2307 = vunpack.c.l.b16 %v1948
      %v2308 = vunpack.c.h.b16 %v1948
      %v2309 = vunpack.c.l.b16 %v1949
      %v2310 = vunpack.c.h.b16 %v1949
      %v2311 = vunpack.c.l.b16 %v1950
      %v2312 = vunpack.c.h.b16 %v1950
      %v2313 = vunpack.c.l.b16 %v1951
      %v2314 = vunpack.c.h.b16 %v1951
      %v2315 = vunpack.c.l.b16 %v1952
      %v2316 = vunpack.c.h.b16 %v1952
      %v2317 = vunpack.c.l.b16 %v1953
      %v2318 = vunpack.c.h.b16 %v1953
      %v2319 = vunpack.c.l.b16 %v1954
      %v2320 = vunpack.c.l.b16 %v1955
      %v2321 = vunpack.c.h.b16 %v1955
      %v2322 = vunpack.c.l.b16 %v1956
      %v2323 = vunpack.c.h.b16 %v1956
      %v2324 = vunpack.c.l.b16 %v1957
      %v2325 = vunpack.c.h.b16 %v1957
      %v2326 = vunpack.c.l.b16 %v1958
      %v2327 = vunpack.c.h.b16 %v1958
      %v2328 = vunpack.c.l.b16 %v1959
      %v2329 = vunpack.c.h.b16 %v1959
      %v2330 = vunpack.c.l.b16 %v1960
      %v2331 = vunpack.c.h.b16 %v1960
      %v2332 = vunpack.c.l.b16 %v1961
      %v2333 = vunpack.c.h.b16 %v1961
      %v2334 = vunpack.c.l.b16 %v1962
      %v2335 = vunpack.c.h.b16 %v1962
      %v2336 = vunpack.c.l.b16 %v1963
      %v2337 = vunpack.c.h.b16 %v1963
      %v2338 = vunpack.c.l.b16 %v1964
      %v2339 = vunpack.c.h.b16 %v1964
      %v2340 = vunpack.c.l.b16 %v1965
      %v2341 = vunpack.c.h.b16 %v1965
      %v2342 = vunpack.c.l.b16 %v1966
      %v2343 = vunpack.c.h.b16 %v1966
      %v2344 = vunpack.c.l.b16 %v1967
      %v2345 = vunpack.c.h.b16 %v1967
      %v2346 = vunpack.c.l.b16 %v1968
      %v2347 = vunpack.c.h.b16 %v1968
      %v2348 = vunpack.c.l.b16 %v1969
      %v2349 = vunpack.c.h.b16 %v1969
      %v2350 = vunpack.c.l.b16 %v1970
      %v2351 = vunpack.c.h.b16 %v1970
      %v2352 = vunpack.c.l.b16 %v1971
      %v2353 = vunpack.c.h.b16 %v1971
      %v2354 = vunpack.c.l.b16 %v1972
      %v2355 = vunpack.c.h.b16 %v1972
      %v2356 = vunpack.c.l.b16 %v1973
      %v2357 = vunpack.c.h.b16 %v1973
      %v2358 = vunpack.c.l.b16 %v1974
      %v2359 = vunpack.c.h.b16 %v1974
      %v2360 = vunpack.c.l.b16 %v1975
      %v2361 = vunpack.c.h.b16 %v1975
      %v2362 = vunpack.c.l.b16 %v1976
      %v2363 = vunpack.c.h.b16 %v1976
      %v2364 = vunpack.c.l.b16 %v1977
      %v2365 = vunpack.c.h.b16 %v1977
      %v2366 = vunpack.c.l.b16 %v1978
      %v2367 = vunpack.c.h.b16 %v1978
      %v2368 = vunpack.c.l.b16 %v1979
      %v2369 = vunpack.c.h.b16 %v1979
      %v2370 = vunpack.c.l.b16 %v1980
      %v2371 = vunpack.c.h.b16 %v1980
      %v2372 = vunpack.c.l.b16 %v1981
      %v2373 = vunpack.c.h.b16 %v1981
      %v2374 = vunpack.c.l.b16 %v1982
      %v2375 = vunpack.c.h.b16 %v1982
      %v2376 = vunpack.c.l.b16 %v1983
      %v2377 = vunpack.c.h.b16 %v1983
      %v2378 = vunpack.c.l.b16 %v1984
      %v2379 = vunpack.c.h.b16 %v1984
      %v2380 = vunpack.c.l.b16 %v1985
      %v2381 = vunpack.c.h.b16 %v1985
      %v2382 = vunpack.c.l.b16 %v1986
      %v2383 = vunpack.c.h.b16 %v1986
      %v2384 = vunpack.c.l.b16 %v1987
      %v2385 = vunpack.c.h.b16 %v1987
      %v2386 = vunpack.c.l.b16 %v1988
      %v2387 = vunpack.c.h.b16 %v1988
      %v2388 = vunpack.c.l.b16 %v1989
      %v2389 = vunpack.c.h.b16 %v1989
      %v2390 = vunpack.c.l.b16 %v1990
      %v2391 = vunpack.c.h.b16 %v1990
      %v2392 = vunpack.c.l.b16 %v1991
      %v2393 = vunpack.c.h.b16 %v1991
      %v2394 = vunpack.c.l.b16 %v1992
      %v2395 = vunpack.c.h.b16 %v1992
      %v2396 = vunpack.c.l.b16 %v1993
      %v2397 = vunpack.c.h.b16 %v1993
      %v2398 = vunpack.c.l.b16 %v1994
      %v2399 = vunpack.c.l.b16 %v1995
      %v2400 = vunpack.c.h.b16 %v1995
      %v2401 = vunpack.c.l.b16 %v1996
      %v2402 = vunpack.c.h.b16 %v1996
      %v2403 = vunpack.c.l.b16 %v1997
      %v2404 = vunpack.c.h.b16 %v1997
      %v2405 = vunpack.c.l.b16 %v1998
      %v2406 = vunpack.c.h.b16 %v1998
      %v2407 = vunpack.c.l.b16 %v1999
      %v2408 = vunpack.c.h.b16 %v1999
      %v2409 = vunpack.c.l.b16 %v2000
      %v2410 = vunpack.c.h.b16 %v2000
      %v2411 = vunpack.c.l.b16 %v2001
      %v2412 = vunpack.c.h.b16 %v2001
      %v2413 = vunpack.c.l.b16 %v2002
      %v2414 = vunpack.c.h.b16 %v2002
      %v2415 = vunpack.c.l.b16 %v2003
      %v2416 = vunpack.c.h.b16 %v2003
      %v2417 = vunpack.c.l.b16 %v2004
      %v2418 = vunpack.c.h.b16 %v2004
      %v2419 = vunpack.c.l.b16 %v2005
      %v2420 = vunpack.c.h.b16 %v2005
      %v2421 = vunpack.c.l.b16 %v2006
      %v2422 = vunpack.c.h.b16 %v2006
      %v2423 = vunpack.c.l.b16 %v2007
      %v2424 = vunpack.c.h.b16 %v2007
      %v2425 = vunpack.c.l.b16 %v2008
      %v2426 = vunpack.c.h.b16 %v2008
      %v2427 = vunpack.c.l.b16 %v2009
      %v2428 = vunpack.c.h.b16 %v2009
      %v2429 = vunpack.c.l.b16 %v2010
      %v2430 = vunpack.c.h.b16 %v2010
      %v2431 = vunpack.c.l.b16 %v2011
      %v2432 = vunpack.c.h.b16 %v2011
      %v2433 = vunpack.c.l.b16 %v2012
      %v2434 = vunpack.c.h.b16 %v2012
      %v2435 = vunpack.c.l.b16 %v2013
      %v2436 = vunpack.c.h.b16 %v2013
      %v2437 = vunpack.c.l.b16 %v2014
      %v2438 = vunpack.c.h.b16 %v2014
      %v2439 = vunpack.c.l.b16 %v2015
      %v2440 = vunpack.c.h.b16 %v2015
      %v2441 = vunpack.c.l.b16 %v2016
      %v2442 = vunpack.c.h.b16 %v2016
      %v2443 = vunpack.c.l.b16 %v2017
      %v2444 = vunpack.c.h.b16 %v2017
      %v2445 = vunpack.c.l.b16 %v2018
      %v2446 = vunpack.c.h.b16 %v2018
      %v2447 = vunpack.c.l.b16 %v2019
      %v2448 = vunpack.c.h.b16 %v2019
      %v2449 = vunpack.c.l.b16 %v2020
      %v2450 = vunpack.c.h.b16 %v2020
      %v2451 = vunpack.c.l.b16 %v2021
      %v2452 = vunpack.c.h.b16 %v2021
      %v2453 = vunpack.c.l.b16 %v2022
      %v2454 = vunpack.c.h.b16 %v2022
      %v2455 = vunpack.c.l.b16 %v2023
      %v2456 = vunpack.c.h.b16 %v2023
      %v2457 = vunpack.c.l.b16 %v2024
      %v2458 = vunpack.c.h.b16 %v2024
      %v2459 = vunpack.c.l.b16 %v2025
      %v2460 = vunpack.c.h.b16 %v2025
      %v2461 = vunpack.c.l.b16 %v2026
      %v2462 = vunpack.c.h.b16 %v2026
      %v2463 = vunpack.c.l.b16 %v2027
      %v2464 = vunpack.c.h.b16 %v2027
      %v2465 = vunpack.c.l.b16 %v2028
      %v2466 = vunpack.c.h.b16 %v2028
      %v2467 = vunpack.c.l.b16 %v2029
      %v2468 = vunpack.c.h.b16 %v2029
      %v2469 = vunpack.c.l.b16 %v2030
      %v2470 = vunpack.c.h.b16 %v2030
      %v2471 = vunpack.c.l.b16 %v2031
      %v2472 = vunpack.c.h.b16 %v2031
      %v2473 = vunpack.c.l.b16 %v2032
      %v2474 = vunpack.c.h.b16 %v2032
      %v2475 = vunpack.c.l.b16 %v2033
      %v2476 = vunpack.c.h.b16 %v2033
      %v2477 = vunpack.c.l.b16 %v2034
      %v2478 = vunpack.c.l.b16 %v2035
      %v2479 = vunpack.c.h.b16 %v2035
      %v2480 = vunpack.c.l.b16 %v2036
      %v2481 = vunpack.c.h.b16 %v2036
      %v2482 = vunpack.c.l.b16 %v2037
      %v2483 = vunpack.c.h.b16 %v2037
      %v2484 = vunpack.c.l.b16 %v2038
      %v2485 = vunpack.c.h.b16 %v2038
      %v2486 = vunpack.c.l.b16 %v2039
      %v2487 = vunpack.c.h.b16 %v2039
      %v2488 = vunpack.c.l.b16 %v2040
      %v2489 = vunpack.c.h.b16 %v2040
      %v2490 = vunpack.c.l.b16 %v2041
      %v2491 = vunpack.c.h.b16 %v2041
      %v2492 = vunpack.c.l.b16 %v2042
      %v2493 = vunpack.c.h.b16 %v2042
      %v2494 = vunpack.c.l.b16 %v2043
      %v2495 = vunpack.c.h.b16 %v2043
      %v2496 = vunpack.c.l.b16 %v2044
      %v2497 = vunpack.c.h.b16 %v2044
      %v2498 = vunpack.c.l.b16 %v2045
      %v2499 = vunpack.c.h.b16 %v2045
      %v2500 = vunpack.c.l.b16 %v2046
      %v2501 = vunpack.c.h.b16 %v2046
      %v2502 = vunpack.c.l.b16 %v2047
      %v2503 = vunpack.c.h.b16 %v2047
      %v2504 = vunpack.c.l.b16 %v2048
      %v2505 = vunpack.c.h.b16 %v2048
      %v2506 = vunpack.c.l.b16 %v2049
      %v2507 = vunpack.c.h.b16 %v2049
      %v2508 = vunpack.c.l.b16 %v2050
      %v2509 = vunpack.c.h.b16 %v2050
      %v2510 = vunpack.c.l.b16 %v2051
      %v2511 = vunpack.c.h.b16 %v2051
      %v2512 = vunpack.c.l.b16 %v2052
      %v2513 = vunpack.c.h.b16 %v2052
      %v2514 = vunpack.c.l.b16 %v2053
      %v2515 = vunpack.c.h.b16 %v2053
      %v2516 = vunpack.c.l.b16 %v2054
      %v2517 = vunpack.c.h.b16 %v2054
      %v2518 = vunpack.c.l.b16 %v2055
      %v2519 = vunpack.c.h.b16 %v2055
      %v2520 = vunpack.c.l.b16 %v2056
      %v2521 = vunpack.c.h.b16 %v2056
      %v2522 = vunpack.c.l.b16 %v2057
      %v2523 = vunpack.c.h.b16 %v2057
      %v2524 = vunpack.c.l.b16 %v2058
      %v2525 = vunpack.c.h.b16 %v2058
      %v2526 = vunpack.c.l.b16 %v2059
      %v2527 = vunpack.c.h.b16 %v2059
      %v2528 = vunpack.c.l.b16 %v2060
      %v2529 = vunpack.c.h.b16 %v2060
      %v2530 = vunpack.c.l.b16 %v2061
      %v2531 = vunpack.c.h.b16 %v2061
      %v2532 = vunpack.c.l.b16 %v2062
      %v2533 = vunpack.c.h.b16 %v2062
      %v2534 = vunpack.c.l.b16 %v2063
      %v2535 = vunpack.c.h.b16 %v2063
      %v2536 = vunpack.c.l.b16 %v2064
      %v2537 = vunpack.c.h.b16 %v2064
      %v2538 = vunpack.c.l.b16 %v2065
      %v2539 = vunpack.c.h.b16 %v2065
      %v2540 = vunpack.c.l.b16 %v2066
      %v2541 = vunpack.c.h.b16 %v2066
      %v2542 = vunpack.c.l.b16 %v2067
      %v2543 = vunpack.c.h.b16 %v2067
      %v2544 = vunpack.c.l.b16 %v2068
      %v2545 = vunpack.c.h.b16 %v2068
      %v2546 = vunpack.c.l.b16 %v2069
      %v2547 = vunpack.c.h.b16 %v2069
      %v2548 = vunpack.c.l.b16 %v2070
      %v2549 = vunpack.c.h.b16 %v2070
      %v2550 = vunpack.c.l.b16 %v2071
      %v2551 = vunpack.c.h.b16 %v2071
      %v2552 = vunpack.c.l.b16 %v2072
      %v2553 = vunpack.c.h.b16 %v2072
      %v2554 = vunpack.c.l.b16 %v2073
      %v2555 = vunpack.c.h.b16 %v2073
      %v2556 = vunpack.c.l.b16 %v2074
      %v2557 = vpack.c.b16 %v2320, %v2241
      %v2558 = vpack.c.b16 %v2321, %v2242
      %v2559 = vpack.c.b16 %v2322, %v2243
      %v2560 = vpack.c.b16 %v2323, %v2244
      %v2561 = vpack.c.b16 %v2324, %v2245
      %v2562 = vpack.c.b16 %v2325, %v2246
      %v2563 = vpack.c.b16 %v2326, %v2247
      %v2564 = vpack.c.b16 %v2327, %v2248
      %v2565 = vpack.c.b16 %v2328, %v2249
      %v2566 = vpack.c.b16 %v2329, %v2250
      %v2567 = vpack.c.b16 %v2330, %v2251
      %v2568 = vpack.c.b16 %v2331, %v2252
      %v2569 = vpack.c.b16 %v2332, %v2253
      %v2570 = vpack.c.b16 %v2333, %v2254
      %v2571 = vpack.c.b16 %v2334, %v2255
      %v2572 = vpack.c.b16 %v2335, %v2256
      %v2573 = vpack.c.b16 %v2336, %v2257
      %v2574 = vpack.c.b16 %v2337, %v2258
      %v2575 = vpack.c.b16 %v2338, %v2259
      %v2576 = vpack.c.b16 %v2339, %v2260
      %v2577 = vpack.c.b16 %v2340, %v2261
      %v2578 = vpack.c.b16 %v2341, %v2262
      %v2579 = vpack.c.b16 %v2342, %v2263
      %v2580 = vpack.c.b16 %v2343, %v2264
      %v2581 = vpack.c.b16 %v2344, %v2265
      %v2582 = vpack.c.b16 %v2345, %v2266
      %v2583 = vpack.c.b16 %v2346, %v2267
      %v2584 = vpack.c.b16 %v2347, %v2268
      %v2585 = vpack.c.b16 %v2348, %v2269
      %v2586 = vpack.c.b16 %v2349, %v2270
      %v2587 = vpack.c.b16 %v2350, %v2271
      %v2588 = vpack.c.b16 %v2351, %v2272
      %v2589 = vpack.c.b16 %v2352, %v2273
      %v2590 = vpack.c.b16 %v2353, %v2274
      %v2591 = vpack.c.b16 %v2354, %v2275
      %v2592 = vpack.c.b16 %v2355, %v2276
      %v2593 = vpack.c.b16 %v2356, %v2277
      %v2594 = vpack.c.b16 %v2357, %v2278
      %v2595 = vpack.c.b16 %v2358, %v2279
      %v2596 = vpack.c.b16 %v2359, %v2280
      %v2597 = vpack.c.b16 %v2360, %v2281
      %v2598 = vpack.c.b16 %v2361, %v2282
      %v2599 = vpack.c.b16 %v2362, %v2283
      %v2600 = vpack.c.b16 %v2363, %v2284
      %v2601 = vpack.c.b16 %v2364, %v2285
      %v2602 = vpack.c.b16 %v2365, %v2286
      %v2603 = vpack.c.b16 %v2366, %v2287
      %v2604 = vpack.c.b16 %v2367, %v2288
      %v2605 = vpack.c.b16 %v2368, %v2289
      %v2606 = vpack.c.b16 %v2369, %v2290
      %v2607 = vpack.c.b16 %v2370, %v2291
      %v2608 = vpack.c.b16 %v2371, %v2292
      %v2609 = vpack.c.b16 %v2372, %v2293
      %v2610 = vpack.c.b16 %v2373, %v2294
      %v2611 = vpack.c.b16 %v2374, %v2295
      %v2612 = vpack.c.b16 %v2375, %v2296
      %v2613 = vpack.c.b16 %v2376, %v2297
      %v2614 = vpack.c.b16 %v2377, %v2298
      %v2615 = vpack.c.b16 %v2378, %v2299
      %v2616 = vpack.c.b16 %v2379, %v2300
      %v2617 = vpack.c.b16 %v2380, %v2301
      %v2618 = vpack.c.b16 %v2381, %v2302
      %v2619 = vpack.c.b16 %v2382, %v2303
      %v2620 = vpack.c.b16 %v2383, %v2304
      %v2621 = vpack.c.b16 %v2384, %v2305
      %v2622 = vpack.c.b16 %v2385, %v2306
      %v2623 = vpack.c.b16 %v2386, %v2307
      %v2624 = vpack.c.b16 %v2387, %v2308
      %v2625 = vpack.c.b16 %v2388, %v2309
      %v2626 = vpack.c.b16 %v2389, %v2310
      %v2627 = vpack.c.b16 %v2390, %v2311
      %v2628 = vpack.c.b16 %v2391, %v2312
      %v2629 = vpack.c.b16 %v2392, %v2313
      %v2630 = vpack.c.b16 %v2393, %v2314
      %v2631 = vpack.c.b16 %v2394, %v2315
      %v2632 = vpack.c.b16 %v2395, %v2316
      %v2633 = vpack.c.b16 %v2396, %v2317
      %v2634 = vpack.c.b16 %v2397, %v2318
      %v2635 = vpack.c.b16 %v2398, %v2319
      %v2636 = vpack.c.b16 %v2478, %v2399
      %v2637 = vpack.c.b16 %v2479, %v2400
      %v2638 = vpack.c.b16 %v2480, %v2401
      %v2639 = vpack.c.b16 %v2481, %v2402
      %v2640 = vpack.c.b16 %v2482, %v2403
      %v2641 = vpack.c.b16 %v2483, %v2404
      %v2642 = vpack.c.b16 %v2484, %v2405
      %v2643 = vpack.c.b16 %v2485, %v2406
      %v2644 = vpack.c.b16 %v2486, %v2407
      %v2645 = vpack.c.b16 %v2487, %v2408
      %v2646 = vpack.c.b16 %v2488, %v2409
      %v2647 = vpack.c.b16 %v2489, %v2410
      %v2648 = vpack.c.b16 %v2490, %v2411
      %v2649 = vpack.c.b16 %v2491, %v2412
      %v2650 = vpack.c.b16 %v2492, %v2413
      %v2651 = vpack.c.b16 %v2493, %v2414
      %v2652 = vpack.c.b16 %v2494, %v2415
      %v2653 = vpack.c.b16 %v2495, %v2416
      %v2654 = vpack.c.b16 %v2496, %v2417
      %v2655 = vpack.c.b16 %v2497, %v2418
      %v2656 = vpack.c.b16 %v2498, %v2419
      %v2657 = vpack.c.b16 %v2499, %v2420
      %v2658 = vpack.c.b16 %v2500, %v2421
      %v2659 = vpack.c.b16 %v2501, %v2422
      %v2660 = vpack.c.b16 %v2502, %v2423
      %v2661 = vpack.c.b16 %v2503, %v2424
      %v2662 = vpack.c.b16 %v2504, %v2425
      %v2663 = vpack.c.b16 %v2505, %v2426
      %v2664 = vpack.c.b16 %v2506, %v2427
      %v2665 = vpack.c.b16 %v2507, %v2428
      %v2666 = vpack.c.b16 %v2508, %v2429
      %v2667 = vpack.c.b16 %v2509, %v2430
      %v2668 = vpack.c.b16 %v2510, %v2431
      %v2669 = vpack.c.b16 %v2511, %v2432
      %v2670 = vpack.c.b16 %v2512, %v2433
      %v2671 = vpack.c.b16 %v2513, %v2434
      %v2672 = vpack.c.b16 %v2514, %v2435
      %v2673 = vpack.c.b16 %v2515, %v2436
      %v2674 = vpack.c.b16 %v2516, %v2437
      %v2675 = vpack.c.b16 %v2517, %v2438
      %v2676 = vpack.c.b16 %v2518, %v2439
      %v2677 = vpack.c.b16 %v2519, %v2440
      %v2678 = vpack.c.b16 %v2520, %v2441
      %v2679 = vpack.c.b16 %v2521, %v2442
      %v2680 = vpack.c.b16 %v2522, %v2443
      %v2681 = vpack.c.b16 %v2523, %v2444
      %v2682 = vpack.c.b16 %v2524, %v2445
      %v2683 = vpack.c.b16 %v2525, %v2446
      %v2684 = vpack.c.b16 %v2526, %v2447
      %v2685 = vpack.c.b16 %v2527, %v2448
      %v2686 = vpack.c.b16 %v2528, %v2449
      %v2687 = vpack.c.b16 %v2529, %v2450
      %v2688 = vpack.c.b16 %v2530, %v2451
      %v2689 = vpack.c.b16 %v2531, %v2452
      %v2690 = vpack.c.b16 %v2532, %v2453
      %v2691 = vpack.c.b16 %v2533, %v2454
      %v2692 = vpack.c.b16 %v2534, %v2455
      %v2693 = vpack.c.b16 %v2535, %v2456
      %v2694 = vpack.c.b16 %v2536, %v2457
      %v2695 = vpack.c.b16 %v2537, %v2458
      %v2696 = vpack.c.b16 %v2538, %v2459
      %v2697 = vpack.c.b16 %v2539, %v2460
      %v2698 = vpack.c.b16 %v2540, %v2461
      %v2699 = vpack.c.b16 %v2541, %v2462
      %v2700 = vpack.c.b16 %v2542, %v2463
      %v2701 = vpack.c.b16 %v2543, %v2464
      %v2702 = vpack.c.b16 %v2544, %v2465
      %v2703 = vpack.c.b16 %v2545, %v2466
      %v2704 = vpack.c.b16 %v2546, %v2467
      %v2705 = vpack.c.b16 %v2547, %v2468
      %v2706 = vpack.c.b16 %v2548, %v2469
      %v2707 = vpack.c.b16 %v2549, %v2470
      %v2708 = vpack.c.b16 %v2550, %v2471
      %v2709 = vpack.c.b16 %v2551, %v2472
      %v2710 = vpack.c.b16 %v2552, %v2473
      %v2711 = vpack.c.b16 %v2553, %v2474
      %v2712 = vpack.c.b16 %v2554, %v2475
      %v2713 = vpack.c.b16 %v2555, %v2476
      %v2714 = vpack.c.b16 %v2556, %v2477
      %v4121 = vunpack.c.l.b16 %v664
      %v4122 = vunpack.c.l.b16 %v665
      %v4123 = vunpack.c.l.b16 %v666
      %v4124 = vunpack.c.l.b16 %v667
      %v4125 = vunpack.c.l.b16 %v668
      %v4126 = vunpack.c.l.b16 %v669
      %v4127 = vunpack.c.l.b16 %v670
      %v4128 = vunpack.c.l.b16 %v671
      %v4129 = vunpack.c.l.b16 %v672
      %v4130 = vunpack.c.l.b16 %v673
      %v4131 = vunpack.c.l.b16 %v674
      %v4132 = vunpack.c.l.b16 %v675
      %v4133 = vunpack.c.l.b16 %v676
      %v4134 = vunpack.c.l.b16 %v677
      %v4135 = vunpack.c.l.b16 %v678
      %v4136 = vunpack.c.l.b16 %v679
      %v4137 = vunpack.c.l.b16 %v680
      %v4138 = vunpack.c.l.b16 %v681
      %v4139 = vunpack.c.l.b16 %v682
      %v4140 = vunpack.c.l.b16 %v683
      %v4141 = vunpack.c.l.b16 %v684
      %v4142 = vunpack.c.l.b16 %v685
      %v4143 = vunpack.c.l.b16 %v686
      %v4144 = vunpack.c.l.b16 %v687
      %v4145 = vunpack.c.l.b16 %v688
      %v4146 = vunpack.c.l.b16 %v689
      %v4147 = vunpack.c.l.b16 %v690
      %v4148 = vunpack.c.l.b16 %v691
      %v4149 = vunpack.c.l.b16 %v692
      %v4150 = vunpack.c.l.b16 %v693
      %v4151 = vunpack.c.l.b16 %v694
      %v4152 = vunpack.c.l.b16 %v695
      %v4153 = vunpack.c.l.b16 %v696
      %v4154 = vunpack.c.l.b16 %v697
      %v4155 = vunpack.c.l.b16 %v698
      %v4156 = vunpack.c.l.b16 %v699
      %v4157 = vunpack.c.l.b16 %v700
      %v4158 = vunpack.c.l.b16 %v701
      %v4159 = vunpack.c.l.b16 %v702
      %v4160 = vunpack.c.l.b16 %v703
      %v4161 = vunpack.c.l.b16 %v704
      %v4162 = vunpack.c.l.b16 %v705
      %v4163 = vunpack.c.l.b16 %v706
      %v4164 = vunpack.c.l.b16 %v707
      %v4165 = vunpack.c.l.b16 %v708
      %v4166 = vunpack.c.l.b16 %v709
      %v4167 = vunpack.c.l.b16 %v710
      %v4168 = vunpack.c.l.b16 %v711
      %v4169 = vunpack.c.l.b16 %v712
      %v4170 = vunpack.c.l.b16 %v713
      %v4171 = vunpack.c.l.b16 %v714
      %v4172 = vunpack.c.l.b16 %v715
      %v4173 = vunpack.c.l.b16 %v716
      %v4174 = vunpack.c.l.b16 %v717
      %v4175 = vunpack.c.l.b16 %v718
      %v4176 = vunpack.c.l.b16 %v719
      %v4177 = vunpack.c.l.b16 %v720
      %v4178 = vunpack.c.l.b16 %v721
      %v4179 = vunpack.c.l.b16 %v722
      %v4180 = vunpack.c.l.b16 %v723
      %v4181 = vunpack.c.l.b16 %v724
      %v4182 = vunpack.c.l.b16 %v725
      %v4183 = vunpack.c.l.b16 %v726
      %v4184 = vunpack.c.l.b16 %v727
      %v4185 = vunpack.c.l.b16 %v728
      %v4186 = vunpack.c.l.b16 %v729
      %v4187 = vunpack.c.l.b16 %v730
      %v4188 = vunpack.c.l.b16 %v731
      %v4189 = vunpack.c.l.b16 %v732
      %v4190 = vunpack.c.l.b16 %v733
      %v4191 = vunpack.c.l.b16 %v734
      %v4192 = vunpack.c.l.b16 %v735
      %v4193 = vunpack.c.l.b16 %v736
      %v4194 = vunpack.c.l.b16 %v737
      %v4195 = vunpack.c.l.b16 %v738
      %v4196 = vunpack.c.l.b16 %v739
      %v4197 = vunpack.c.l.b16 %v740
      %v4198 = vunpack.c.l.b16 %v741
      %v4199 = vunpack.c.l.b16 %v742
      %v4200 = vunpack.c.l.b16 %v743
      %v4201 = vunpack.c.l.b16 %v744
      %v4202 = vunpack.c.l.b16 %v745
      %v4203 = vunpack.c.l.b16 %v746
      %v4204 = vunpack.c.l.b16 %v747
      %v4205 = vunpack.c.l.b16 %v748
      %v4206 = vunpack.c.l.b16 %v749
      %v4207 = vunpack.c.l.b16 %v750
      %v4208 = vunpack.c.l.b16 %v751
      %v4209 = vunpack.c.l.b16 %v752
      %v4210 = vunpack.c.l.b16 %v753
      %v4211 = vunpack.c.l.b16 %v754
      %v4212 = vunpack.c.l.b16 %v755
      %v4213 = vunpack.c.l.b16 %v756
      %v4214 = vunpack.c.l.b16 %v757
      %v4215 = vunpack.c.l.b16 %v758
      %v4216 = vunpack.c.l.b16 %v759
      %v4217 = vunpack.c.l.b16 %v760
      %v4218 = vunpack.c.l.b16 %v761
      %v4219 = vunpack.c.l.b16 %v762
      %v4220 = vunpack.c.l.b16 %v763
      %v4221 = vunpack.c.l.b16 %v764
      %v4222 = vunpack.c.l.b16 %v765
      %v4223 = vunpack.c.l.b16 %v766
      %v4224 = vunpack.c.l.b16 %v767
      %v4225 = vunpack.c.l.b16 %v768
      %v4226 = vunpack.c.l.b16 %v769
      %v4227 = vunpack.c.l.b16 %v770
      %v4228 = vunpack.c.l.b16 %v771
      %v4229 = vunpack.c.l.b16 %v772
      %v4230 = vunpack.c.l.b16 %v773
      %v4231 = vunpack.c.l.b16 %v774
      %v4232 = vunpack.c.l.b16 %v775
      %v4233 = vunpack.c.l.b16 %v776
      %v4234 = vunpack.c.l.b16 %v777
      %v4235 = vunpack.c.l.b16 %v778
      %v4236 = vunpack.c.l.b16 %v779
      %v4237 = vunpack.c.l.b16 %v780
      %v4238 = vunpack.c.l.b16 %v781
      %v4239 = vunpack.c.l.b16 %v782
      %v4240 = vunpack.c.l.b16 %v783
      %v4241 = vunpack.c.l.b16 %v784
      %v4242 = vunpack.c.l.b16 %v785
      %v4243 = vunpack.c.l.b16 %v786
      %v4244 = vunpack.c.l.b16 %v787
      %v4245 = vunpack.c.l.b16 %v788
      %v4246 = vunpack.c.l.b16 %v789
      %v4247 = vunpack.c.l.b16 %v790
      %v4248 = vunpack.c.l.b16 %v791
      %v4249 = vunpack.c.l.b16 %v792
      %v4250 = vunpack.c.l.b16 %v793
      %v4251 = vunpack.c.l.b16 %v794
      %v4252 = vunpack.c.l.b16 %v795
      %v4253 = vunpack.c.l.b16 %v796
      %v4254 = vunpack.c.l.b16 %v797
      %v4255 = vunpack.c.l.b16 %v798
      %v4256 = vunpack.c.l.b16 %v799
      %v4257 = vunpack.c.l.b16 %v800
      %v4258 = vunpack.c.l.b16 %v801
      %v4259 = vunpack.c.l.b16 %v802
      %v4260 = vunpack.c.l.b16 %v803
      %v4261 = vunpack.c.l.b16 %v804
      %v4262 = vunpack.c.l.b16 %v805
      %v4263 = vunpack.c.l.b16 %v806
      %v4264 = vunpack.c.l.b16 %v807
      %v4265 = vunpack.c.l.b16 %v808
      %v4266 = vunpack.c.l.b16 %v809
      %v4267 = vunpack.c.l.b16 %v810
      %v4268 = vunpack.c.l.b16 %v811
      %v4269 = vunpack.c.l.b16 %v812
      %v4270 = vunpack.c.l.b16 %v813
      %v4271 = vunpack.c.l.b16 %v814
      %v4272 = vunpack.c.l.b16 %v815
      %v4273 = vunpack.c.l.b16 %v816
      %v4274 = vunpack.c.l.b16 %v817
      %v4275 = vunpack.c.l.b16 %v818
      %v4276 = vunpack.c.l.b16 %v819
      %v4277 = vunpack.c.l.b16 %v820
      %v4278 = vunpack.c.l.b16 %v821
      %v4279 = vunpack.c.l.b16 %v822
      %v4280 = vunpack.c.l.b16 %v823
      %v4281 = vunpack.c.l.b16 %v824
      %v4282 = vunpack.c.l.b16 %v825
      %v4283 = vunpack.c.l.b16 %v826
      %v4284 = vunpack.c.l.b16 %v827
      %v4285 = vunpack.c.l.b16 %v828
      %v4286 = vunpack.c.l.b16 %v829
      %v4287 = vunpack.c.l.b16 %v830
      %v4288 = vunpack.c.l.b16 %v831
      %v4289 = vunpack.c.l.b16 %v832
      %v4290 = vunpack.c.l.b16 %v833
      %v4291 = vunpack.c.l.b16 %v834
      %v4292 = vunpack.c.l.b16 %v835
      %v4293 = vunpack.c.l.b16 %v836
      %v4294 = vunpack.c.l.b16 %v837
      %v4295 = vunpack.c.l.b16 %v838
      %v4296 = vunpack.c.l.b16 %v839
      %v4297 = vunpack.c.l.b16 %v840
      %v4298 = vunpack.c.l.b16 %v841
      %v4299 = vunpack.c.l.b16 %v842
      %v4300 = vunpack.c.l.b16 %v843
      %v4301 = vunpack.c.l.b16 %v844
      %v4302 = vunpack.c.l.b16 %v845
      %v4303 = vunpack.c.l.b16 %v846
      %v4304 = vunpack.c.l.b16 %v847
      %v4305 = vunpack.c.l.b16 %v848
      %v4306 = vunpack.c.l.b16 %v849
      %v4307 = vunpack.c.l.b16 %v850
      %v4308 = vunpack.c.l.b16 %v851
      %v4309 = vunpack.c.l.b16 %v852
      %v4310 = vunpack.c.l.b16 %v853
      %v4311 = vunpack.c.l.b16 %v854
      %v4312 = vunpack.c.l.b16 %v855
      %v4313 = vunpack.c.l.b16 %v856
      %v4314 = vunpack.c.l.b16 %v857
      %v4315 = vunpack.c.l.b16 %v858
      %v4316 = vunpack.c.l.b16 %v859
      %v4317 = vunpack.c.l.b16 %v860
      %v4318 = vunpack.c.l.b16 %v861
      %v4319 = vunpack.c.l.b16 %v862
      %v4320 = vunpack.c.l.b16 %v863
      %v4321 = vunpack.c.l.b16 %v864
      %v4322 = vunpack.c.l.b16 %v865
      %v4323 = vunpack.c.l.b16 %v866
      %v4324 = vunpack.c.l.b16 %v867
      %v4325 = vunpack.c.l.b16 %v868
      %v4326 = vunpack.c.l.b16 %v869
      %v4327 = vunpack.c.l.b16 %v870
      %v4328 = vunpack.c.l.b16 %v871
      %v4329 = vunpack.c.l.b16 %v872
      %v4330 = vunpack.c.l.b16 %v873
      %v4331 = vunpack.c.l.b16 %v874
      %v4332 = vunpack.c.l.b16 %v875
      %v4333 = vunpack.c.l.b16 %v876
      %v4334 = vunpack.c.l.b16 %v877
      %v4335 = vunpack.c.l.b16 %v878
      %v4336 = vunpack.c.l.b16 %v879
      %v4337 = vunpack.c.l.b16 %v880
      %v4338 = vunpack.c.l.b16 %v881
      %v4339 = vunpack.c.l.b16 %v882
      %v4340 = vunpack.c.l.b16 %v883
      %v4341 = vunpack.c.l.b16 %v884
      %v4342 = vunpack.c.l.b16 %v885
      %v4343 = vunpack.c.l.b16 %v886
      %v4344 = vunpack.c.l.b16 %v887
      %v4345 = vunpack.c.l.b16 %v888
      %v4346 = vunpack.c.l.b16 %v889
      %v4347 = vunpack.c.l.b16 %v890
      %v4348 = vunpack.c.l.b16 %v891
      %v4349 = vunpack.c.l.b16 %v892
      %v4350 = vunpack.c.l.b16 %v893
      %v4351 = vunpack.c.l.b16 %v894
      %v4352 = vunpack.c.l.b16 %v895
      %v4353 = vunpack.c.l.b16 %v896
      %v4354 = vunpack.c.l.b16 %v897
      %v4355 = vunpack.c.l.b16 %v898
      %v4356 = vunpack.c.l.b16 %v899
      %v4357 = vunpack.c.l.b16 %v900
      %v4358 = vunpack.c.l.b16 %v901
      %v4359 = vunpack.c.l.b16 %v902
      %v4360 = vunpack.c.l.b16 %v903
      %v4361 = vunpack.c.l.b16 %v904
      %v4362 = vunpack.c.l.b16 %v905
      %v4363 = vunpack.c.l.b16 %v906
      %v4364 = vunpack.c.l.b16 %v907
      %v4365 = vunpack.c.l.b16 %v908
      %v4366 = vunpack.c.l.b16 %v909
      %v4367 = vunpack.c.l.b16 %v910
      %v4368 = vunpack.c.l.b16 %v911
      %v4369 = vunpack.c.l.b16 %v912
      %v4370 = vunpack.c.l.b16 %v913
      %v4371 = vunpack.c.l.b16 %v914
      %v4372 = vunpack.c.l.b16 %v915
      %v4373 = vunpack.c.l.b16 %v916
      %v4374 = vunpack.c.l.b16 %v917
      %v4375 = vunpack.c.l.b16 %v918
      %v4376 = vunpack.c.l.b16 %v919
      %v4377 = vunpack.c.l.b16 %v920
      %v4378 = vunpack.c.l.b16 %v921
      %v4379 = vunpack.c.l.b16 %v922
      %v4380 = vunpack.c.l.b16 %v923
      %v4381 = vunpack.c.l.b16 %v924
      %v4382 = vunpack.c.l.b16 %v925
      %v4383 = vunpack.c.l.b16 %v926
      %v4384 = vunpack.c.l.b16 %v927
      %v4385 = vunpack.c.l.b16 %v928
      %v4386 = vunpack.c.l.b16 %v929
      %v4387 = vunpack.c.l.b16 %v930
      %v4388 = vunpack.c.l.b16 %v931
      %v4389 = vunpack.c.l.b16 %v932
      %v4390 = vunpack.c.l.b16 %v933
      %v4391 = vunpack.c.l.b16 %v934
      %v4392 = vunpack.c.l.b16 %v935
      %v4393 = vunpack.c.l.b16 %v936
      %v4394 = vunpack.c.l.b16 %v937
      %v4395 = vunpack.c.l.b16 %v938
      %v4396 = vunpack.c.l.b16 %v939
      %v4397 = vunpack.c.l.b16 %v940
      %v4398 = vunpack.c.l.b16 %v941
      %v4399 = vunpack.c.l.b16 %v942
      %v4400 = vunpack.c.l.b16 %v943
      %v4401 = vunpack.c.l.b16 %v944
      %v4402 = vunpack.c.l.b16 %v945
      %v4403 = vunpack.c.l.b16 %v946
      %v4404 = vunpack.c.l.b16 %v947
      %v4405 = vunpack.c.l.b16 %v948
      %v4406 = vunpack.c.l.b16 %v949
      %v4407 = vunpack.c.l.b16 %v950
      %v4408 = vunpack.c.l.b16 %v951
      %v4409 = vunpack.c.l.b16 %v952
      %v4410 = vunpack.c.l.b16 %v953
      %v4411 = vunpack.c.l.b16 %v954
      %v4412 = vunpack.c.l.b16 %v955
      %v4413 = vunpack.c.l.b16 %v956
      %v4414 = vunpack.c.l.b16 %v957
      %v4415 = vunpack.c.l.b16 %v958
      %v4416 = vunpack.c.l.b16 %v959
      %v4417 = vunpack.c.l.b16 %v960
      %v4418 = vunpack.c.l.b16 %v961
      %v4419 = vunpack.c.l.b16 %v962
      %v4420 = vunpack.c.l.b16 %v963
      %v4421 = vunpack.c.l.b16 %v964
      %v4422 = vunpack.c.l.b16 %v965
      %v4423 = vunpack.c.l.b16 %v966
      %v4424 = vunpack.c.l.b16 %v967
      %v4425 = vunpack.c.l.b16 %v968
      %v4426 = vunpack.c.l.b16 %v969
      %v4427 = vunpack.c.l.b16 %v970
      %v4428 = vunpack.c.l.b16 %v971
      %v4429 = vunpack.c.l.b16 %v972
      %v4430 = vunpack.c.l.b16 %v973
      %v4431 = vunpack.c.l.b16 %v974
      %v4432 = vunpack.c.l.b16 %v975
      %v4433 = vunpack.c.l.b16 %v976
      %v4434 = vunpack.c.l.b16 %v977
      %v4435 = vunpack.c.l.b16 %v978
      %v4436 = vunpack.c.l.b16 %v979
      %v4437 = vunpack.c.l.b16 %v980
      %v4438 = vunpack.c.l.b16 %v981
      %v4439 = vunpack.c.l.b16 %v982
      %v4440 = vunpack.c.l.b16 %v983
      %v4441 = vunpack.c.l.b16 %v984
      %v4442 = vunpack.c.l.b16 %v985
      %v4443 = vunpack.c.l.b16 %v986
      %v4444 = vunpack.c.l.b16 %v987
      %v4445 = vunpack.c.l.b16 %v988
      %v4446 = vunpack.c.l.b16 %v989
      %v4447 = vunpack.c.l.b16 %v990
      %v4448 = vunpack.c.l.b16 %v991
      %v4449 = vunpack.c.l.b16 %v992
      %v4450 = vunpack.c.l.b16 %v993
      %v4451 = vunpack.c.l.b16 %v994
      %v4452 = vunpack.c.l.b16 %v995
      %v4453 = vunpack.c.l.b16 %v996
      %v4454 = vunpack.c.l.b16 %v997
      %v4455 = vunpack.c.l.b16 %v998
      %v4456 = vunpack.c.l.b16 %v999
      %v4457 = vunpack.c.l.b16 %v1000
      %v4458 = vunpack.c.l.b16 %v1001
      %v4459 = vunpack.c.l.b16 %v1002
      %v4460 = vunpack.c.l.b16 %v1003
      %v4461 = vunpack.c.l.b16 %v1004
      %v4462 = vunpack.c.l.b16 %v1005
      %v4463 = vunpack.c.l.b16 %v1006
      %v4464 = vunpack.c.l.b16 %v1007
      %v4465 = vunpack.c.l.b16 %v1008
      %v4466 = vunpack.c.l.b16 %v1009
      %v4467 = vunpack.c.l.b16 %v1010
      %v4468 = vunpack.c.l.b16 %v1011
      %v4469 = vunpack.c.l.b16 %v1012
      %v4470 = vunpack.c.l.b16 %v1013
      %v4471 = vunpack.c.l.b16 %v1014
      %v4472 = vunpack.c.l.b16 %v1015
      %v4473 = vunpack.c.l.b16 %v1016
      %v4474 = vunpack.c.l.b16 %v1017
      %v4475 = vunpack.c.l.b16 %v1018
      %v4476 = vunpack.c.l.b16 %v1019
      %v4477 = vunpack.c.l.b16 %v1020
      %v4478 = vunpack.c.l.b16 %v1021
      %v4479 = vunpack.c.l.b16 %v1022
      %v4480 = vunpack.c.l.b16 %v1023
      %v4481 = vunpack.c.l.b16 %v1024
      %v4482 = vunpack.c.l.b16 %v1025
      %v4483 = vunpack.c.l.b16 %v1026
      %v4484 = vunpack.c.l.b16 %v1027
      %v4485 = vunpack.c.l.b16 %v1028
      %v4486 = vunpack.c.l.b16 %v1029
      %v4487 = vunpack.c.l.b16 %v1030
      %v4488 = vunpack.c.l.b16 %v1031
      %v4489 = vunpack.c.l.b16 %v1032
      %v4490 = vunpack.c.l.b16 %v1033
      %v4491 = vunpack.c.l.b16 %v1034
      %v4492 = vunpack.c.l.b16 %v1035
      %v4493 = vunpack.c.l.b16 %v1036
      %v4494 = vunpack.c.l.b16 %v1037
      %v4495 = vunpack.c.l.b16 %v1038
      %v4496 = vunpack.c.l.b16 %v1039
      %v4497 = vunpack.c.l.b16 %v1040
      %v4498 = vunpack.c.l.b16 %v1041
      %v4499 = vunpack.c.l.b16 %v1042
      %v4500 = vunpack.c.l.b16 %v1043
      %v4501 = vunpack.c.l.b16 %v1044
      %v4502 = vunpack.c.l.b16 %v1045
      %v4503 = vunpack.c.l.b16 %v1046
      %v4504 = vunpack.c.l.b16 %v1047
      %v4505 = vunpack.c.l.b16 %v1048
      %v4506 = vunpack.c.l.b16 %v1049
      %v4507 = vunpack.c.l.b16 %v1050
      %v4508 = vunpack.c.l.b16 %v1051
      %v4509 = vunpack.c.l.b16 %v1052
      %v4510 = vunpack.c.l.b16 %v1053
      %v4511 = vunpack.c.l.b16 %v1054
      %v4512 = vunpack.c.l.b16 %v1055
      %v4513 = vunpack.c.l.b16 %v1056
      %v4514 = vunpack.c.l.b16 %v1057
      %v4515 = vunpack.c.l.b16 %v1058
      %v4516 = vunpack.c.l.b16 %v1059
      %v4517 = vunpack.c.l.b16 %v1060
      %v4518 = vunpack.c.l.b16 %v1061
      %v4519 = vunpack.c.l.b16 %v1062
      %v4520 = vunpack.c.l.b16 %v1063
      %v4521 = vunpack.c.l.b16 %v1064
      %v4522 = vunpack.c.l.b16 %v1065
      %v4523 = vunpack.c.l.b16 %v1066
      %v4524 = vunpack.c.l.b16 %v1067
      %v4525 = vunpack.c.l.b16 %v1068
      %v4526 = vunpack.c.l.b16 %v1069
      %v4527 = vunpack.c.l.b16 %v1070
      %v4528 = vunpack.c.l.b16 %v1071
      %v4529 = vunpack.c.l.b16 %v1072
      %v4530 = vunpack.c.l.b16 %v1073
      %v4531 = vunpack.c.l.b16 %v1074
      %v4532 = vunpack.c.l.b16 %v1075
      %v4533 = vunpack.c.l.b16 %v1076
      %v4534 = vunpack.c.l.b16 %v1077
      %v4535 = vunpack.c.l.b16 %v1078
      %v4536 = vunpack.c.l.b16 %v1079
      %v4537 = vunpack.c.l.b16 %v1080
      %v4538 = vunpack.c.l.b16 %v1081
      %v4539 = vunpack.c.l.b16 %v1082
      %v4540 = vunpack.c.l.b16 %v1083
      %v4541 = vunpack.c.l.b16 %v1084
      %v4542 = vunpack.c.l.b16 %v1085
      %v4543 = vunpack.c.l.b16 %v1086
      %v4544 = vunpack.c.l.b16 %v1087
      %v4545 = vunpack.c.l.b16 %v1088
      %v4546 = vunpack.c.l.b16 %v1089
      %v4547 = vunpack.c.l.b16 %v1090
      %v4548 = vunpack.c.l.b16 %v1091
      %v4549 = vunpack.c.l.b16 %v1092
      %v4550 = vunpack.c.l.b16 %v1093
      %v4551 = vunpack.c.l.b16 %v1094
      %v4552 = vunpack.c.l.b16 %v1095
      %v4553 = vunpack.c.l.b16 %v1096
      %v4554 = vunpack.c.l.b16 %v1097
      %v4555 = vunpack.c.l.b16 %v1098
      %v4556 = vunpack.c.l.b16 %v1099
      %v4557 = vunpack.c.l.b16 %v1100
      %v4558 = vunpack.c.l.b16 %v1101
      %v4559 = vunpack.c.l.b16 %v1102
      %v4560 = vunpack.c.l.b16 %v1103
      %v4561 = vunpack.c.l.b16 %v1104
      %v4562 = vunpack.c.l.b16 %v1105
      %v4563 = vunpack.c.l.b16 %v1106
      %v4564 = vunpack.c.l.b16 %v1107
      %v4565 = vunpack.c.l.b16 %v1108
      %v4566 = vunpack.c.l.b16 %v1109
      %v4567 = vunpack.c.l.b16 %v1110
      %v4568 = vunpack.c.l.b16 %v1111
      %v4569 = vunpack.c.l.b16 %v1112
      %v4570 = vunpack.c.l.b16 %v1113
      %v4571 = vunpack.c.l.b16 %v1114
      %v4572 = vunpack.c.l.b16 %v1115
      %v4573 = vunpack.c.l.b16 %v1116
      %v4574 = vunpack.c.l.b16 %v1117
      %v4575 = vunpack.c.l.b16 %v1118
      %v4576 = vunpack.c.l.b16 %v1119
      %v4577 = vunpack.c.l.b16 %v1120
      %v4578 = vunpack.c.l.b16 %v1121
      %v4579 = vunpack.c.l.b16 %v1122
      %v4580 = vunpack.c.l.b16 %v1123
      %v4581 = vunpack.c.l.b16 %v1124
      %v4582 = vunpack.c.l.b16 %v1125
      %v4583 = vunpack.c.l.b16 %v1126
      %v4584 = vunpack.c.l.b16 %v1127
      %v4585 = vunpack.c.l.b16 %v1128
      %v4586 = vunpack.c.l.b16 %v1129
      %v4587 = vunpack.c.l.b16 %v1130
      %v4588 = vunpack.c.l.b16 %v1131
      %v4589 = vunpack.c.l.b16 %v1132
      %v4590 = vunpack.c.l.b16 %v1133
      %v4591 = vunpack.c.l.b16 %v1134
      %v4592 = vunpack.c.l.b16 %v1135
      %v4593 = vunpack.c.l.b16 %v1136
      %v4594 = vunpack.c.l.b16 %v1137
      %v4595 = vunpack.c.l.b16 %v1138
      %v4596 = vunpack.c.l.b16 %v1139
      %v4597 = vunpack.c.l.b16 %v1140
      %v4598 = vunpack.c.l.b16 %v1141
      %v4599 = vunpack.c.l.b16 %v1142
      %v4600 = vunpack.c.l.b16 %v1143
      %v4601 = vunpack.c.l.b16 %v1144
      %v4602 = vunpack.c.l.b16 %v1145
      %v4603 = vunpack.c.l.b16 %v1146
      %v4604 = vunpack.c.l.b16 %v1147
      %v4605 = vunpack.c.l.b16 %v1148
      %v4606 = vunpack.c.l.b16 %v1149
      %v4607 = vunpack.c.l.b16 %v1150
      %v4608 = vunpack.c.l.b16 %v1151
      %v4609 = vunpack.c.l.b16 %v1152
      %v4610 = vunpack.c.l.b16 %v1153
      %v4611 = vunpack.c.l.b16 %v1154
      %v4612 = vunpack.c.l.b16 %v1155
      %v4613 = vunpack.c.l.b16 %v1156
      %v4614 = vunpack.c.l.b16 %v1157
      %v4615 = vunpack.c.l.b16 %v1158
      %v4616 = vunpack.c.l.b16 %v1159
      %v4617 = vunpack.c.l.b16 %v1160
      %v4618 = vunpack.c.l.b16 %v1161
      %v4619 = vunpack.c.l.b16 %v1162
      %v4620 = vunpack.c.l.b16 %v1163
      %v4621 = vunpack.c.l.b16 %v1164
      %v4622 = vunpack.c.l.b16 %v1165
      %v4623 = vunpack.c.l.b16 %v1166
      %v4624 = vunpack.c.l.b16 %v1167
      %v4625 = vunpack.c.l.b16 %v1168
      %v4626 = vunpack.c.l.b16 %v1169
      %v4627 = vunpack.c.l.b16 %v1170
      %v4628 = vunpack.c.l.b16 %v1171
      %v4629 = vunpack.c.l.b16 %v1172
      %v4630 = vunpack.c.l.b16 %v1173
      %v4631 = vunpack.c.l.b16 %v1174
      %v4632 = vunpack.c.l.b16 %v1175
      %v4633 = vunpack.c.l.b16 %v1176
      %v4634 = vunpack.c.l.b16 %v1177
      %v4635 = vunpack.c.l.b16 %v1178
      %v4636 = vunpack.c.l.b16 %v1179
      %v4637 = vunpack.c.l.b16 %v1180
      %v4638 = vunpack.c.l.b16 %v1181
      %v4639 = vunpack.c.l.b16 %v1182
      %v4640 = vunpack.c.l.b16 %v1183
      %v4641 = vunpack.c.l.b16 %v1184
      %v4642 = vunpack.c.l.b16 %v1185
      %v4643 = vunpack.c.l.b16 %v1186
      %v4644 = vunpack.c.l.b16 %v1187
      %v4645 = vunpack.c.l.b16 %v1188
      %v4646 = vunpack.c.l.b16 %v1189
      %v4647 = vunpack.c.l.b16 %v1190
      %v4648 = vunpack.c.l.b16 %v1191
      %v4649 = vunpack.c.l.b16 %v1192
      %v4650 = vunpack.c.l.b16 %v1193
      %v4651 = vunpack.c.l.b16 %v1194
      %v4652 = vunpack.c.l.b16 %v1195
      %v4653 = vunpack.c.l.b16 %v1196
      %v4654 = vunpack.c.l.b16 %v1197
      %v4655 = vunpack.c.l.b16 %v1198
      %v4656 = vunpack.c.l.b16 %v1199
      %v4657 = vunpack.c.l.b16 %v1200
      %v4658 = vunpack.c.l.b16 %v1201
      %v4659 = vunpack.c.l.b16 %v1202
      %v4660 = vunpack.c.l.b16 %v1203
      %v4661 = vunpack.c.l.b16 %v1204
      %v4662 = vunpack.c.l.b16 %v1205
      %v4663 = vunpack.c.l.b16 %v1206
      %v4664 = vunpack.c.l.b16 %v1207
      %v4665 = vunpack.c.l.b16 %v1208
      %v4666 = vunpack.c.l.b16 %v1209
      %v4667 = vunpack.c.l.b16 %v1210
      %v4668 = vunpack.c.l.b16 %v1211
      %v4669 = vunpack.c.l.b16 %v1212
      %v4670 = vunpack.c.l.b16 %v1213
      %v4671 = vunpack.c.l.b16 %v1214
      %v4672 = vunpack.c.l.b16 %v1215
      %v4673 = vunpack.c.l.b16 %v1216
      %v4674 = vunpack.c.l.b16 %v1217
      %v4675 = vunpack.c.l.b16 %v1218
      %v4676 = vunpack.c.l.b16 %v1219
      %v4677 = vunpack.c.l.b16 %v1220
      %v4678 = vunpack.c.l.b16 %v1221
      %v4679 = vunpack.c.l.b16 %v1222
      %v4680 = vunpack.c.l.b16 %v1223
      %v4681 = vunpack.c.l.b16 %v1224
      %v4682 = vunpack.c.l.b16 %v1225
      %v4683 = vunpack.c.l.b16 %v1226
      %v4684 = vunpack.c.l.b16 %v1227
      %v4685 = vunpack.c.l.b16 %v1228
      %v4686 = vunpack.c.l.b16 %v1229
      %v4687 = vunpack.c.l.b16 %v1230
      %v4688 = vunpack.c.l.b16 %v1231
      %v4689 = vunpack.c.l.b16 %v1232
      %v4690 = vunpack.c.l.b16 %v1233
      %v4691 = vunpack.c.l.b16 %v1234
      %v4692 = vunpack.c.l.b16 %v1235
      %v4693 = vunpack.c.l.b16 %v1236
      %v4694 = vunpack.c.l.b16 %v1237
      %v4695 = vunpack.c.l.b16 %v1238
      %v4696 = vunpack.c.l.b16 %v1239
      %v4697 = vunpack.c.l.b16 %v1240
      %v4698 = vunpack.c.l.b16 %v1241
      %v4699 = vunpack.c.l.b16 %v1242
      %v4700 = vunpack.c.l.b16 %v1243
      %v4701 = vunpack.c.l.b16 %v1244
      %v4702 = vunpack.c.l.b16 %v1245
      %v4703 = vunpack.c.l.b16 %v1246
      %v4704 = vunpack.c.l.b16 %v1247
      %v4705 = vunpack.c.l.b16 %v1248
      %v4706 = vunpack.c.l.b16 %v1249
      %v4707 = vunpack.c.l.b16 %v1250
      %v4708 = vunpack.c.l.b16 %v1251
      %v4709 = vunpack.c.l.b16 %v1252
      %v4710 = vunpack.c.l.b16 %v1253
      %v4711 = vunpack.c.l.b16 %v1254
      %v4712 = vunpack.c.l.b16 %v1255
      %v4713 = vunpack.c.l.b16 %v1256
      %v4714 = vunpack.c.l.b16 %v1257
      %v4715 = vunpack.c.l.b16 %v1258
      %v4716 = vunpack.c.l.b16 %v1259
      %v4717 = vunpack.c.l.b16 %v1260
      %v4718 = vunpack.c.l.b16 %v1261
      %v4719 = vunpack.c.l.b16 %v1262
      %v4720 = vunpack.c.l.b16 %v1263
      %v4721 = vunpack.c.l.b16 %v1264
      %v4722 = vunpack.c.l.b16 %v1265
      %v4723 = vunpack.c.l.b16 %v1266
      %v4724 = vunpack.c.l.b16 %v1267
      %v4725 = vunpack.c.l.b16 %v1268
      %v4726 = vunpack.c.l.b16 %v1269
      %v4727 = vunpack.c.l.b16 %v1270
      %v4728 = vunpack.c.l.b16 %v1271
      %v4729 = vunpack.c.l.b16 %v1272
      %v4730 = vunpack.c.l.b16 %v1273
      %v4731 = vunpack.c.l.b16 %v1274
      %v4732 = vunpack.c.l.b16 %v1275
      %v4733 = vunpack.c.l.b16 %v1276
      %v4734 = vunpack.c.l.b16 %v1277
      %v4735 = vunpack.c.l.b16 %v1278
      %v4736 = vunpack.c.l.b16 %v1279
      %v4737 = vunpack.c.l.b16 %v1280
      %v4738 = vunpack.c.l.b16 %v1281
      %v4739 = vunpack.c.l.b16 %v1282
      %v4740 = vunpack.c.l.b16 %v1283
      %v4741 = vunpack.c.l.b16 %v1284
      %v4742 = vunpack.c.l.b16 %v1285
      %v4743 = vunpack.c.l.b16 %v1286
      %v4744 = vunpack.c.l.b16 %v1287
      %v4745 = vunpack.c.l.b16 %v1288
      %v4746 = vunpack.c.l.b16 %v1289
      %v4747 = vunpack.c.l.b16 %v1290
      %v4748 = vunpack.c.l.b16 %v1291
      %v4749 = vunpack.c.l.b16 %v1292
      %v4750 = vunpack.c.l.b16 %v1293
      %v4751 = vunpack.c.l.b16 %v1294
      %v4752 = vunpack.c.l.b16 %v1295
      %v4753 = vunpack.c.l.b16 %v1296
      %v4754 = vunpack.c.l.b16 %v1297
      %v4755 = vunpack.c.l.b16 %v1298
      %v4756 = vunpack.c.l.b16 %v1299
      %v4757 = vunpack.c.l.b16 %v1300
      %v4758 = vunpack.c.l.b16 %v1301
      %v4759 = vunpack.c.l.b16 %v1302
      %v4760 = vunpack.c.l.b16 %v1303
      %v4761 = vunpack.c.l.b16 %v1304
      %v4762 = vunpack.c.l.b16 %v1305
      %v4763 = vunpack.c.l.b16 %v1306
      %v4764 = vunpack.c.l.b16 %v1307
      %v4765 = vunpack.c.l.b16 %v1308
      %v4766 = vunpack.c.l.b16 %v1309
      %v4767 = vunpack.c.l.b16 %v1310
      %v4768 = vunpack.c.l.b16 %v1311
      %v4769 = vunpack.c.l.b16 %v1312
      %v4770 = vunpack.c.l.b16 %v1313
      %v4771 = vunpack.c.l.b16 %v1314
      %v4772 = vunpack.c.l.b16 %v1315
      %v4773 = vunpack.c.l.b16 %v1316
      %v4774 = vunpack.c.l.b16 %v1317
      %v4775 = vunpack.c.l.b16 %v1318
      %v4776 = vunpack.c.l.b16 %v1319
      %v4777 = vunpack.c.l.b16 %v1320
      %v4778 = vunpack.c.l.b16 %v1321
      %v4779 = vunpack.c.l.b16 %v1322
      %v4780 = vunpack.c.l.b16 %v1323
      %v4781 = vunpack.c.l.b16 %v1324
      %v4782 = vunpack.c.l.b16 %v1325
      %v4783 = vunpack.c.l.b16 %v1326
      %v4784 = vunpack.c.l.b16 %v1327
      %v4785 = vunpack.c.l.b16 %v1328
      %v4786 = vunpack.c.l.b16 %v1329
      %v4787 = vunpack.c.l.b16 %v1330
      %v4788 = vunpack.c.l.b16 %v1331
      %v4789 = vunpack.c.l.b16 %v1332
      %v4790 = vunpack.c.l.b16 %v1333
      %v4791 = vunpack.c.l.b16 %v1334
      %v4792 = vunpack.c.l.b16 %v1335
      %v4793 = vunpack.c.l.b16 %v1336
      %v4794 = vunpack.c.l.b16 %v1337
      %v4795 = vunpack.c.l.b16 %v1338
      %v4796 = vunpack.c.l.b16 %v1339
      %v4797 = vunpack.c.l.b16 %v1340
      %v4798 = vunpack.c.l.b16 %v1341
      %v4799 = vunpack.c.l.b16 %v1342
      %v4800 = vunpack.c.l.b16 %v1343
      %v4801 = vunpack.c.l.b16 %v1344
      %v4802 = vunpack.c.l.b16 %v1345
      %v4803 = vunpack.c.l.b16 %v1346
      %v4804 = vunpack.c.l.b16 %v1347
      %v4805 = vunpack.c.l.b16 %v1348
      %v4806 = vunpack.c.l.b16 %v1349
      %v4807 = vunpack.c.l.b16 %v1350
      %v4808 = vunpack.c.l.b16 %v1351
      %v4809 = vunpack.c.l.b16 %v1352
      %v4810 = vunpack.c.l.b16 %v1353
      %v4811 = vunpack.c.l.b16 %v1354
      %v4812 = vunpack.c.l.b16 %v1355
      %v4813 = vunpack.c.l.b16 %v1356
      %v4814 = vunpack.c.l.b16 %v1357
      %v4815 = vunpack.c.l.b16 %v1358
      %v4816 = vunpack.c.l.b16 %v1359
      %v4817 = vunpack.c.l.b16 %v1360
      %v4818 = vunpack.c.l.b16 %v1361
      %v4819 = vunpack.c.l.b16 %v1362
      %v4820 = vunpack.c.l.b16 %v1363
      %v4821 = vunpack.c.l.b16 %v1364
      %v4822 = vunpack.c.l.b16 %v1365
      %v4823 = vunpack.c.l.b16 %v1366
      %v4824 = vunpack.c.l.b16 %v1367
      %v4825 = vunpack.c.l.b16 %v1368
      %v4826 = vunpack.c.l.b16 %v1369
      %v4827 = vunpack.c.l.b16 %v1370
      %v4828 = vunpack.c.l.b16 %v1371
      %v4829 = vunpack.c.l.b16 %v1372
      %v4830 = vunpack.c.l.b16 %v1373
      %v4831 = vunpack.c.l.b16 %v1374
      %v4832 = vunpack.c.l.b16 %v1375
      %v4833 = vunpack.c.l.b16 %v1376
      %v4834 = vunpack.c.l.b16 %v1377
      %v4835 = vunpack.c.l.b16 %v1378
      %v4836 = vunpack.c.l.b16 %v1379
      %v4837 = vunpack.c.l.b16 %v1380
      %v4838 = vunpack.c.l.b16 %v1381
      %v4839 = vunpack.c.l.b16 %v1382
      %v4840 = vunpack.c.l.b16 %v1383
      %v4841 = vunpack.c.l.b16 %v1384
      %v4842 = vunpack.c.l.b16 %v1385
      %v4843 = vunpack.c.l.b16 %v1386
      %v4844 = vunpack.c.l.b16 %v1387
      %v4845 = vunpack.c.l.b16 %v1388
      %v4846 = vunpack.c.l.b16 %v1389
      %v4847 = vunpack.c.l.b16 %v1390
      %v4848 = vunpack.c.l.b16 %v1391
      %v4849 = vunpack.c.l.b16 %v1392
      %v4850 = vunpack.c.l.b16 %v1393
      %v4851 = vunpack.c.l.b16 %v1394
      %v4852 = vunpack.c.l.b16 %v1395
      %v4853 = vunpack.c.l.b16 %v1396
      %v4854 = vunpack.c.l.b16 %v1397
      %v4855 = vunpack.c.l.b16 %v1398
      %v4856 = vunpack.c.l.b16 %v1399
      %v4857 = vunpack.c.l.b16 %v1400
      %v4858 = vunpack.c.l.b16 %v1401
      %v4859 = vunpack.c.l.b16 %v1402
      %v4860 = vunpack.c.l.b16 %v1403
      %v4861 = vunpack.c.l.b16 %v1404
      %v4862 = vunpack.c.l.b16 %v1405
      %v4863 = vunpack.c.l.b16 %v1406
      %v4864 = vunpack.c.l.b16 %v1407
      %v4865 = vunpack.c.l.b16 %v1408
      %v4866 = vunpack.c.l.b16 %v1409
      %v4867 = vunpack.c.l.b16 %v1410
      %v4868 = vunpack.c.l.b16 %v1411
      %v4869 = vunpack.c.l.b16 %v1412
      %v4870 = vunpack.c.l.b16 %v1413
      %v4871 = vunpack.c.l.b16 %v1414
      %v4872 = vunpack.c.l.b16 %v1415
      %v4873 = vunpack.c.l.b16 %v1416
      %v4874 = vunpack.c.l.b16 %v1417
      %v4875 = vunpack.c.l.b16 %v1418
      %v4876 = vunpack.c.l.b16 %v1419
      %v4877 = vunpack.c.l.b16 %v1420
      %v4878 = vunpack.c.l.b16 %v1421
      %v4879 = vunpack.c.l.b16 %v1422
      %v4880 = vunpack.c.l.b16 %v1423
      %v4881 = vunpack.c.l.b16 %v1424
      %v4882 = vunpack.c.l.b16 %v1425
      %v4883 = vunpack.c.l.b16 %v1426
      %v4884 = vunpack.c.l.b16 %v1427
      %v4885 = vunpack.c.l.b16 %v1428
      %v4886 = vunpack.c.l.b16 %v1429
      %v4887 = vunpack.c.l.b16 %v1430
      %v4888 = vunpack.c.l.b16 %v1431
      %v4889 = vunpack.c.l.b16 %v1432
      %v4890 = vunpack.c.l.b16 %v1433
      %v4891 = vunpack.c.l.b16 %v1434
      %v4892 = vunpack.c.l.b16 %v1435
      %v4893 = vunpack.c.l.b16 %v1436
      %v4894 = vunpack.c.l.b16 %v1437
      %v4895 = vunpack.c.l.b16 %v1438
      %v4896 = vunpack.c.l.b16 %v1439
      %v4897 = vunpack.c.l.b16 %v1440
      %v4898 = vunpack.c.l.b16 %v1441
      %v4899 = vunpack.c.l.b16 %v1442
      %v4900 = vunpack.c.l.b16 %v1443
      %v4901 = vunpack.c.l.b16 %v1444
      %v4902 = vunpack.c.l.b16 %v1445
      %v4903 = vunpack.c.l.b16 %v1446
      %v4904 = vunpack.c.l.b16 %v1447
      %v4905 = vunpack.c.l.b16 %v1448
      %v4906 = vunpack.c.l.b16 %v1449
      %v4907 = vunpack.c.l.b16 %v1450
      %v4908 = vunpack.c.l.b16 %v1451
      %v4909 = vunpack.c.l.b16 %v1452
      %v4910 = vunpack.c.l.b16 %v1453
      %v4911 = vunpack.c.l.b16 %v1454
      %v4912 = vunpack.c.l.b16 %v1455
      %v4913 = vunpack.c.l.b16 %v1456
      %v4914 = vunpack.c.l.b16 %v1457
      %v4915 = vunpack.c.l.b16 %v1458
      %v4916 = vunpack.c.l.b16 %v1459
      %v4917 = vunpack.c.l.b16 %v1460
      %v4918 = vunpack.c.l.b16 %v1461
      %v4919 = vunpack.c.l.b16 %v1462
      %v4920 = vunpack.c.l.b16 %v1463
      %v4921 = vunpack.c.l.b16 %v1464
      %v4922 = vunpack.c.l.b16 %v1465
      %v4923 = vunpack.c.l.b16 %v1466
      %v4924 = vunpack.c.l.b16 %v1467
      %v4925 = vunpack.c.l.b16 %v1468
      %v4926 = vunpack.c.l.b16 %v1469
      %v4927 = vunpack.c.l.b16 %v1470
      %v4928 = vunpack.c.l.b16 %v1471
      %v4929 = vunpack.c.l.b16 %v1472
      %v4930 = vunpack.c.l.b16 %v1473
      %v4931 = vunpack.c.l.b16 %v1474
      %v4932 = vunpack.c.l.b16 %v1475
      %v4933 = vunpack.c.l.b16 %v1476
      %v4934 = vunpack.c.l.b16 %v1477
      %v4935 = vunpack.c.l.b16 %v1478
      %v4936 = vunpack.c.l.b16 %v1479
      %v4937 = vunpack.c.l.b16 %v1480
      %v4938 = vunpack.c.l.b16 %v1481
      %v4939 = vunpack.c.l.b16 %v1482
      %v4940 = vunpack.c.l.b16 %v1483
      %v4941 = vunpack.c.l.b16 %v1484
      %v4942 = vunpack.c.l.b16 %v1485
      %v4943 = vunpack.c.l.b16 %v1486
      %v4944 = vunpack.c.l.b16 %v1487
      %v4945 = vunpack.c.l.b16 %v1488
      %v4946 = vunpack.c.l.b16 %v1489
      %v4947 = vunpack.c.l.b16 %v1490
      %v4948 = vunpack.c.l.b16 %v1491
      %v4949 = vunpack.c.l.b16 %v1492
      %v4950 = vunpack.c.l.b16 %v1493
      %v4951 = vunpack.c.l.b16 %v1494
      %v4952 = vunpack.c.l.b16 %v1495
      %v4953 = vunpack.c.l.b16 %v1496
      %v4954 = vunpack.c.l.b16 %v1497
      %v4955 = vunpack.c.l.b16 %v1498
      %v4956 = vunpack.c.l.b16 %v1499
      %v4957 = vunpack.c.l.b16 %v1500
      %v4958 = vunpack.c.l.b16 %v1501
      %v4959 = vunpack.c.l.b16 %v1502
      %v4960 = vunpack.c.l.b16 %v1503
      %v4961 = vunpack.c.l.b16 %v1504
      %v4962 = vunpack.c.l.b16 %v1505
      %v4963 = vunpack.c.l.b16 %v1506
      %v4964 = vunpack.c.l.b16 %v1507
      %v4965 = vunpack.c.l.b16 %v1508
      %v4966 = vunpack.c.l.b16 %v1509
      %v4967 = vunpack.c.l.b16 %v1510
      %v4968 = vunpack.c.l.b16 %v1511
      %v4969 = vunpack.c.l.b16 %v1512
      %v4970 = vunpack.c.l.b16 %v1513
      %v4971 = vunpack.c.l.b16 %v1514
      %v4972 = vunpack.c.l.b16 %v1515
      %v4973 = vunpack.c.l.b16 %v1516
      %v4974 = vunpack.c.l.b16 %v1517
      %v4975 = vunpack.c.l.b16 %v1518
      %v4976 = vunpack.c.l.b16 %v1519
      %v4977 = vunpack.c.l.b16 %v1520
      %v4978 = vunpack.c.l.b16 %v1521
      %v4979 = vunpack.c.l.b16 %v1522
      %v4980 = vunpack.c.l.b16 %v1523
      %v4981 = vunpack.c.l.b16 %v1524
      %v4982 = vunpack.c.l.b16 %v1525
      %v4983 = vunpack.c.l.b16 %v1526
      %v4984 = vunpack.c.l.b16 %v1527
      %v4985 = vunpack.c.l.b16 %v1528
      %v4986 = vunpack.c.l.b16 %v1529
      %v4987 = vunpack.c.l.b16 %v1530
      %v4988 = vunpack.c.l.b16 %v1531
      %v4989 = vunpack.c.l.b16 %v1532
      %v4990 = vunpack.c.l.b16 %v1533
      %v4991 = vunpack.c.l.b16 %v1534
      %v4992 = vunpack.c.l.b16 %v1535
      %v4993 = vunpack.c.l.b16 %v1536
      %v4994 = vunpack.c.l.b16 %v1537
      %v4995 = vunpack.c.l.b16 %v1538
      %v4996 = vunpack.c.l.b16 %v1539
      %v4997 = vunpack.c.l.b16 %v1540
      %v4998 = vunpack.c.l.b16 %v1541
      %v4999 = vunpack.c.l.b16 %v1542
      %v5000 = vunpack.c.l.b16 %v1543
      %v5001 = vunpack.c.l.b16 %v1544
      %v5002 = vunpack.c.l.b16 %v1545
      %v5003 = vunpack.c.l.b16 %v1546
      %v5004 = vunpack.c.l.b16 %v1547
      %v5005 = vunpack.c.l.b16 %v1548
      %v5006 = vunpack.c.l.b16 %v1549
      %v5007 = vunpack.c.l.b16 %v1550
      %v5008 = vunpack.c.l.b16 %v1551
      %v5009 = vunpack.c.l.b16 %v1552
      %v5010 = vunpack.c.l.b16 %v1553
      %v5011 = vunpack.c.l.b16 %v1554
      %v5012 = vunpack.c.l.b16 %v1555
      %v5013 = vunpack.c.l.b16 %v1556
      %v5014 = vunpack.c.l.b16 %v1557
      %v5015 = vunpack.c.l.b16 %v1558
      %v5016 = vunpack.c.l.b16 %v1559
      %v5017 = vunpack.c.l.b16 %v1560
      %v5018 = vunpack.c.l.b16 %v1561
      %v5019 = vunpack.c.l.b16 %v1562
      %v5020 = vunpack.c.l.b16 %v1563
      %v5021 = vunpack.c.l.b16 %v1564
      %v5022 = vunpack.c.l.b16 %v1565
      %v5023 = vunpack.c.l.b16 %v1566
      %v5024 = vunpack.c.l.b16 %v1567
      %v5025 = vunpack.c.l.b16 %v1568
      %v5026 = vunpack.c.l.b16 %v1569
      %v5027 = vunpack.c.l.b16 %v1570
      %v5028 = vunpack.c.l.b16 %v1571
      %v5029 = vunpack.c.l.b16 %v1572
      %v5030 = vunpack.c.l.b16 %v1573
      %v5031 = vunpack.c.l.b16 %v1574
      %v5032 = vunpack.c.l.b16 %v1575
      %v5033 = vunpack.c.l.b16 %v1576
      %v5034 = vunpack.c.l.b16 %v1577
      %v5035 = vunpack.c.l.b16 %v1578
      %v5036 = vunpack.c.l.b16 %v1579
      %v5037 = vunpack.c.l.b16 %v1580
      %v5038 = vunpack.c.l.b16 %v1581
      %v5039 = vunpack.c.l.b16 %v1582
      %v5040 = vunpack.c.l.b16 %v1583
      %v5041 = vunpack.c.l.b16 %v1584
      %v5042 = vunpack.c.l.b16 %v1585
      %v5043 = vunpack.c.l.b16 %v1586
      %v5044 = vunpack.c.l.b16 %v1587
      %v5045 = vunpack.c.l.b16 %v1588
      %v5046 = vunpack.c.l.b16 %v1589
      %v5047 = vunpack.c.l.b16 %v1590
      %v5048 = vunpack.c.l.b16 %v1591
      %v5049 = vunpack.c.l.b16 %v1592
      %v5050 = vunpack.c.l.b16 %v1593
      %v5051 = vunpack.c.l.b16 %v1594
      %v5052 = vunpack.c.l.b16 %v1595
      %v5053 = vunpack.c.l.b16 %v1596
      %v5054 = vunpack.c.l.b16 %v1597
      %v5055 = vunpack.c.l.b16 %v1598
      %v5056 = vunpack.c.l.b16 %v1599
      %v5057 = vunpack.c.l.b16 %v1600
      %v5058 = vunpack.c.l.b16 %v1601
      %v5059 = vunpack.c.l.b16 %v1602
      %v5060 = vunpack.c.l.b16 %v1603
      %v5061 = vunpack.c.l.b16 %v1604
      %v5062 = vunpack.c.l.b16 %v1605
      %v5063 = vunpack.c.l.b16 %v1606
      %v5064 = vunpack.c.l.b16 %v1607
      %v5065 = vunpack.c.l.b16 %v1608
      %v5066 = vunpack.c.l.b16 %v1609
      %v5067 = vunpack.c.l.b16 %v1610
      %v5068 = vunpack.c.l.b16 %v1611
      %v5069 = vunpack.c.l.b16 %v1612
      %v5070 = vunpack.c.l.b16 %v1613
      %v5071 = vunpack.c.l.b16 %v1614
      %v5072 = vunpack.c.l.b16 %v1615
      %v5073 = vunpack.c.l.b16 %v1616
      %v5074 = vunpack.c.l.b16 %v1617
      %v5075 = vunpack.c.l.b16 %v1618
      %v5076 = vunpack.c.l.b16 %v1619
      %v5077 = vunpack.c.l.b16 %v1620
      %v5078 = vunpack.c.l.b16 %v1621
      %v5079 = vunpack.c.l.b16 %v1622
      %v5080 = vunpack.c.l.b16 %v1623
      %v5081 = vunpack.c.l.b16 %v1624
      %v5082 = vunpack.c.l.b16 %v1625
      %v5083 = vunpack.c.l.b16 %v1626
      %v5084 = vunpack.c.l.b16 %v1627
      %v5085 = vunpack.c.l.b16 %v1628
      %v5086 = vunpack.c.l.b16 %v1629
      %v5087 = vunpack.c.l.b16 %v1630
      %v5088 = vunpack.c.l.b16 %v1631
      %v5089 = vunpack.c.l.b16 %v1632
      %v5090 = vunpack.c.l.b16 %v1633
      %v5091 = vunpack.c.l.b16 %v1634
      %v5092 = vunpack.c.l.b16 %v1635
      %v5093 = vunpack.c.l.b16 %v1636
      %v5094 = vunpack.c.l.b16 %v1637
      %v5095 = vunpack.c.l.b16 %v1638
      %v5096 = vunpack.c.l.b16 %v1639
      %v5097 = vunpack.c.l.b16 %v1640
      %v5098 = vunpack.c.l.b16 %v1641
      %v5099 = vunpack.c.l.b16 %v1642
      %v5100 = vunpack.c.l.b16 %v1643
      %v5101 = vunpack.c.l.b16 %v1644
      %v5102 = vunpack.c.l.b16 %v1645
      %v5103 = vunpack.c.l.b16 %v1646
      %v5104 = vunpack.c.l.b16 %v1647
      %v5105 = vunpack.c.l.b16 %v1648
      %v5106 = vunpack.c.l.b16 %v1649
      %v5107 = vunpack.c.l.b16 %v1650
      %v5108 = vunpack.c.l.b16 %v1651
      %v5109 = vunpack.c.l.b16 %v1652
      %v5110 = vunpack.c.l.b16 %v1653
      %v5111 = vunpack.c.l.b16 %v1654
      %v5112 = vunpack.c.l.b16 %v1655
      %v5113 = vunpack.c.l.b16 %v1656
      %v5114 = vunpack.c.l.b16 %v1657
      %v5115 = vunpack.c.l.b16 %v1658
      %v5116 = vunpack.c.l.b16 %v1659
      %v5117 = vunpack.c.l.b16 %v1660
      %v5118 = vunpack.c.l.b16 %v1661
      %v5119 = vunpack.c.l.b16 %v1662
      %v5120 = vunpack.c.l.b16 %v1663
      %v5121 = vunpack.c.l.b16 %v1664
      %v5122 = vunpack.c.l.b16 %v1665
      %v5123 = vunpack.c.l.b16 %v1666
      %v5124 = vunpack.c.l.b16 %v1667
      %v5125 = vunpack.c.l.b16 %v1668
      %v5126 = vunpack.c.l.b16 %v1669
      %v5127 = vunpack.c.l.b16 %v1670
      %v5128 = vunpack.c.l.b16 %v1671
      %v5129 = vunpack.c.l.b16 %v1672
      %v5130 = vunpack.c.l.b16 %v1673
      %v5131 = vunpack.c.l.b16 %v1674
      %v5132 = vunpack.c.l.b16 %v1675
      %v5133 = vunpack.c.l.b16 %v1676
      %v5134 = vunpack.c.l.b16 %v1677
      %v5135 = vunpack.c.l.b16 %v1678
      %v5136 = vunpack.c.l.b16 %v1679
      %v5137 = vunpack.c.l.b16 %v1680
      %v5138 = vunpack.c.l.b16 %v1681
      %v5139 = vunpack.c.l.b16 %v1682
      %v5140 = vunpack.c.l.b16 %v1683
      %v5141 = vunpack.c.l.b16 %v1684
      %v5142 = vunpack.c.l.b16 %v1685
      %v5143 = vunpack.c.l.b16 %v1686
      %v5144 = vunpack.c.l.b16 %v1687
      %v5145 = vunpack.c.l.b16 %v1688
      %v5146 = vunpack.c.l.b16 %v1689
      %v5147 = vunpack.c.l.b16 %v1690
      %v5148 = vunpack.c.l.b16 %v1691
      %v5149 = vunpack.c.l.b16 %v1692
      %v5150 = vunpack.c.l.b16 %v1693
      %v5151 = vunpack.c.l.b16 %v1694
      %v5152 = vunpack.c.l.b16 %v1695
      %v5153 = vunpack.c.l.b16 %v1696
      %v5154 = vunpack.c.l.b16 %v1697
      %v5155 = vunpack.c.l.b16 %v1698
      %v5156 = vunpack.c.l.b16 %v1699
      %v5157 = vunpack.c.l.b16 %v1700
      %v5158 = vunpack.c.l.b16 %v1701
      %v5159 = vunpack.c.l.b16 %v1702
      %v5160 = vunpack.c.l.b16 %v1703
      %v5161 = vunpack.c.l.b16 %v1704
      %v5162 = vunpack.c.l.b16 %v1705
      %v5163 = vunpack.c.l.b16 %v1706
      %v5164 = vunpack.c.l.b16 %v1707
      %v5165 = vunpack.c.l.b16 %v1708
      %v5166 = vunpack.c.l.b16 %v1709
      %v5167 = vunpack.c.l.b16 %v1710
      %v5168 = vunpack.c.l.b16 %v1711
      %v5169 = vunpack.c.l.b16 %v1712
      %v5170 = vunpack.c.l.b16 %v1713
      %v5171 = vunpack.c.l.b16 %v1714
      %v5172 = vunpack.c.l.b16 %v1715
      %v5173 = vunpack.c.l.b16 %v1716
      %v5174 = vunpack.c.l.b16 %v1717
      %v5175 = vunpack.c.l.b16 %v1718
      %v5176 = vunpack.c.l.b16 %v1719
      %v5177 = vunpack.c.l.b16 %v1720
      %v5178 = vunpack.c.l.b16 %v1721
      %v5179 = vunpack.c.l.b16 %v1722
      %v5180 = vunpack.c.l.b16 %v1723
      %v5181 = vunpack.c.l.b16 %v1724
      %v5182 = vunpack.c.l.b16 %v1725
      %v5183 = vunpack.c.l.b16 %v1726
      %v5184 = vunpack.c.l.b16 %v1727
      %v5185 = vunpack.c.l.b16 %v1728
      %v5186 = vunpack.c.l.b16 %v1729
      %v5187 = vunpack.c.l.b16 %v1730
      %v5188 = vunpack.c.l.b16 %v1731
      %v5189 = vunpack.c.l.b16 %v1732
      %v5190 = vunpack.c.l.b16 %v1733
      %v5191 = vunpack.c.l.b16 %v1734
      %v5192 = vunpack.c.l.b16 %v1735
      %v5193 = vunpack.c.l.b16 %v1736
      %v5194 = vunpack.c.l.b16 %v1737
      %v5195 = vunpack.c.l.b16 %v1738
      %v5196 = vunpack.c.l.b16 %v1739
      %v5197 = vunpack.c.l.b16 %v1740
      %v5198 = vunpack.c.l.b16 %v1741
      %v5199 = vunpack.c.l.b16 %v1742
      %v5200 = vunpack.c.l.b16 %v1743
      %v5201 = vunpack.c.l.b16 %v1744
      %v5202 = vunpack.c.l.b16 %v1745
      %v5203 = vunpack.c.l.b16 %v1746
      %v5204 = vunpack.c.l.b16 %v1747
      %v5205 = vunpack.c.l.b16 %v1748
      %v5206 = vunpack.c.l.b16 %v1749
      %v5207 = vunpack.c.l.b16 %v1750
      %v5208 = vunpack.c.l.b16 %v1751
      %v5209 = vunpack.c.l.b16 %v1752
      %v5210 = vunpack.c.l.b16 %v1753
      %v5211 = vunpack.c.l.b16 %v1754
      %v5212 = vunpack.c.l.b16 %v1755
      %v5213 = vunpack.c.l.b16 %v1756
      %v5214 = vunpack.c.l.b16 %v1757
      %v5215 = vunpack.c.l.b16 %v1758
      %v5216 = vunpack.c.l.b16 %v1759
      %v5217 = vunpack.c.l.b16 %v1760
      %v5218 = vunpack.c.l.b16 %v1761
      %v5219 = vunpack.c.l.b16 %v1762
      %v5220 = vunpack.c.l.b16 %v1763
      %v5221 = vunpack.c.l.b16 %v1764
      %v5222 = vunpack.c.l.b16 %v1765
      %v5223 = vunpack.c.l.b16 %v1766
      %v5224 = vunpack.c.l.b16 %v1767
      %v5225 = vunpack.c.l.b16 %v1768
      %v5226 = vunpack.c.l.b16 %v1769
      %v5227 = vunpack.c.l.b16 %v1770
      %v5228 = vunpack.c.l.b16 %v1771
      %v5229 = vunpack.c.l.b16 %v1772
      %v5230 = vunpack.c.l.b16 %v1773
      %v5231 = vunpack.c.l.b16 %v1774
      %v5232 = vunpack.c.l.b16 %v1775
      %v5233 = vunpack.c.l.b16 %v1776
      %v5234 = vunpack.c.l.b16 %v1777
      %v5235 = vunpack.c.l.b16 %v1778
      %v5236 = vunpack.c.l.b16 %v1779
      %v5237 = vunpack.c.l.b16 %v1780
      %v5238 = vunpack.c.l.b16 %v1781
      %v5239 = vunpack.c.l.b16 %v1782
      %v5240 = vunpack.c.l.b16 %v1783
      %v5241 = vunpack.c.l.b16 %v1784
      %v5242 = vunpack.c.l.b16 %v1785
      %v5243 = vunpack.c.l.b16 %v1786
      %v5244 = vunpack.c.l.b16 %v1787
      %v5245 = vunpack.c.l.b16 %v1788
      %v5246 = vunpack.c.l.b16 %v1789
      %v5247 = vunpack.c.l.b16 %v1790
      %v5248 = vunpack.c.l.b16 %v1791
      %v5249 = vunpack.c.l.b16 %v1792
      %v5250 = vunpack.c.l.b16 %v1793
      %v5251 = vunpack.c.l.b16 %v1794
      %v5252 = vunpack.c.l.b16 %v1795
      %v5253 = vunpack.c.l.b16 %v1796
      %v5254 = vunpack.c.l.b16 %v1797
      %v5255 = vunpack.c.l.b16 %v1798
      %v5256 = vunpack.c.l.b16 %v1799
      %v5257 = vunpack.c.l.b16 %v1800
      %v5258 = vunpack.c.l.b16 %v1801
      %v5259 = vunpack.c.l.b16 %v1802
      %v5260 = vunpack.c.l.b16 %v1803
      %v5261 = vunpack.c.l.b16 %v1804
      %v5262 = vunpack.c.l.b16 %v1805
      %v5263 = vunpack.c.l.b16 %v1806
      %v5264 = vunpack.c.l.b16 %v1807
      %v5265 = vunpack.c.l.b16 %v1808
      %v5266 = vunpack.c.l.b16 %v1809
      %v5267 = vunpack.c.l.b16 %v1810
      %v5268 = vunpack.c.l.b16 %v1811
      %v5269 = vunpack.c.l.b16 %v1812
      %v5270 = vunpack.c.l.b16 %v1813
      %v5271 = vunpack.c.l.b16 %v1814
      %v5272 = vunpack.c.l.b16 %v1815
      %v5273 = vunpack.c.l.b16 %v1816
      %v5274 = vunpack.c.l.b16 %v1817
      %v5275 = vunpack.c.l.b16 %v1818
      %v5276 = vunpack.c.l.b16 %v1819
      %v5277 = vunpack.c.l.b16 %v1820
      %v5278 = vunpack.c.l.b16 %v1821
      %v5279 = vunpack.c.l.b16 %v1822
      %v5280 = vunpack.c.l.b16 %v1823
      %v5281 = vunpack.c.l.b16 %v1824
      %v5282 = vunpack.c.l.b16 %v1825
      %v5283 = vunpack.c.l.b16 %v1826
      %v5284 = vunpack.c.l.b16 %v1827
      %v5285 = vunpack.c.l.b16 %v1828
      %v5286 = vunpack.c.l.b16 %v1829
      %v5287 = vunpack.c.l.b16 %v1830
      %v5288 = vunpack.c.l.b16 %v1831
      %v5289 = vunpack.c.l.b16 %v1832
      %v5290 = vunpack.c.l.b16 %v1833
      %v5291 = vunpack.c.l.b16 %v1834
      %v5292 = vunpack.c.l.b16 %v1835
      %v5293 = vunpack.c.l.b16 %v1836
      %v5294 = vunpack.c.l.b16 %v1837
      %v5295 = vunpack.c.l.b16 %v1838
      %v5296 = vunpack.c.l.b16 %v1839
      %v5297 = vunpack.c.l.b16 %v1840
      %v5298 = vunpack.c.l.b16 %v1841
      %v5299 = vunpack.c.l.b16 %v1842
      %v5300 = vunpack.c.l.b16 %v1843
      %v5301 = vunpack.c.l.b16 %v1844
      %v5302 = vunpack.c.l.b16 %v1845
      %v5303 = vunpack.c.l.b16 %v1846
      %v5304 = vunpack.c.l.b16 %v1847
      %v5305 = vunpack.c.l.b16 %v1848
      %v5306 = vunpack.c.l.b16 %v1849
      %v5307 = vunpack.c.l.b16 %v1850
      %v5308 = vunpack.c.l.b16 %v1851
      %v5309 = vunpack.c.l.b16 %v1852
      %v5310 = vunpack.c.l.b16 %v1853
      %v5311 = vunpack.c.l.b16 %v1854
      %v5312 = vunpack.c.l.b16 %v1855
      %v5313 = vunpack.c.l.b16 %v1856
      %v5314 = vunpack.c.l.b16 %v1857
      %v5315 = vunpack.c.l.b16 %v1858
      %v5316 = vunpack.c.l.b16 %v1859
      %v5317 = vunpack.c.l.b16 %v1860
      %v5318 = vunpack.c.l.b16 %v1861
      %v5319 = vunpack.c.l.b16 %v1862
      %v5320 = vunpack.c.l.b16 %v1863
      %v5321 = vunpack.c.l.b16 %v1864
      %v5322 = vunpack.c.l.b16 %v1865
      %v5323 = vunpack.c.l.b16 %v1866
      %v5324 = vunpack.c.l.b16 %v1867
      %v5325 = vunpack.c.l.b16 %v1868
      %v5326 = vunpack.c.l.b16 %v1869
      %v5327 = vunpack.c.l.b16 %v1870
      %v5328 = vunpack.c.l.b16 %v1871
      %v5329 = vunpack.c.l.b16 %v1872
      %v5330 = vunpack.c.l.b16 %v1873
      %v5331 = vunpack.c.l.b16 %v1874
      %v5332 = vunpack.c.l.b16 %v1875
      %v5333 = vunpack.c.l.b16 %v1876
      %v5334 = vunpack.c.l.b16 %v1877
      %v5335 = vunpack.c.l.b16 %v1878
      %v5336 = vunpack.c.l.b16 %v1879
      %v5337 = vunpack.c.l.b16 %v1880
      %v5338 = vunpack.c.l.b16 %v1881
      %v5339 = vunpack.c.l.b16 %v1882
      %v5340 = vunpack.c.l.b16 %v1883
      %v5341 = vunpack.c.l.b16 %v1884
      %v5342 = vunpack.c.l.b16 %v1885
      %v5343 = vunpack.c.l.b16 %v1886
      %v5344 = vunpack.c.l.b16 %v1887
      %v5345 = vunpack.c.l.b16 %v1888
      %v5346 = vunpack.c.l.b16 %v1889
      %v5347 = vunpack.c.l.b16 %v1890
      %v5348 = vunpack.c.l.b16 %v1891
      %v5349 = vunpack.c.l.b16 %v1892
      %v5350 = vunpack.c.l.b16 %v1893
      %v5351 = vunpack.c.l.b16 %v1894
      %v5352 = vunpack.c.l.b16 %v1895
      %v5353 = vunpack.c.l.b16 %v1896
      %v5354 = vunpack.c.l.b16 %v1897
      %v5355 = vunpack.c.l.b16 %v1898
      %v5356 = vunpack.c.l.b16 %v1899
      %v5357 = vunpack.c.l.b16 %v1900
      %v5358 = vunpack.c.l.b16 %v1901
      %v5359 = vunpack.c.l.b16 %v1902
      %v5360 = vunpack.c.l.b16 %v1903
      %v5361 = vunpack.c.l.b16 %v1904
      %v5362 = vunpack.c.l.b16 %v1905
      %v5363 = vunpack.c.l.b16 %v1906
      %v5364 = vunpack.c.l.b16 %v1907
      %v5365 = vunpack.c.l.b16 %v1908
      %v5366 = vunpack.c.l.b16 %v1909
      %v5367 = vunpack.c.l.b16 %v1910
      %v5368 = vunpack.c.l.b16 %v1911
      %v5369 = vunpack.c.l.b16 %v1912
      %v5370 = vunpack.c.l.b16 %v1913
      %v5371 = vpack.c.b16 %v4122, %v4121
      %v5372 = vpack.c.b16 %v4124, %v4123
      %v5373 = vpack.c.b16 %v4126, %v4125
      %v5374 = vpack.c.b16 %v4128, %v4127
      %v5375 = vpack.c.b16 %v4130, %v4129
      %v5376 = vpack.c.b16 %v4132, %v4131
      %v5377 = vpack.c.b16 %v4134, %v4133
      %v5378 = vpack.c.b16 %v4136, %v4135
      %v5379 = vpack.c.b16 %v4138, %v4137
      %v5380 = vpack.c.b16 %v4140, %v4139
      %v5381 = vpack.c.b16 %v4142, %v4141
      %v5382 = vpack.c.b16 %v4144, %v4143
      %v5383 = vpack.c.b16 %v4146, %v4145
      %v5384 = vpack.c.b16 %v4148, %v4147
      %v5385 = vpack.c.b16 %v4150, %v4149
      %v5386 = vpack.c.b16 %v4152, %v4151
      %v5387 = vpack.c.b16 %v4154, %v4153
      %v5388 = vpack.c.b16 %v4156, %v4155
      %v5389 = vpack.c.b16 %v4158, %v4157
      %v5390 = vpack.c.b16 %v4160, %v4159
      %v5391 = vpack.c.b16 %v4162, %v4161
      %v5392 = vpack.c.b16 %v4164, %v4163
      %v5393 = vpack.c.b16 %v4166, %v4165
      %v5394 = vpack.c.b16 %v4168, %v4167
      %v5395 = vpack.c.b16 %v4170, %v4169
      %v5396 = vpack.c.b16 %v4172, %v4171
      %v5397 = vpack.c.b16 %v4174, %v4173
      %v5398 = vpack.c.b16 %v4176, %v4175
      %v5399 = vpack.c.b16 %v4178, %v4177
      %v5400 = vpack.c.b16 %v4180, %v4179
      %v5401 = vpack.c.b16 %v4182, %v4181
      %v5402 = vpack.c.b16 %v4184, %v4183
      %v5403 = vpack.c.b16 %v4186, %v4185
      %v5404 = vpack.c.b16 %v4188, %v4187
      %v5405 = vpack.c.b16 %v4190, %v4189
      %v5406 = vpack.c.b16 %v4192, %v4191
      %v5407 = vpack.c.b16 %v4194, %v4193
      %v5408 = vpack.c.b16 %v4196, %v4195
      %v5409 = vpack.c.b16 %v4198, %v4197
      %v5410 = vpack.c.b16 %v4200, %v4199
      %v5411 = vpack.c.b16 %v4202, %v4201
      %v5412 = vpack.c.b16 %v4204, %v4203
      %v5413 = vpack.c.b16 %v4206, %v4205
      %v5414 = vpack.c.b16 %v4208, %v4207
      %v5415 = vpack.c.b16 %v4210, %v4209
      %v5416 = vpack.c.b16 %v4212, %v4211
      %v5417 = vpack.c.b16 %v4214, %v4213
      %v5418 = vpack.c.b16 %v4216, %v4215
      %v5419 = vpack.c.b16 %v4218, %v4217
      %v5420 = vpack.c.b16 %v4220, %v4219
      %v5421 = vpack.c.b16 %v4222, %v4221
      %v5422 = vpack.c.b16 %v4224, %v4223
      %v5423 = vpack.c.b16 %v4226, %v4225
      %v5424 = vpack.c.b16 %v4228, %v4227
      %v5425 = vpack.c.b16 %v4230, %v4229
      %v5426 = vpack.c.b16 %v4232, %v4231
      %v5427 = vpack.c.b16 %v4234, %v4233
      %v5428 = vpack.c.b16 %v4236, %v4235
      %v5429 = vpack.c.b16 %v4238, %v4237
      %v5430 = vpack.c.b16 %v4240, %v4239
      %v5431 = vpack.c.b16 %v4242, %v4241
      %v5432 = vpack.c.b16 %v4244, %v4243
      %v5433 = vpack.c.b16 %v4246, %v4245
      %v5434 = vpack.c.b16 %v4248, %v4247
      %v5435 = vpack.c.b16 %v4250, %v4249
      %v5436 = vpack.c.b16 %v4252, %v4251
      %v5437 = vpack.c.b16 %v4254, %v4253
      %v5438 = vpack.c.b16 %v4256, %v4255
      %v5439 = vpack.c.b16 %v4258, %v4257
      %v5440 = vpack.c.b16 %v4260, %v4259
      %v5441 = vpack.c.b16 %v4262, %v4261
      %v5442 = vpack.c.b16 %v4264, %v4263
      %v5443 = vpack.c.b16 %v4266, %v4265
      %v5444 = vpack.c.b16 %v4268, %v4267
      %v5445 = vpack.c.b16 %v4270, %v4269
      %v5446 = vpack.c.b16 %v4272, %v4271
      %v5447 = vpack.c.b16 %v4274, %v4273
      %v5448 = vpack.c.b16 %v4276, %v4275
      %v5449 = vpack.c.b16 %v4278, %v4277
      %v5450 = vpack.c.b16 %v4280, %v4279
      %v5451 = vpack.c.b16 %v4282, %v4281
      %v5452 = vpack.c.b16 %v4284, %v4283
      %v5453 = vpack.c.b16 %v4286, %v4285
      %v5454 = vpack.c.b16 %v4288, %v4287
      %v5455 = vpack.c.b16 %v4290, %v4289
      %v5456 = vpack.c.b16 %v4292, %v4291
      %v5457 = vpack.c.b16 %v4294, %v4293
      %v5458 = vpack.c.b16 %v4296, %v4295
      %v5459 = vpack.c.b16 %v4298, %v4297
      %v5460 = vpack.c.b16 %v4300, %v4299
      %v5461 = vpack.c.b16 %v4302, %v4301
      %v5462 = vpack.c.b16 %v4304, %v4303
      %v5463 = vpack.c.b16 %v4306, %v4305
      %v5464 = vpack.c.b16 %v4308, %v4307
      %v5465 = vpack.c.b16 %v4310, %v4309
      %v5466 = vpack.c.b16 %v4312, %v4311
      %v5467 = vpack.c.b16 %v4314, %v4313
      %v5468 = vpack.c.b16 %v4316, %v4315
      %v5469 = vpack.c.b16 %v4318, %v4317
      %v5470 = vpack.c.b16 %v4320, %v4319
      %v5471 = vpack.c.b16 %v4322, %v4321
      %v5472 = vpack.c.b16 %v4324, %v4323
      %v5473 = vpack.c.b16 %v4326, %v4325
      %v5474 = vpack.c.b16 %v4328, %v4327
      %v5475 = vpack.c.b16 %v4330, %v4329
      %v5476 = vpack.c.b16 %v4332, %v4331
      %v5477 = vpack.c.b16 %v4334, %v4333
      %v5478 = vpack.c.b16 %v4336, %v4335
      %v5479 = vpack.c.b16 %v4338, %v4337
      %v5480 = vpack.c.b16 %v4340, %v4339
      %v5481 = vpack.c.b16 %v4342, %v4341
      %v5482 = vpack.c.b16 %v4344, %v4343
      %v5483 = vpack.c.b16 %v4346, %v4345
      %v5484 = vpack.c.b16 %v4348, %v4347
      %v5485 = vpack.c.b16 %v4350, %v4349
      %v5486 = vpack.c.b16 %v4352, %v4351
      %v5487 = vpack.c.b16 %v4354, %v4353
      %v5488 = vpack.c.b16 %v4356, %v4355
      %v5489 = vpack.c.b16 %v4358, %v4357
      %v5490 = vpack.c.b16 %v4360, %v4359
      %v5491 = vpack.c.b16 %v4362, %v4361
      %v5492 = vpack.c.b16 %v4364, %v4363
      %v5493 = vpack.c.b16 %v4366, %v4365
      %v5494 = vpack.c.b16 %v4368, %v4367
      %v5495 = vpack.c.b16 %v4370, %v4369
      %v5496 = vpack.c.b16 %v4372, %v4371
      %v5497 = vpack.c.b16 %v4374, %v4373
      %v5498 = vpack.c.b16 %v4376, %v4375
      %v5499 = vpack.c.b16 %v4378, %v4377
      %v5500 = vpack.c.b16 %v4380, %v4379
      %v5501 = vpack.c.b16 %v4382, %v4381
      %v5502 = vpack.c.b16 %v4384, %v4383
      %v5503 = vpack.c.b16 %v4386, %v4385
      %v5504 = vpack.c.b16 %v4388, %v4387
      %v5505 = vpack.c.b16 %v4390, %v4389
      %v5506 = vpack.c.b16 %v4392, %v4391
      %v5507 = vpack.c.b16 %v4394, %v4393
      %v5508 = vpack.c.b16 %v4396, %v4395
      %v5509 = vpack.c.b16 %v4398, %v4397
      %v5510 = vpack.c.b16 %v4400, %v4399
      %v5511 = vpack.c.b16 %v4402, %v4401
      %v5512 = vpack.c.b16 %v4404, %v4403
      %v5513 = vpack.c.b16 %v4406, %v4405
      %v5514 = vpack.c.b16 %v4408, %v4407
      %v5515 = vpack.c.b16 %v4410, %v4409
      %v5516 = vpack.c.b16 %v4412, %v4411
      %v5517 = vpack.c.b16 %v4414, %v4413
      %v5518 = vpack.c.b16 %v4416, %v4415
      %v5519 = vpack.c.b16 %v4418, %v4417
      %v5520 = vpack.c.b16 %v4420, %v4419
      %v5521 = vpack.c.b16 %v4422, %v4421
      %v5522 = vpack.c.b16 %v4424, %v4423
      %v5523 = vpack.c.b16 %v4426, %v4425
      %v5524 = vpack.c.b16 %v4428, %v4427
      %v5525 = vpack.c.b16 %v4430, %v4429
      %v5526 = vpack.c.b16 %v4432, %v4431
      %v5527 = vpack.c.b16 %v4434, %v4433
      %v5528 = vpack.c.b16 %v4436, %v4435
      %v5529 = vpack.c.b16 %v4438, %v4437
      %v5530 = vpack.c.b16 %v4440, %v4439
      %v5531 = vpack.c.b16 %v4442, %v4441
      %v5532 = vpack.c.b16 %v4444, %v4443
      %v5533 = vpack.c.b16 %v4446, %v4445
      %v5534 = vpack.c.b16 %v4448, %v4447
      %v5535 = vpack.c.b16 %v4450, %v4449
      %v5536 = vpack.c.b16 %v4452, %v4451
      %v5537 = vpack.c.b16 %v4454, %v4453
      %v5538 = vpack.c.b16 %v4456, %v4455
      %v5539 = vpack.c.b16 %v4458, %v4457
      %v5540 = vpack.c.b16 %v4460, %v4459
      %v5541 = vpack.c.b16 %v4462, %v4461
      %v5542 = vpack.c.b16 %v4464, %v4463
      %v5543 = vpack.c.b16 %v4466, %v4465
      %v5544 = vpack.c.b16 %v4468, %v4467
      %v5545 = vpack.c.b16 %v4470, %v4469
      %v5546 = vpack.c.b16 %v4472, %v4471
      %v5547 = vpack.c.b16 %v4474, %v4473
      %v5548 = vpack.c.b16 %v4476, %v4475
      %v5549 = vpack.c.b16 %v4478, %v4477
      %v5550 = vpack.c.b16 %v4480, %v4479
      %v5551 = vpack.c.b16 %v4482, %v4481
      %v5552 = vpack.c.b16 %v4484, %v4483
      %v5553 = vpack.c.b16 %v4486, %v4485
      %v5554 = vpack.c.b16 %v4488, %v4487
      %v5555 = vpack.c.b16 %v4490, %v4489
      %v5556 = vpack.c.b16 %v4492, %v4491
      %v5557 = vpack.c.b16 %v4494, %v4493
      %v5558 = vpack.c.b16 %v4496, %v4495
      %v5559 = vpack.c.b16 %v4498, %v4497
      %v5560 = vpack.c.b16 %v4500, %v4499
      %v5561 = vpack.c.b16 %v4502, %v4501
      %v5562 = vpack.c.b16 %v4504, %v4503
      %v5563 = vpack.c.b16 %v4506, %v4505
      %v5564 = vpack.c.b16 %v4508, %v4507
      %v5565 = vpack.c.b16 %v4510, %v4509
      %v5566 = vpack.c.b16 %v4512, %v4511
      %v5567 = vpack.c.b16 %v4514, %v4513
      %v5568 = vpack.c.b16 %v4516, %v4515
      %v5569 = vpack.c.b16 %v4518, %v4517
      %v5570 = vpack.c.b16 %v4520, %v4519
      %v5571 = vpack.c.b16 %v4522, %v4521
      %v5572 = vpack.c.b16 %v4524, %v4523
      %v5573 = vpack.c.b16 %v4526, %v4525
      %v5574 = vpack.c.b16 %v4528, %v4527
      %v5575 = vpack.c.b16 %v4530, %v4529
      %v5576 = vpack.c.b16 %v4532, %v4531
      %v5577 = vpack.c.b16 %v4534, %v4533
      %v5578 = vpack.c.b16 %v4536, %v4535
      %v5579 = vpack.c.b16 %v4538, %v4537
      %v5580 = vpack.c.b16 %v4540, %v4539
      %v5581 = vpack.c.b16 %v4542, %v4541
      %v5582 = vpack.c.b16 %v4544, %v4543
      %v5583 = vpack.c.b16 %v4546, %v4545
      %v5584 = vpack.c.b16 %v4548, %v4547
      %v5585 = vpack.c.b16 %v4550, %v4549
      %v5586 = vpack.c.b16 %v4552, %v4551
      %v5587 = vpack.c.b16 %v4554, %v4553
      %v5588 = vpack.c.b16 %v4556, %v4555
      %v5589 = vpack.c.b16 %v4558, %v4557
      %v5590 = vpack.c.b16 %v4560, %v4559
      %v5591 = vpack.c.b16 %v4562, %v4561
      %v5592 = vpack.c.b16 %v4564, %v4563
      %v5593 = vpack.c.b16 %v4566, %v4565
      %v5594 = vpack.c.b16 %v4568, %v4567
      %v5595 = vpack.c.b16 %v4570, %v4569
      %v5596 = vpack.c.b16 %v4572, %v4571
      %v5597 = vpack.c.b16 %v4574, %v4573
      %v5598 = vpack.c.b16 %v4576, %v4575
      %v5599 = vpack.c.b16 %v4578, %v4577
      %v5600 = vpack.c.b16 %v4580, %v4579
      %v5601 = vpack.c.b16 %v4582, %v4581
      %v5602 = vpack.c.b16 %v4584, %v4583
      %v5603 = vpack.c.b16 %v4586, %v4585
      %v5604 = vpack.c.b16 %v4588, %v4587
      %v5605 = vpack.c.b16 %v4590, %v4589
      %v5606 = vpack.c.b16 %v4592, %v4591
      %v5607 = vpack.c.b16 %v4594, %v4593
      %v5608 = vpack.c.b16 %v4596, %v4595
      %v5609 = vpack.c.b16 %v4598, %v4597
      %v5610 = vpack.c.b16 %v4600, %v4599
      %v5611 = vpack.c.b16 %v4602, %v4601
      %v5612 = vpack.c.b16 %v4604, %v4603
      %v5613 = vpack.c.b16 %v4606, %v4605
      %v5614 = vpack.c.b16 %v4608, %v4607
      %v5615 = vpack.c.b16 %v4610, %v4609
      %v5616 = vpack.c.b16 %v4612, %v4611
      %v5617 = vpack.c.b16 %v4614, %v4613
      %v5618 = vpack.c.b16 %v4616, %v4615
      %v5619 = vpack.c.b16 %v4618, %v4617
      %v5620 = vpack.c.b16 %v4620, %v4619
      %v5621 = vpack.c.b16 %v4622, %v4621
      %v5622 = vpack.c.b16 %v4624, %v4623
      %v5623 = vpack.c.b16 %v4626, %v4625
      %v5624 = vpack.c.b16 %v4628, %v4627
      %v5625 = vpack.c.b16 %v4630, %v4629
      %v5626 = vpack.c.b16 %v4632, %v4631
      %v5627 = vpack.c.b16 %v4634, %v4633
      %v5628 = vpack.c.b16 %v4636, %v4635
      %v5629 = vpack.c.b16 %v4638, %v4637
      %v5630 = vpack.c.b16 %v4640, %v4639
      %v5631 = vpack.c.b16 %v4642, %v4641
      %v5632 = vpack.c.b16 %v4644, %v4643
      %v5633 = vpack.c.b16 %v4646, %v4645
      %v5634 = vpack.c.b16 %v4648, %v4647
      %v5635 = vpack.c.b16 %v4650, %v4649
      %v5636 = vpack.c.b16 %v4652, %v4651
      %v5637 = vpack.c.b16 %v4654, %v4653
      %v5638 = vpack.c.b16 %v4656, %v4655
      %v5639 = vpack.c.b16 %v4658, %v4657
      %v5640 = vpack.c.b16 %v4660, %v4659
      %v5641 = vpack.c.b16 %v4662, %v4661
      %v5642 = vpack.c.b16 %v4664, %v4663
      %v5643 = vpack.c.b16 %v4666, %v4665
      %v5644 = vpack.c.b16 %v4668, %v4667
      %v5645 = vpack.c.b16 %v4670, %v4669
      %v5646 = vpack.c.b16 %v4672, %v4671
      %v5647 = vpack.c.b16 %v4674, %v4673
      %v5648 = vpack.c.b16 %v4676, %v4675
      %v5649 = vpack.c.b16 %v4678, %v4677
      %v5650 = vpack.c.b16 %v4680, %v4679
      %v5651 = vpack.c.b16 %v4682, %v4681
      %v5652 = vpack.c.b16 %v4684, %v4683
      %v5653 = vpack.c.b16 %v4686, %v4685
      %v5654 = vpack.c.b16 %v4688, %v4687
      %v5655 = vpack.c.b16 %v4690, %v4689
      %v5656 = vpack.c.b16 %v4692, %v4691
      %v5657 = vpack.c.b16 %v4694, %v4693
      %v5658 = vpack.c.b16 %v4696, %v4695
      %v5659 = vpack.c.b16 %v4698, %v4697
      %v5660 = vpack.c.b16 %v4700, %v4699
      %v5661 = vpack.c.b16 %v4702, %v4701
      %v5662 = vpack.c.b16 %v4704, %v4703
      %v5663 = vpack.c.b16 %v4706, %v4705
      %v5664 = vpack.c.b16 %v4708, %v4707
      %v5665 = vpack.c.b16 %v4710, %v4709
      %v5666 = vpack.c.b16 %v4712, %v4711
      %v5667 = vpack.c.b16 %v4714, %v4713
      %v5668 = vpack.c.b16 %v4716, %v4715
      %v5669 = vpack.c.b16 %v4718, %v4717
      %v5670 = vpack.c.b16 %v4720, %v4719
      %v5671 = vpack.c.b16 %v4722, %v4721
      %v5672 = vpack.c.b16 %v4724, %v4723
      %v5673 = vpack.c.b16 %v4726, %v4725
      %v5674 = vpack.c.b16 %v4728, %v4727
      %v5675 = vpack.c.b16 %v4730, %v4729
      %v5676 = vpack.c.b16 %v4732, %v4731
      %v5677 = vpack.c.b16 %v4734, %v4733
      %v5678 = vpack.c.b16 %v4736, %v4735
      %v5679 = vpack.c.b16 %v4738, %v4737
      %v5680 = vpack.c.b16 %v4740, %v4739
      %v5681 = vpack.c.b16 %v4742, %v4741
      %v5682 = vpack.c.b16 %v4744, %v4743
      %v5683 = vpack.c.b16 %v4746, %v4745
      %v5684 = vpack.c.b16 %v4748, %v4747
      %v5685 = vpack.c.b16 %v4750, %v4749
      %v5686 = vpack.c.b16 %v4752, %v4751
      %v5687 = vpack.c.b16 %v4754, %v4753
      %v5688 = vpack.c.b16 %v4756, %v4755
      %v5689 = vpack.c.b16 %v4758, %v4757
      %v5690 = vpack.c.b16 %v4760, %v4759
      %v5691 = vpack.c.b16 %v4762, %v4761
      %v5692 = vpack.c.b16 %v4764, %v4763
      %v5693 = vpack.c.b16 %v4766, %v4765
      %v5694 = vpack.c.b16 %v4768, %v4767
      %v5695 = vpack.c.b16 %v4770, %v4769
      %v5696 = vpack.c.b16 %v4772, %v4771
      %v5697 = vpack.c.b16 %v4774, %v4773
      %v5698 = vpack.c.b16 %v4776, %v4775
      %v5699 = vpack.c.b16 %v4778, %v4777
      %v5700 = vpack.c.b16 %v4780, %v4779
      %v5701 = vpack.c.b16 %v4782, %v4781
      %v5702 = vpack.c.b16 %v4784, %v4783
      %v5703 = vpack.c.b16 %v4786, %v4785
      %v5704 = vpack.c.b16 %v4788, %v4787
      %v5705 = vpack.c.b16 %v4790, %v4789
      %v5706 = vpack.c.b16 %v4792, %v4791
      %v5707 = vpack.c.b16 %v4794, %v4793
      %v5708 = vpack.c.b16 %v4796, %v4795
      %v5709 = vpack.c.b16 %v4798, %v4797
      %v5710 = vpack.c.b16 %v4800, %v4799
      %v5711 = vpack.c.b16 %v4802, %v4801
      %v5712 = vpack.c.b16 %v4804, %v4803
      %v5713 = vpack.c.b16 %v4806, %v4805
      %v5714 = vpack.c.b16 %v4808, %v4807
      %v5715 = vpack.c.b16 %v4810, %v4809
      %v5716 = vpack.c.b16 %v4812, %v4811
      %v5717 = vpack.c.b16 %v4814, %v4813
      %v5718 = vpack.c.b16 %v4816, %v4815
      %v5719 = vpack.c.b16 %v4818, %v4817
      %v5720 = vpack.c.b16 %v4820, %v4819
      %v5721 = vpack.c.b16 %v4822, %v4821
      %v5722 = vpack.c.b16 %v4824, %v4823
      %v5723 = vpack.c.b16 %v4826, %v4825
      %v5724 = vpack.c.b16 %v4828, %v4827
      %v5725 = vpack.c.b16 %v4830, %v4829
      %v5726 = vpack.c.b16 %v4832, %v4831
      %v5727 = vpack.c.b16 %v4834, %v4833
      %v5728 = vpack.c.b16 %v4836, %v4835
      %v5729 = vpack.c.b16 %v4838, %v4837
      %v5730 = vpack.c.b16 %v4840, %v4839
      %v5731 = vpack.c.b16 %v4842, %v4841
      %v5732 = vpack.c.b16 %v4844, %v4843
      %v5733 = vpack.c.b16 %v4846, %v4845
      %v5734 = vpack.c.b16 %v4848, %v4847
      %v5735 = vpack.c.b16 %v4850, %v4849
      %v5736 = vpack.c.b16 %v4852, %v4851
      %v5737 = vpack.c.b16 %v4854, %v4853
      %v5738 = vpack.c.b16 %v4856, %v4855
      %v5739 = vpack.c.b16 %v4858, %v4857
      %v5740 = vpack.c.b16 %v4860, %v4859
      %v5741 = vpack.c.b16 %v4862, %v4861
      %v5742 = vpack.c.b16 %v4864, %v4863
      %v5743 = vpack.c.b16 %v4866, %v4865
      %v5744 = vpack.c.b16 %v4868, %v4867
      %v5745 = vpack.c.b16 %v4870, %v4869
      %v5746 = vpack.c.b16 %v4872, %v4871
      %v5747 = vpack.c.b16 %v4874, %v4873
      %v5748 = vpack.c.b16 %v4876, %v4875
      %v5749 = vpack.c.b16 %v4878, %v4877
      %v5750 = vpack.c.b16 %v4880, %v4879
      %v5751 = vpack.c.b16 %v4882, %v4881
      %v5752 = vpack.c.b16 %v4884, %v4883
      %v5753 = vpack.c.b16 %v4886, %v4885
      %v5754 = vpack.c.b16 %v4888, %v4887
      %v5755 = vpack.c.b16 %v4890, %v4889
      %v5756 = vpack.c.b16 %v4892, %v4891
      %v5757 = vpack.c.b16 %v4894, %v4893
      %v5758 = vpack.c.b16 %v4896, %v4895
      %v5759 = vpack.c.b16 %v4898, %v4897
      %v5760 = vpack.c.b16 %v4900, %v4899
      %v5761 = vpack.c.b16 %v4902, %v4901
      %v5762 = vpack.c.b16 %v4904, %v4903
      %v5763 = vpack.c.b16 %v4906, %v4905
      %v5764 = vpack.c.b16 %v4908, %v4907
      %v5765 = vpack.c.b16 %v4910, %v4909
      %v5766 = vpack.c.b16 %v4912, %v4911
      %v5767 = vpack.c.b16 %v4914, %v4913
      %v5768 = vpack.c.b16 %v4916, %v4915
      %v5769 = vpack.c.b16 %v4918, %v4917
      %v5770 = vpack.c.b16 %v4920, %v4919
      %v5771 = vpack.c.b16 %v4922, %v4921
      %v5772 = vpack.c.b16 %v4924, %v4923
      %v5773 = vpack.c.b16 %v4926, %v4925
      %v5774 = vpack.c.b16 %v4928, %v4927
      %v5775 = vpack.c.b16 %v4930, %v4929
      %v5776 = vpack.c.b16 %v4932, %v4931
      %v5777 = vpack.c.b16 %v4934, %v4933
      %v5778 = vpack.c.b16 %v4936, %v4935
      %v5779 = vpack.c.b16 %v4938, %v4937
      %v5780 = vpack.c.b16 %v4940, %v4939
      %v5781 = vpack.c.b16 %v4942, %v4941
      %v5782 = vpack.c.b16 %v4944, %v4943
      %v5783 = vpack.c.b16 %v4946, %v4945
      %v5784 = vpack.c.b16 %v4948, %v4947
      %v5785 = vpack.c.b16 %v4950, %v4949
      %v5786 = vpack.c.b16 %v4952, %v4951
      %v5787 = vpack.c.b16 %v4954, %v4953
      %v5788 = vpack.c.b16 %v4956, %v4955
      %v5789 = vpack.c.b16 %v4958, %v4957
      %v5790 = vpack.c.b16 %v4960, %v4959
      %v5791 = vpack.c.b16 %v4962, %v4961
      %v5792 = vpack.c.b16 %v4964, %v4963
      %v5793 = vpack.c.b16 %v4966, %v4965
      %v5794 = vpack.c.b16 %v4968, %v4967
      %v5795 = vpack.c.b16 %v4970, %v4969
      %v5796 = vpack.c.b16 %v4972, %v4971
      %v5797 = vpack.c.b16 %v4974, %v4973
      %v5798 = vpack.c.b16 %v4976, %v4975
      %v5799 = vpack.c.b16 %v4978, %v4977
      %v5800 = vpack.c.b16 %v4980, %v4979
      %v5801 = vpack.c.b16 %v4982, %v4981
      %v5802 = vpack.c.b16 %v4984, %v4983
      %v5803 = vpack.c.b16 %v4986, %v4985
      %v5804 = vpack.c.b16 %v4988, %v4987
      %v5805 = vpack.c.b16 %v4990, %v4989
      %v5806 = vpack.c.b16 %v4992, %v4991
      %v5807 = vpack.c.b16 %v4994, %v4993
      %v5808 = vpack.c.b16 %v4996, %v4995
      %v5809 = vpack.c.b16 %v4998, %v4997
      %v5810 = vpack.c.b16 %v5000, %v4999
      %v5811 = vpack.c.b16 %v5002, %v5001
      %v5812 = vpack.c.b16 %v5004, %v5003
      %v5813 = vpack.c.b16 %v5006, %v5005
      %v5814 = vpack.c.b16 %v5008, %v5007
      %v5815 = vpack.c.b16 %v5010, %v5009
      %v5816 = vpack.c.b16 %v5012, %v5011
      %v5817 = vpack.c.b16 %v5014, %v5013
      %v5818 = vpack.c.b16 %v5016, %v5015
      %v5819 = vpack.c.b16 %v5018, %v5017
      %v5820 = vpack.c.b16 %v5020, %v5019
      %v5821 = vpack.c.b16 %v5022, %v5021
      %v5822 = vpack.c.b16 %v5024, %v5023
      %v5823 = vpack.c.b16 %v5026, %v5025
      %v5824 = vpack.c.b16 %v5028, %v5027
      %v5825 = vpack.c.b16 %v5030, %v5029
      %v5826 = vpack.c.b16 %v5032, %v5031
      %v5827 = vpack.c.b16 %v5034, %v5033
      %v5828 = vpack.c.b16 %v5036, %v5035
      %v5829 = vpack.c.b16 %v5038, %v5037
      %v5830 = vpack.c.b16 %v5040, %v5039
      %v5831 = vpack.c.b16 %v5042, %v5041
      %v5832 = vpack.c.b16 %v5044, %v5043
      %v5833 = vpack.c.b16 %v5046, %v5045
      %v5834 = vpack.c.b16 %v5048, %v5047
      %v5835 = vpack.c.b16 %v5050, %v5049
      %v5836 = vpack.c.b16 %v5052, %v5051
      %v5837 = vpack.c.b16 %v5054, %v5053
      %v5838 = vpack.c.b16 %v5056, %v5055
      %v5839 = vpack.c.b16 %v5058, %v5057
      %v5840 = vpack.c.b16 %v5060, %v5059
      %v5841 = vpack.c.b16 %v5062, %v5061
      %v5842 = vpack.c.b16 %v5064, %v5063
      %v5843 = vpack.c.b16 %v5066, %v5065
      %v5844 = vpack.c.b16 %v5068, %v5067
      %v5845 = vpack.c.b16 %v5070, %v5069
      %v5846 = vpack.c.b16 %v5072, %v5071
      %v5847 = vpack.c.b16 %v5074, %v5073
      %v5848 = vpack.c.b16 %v5076, %v5075
      %v5849 = vpack.c.b16 %v5078, %v5077
      %v5850 = vpack.c.b16 %v5080, %v5079
      %v5851 = vpack.c.b16 %v5082, %v5081
      %v5852 = vpack.c.b16 %v5084, %v5083
      %v5853 = vpack.c.b16 %v5086, %v5085
      %v5854 = vpack.c.b16 %v5088, %v5087
      %v5855 = vpack.c.b16 %v5090, %v5089
      %v5856 = vpack.c.b16 %v5092, %v5091
      %v5857 = vpack.c.b16 %v5094, %v5093
      %v5858 = vpack.c.b16 %v5096, %v5095
      %v5859 = vpack.c.b16 %v5098, %v5097
      %v5860 = vpack.c.b16 %v5100, %v5099
      %v5861 = vpack.c.b16 %v5102, %v5101
      %v5862 = vpack.c.b16 %v5104, %v5103
      %v5863 = vpack.c.b16 %v5106, %v5105
      %v5864 = vpack.c.b16 %v5108, %v5107
      %v5865 = vpack.c.b16 %v5110, %v5109
      %v5866 = vpack.c.b16 %v5112, %v5111
      %v5867 = vpack.c.b16 %v5114, %v5113
      %v5868 = vpack.c.b16 %v5116, %v5115
      %v5869 = vpack.c.b16 %v5118, %v5117
      %v5870 = vpack.c.b16 %v5120, %v5119
      %v5871 = vpack.c.b16 %v5122, %v5121
      %v5872 = vpack.c.b16 %v5124, %v5123
      %v5873 = vpack.c.b16 %v5126, %v5125
      %v5874 = vpack.c.b16 %v5128, %v5127
      %v5875 = vpack.c.b16 %v5130, %v5129
      %v5876 = vpack.c.b16 %v5132, %v5131
      %v5877 = vpack.c.b16 %v5134, %v5133
      %v5878 = vpack.c.b16 %v5136, %v5135
      %v5879 = vpack.c.b16 %v5138, %v5137
      %v5880 = vpack.c.b16 %v5140, %v5139
      %v5881 = vpack.c.b16 %v5142, %v5141
      %v5882 = vpack.c.b16 %v5144, %v5143
      %v5883 = vpack.c.b16 %v5146, %v5145
      %v5884 = vpack.c.b16 %v5148, %v5147
      %v5885 = vpack.c.b16 %v5150, %v5149
      %v5886 = vpack.c.b16 %v5152, %v5151
      %v5887 = vpack.c.b16 %v5154, %v5153
      %v5888 = vpack.c.b16 %v5156, %v5155
      %v5889 = vpack.c.b16 %v5158, %v5157
      %v5890 = vpack.c.b16 %v5160, %v5159
      %v5891 = vpack.c.b16 %v5162, %v5161
      %v5892 = vpack.c.b16 %v5164, %v5163
      %v5893 = vpack.c.b16 %v5166, %v5165
      %v5894 = vpack.c.b16 %v5168, %v5167
      %v5895 = vpack.c.b16 %v5170, %v5169
      %v5896 = vpack.c.b16 %v5172, %v5171
      %v5897 = vpack.c.b16 %v5174, %v5173
      %v5898 = vpack.c.b16 %v5176, %v5175
      %v5899 = vpack.c.b16 %v5178, %v5177
      %v5900 = vpack.c.b16 %v5180, %v5179
      %v5901 = vpack.c.b16 %v5182, %v5181
      %v5902 = vpack.c.b16 %v5184, %v5183
      %v5903 = vpack.c.b16 %v5186, %v5185
      %v5904 = vpack.c.b16 %v5188, %v5187
      %v5905 = vpack.c.b16 %v5190, %v5189
      %v5906 = vpack.c.b16 %v5192, %v5191
      %v5907 = vpack.c.b16 %v5194, %v5193
      %v5908 = vpack.c.b16 %v5196, %v5195
      %v5909 = vpack.c.b16 %v5198, %v5197
      %v5910 = vpack.c.b16 %v5200, %v5199
      %v5911 = vpack.c.b16 %v5202, %v5201
      %v5912 = vpack.c.b16 %v5204, %v5203
      %v5913 = vpack.c.b16 %v5206, %v5205
      %v5914 = vpack.c.b16 %v5208, %v5207
      %v5915 = vpack.c.b16 %v5210, %v5209
      %v5916 = vpack.c.b16 %v5212, %v5211
      %v5917 = vpack.c.b16 %v5214, %v5213
      %v5918 = vpack.c.b16 %v5216, %v5215
      %v5919 = vpack.c.b16 %v5218, %v5217
      %v5920 = vpack.c.b16 %v5220, %v5219
      %v5921 = vpack.c.b16 %v5222, %v5221
      %v5922 = vpack.c.b16 %v5224, %v5223
      %v5923 = vpack.c.b16 %v5226, %v5225
      %v5924 = vpack.c.b16 %v5228, %v5227
      %v5925 = vpack.c.b16 %v5230, %v5229
      %v5926 = vpack.c.b16 %v5232, %v5231
      %v5927 = vpack.c.b16 %v5234, %v5233
      %v5928 = vpack.c.b16 %v5236, %v5235
      %v5929 = vpack.c.b16 %v5238, %v5237
      %v5930 = vpack.c.b16 %v5240, %v5239
      %v5931 = vpack.c.b16 %v5242, %v5241
      %v5932 = vpack.c.b16 %v5244, %v5243
      %v5933 = vpack.c.b16 %v5246, %v5245
      %v5934 = vpack.c.b16 %v5248, %v5247
      %v5935 = vpack.c.b16 %v5250, %v5249
      %v5936 = vpack.c.b16 %v5252, %v5251
      %v5937 = vpack.c.b16 %v5254, %v5253
      %v5938 = vpack.c.b16 %v5256, %v5255
      %v5939 = vpack.c.b16 %v5258, %v5257
      %v5940 = vpack.c.b16 %v5260, %v5259
      %v5941 = vpack.c.b16 %v5262, %v5261
      %v5942 = vpack.c.b16 %v5264, %v5263
      %v5943 = vpack.c.b16 %v5266, %v5265
      %v5944 = vpack.c.b16 %v5268, %v5267
      %v5945 = vpack.c.b16 %v5270, %v5269
      %v5946 = vpack.c.b16 %v5272, %v5271
      %v5947 = vpack.c.b16 %v5274, %v5273
      %v5948 = vpack.c.b16 %v5276, %v5275
      %v5949 = vpack.c.b16 %v5278, %v5277
      %v5950 = vpack.c.b16 %v5280, %v5279
      %v5951 = vpack.c.b16 %v5282, %v5281
      %v5952 = vpack.c.b16 %v5284, %v5283
      %v5953 = vpack.c.b16 %v5286, %v5285
      %v5954 = vpack.c.b16 %v5288, %v5287
      %v5955 = vpack.c.b16 %v5290, %v5289
      %v5956 = vpack.c.b16 %v5292, %v5291
      %v5957 = vpack.c.b16 %v5294, %v5293
      %v5958 = vpack.c.b16 %v5296, %v5295
      %v5959 = vpack.c.b16 %v5298, %v5297
      %v5960 = vpack.c.b16 %v5300, %v5299
      %v5961 = vpack.c.b16 %v5302, %v5301
      %v5962 = vpack.c.b16 %v5304, %v5303
      %v5963 = vpack.c.b16 %v5306, %v5305
      %v5964 = vpack.c.b16 %v5308, %v5307
      %v5965 = vpack.c.b16 %v5310, %v5309
      %v5966 = vpack.c.b16 %v5312, %v5311
      %v5967 = vpack.c.b16 %v5314, %v5313
      %v5968 = vpack.c.b16 %v5316, %v5315
      %v5969 = vpack.c.b16 %v5318, %v5317
      %v5970 = vpack.c.b16 %v5320, %v5319
      %v5971 = vpack.c.b16 %v5322, %v5321
      %v5972 = vpack.c.b16 %v5324, %v5323
      %v5973 = vpack.c.b16 %v5326, %v5325
      %v5974 = vpack.c.b16 %v5328, %v5327
      %v5975 = vpack.c.b16 %v5330, %v5329
      %v5976 = vpack.c.b16 %v5332, %v5331
      %v5977 = vpack.c.b16 %v5334, %v5333
      %v5978 = vpack.c.b16 %v5336, %v5335
      %v5979 = vpack.c.b16 %v5338, %v5337
      %v5980 = vpack.c.b16 %v5340, %v5339
      %v5981 = vpack.c.b16 %v5342, %v5341
      %v5982 = vpack.c.b16 %v5344, %v5343
      %v5983 = vpack.c.b16 %v5346, %v5345
      %v5984 = vpack.c.b16 %v5348, %v5347
      %v5985 = vpack.c.b16 %v5350, %v5349
      %v5986 = vpack.c.b16 %v5352, %v5351
      %v5987 = vpack.c.b16 %v5354, %v5353
      %v5988 = vpack.c.b16 %v5356, %v5355
      %v5989 = vpack.c.b16 %v5358, %v5357
      %v5990 = vpack.c.b16 %v5360, %v5359
      %v5991 = vpack.c.b16 %v5362, %v5361
      %v5992 = vpack.c.b16 %v5364, %v5363
      %v5993 = vpack.c.b16 %v5366, %v5365
      %v5994 = vpack.c.b16 %v5368, %v5367
      %v5995 = vpack.c.b16 %v5370, %v5369
      %vm6621 = vcmask 130048
      %v6623 = vsel %vm6621, %v2635, 0
      %v6626 = vsel %vm6621, %v2714, 0
      %6628 = vmatprep.subr.bf16.mxu0 0
      %6629 = vmatpush1.bf16.msra.mxu0 %v5378
      %6630 = vmatprep.subr.bf16.mxu0 0
      %6631 = vmatpush1.bf16.msra.mxu0 %v5377
      %6632 = vmatprep.subr.bf16.mxu0 0
      %6633 = vmatpush1.bf16.msra.mxu0 %v5376
      %6634 = vmatprep.subr.bf16.mxu0 0
      %6635 = vmatpush1.bf16.msra.mxu0 %v5375
      %6636 = vmatprep.subr.bf16.mxu0 0
      %6637 = vmatpush1.bf16.msra.mxu0 %v5374
      %6638 = vmatprep.subr.bf16.mxu0 0
      %6639 = vmatpush1.bf16.msra.mxu0 %v5373
      %6640 = vmatprep.subr.bf16.mxu0 0
      %6641 = vmatpush1.bf16.msra.mxu0 %v5372
      %6642 = vmatprep.subr.bf16.mxu0 0
      %6643 = vmatpush1.bf16.msra.mxu0 %v5371
      %6644 = vmatprep.subr.bf16.mxu0 0
      %6645 = vmatpush2.bf16.msra.mxu0 %v5386
      %6646 = vmatprep.subr.bf16.mxu0 0
      %6647 = vmatpush2.bf16.msra.mxu0 %v5385
      %6648 = vmatprep.subr.bf16.mxu0 0
      %6649 = vmatpush2.bf16.msra.mxu0 %v5384
      %6650 = vmatprep.subr.bf16.mxu0 0
      %6651 = vmatpush2.bf16.msra.mxu0 %v5383
      %6652 = vmatprep.subr.bf16.mxu0 0
      %6653 = vmatpush2.bf16.msra.mxu0 %v5382
      %6654 = vmatprep.subr.bf16.mxu0 0
      %6655 = vmatpush2.bf16.msra.mxu0 %v5381
      %6656 = vmatprep.subr.bf16.mxu0 0
      %6657 = vmatpush2.bf16.msra.mxu0 %v5380
      %6658 = vmatprep.subr.bf16.mxu0 0
      %6659 = vmatpush2.bf16.msra.mxu0 %v5379
      %6660 = vmatprep.mubr.bf16.mxu0 %v2558
      %6661 = vmatmul.mubr.bf16.gmra.mxu0 %v2557
      %v6662 = vpop.f32.mrf.mxu0
      %v6663 = vadd.f32 %v2079, %v6662
      %v6664 = vpop.f32.mrf.mxu0
      %v6665 = vpop.f32.mrf.mxu0
      %v6666 = vadd.f32 %v2079, %v6665
      %v6667 = vpop.f32.mrf.mxu0
      %6668 = vmatprep.mubr.bf16.mxu0 %v2637
      %6669 = vmatmul.mubr.bf16.gmra.mxu0 %v2636
      %v6670 = vpop.f32.mrf.mxu0
      %v6671 = vadd.f32 %v2079, %v6670
      %v6672 = vpop.f32.mrf.mxu0
      %v6673 = vpop.f32.mrf.mxu0
      %v6674 = vadd.f32 %v2079, %v6673
      %v6675 = vpop.f32.mrf.mxu0
      %6676 = vdwg.mxu0
      %6677 = vmatprep.subr.bf16.mxu0 0
      %6678 = vmatpush1.bf16.msra.mxu0 %v5394
      %6679 = vmatprep.subr.bf16.mxu0 0
      %6680 = vmatpush1.bf16.msra.mxu0 %v5393
      %6681 = vmatprep.subr.bf16.mxu0 0
      %6682 = vmatpush1.bf16.msra.mxu0 %v5392
      %6683 = vmatprep.subr.bf16.mxu0 0
      %6684 = vmatpush1.bf16.msra.mxu0 %v5391
      %6685 = vmatprep.subr.bf16.mxu0 0
      %6686 = vmatpush1.bf16.msra.mxu0 %v5390
      %6687 = vmatprep.subr.bf16.mxu0 0
      %6688 = vmatpush1.bf16.msra.mxu0 %v5389
      %6689 = vmatprep.subr.bf16.mxu0 0
      %6690 = vmatpush1.bf16.msra.mxu0 %v5388
      %6691 = vmatprep.subr.bf16.mxu0 0
      %6692 = vmatpush1.bf16.msra.mxu0 %v5387
      %6693 = vmatprep.subr.bf16.mxu0 0
      %6694 = vmatpush2.bf16.msra.mxu0 %v5402
      %6695 = vmatprep.subr.bf16.mxu0 0
      %6696 = vmatpush2.bf16.msra.mxu0 %v5401
      %6697 = vmatprep.subr.bf16.mxu0 0
      %6698 = vmatpush2.bf16.msra.mxu0 %v5400
      %6699 = vmatprep.subr.bf16.mxu0 0
      %6700 = vmatpush2.bf16.msra.mxu0 %v5399
      %6701 = vmatprep.subr.bf16.mxu0 0
      %6702 = vmatpush2.bf16.msra.mxu0 %v5398
      %6703 = vmatprep.subr.bf16.mxu0 0
      %6704 = vmatpush2.bf16.msra.mxu0 %v5397
      %6705 = vmatprep.subr.bf16.mxu0 0
      %6706 = vmatpush2.bf16.msra.mxu0 %v5396
      %6707 = vmatprep.subr.bf16.mxu0 0
      %6708 = vmatpush2.bf16.msra.mxu0 %v5395
      %6709 = vmatprep.mubr.bf16.mxu0 %v2560
      %6710 = vmatmul.mubr.bf16.gmra.mxu0 %v2559
      %v6711 = vpop.f32.mrf.mxu0
      %v6712 = vadd.f32 %v6663, %v6711
      %v6713 = vpop.f32.mrf.mxu0
      %v6714 = vpop.f32.mrf.mxu0
      %v6715 = vadd.f32 %v6666, %v6714
      %v6716 = vpop.f32.mrf.mxu0
      %6717 = vmatprep.mubr.bf16.mxu0 %v2639
      %6718 = vmatmul.mubr.bf16.gmra.mxu0 %v2638
      %v6719 = vpop.f32.mrf.mxu0
      %v6720 = vadd.f32 %v6671, %v6719
      %v6721 = vpop.f32.mrf.mxu0
      %v6722 = vpop.f32.mrf.mxu0
      %v6723 = vadd.f32 %v6674, %v6722
      %v6724 = vpop.f32.mrf.mxu0
      %6725 = vdwg.mxu0
      %6726 = vmatprep.subr.bf16.mxu0 0
      %6727 = vmatpush1.bf16.msra.mxu0 %v5410
      %6728 = vmatprep.subr.bf16.mxu0 0
      %6729 = vmatpush1.bf16.msra.mxu0 %v5409
      %6730 = vmatprep.subr.bf16.mxu0 0
      %6731 = vmatpush1.bf16.msra.mxu0 %v5408
      %6732 = vmatprep.subr.bf16.mxu0 0
      %6733 = vmatpush1.bf16.msra.mxu0 %v5407
      %6734 = vmatprep.subr.bf16.mxu0 0
      %6735 = vmatpush1.bf16.msra.mxu0 %v5406
      %6736 = vmatprep.subr.bf16.mxu0 0
      %6737 = vmatpush1.bf16.msra.mxu0 %v5405
      %6738 = vmatprep.subr.bf16.mxu0 0
      %6739 = vmatpush1.bf16.msra.mxu0 %v5404
      %6740 = vmatprep.subr.bf16.mxu0 0
      %6741 = vmatpush1.bf16.msra.mxu0 %v5403
      %6742 = vmatprep.subr.bf16.mxu0 0
      %6743 = vmatpush2.bf16.msra.mxu0 %v5418
      %6744 = vmatprep.subr.bf16.mxu0 0
      %6745 = vmatpush2.bf16.msra.mxu0 %v5417
      %6746 = vmatprep.subr.bf16.mxu0 0
      %6747 = vmatpush2.bf16.msra.mxu0 %v5416
      %6748 = vmatprep.subr.bf16.mxu0 0
      %6749 = vmatpush2.bf16.msra.mxu0 %v5415
      %6750 = vmatprep.subr.bf16.mxu0 0
      %6751 = vmatpush2.bf16.msra.mxu0 %v5414
      %6752 = vmatprep.subr.bf16.mxu0 0
      %6753 = vmatpush2.bf16.msra.mxu0 %v5413
      %6754 = vmatprep.subr.bf16.mxu0 0
      %6755 = vmatpush2.bf16.msra.mxu0 %v5412
      %6756 = vmatprep.subr.bf16.mxu0 0
      %6757 = vmatpush2.bf16.msra.mxu0 %v5411
      %6758 = vmatprep.mubr.bf16.mxu0 %v2562
      %6759 = vmatmul.mubr.bf16.gmra.mxu0 %v2561
      %v6760 = vpop.f32.mrf.mxu0
      %v6761 = vadd.f32 %v6712, %v6760
      %v6762 = vpop.f32.mrf.mxu0
      %v6763 = vpop.f32.mrf.mxu0
      %v6764 = vadd.f32 %v6715, %v6763
      %v6765 = vpop.f32.mrf.mxu0
      %6766 = vmatprep.mubr.bf16.mxu0 %v2641
      %6767 = vmatmul.mubr.bf16.gmra.mxu0 %v2640
      %v6768 = vpop.f32.mrf.mxu0
      %v6769 = vadd.f32 %v6720, %v6768
      %v6770 = vpop.f32.mrf.mxu0
      %v6771 = vpop.f32.mrf.mxu0
      %v6772 = vadd.f32 %v6723, %v6771
      %v6773 = vpop.f32.mrf.mxu0
      %6774 = vdwg.mxu0
      %6775 = vmatprep.subr.bf16.mxu0 0
      %6776 = vmatpush1.bf16.msra.mxu0 %v5426
      %6777 = vmatprep.subr.bf16.mxu0 0
      %6778 = vmatpush1.bf16.msra.mxu0 %v5425
      %6779 = vmatprep.subr.bf16.mxu0 0
      %6780 = vmatpush1.bf16.msra.mxu0 %v5424
      %6781 = vmatprep.subr.bf16.mxu0 0
      %6782 = vmatpush1.bf16.msra.mxu0 %v5423
      %6783 = vmatprep.subr.bf16.mxu0 0
      %6784 = vmatpush1.bf16.msra.mxu0 %v5422
      %6785 = vmatprep.subr.bf16.mxu0 0
      %6786 = vmatpush1.bf16.msra.mxu0 %v5421
      %6787 = vmatprep.subr.bf16.mxu0 0
      %6788 = vmatpush1.bf16.msra.mxu0 %v5420
      %6789 = vmatprep.subr.bf16.mxu0 0
      %6790 = vmatpush1.bf16.msra.mxu0 %v5419
      %6791 = vmatprep.subr.bf16.mxu0 0
      %6792 = vmatpush2.bf16.msra.mxu0 %v5434
      %6793 = vmatprep.subr.bf16.mxu0 0
      %6794 = vmatpush2.bf16.msra.mxu0 %v5433
      %6795 = vmatprep.subr.bf16.mxu0 0
      %6796 = vmatpush2.bf16.msra.mxu0 %v5432
      %6797 = vmatprep.subr.bf16.mxu0 0
      %6798 = vmatpush2.bf16.msra.mxu0 %v5431
      %6799 = vmatprep.subr.bf16.mxu0 0
      %6800 = vmatpush2.bf16.msra.mxu0 %v5430
      %6801 = vmatprep.subr.bf16.mxu0 0
      %6802 = vmatpush2.bf16.msra.mxu0 %v5429
      %6803 = vmatprep.subr.bf16.mxu0 0
      %6804 = vmatpush2.bf16.msra.mxu0 %v5428
      %6805 = vmatprep.subr.bf16.mxu0 0
      %6806 = vmatpush2.bf16.msra.mxu0 %v5427
      %6807 = vmatprep.mubr.bf16.mxu0 %v2564
      %6808 = vmatmul.mubr.bf16.gmra.mxu0 %v2563
      %v6809 = vpop.f32.mrf.mxu0
      %v6810 = vadd.f32 %v6761, %v6809
      %v6811 = vpop.f32.mrf.mxu0
      %v6812 = vpop.f32.mrf.mxu0
      %v6813 = vadd.f32 %v6764, %v6812
      %v6814 = vpop.f32.mrf.mxu0
      %6815 = vmatprep.mubr.bf16.mxu0 %v2643
      %6816 = vmatmul.mubr.bf16.gmra.mxu0 %v2642
      %v6817 = vpop.f32.mrf.mxu0
      %v6818 = vadd.f32 %v6769, %v6817
      %v6819 = vpop.f32.mrf.mxu0
      %v6820 = vpop.f32.mrf.mxu0
      %v6821 = vadd.f32 %v6772, %v6820
      %v6822 = vpop.f32.mrf.mxu0
      %6823 = vdwg.mxu0
      %6824 = vmatprep.subr.bf16.mxu0 0
      %6825 = vmatpush1.bf16.msra.mxu0 %v5442
      %6826 = vmatprep.subr.bf16.mxu0 0
      %6827 = vmatpush1.bf16.msra.mxu0 %v5441
      %6828 = vmatprep.subr.bf16.mxu0 0
      %6829 = vmatpush1.bf16.msra.mxu0 %v5440
      %6830 = vmatprep.subr.bf16.mxu0 0
      %6831 = vmatpush1.bf16.msra.mxu0 %v5439
      %6832 = vmatprep.subr.bf16.mxu0 0
      %6833 = vmatpush1.bf16.msra.mxu0 %v5438
      %6834 = vmatprep.subr.bf16.mxu0 0
      %6835 = vmatpush1.bf16.msra.mxu0 %v5437
      %6836 = vmatprep.subr.bf16.mxu0 0
      %6837 = vmatpush1.bf16.msra.mxu0 %v5436
      %6838 = vmatprep.subr.bf16.mxu0 0
      %6839 = vmatpush1.bf16.msra.mxu0 %v5435
      %6840 = vmatprep.subr.bf16.mxu0 0
      %6841 = vmatpush2.bf16.msra.mxu0 %v5450
      %6842 = vmatprep.subr.bf16.mxu0 0
      %6843 = vmatpush2.bf16.msra.mxu0 %v5449
      %6844 = vmatprep.subr.bf16.mxu0 0
      %6845 = vmatpush2.bf16.msra.mxu0 %v5448
      %6846 = vmatprep.subr.bf16.mxu0 0
      %6847 = vmatpush2.bf16.msra.mxu0 %v5447
      %6848 = vmatprep.subr.bf16.mxu0 0
      %6849 = vmatpush2.bf16.msra.mxu0 %v5446
      %6850 = vmatprep.subr.bf16.mxu0 0
      %6851 = vmatpush2.bf16.msra.mxu0 %v5445
      %6852 = vmatprep.subr.bf16.mxu0 0
      %6853 = vmatpush2.bf16.msra.mxu0 %v5444
      %6854 = vmatprep.subr.bf16.mxu0 0
      %6855 = vmatpush2.bf16.msra.mxu0 %v5443
      %6856 = vmatprep.mubr.bf16.mxu0 %v2566
      %6857 = vmatmul.mubr.bf16.gmra.mxu0 %v2565
      %v6858 = vpop.f32.mrf.mxu0
      %v6859 = vadd.f32 %v6810, %v6858
      %v6860 = vpop.f32.mrf.mxu0
      %v6861 = vpop.f32.mrf.mxu0
      %v6862 = vadd.f32 %v6813, %v6861
      %v6863 = vpop.f32.mrf.mxu0
      %6864 = vmatprep.mubr.bf16.mxu0 %v2645
      %6865 = vmatmul.mubr.bf16.gmra.mxu0 %v2644
      %v6866 = vpop.f32.mrf.mxu0
      %v6867 = vadd.f32 %v6818, %v6866
      %v6868 = vpop.f32.mrf.mxu0
      %v6869 = vpop.f32.mrf.mxu0
      %v6870 = vadd.f32 %v6821, %v6869
      %v6871 = vpop.f32.mrf.mxu0
      %6872 = vdwg.mxu0
      %6873 = vmatprep.subr.bf16.mxu0 0
      %6874 = vmatpush1.bf16.msra.mxu0 %v5458
      %6875 = vmatprep.subr.bf16.mxu0 0
      %6876 = vmatpush1.bf16.msra.mxu0 %v5457
      %6877 = vmatprep.subr.bf16.mxu0 0
      %6878 = vmatpush1.bf16.msra.mxu0 %v5456
      %6879 = vmatprep.subr.bf16.mxu0 0
      %6880 = vmatpush1.bf16.msra.mxu0 %v5455
      %6881 = vmatprep.subr.bf16.mxu0 0
      %6882 = vmatpush1.bf16.msra.mxu0 %v5454
      %6883 = vmatprep.subr.bf16.mxu0 0
      %6884 = vmatpush1.bf16.msra.mxu0 %v5453
      %6885 = vmatprep.subr.bf16.mxu0 0
      %6886 = vmatpush1.bf16.msra.mxu0 %v5452
      %6887 = vmatprep.subr.bf16.mxu0 0
      %6888 = vmatpush1.bf16.msra.mxu0 %v5451
      %6889 = vmatprep.subr.bf16.mxu0 0
      %6890 = vmatpush2.bf16.msra.mxu0 %v5466
      %6891 = vmatprep.subr.bf16.mxu0 0
      %6892 = vmatpush2.bf16.msra.mxu0 %v5465
      %6893 = vmatprep.subr.bf16.mxu0 0
      %6894 = vmatpush2.bf16.msra.mxu0 %v5464
      %6895 = vmatprep.subr.bf16.mxu0 0
      %6896 = vmatpush2.bf16.msra.mxu0 %v5463
      %6897 = vmatprep.subr.bf16.mxu0 0
      %6898 = vmatpush2.bf16.msra.mxu0 %v5462
      %6899 = vmatprep.subr.bf16.mxu0 0
      %6900 = vmatpush2.bf16.msra.mxu0 %v5461
      %6901 = vmatprep.subr.bf16.mxu0 0
      %6902 = vmatpush2.bf16.msra.mxu0 %v5460
      %6903 = vmatprep.subr.bf16.mxu0 0
      %6904 = vmatpush2.bf16.msra.mxu0 %v5459
      %6905 = vmatprep.mubr.bf16.mxu0 %v2568
      %6906 = vmatmul.mubr.bf16.gmra.mxu0 %v2567
      %v6907 = vpop.f32.mrf.mxu0
      %v6908 = vadd.f32 %v6859, %v6907
      %v6909 = vpop.f32.mrf.mxu0
      %v6910 = vpop.f32.mrf.mxu0
      %v6911 = vadd.f32 %v6862, %v6910
      %v6912 = vpop.f32.mrf.mxu0
      %6913 = vmatprep.mubr.bf16.mxu0 %v2647
      %6914 = vmatmul.mubr.bf16.gmra.mxu0 %v2646
      %v6915 = vpop.f32.mrf.mxu0
      %v6916 = vadd.f32 %v6867, %v6915
      %v6917 = vpop.f32.mrf.mxu0
      %v6918 = vpop.f32.mrf.mxu0
      %v6919 = vadd.f32 %v6870, %v6918
      %v6920 = vpop.f32.mrf.mxu0
      %6921 = vdwg.mxu0
      %6922 = vmatprep.subr.bf16.mxu0 0
      %6923 = vmatpush1.bf16.msra.mxu0 %v5474
      %6924 = vmatprep.subr.bf16.mxu0 0
      %6925 = vmatpush1.bf16.msra.mxu0 %v5473
      %6926 = vmatprep.subr.bf16.mxu0 0
      %6927 = vmatpush1.bf16.msra.mxu0 %v5472
      %6928 = vmatprep.subr.bf16.mxu0 0
      %6929 = vmatpush1.bf16.msra.mxu0 %v5471
      %6930 = vmatprep.subr.bf16.mxu0 0
      %6931 = vmatpush1.bf16.msra.mxu0 %v5470
      %6932 = vmatprep.subr.bf16.mxu0 0
      %6933 = vmatpush1.bf16.msra.mxu0 %v5469
      %6934 = vmatprep.subr.bf16.mxu0 0
      %6935 = vmatpush1.bf16.msra.mxu0 %v5468
      %6936 = vmatprep.subr.bf16.mxu0 0
      %6937 = vmatpush1.bf16.msra.mxu0 %v5467
      %6938 = vmatprep.subr.bf16.mxu0 0
      %6939 = vmatpush2.bf16.msra.mxu0 %v5482
      %6940 = vmatprep.subr.bf16.mxu0 0
      %6941 = vmatpush2.bf16.msra.mxu0 %v5481
      %6942 = vmatprep.subr.bf16.mxu0 0
      %6943 = vmatpush2.bf16.msra.mxu0 %v5480
      %6944 = vmatprep.subr.bf16.mxu0 0
      %6945 = vmatpush2.bf16.msra.mxu0 %v5479
      %6946 = vmatprep.subr.bf16.mxu0 0
      %6947 = vmatpush2.bf16.msra.mxu0 %v5478
      %6948 = vmatprep.subr.bf16.mxu0 0
      %6949 = vmatpush2.bf16.msra.mxu0 %v5477
      %6950 = vmatprep.subr.bf16.mxu0 0
      %6951 = vmatpush2.bf16.msra.mxu0 %v5476
      %6952 = vmatprep.subr.bf16.mxu0 0
      %6953 = vmatpush2.bf16.msra.mxu0 %v5475
      %6954 = vmatprep.mubr.bf16.mxu0 %v2570
      %6955 = vmatmul.mubr.bf16.gmra.mxu0 %v2569
      %v6956 = vpop.f32.mrf.mxu0
      %v6957 = vadd.f32 %v6908, %v6956
      %v6958 = vpop.f32.mrf.mxu0
      %v6959 = vpop.f32.mrf.mxu0
      %v6960 = vadd.f32 %v6911, %v6959
      %v6961 = vpop.f32.mrf.mxu0
      %6962 = vmatprep.mubr.bf16.mxu0 %v2649
      %6963 = vmatmul.mubr.bf16.gmra.mxu0 %v2648
      %v6964 = vpop.f32.mrf.mxu0
      %v6965 = vadd.f32 %v6916, %v6964
      %v6966 = vpop.f32.mrf.mxu0
      %v6967 = vpop.f32.mrf.mxu0
      %v6968 = vadd.f32 %v6919, %v6967
      %v6969 = vpop.f32.mrf.mxu0
      %6970 = vdwg.mxu0
      %6971 = vmatprep.subr.bf16.mxu0 0
      %6972 = vmatpush1.bf16.msra.mxu0 %v5490
      %6973 = vmatprep.subr.bf16.mxu0 0
      %6974 = vmatpush1.bf16.msra.mxu0 %v5489
      %6975 = vmatprep.subr.bf16.mxu0 0
      %6976 = vmatpush1.bf16.msra.mxu0 %v5488
      %6977 = vmatprep.subr.bf16.mxu0 0
      %6978 = vmatpush1.bf16.msra.mxu0 %v5487
      %6979 = vmatprep.subr.bf16.mxu0 0
      %6980 = vmatpush1.bf16.msra.mxu0 %v5486
      %6981 = vmatprep.subr.bf16.mxu0 0
      %6982 = vmatpush1.bf16.msra.mxu0 %v5485
      %6983 = vmatprep.subr.bf16.mxu0 0
      %6984 = vmatpush1.bf16.msra.mxu0 %v5484
      %6985 = vmatprep.subr.bf16.mxu0 0
      %6986 = vmatpush1.bf16.msra.mxu0 %v5483
      %6987 = vmatprep.subr.bf16.mxu0 0
      %6988 = vmatpush2.bf16.msra.mxu0 %v5498
      %6989 = vmatprep.subr.bf16.mxu0 0
      %6990 = vmatpush2.bf16.msra.mxu0 %v5497
      %6991 = vmatprep.subr.bf16.mxu0 0
      %6992 = vmatpush2.bf16.msra.mxu0 %v5496
      %6993 = vmatprep.subr.bf16.mxu0 0
      %6994 = vmatpush2.bf16.msra.mxu0 %v5495
      %6995 = vmatprep.subr.bf16.mxu0 0
      %6996 = vmatpush2.bf16.msra.mxu0 %v5494
      %6997 = vmatprep.subr.bf16.mxu0 0
      %6998 = vmatpush2.bf16.msra.mxu0 %v5493
      %6999 = vmatprep.subr.bf16.mxu0 0
      %7000 = vmatpush2.bf16.msra.mxu0 %v5492
      %7001 = vmatprep.subr.bf16.mxu0 0
      %7002 = vmatpush2.bf16.msra.mxu0 %v5491
      %7003 = vmatprep.mubr.bf16.mxu0 %v2572
      %7004 = vmatmul.mubr.bf16.gmra.mxu0 %v2571
      %v7005 = vpop.f32.mrf.mxu0
      %v7006 = vadd.f32 %v6957, %v7005
      %v7007 = vpop.f32.mrf.mxu0
      %v7008 = vpop.f32.mrf.mxu0
      %v7009 = vadd.f32 %v6960, %v7008
      %v7010 = vpop.f32.mrf.mxu0
      %7011 = vmatprep.mubr.bf16.mxu0 %v2651
      %7012 = vmatmul.mubr.bf16.gmra.mxu0 %v2650
      %v7013 = vpop.f32.mrf.mxu0
      %v7014 = vadd.f32 %v6965, %v7013
      %v7015 = vpop.f32.mrf.mxu0
      %v7016 = vpop.f32.mrf.mxu0
      %v7017 = vadd.f32 %v6968, %v7016
      %v7018 = vpop.f32.mrf.mxu0
      %7019 = vdwg.mxu0
      %7020 = vmatprep.subr.bf16.mxu0 0
      %7021 = vmatpush1.bf16.msra.mxu0 %v5506
      %7022 = vmatprep.subr.bf16.mxu0 0
      %7023 = vmatpush1.bf16.msra.mxu0 %v5505
      %7024 = vmatprep.subr.bf16.mxu0 0
      %7025 = vmatpush1.bf16.msra.mxu0 %v5504
      %7026 = vmatprep.subr.bf16.mxu0 0
      %7027 = vmatpush1.bf16.msra.mxu0 %v5503
      %7028 = vmatprep.subr.bf16.mxu0 0
      %7029 = vmatpush1.bf16.msra.mxu0 %v5502
      %7030 = vmatprep.subr.bf16.mxu0 0
      %7031 = vmatpush1.bf16.msra.mxu0 %v5501
      %7032 = vmatprep.subr.bf16.mxu0 0
      %7033 = vmatpush1.bf16.msra.mxu0 %v5500
      %7034 = vmatprep.subr.bf16.mxu0 0
      %7035 = vmatpush1.bf16.msra.mxu0 %v5499
      %7036 = vmatprep.subr.bf16.mxu0 0
      %7037 = vmatpush2.bf16.msra.mxu0 %v5514
      %7038 = vmatprep.subr.bf16.mxu0 0
      %7039 = vmatpush2.bf16.msra.mxu0 %v5513
      %7040 = vmatprep.subr.bf16.mxu0 0
      %7041 = vmatpush2.bf16.msra.mxu0 %v5512
      %7042 = vmatprep.subr.bf16.mxu0 0
      %7043 = vmatpush2.bf16.msra.mxu0 %v5511
      %7044 = vmatprep.subr.bf16.mxu0 0
      %7045 = vmatpush2.bf16.msra.mxu0 %v5510
      %7046 = vmatprep.subr.bf16.mxu0 0
      %7047 = vmatpush2.bf16.msra.mxu0 %v5509
      %7048 = vmatprep.subr.bf16.mxu0 0
      %7049 = vmatpush2.bf16.msra.mxu0 %v5508
      %7050 = vmatprep.subr.bf16.mxu0 0
      %7051 = vmatpush2.bf16.msra.mxu0 %v5507
      %7052 = vmatprep.mubr.bf16.mxu0 %v2574
      %7053 = vmatmul.mubr.bf16.gmra.mxu0 %v2573
      %v7054 = vpop.f32.mrf.mxu0
      %v7055 = vadd.f32 %v7006, %v7054
      %v7056 = vpop.f32.mrf.mxu0
      %v7057 = vpop.f32.mrf.mxu0
      %v7058 = vadd.f32 %v7009, %v7057
      %v7059 = vpop.f32.mrf.mxu0
      %7060 = vmatprep.mubr.bf16.mxu0 %v2653
      %7061 = vmatmul.mubr.bf16.gmra.mxu0 %v2652
      %v7062 = vpop.f32.mrf.mxu0
      %v7063 = vadd.f32 %v7014, %v7062
      %v7064 = vpop.f32.mrf.mxu0
      %v7065 = vpop.f32.mrf.mxu0
      %v7066 = vadd.f32 %v7017, %v7065
      %v7067 = vpop.f32.mrf.mxu0
      %7068 = vdwg.mxu0
      %7069 = vmatprep.subr.bf16.mxu0 0
      %7070 = vmatpush1.bf16.msra.mxu0 %v5522
      %7071 = vmatprep.subr.bf16.mxu0 0
      %7072 = vmatpush1.bf16.msra.mxu0 %v5521
      %7073 = vmatprep.subr.bf16.mxu0 0
      %7074 = vmatpush1.bf16.msra.mxu0 %v5520
      %7075 = vmatprep.subr.bf16.mxu0 0
      %7076 = vmatpush1.bf16.msra.mxu0 %v5519
      %7077 = vmatprep.subr.bf16.mxu0 0
      %7078 = vmatpush1.bf16.msra.mxu0 %v5518
      %7079 = vmatprep.subr.bf16.mxu0 0
      %7080 = vmatpush1.bf16.msra.mxu0 %v5517
      %7081 = vmatprep.subr.bf16.mxu0 0
      %7082 = vmatpush1.bf16.msra.mxu0 %v5516
      %7083 = vmatprep.subr.bf16.mxu0 0
      %7084 = vmatpush1.bf16.msra.mxu0 %v5515
      %7085 = vmatprep.subr.bf16.mxu0 0
      %7086 = vmatpush2.bf16.msra.mxu0 %v5530
      %7087 = vmatprep.subr.bf16.mxu0 0
      %7088 = vmatpush2.bf16.msra.mxu0 %v5529
      %7089 = vmatprep.subr.bf16.mxu0 0
      %7090 = vmatpush2.bf16.msra.mxu0 %v5528
      %7091 = vmatprep.subr.bf16.mxu0 0
      %7092 = vmatpush2.bf16.msra.mxu0 %v5527
      %7093 = vmatprep.subr.bf16.mxu0 0
      %7094 = vmatpush2.bf16.msra.mxu0 %v5526
      %7095 = vmatprep.subr.bf16.mxu0 0
      %7096 = vmatpush2.bf16.msra.mxu0 %v5525
      %7097 = vmatprep.subr.bf16.mxu0 0
      %7098 = vmatpush2.bf16.msra.mxu0 %v5524
      %7099 = vmatprep.subr.bf16.mxu0 0
      %7100 = vmatpush2.bf16.msra.mxu0 %v5523
      %7101 = vmatprep.mubr.bf16.mxu0 %v2576
      %7102 = vmatmul.mubr.bf16.gmra.mxu0 %v2575
      %v7103 = vpop.f32.mrf.mxu0
      %v7104 = vadd.f32 %v7055, %v7103
      %v7105 = vpop.f32.mrf.mxu0
      %v7106 = vpop.f32.mrf.mxu0
      %v7107 = vadd.f32 %v7058, %v7106
      %v7108 = vpop.f32.mrf.mxu0
      %7109 = vmatprep.mubr.bf16.mxu0 %v2655
      %7110 = vmatmul.mubr.bf16.gmra.mxu0 %v2654
      %v7111 = vpop.f32.mrf.mxu0
      %v7112 = vadd.f32 %v7063, %v7111
      %v7113 = vpop.f32.mrf.mxu0
      %v7114 = vpop.f32.mrf.mxu0
      %v7115 = vadd.f32 %v7066, %v7114
      %v7116 = vpop.f32.mrf.mxu0
      %7117 = vdwg.mxu0
      %7118 = vmatprep.subr.bf16.mxu0 0
      %7119 = vmatpush1.bf16.msra.mxu0 %v5538
      %7120 = vmatprep.subr.bf16.mxu0 0
      %7121 = vmatpush1.bf16.msra.mxu0 %v5537
      %7122 = vmatprep.subr.bf16.mxu0 0
      %7123 = vmatpush1.bf16.msra.mxu0 %v5536
      %7124 = vmatprep.subr.bf16.mxu0 0
      %7125 = vmatpush1.bf16.msra.mxu0 %v5535
      %7126 = vmatprep.subr.bf16.mxu0 0
      %7127 = vmatpush1.bf16.msra.mxu0 %v5534
      %7128 = vmatprep.subr.bf16.mxu0 0
      %7129 = vmatpush1.bf16.msra.mxu0 %v5533
      %7130 = vmatprep.subr.bf16.mxu0 0
      %7131 = vmatpush1.bf16.msra.mxu0 %v5532
      %7132 = vmatprep.subr.bf16.mxu0 0
      %7133 = vmatpush1.bf16.msra.mxu0 %v5531
      %7134 = vmatprep.subr.bf16.mxu0 0
      %7135 = vmatpush2.bf16.msra.mxu0 %v5546
      %7136 = vmatprep.subr.bf16.mxu0 0
      %7137 = vmatpush2.bf16.msra.mxu0 %v5545
      %7138 = vmatprep.subr.bf16.mxu0 0
      %7139 = vmatpush2.bf16.msra.mxu0 %v5544
      %7140 = vmatprep.subr.bf16.mxu0 0
      %7141 = vmatpush2.bf16.msra.mxu0 %v5543
      %7142 = vmatprep.subr.bf16.mxu0 0
      %7143 = vmatpush2.bf16.msra.mxu0 %v5542
      %7144 = vmatprep.subr.bf16.mxu0 0
      %7145 = vmatpush2.bf16.msra.mxu0 %v5541
      %7146 = vmatprep.subr.bf16.mxu0 0
      %7147 = vmatpush2.bf16.msra.mxu0 %v5540
      %7148 = vmatprep.subr.bf16.mxu0 0
      %7149 = vmatpush2.bf16.msra.mxu0 %v5539
      %7150 = vmatprep.mubr.bf16.mxu0 %v2578
      %7151 = vmatmul.mubr.bf16.gmra.mxu0 %v2577
      %v7152 = vpop.f32.mrf.mxu0
      %v7153 = vadd.f32 %v7104, %v7152
      %v7154 = vpop.f32.mrf.mxu0
      %v7155 = vpop.f32.mrf.mxu0
      %v7156 = vadd.f32 %v7107, %v7155
      %v7157 = vpop.f32.mrf.mxu0
      %7158 = vmatprep.mubr.bf16.mxu0 %v2657
      %7159 = vmatmul.mubr.bf16.gmra.mxu0 %v2656
      %v7160 = vpop.f32.mrf.mxu0
      %v7161 = vadd.f32 %v7112, %v7160
      %v7162 = vpop.f32.mrf.mxu0
      %v7163 = vpop.f32.mrf.mxu0
      %v7164 = vadd.f32 %v7115, %v7163
      %v7165 = vpop.f32.mrf.mxu0
      %7166 = vdwg.mxu0
      %7167 = vmatprep.subr.bf16.mxu0 0
      %7168 = vmatpush1.bf16.msra.mxu0 %v5554
      %7169 = vmatprep.subr.bf16.mxu0 0
      %7170 = vmatpush1.bf16.msra.mxu0 %v5553
      %7171 = vmatprep.subr.bf16.mxu0 0
      %7172 = vmatpush1.bf16.msra.mxu0 %v5552
      %7173 = vmatprep.subr.bf16.mxu0 0
      %7174 = vmatpush1.bf16.msra.mxu0 %v5551
      %7175 = vmatprep.subr.bf16.mxu0 0
      %7176 = vmatpush1.bf16.msra.mxu0 %v5550
      %7177 = vmatprep.subr.bf16.mxu0 0
      %7178 = vmatpush1.bf16.msra.mxu0 %v5549
      %7179 = vmatprep.subr.bf16.mxu0 0
      %7180 = vmatpush1.bf16.msra.mxu0 %v5548
      %7181 = vmatprep.subr.bf16.mxu0 0
      %7182 = vmatpush1.bf16.msra.mxu0 %v5547
      %7183 = vmatprep.subr.bf16.mxu0 0
      %7184 = vmatpush2.bf16.msra.mxu0 %v5562
      %7185 = vmatprep.subr.bf16.mxu0 0
      %7186 = vmatpush2.bf16.msra.mxu0 %v5561
      %7187 = vmatprep.subr.bf16.mxu0 0
      %7188 = vmatpush2.bf16.msra.mxu0 %v5560
      %7189 = vmatprep.subr.bf16.mxu0 0
      %7190 = vmatpush2.bf16.msra.mxu0 %v5559
      %7191 = vmatprep.subr.bf16.mxu0 0
      %7192 = vmatpush2.bf16.msra.mxu0 %v5558
      %7193 = vmatprep.subr.bf16.mxu0 0
      %7194 = vmatpush2.bf16.msra.mxu0 %v5557
      %7195 = vmatprep.subr.bf16.mxu0 0
      %7196 = vmatpush2.bf16.msra.mxu0 %v5556
      %7197 = vmatprep.subr.bf16.mxu0 0
      %7198 = vmatpush2.bf16.msra.mxu0 %v5555
      %7199 = vmatprep.mubr.bf16.mxu0 %v2580
      %7200 = vmatmul.mubr.bf16.gmra.mxu0 %v2579
      %v7201 = vpop.f32.mrf.mxu0
      %v7202 = vadd.f32 %v7153, %v7201
      %v7203 = vpop.f32.mrf.mxu0
      %v7204 = vpop.f32.mrf.mxu0
      %v7205 = vadd.f32 %v7156, %v7204
      %v7206 = vpop.f32.mrf.mxu0
      %7207 = vmatprep.mubr.bf16.mxu0 %v2659
      %7208 = vmatmul.mubr.bf16.gmra.mxu0 %v2658
      %v7209 = vpop.f32.mrf.mxu0
      %v7210 = vadd.f32 %v7161, %v7209
      %v7211 = vpop.f32.mrf.mxu0
      %v7212 = vpop.f32.mrf.mxu0
      %v7213 = vadd.f32 %v7164, %v7212
      %v7214 = vpop.f32.mrf.mxu0
      %7215 = vdwg.mxu0
      %7216 = vmatprep.subr.bf16.mxu0 0
      %7217 = vmatpush1.bf16.msra.mxu0 %v5570
      %7218 = vmatprep.subr.bf16.mxu0 0
      %7219 = vmatpush1.bf16.msra.mxu0 %v5569
      %7220 = vmatprep.subr.bf16.mxu0 0
      %7221 = vmatpush1.bf16.msra.mxu0 %v5568
      %7222 = vmatprep.subr.bf16.mxu0 0
      %7223 = vmatpush1.bf16.msra.mxu0 %v5567
      %7224 = vmatprep.subr.bf16.mxu0 0
      %7225 = vmatpush1.bf16.msra.mxu0 %v5566
      %7226 = vmatprep.subr.bf16.mxu0 0
      %7227 = vmatpush1.bf16.msra.mxu0 %v5565
      %7228 = vmatprep.subr.bf16.mxu0 0
      %7229 = vmatpush1.bf16.msra.mxu0 %v5564
      %7230 = vmatprep.subr.bf16.mxu0 0
      %7231 = vmatpush1.bf16.msra.mxu0 %v5563
      %7232 = vmatprep.subr.bf16.mxu0 0
      %7233 = vmatpush2.bf16.msra.mxu0 %v5578
      %7234 = vmatprep.subr.bf16.mxu0 0
      %7235 = vmatpush2.bf16.msra.mxu0 %v5577
      %7236 = vmatprep.subr.bf16.mxu0 0
      %7237 = vmatpush2.bf16.msra.mxu0 %v5576
      %7238 = vmatprep.subr.bf16.mxu0 0
      %7239 = vmatpush2.bf16.msra.mxu0 %v5575
      %7240 = vmatprep.subr.bf16.mxu0 0
      %7241 = vmatpush2.bf16.msra.mxu0 %v5574
      %7242 = vmatprep.subr.bf16.mxu0 0
      %7243 = vmatpush2.bf16.msra.mxu0 %v5573
      %7244 = vmatprep.subr.bf16.mxu0 0
      %7245 = vmatpush2.bf16.msra.mxu0 %v5572
      %7246 = vmatprep.subr.bf16.mxu0 0
      %7247 = vmatpush2.bf16.msra.mxu0 %v5571
      %7248 = vmatprep.mubr.bf16.mxu0 %v2582
      %7249 = vmatmul.mubr.bf16.gmra.mxu0 %v2581
      %v7250 = vpop.f32.mrf.mxu0
      %v7251 = vadd.f32 %v7202, %v7250
      %v7252 = vpop.f32.mrf.mxu0
      %v7253 = vpop.f32.mrf.mxu0
      %v7254 = vadd.f32 %v7205, %v7253
      %v7255 = vpop.f32.mrf.mxu0
      %7256 = vmatprep.mubr.bf16.mxu0 %v2661
      %7257 = vmatmul.mubr.bf16.gmra.mxu0 %v2660
      %v7258 = vpop.f32.mrf.mxu0
      %v7259 = vadd.f32 %v7210, %v7258
      %v7260 = vpop.f32.mrf.mxu0
      %v7261 = vpop.f32.mrf.mxu0
      %v7262 = vadd.f32 %v7213, %v7261
      %v7263 = vpop.f32.mrf.mxu0
      %7264 = vdwg.mxu0
      %7265 = vmatprep.subr.bf16.mxu0 0
      %7266 = vmatpush1.bf16.msra.mxu0 %v5586
      %7267 = vmatprep.subr.bf16.mxu0 0
      %7268 = vmatpush1.bf16.msra.mxu0 %v5585
      %7269 = vmatprep.subr.bf16.mxu0 0
      %7270 = vmatpush1.bf16.msra.mxu0 %v5584
      %7271 = vmatprep.subr.bf16.mxu0 0
      %7272 = vmatpush1.bf16.msra.mxu0 %v5583
      %7273 = vmatprep.subr.bf16.mxu0 0
      %7274 = vmatpush1.bf16.msra.mxu0 %v5582
      %7275 = vmatprep.subr.bf16.mxu0 0
      %7276 = vmatpush1.bf16.msra.mxu0 %v5581
      %7277 = vmatprep.subr.bf16.mxu0 0
      %7278 = vmatpush1.bf16.msra.mxu0 %v5580
      %7279 = vmatprep.subr.bf16.mxu0 0
      %7280 = vmatpush1.bf16.msra.mxu0 %v5579
      %7281 = vmatprep.subr.bf16.mxu0 0
      %7282 = vmatpush2.bf16.msra.mxu0 %v5594
      %7283 = vmatprep.subr.bf16.mxu0 0
      %7284 = vmatpush2.bf16.msra.mxu0 %v5593
      %7285 = vmatprep.subr.bf16.mxu0 0
      %7286 = vmatpush2.bf16.msra.mxu0 %v5592
      %7287 = vmatprep.subr.bf16.mxu0 0
      %7288 = vmatpush2.bf16.msra.mxu0 %v5591
      %7289 = vmatprep.subr.bf16.mxu0 0
      %7290 = vmatpush2.bf16.msra.mxu0 %v5590
      %7291 = vmatprep.subr.bf16.mxu0 0
      %7292 = vmatpush2.bf16.msra.mxu0 %v5589
      %7293 = vmatprep.subr.bf16.mxu0 0
      %7294 = vmatpush2.bf16.msra.mxu0 %v5588
      %7295 = vmatprep.subr.bf16.mxu0 0
      %7296 = vmatpush2.bf16.msra.mxu0 %v5587
      %7297 = vmatprep.mubr.bf16.mxu0 %v2584
      %7298 = vmatmul.mubr.bf16.gmra.mxu0 %v2583
      %v7299 = vpop.f32.mrf.mxu0
      %v7300 = vadd.f32 %v7251, %v7299
      %v7301 = vpop.f32.mrf.mxu0
      %v7302 = vpop.f32.mrf.mxu0
      %v7303 = vadd.f32 %v7254, %v7302
      %v7304 = vpop.f32.mrf.mxu0
      %7305 = vmatprep.mubr.bf16.mxu0 %v2663
      %7306 = vmatmul.mubr.bf16.gmra.mxu0 %v2662
      %v7307 = vpop.f32.mrf.mxu0
      %v7308 = vadd.f32 %v7259, %v7307
      %v7309 = vpop.f32.mrf.mxu0
      %v7310 = vpop.f32.mrf.mxu0
      %v7311 = vadd.f32 %v7262, %v7310
      %v7312 = vpop.f32.mrf.mxu0
      %7313 = vdwg.mxu0
      %7314 = vmatprep.subr.bf16.mxu0 0
      %7315 = vmatpush1.bf16.msra.mxu0 %v5602
      %7316 = vmatprep.subr.bf16.mxu0 0
      %7317 = vmatpush1.bf16.msra.mxu0 %v5601
      %7318 = vmatprep.subr.bf16.mxu0 0
      %7319 = vmatpush1.bf16.msra.mxu0 %v5600
      %7320 = vmatprep.subr.bf16.mxu0 0
      %7321 = vmatpush1.bf16.msra.mxu0 %v5599
      %7322 = vmatprep.subr.bf16.mxu0 0
      %7323 = vmatpush1.bf16.msra.mxu0 %v5598
      %7324 = vmatprep.subr.bf16.mxu0 0
      %7325 = vmatpush1.bf16.msra.mxu0 %v5597
      %7326 = vmatprep.subr.bf16.mxu0 0
      %7327 = vmatpush1.bf16.msra.mxu0 %v5596
      %7328 = vmatprep.subr.bf16.mxu0 0
      %7329 = vmatpush1.bf16.msra.mxu0 %v5595
      %7330 = vmatprep.subr.bf16.mxu0 0
      %7331 = vmatpush2.bf16.msra.mxu0 %v5610
      %7332 = vmatprep.subr.bf16.mxu0 0
      %7333 = vmatpush2.bf16.msra.mxu0 %v5609
      %7334 = vmatprep.subr.bf16.mxu0 0
      %7335 = vmatpush2.bf16.msra.mxu0 %v5608
      %7336 = vmatprep.subr.bf16.mxu0 0
      %7337 = vmatpush2.bf16.msra.mxu0 %v5607
      %7338 = vmatprep.subr.bf16.mxu0 0
      %7339 = vmatpush2.bf16.msra.mxu0 %v5606
      %7340 = vmatprep.subr.bf16.mxu0 0
      %7341 = vmatpush2.bf16.msra.mxu0 %v5605
      %7342 = vmatprep.subr.bf16.mxu0 0
      %7343 = vmatpush2.bf16.msra.mxu0 %v5604
      %7344 = vmatprep.subr.bf16.mxu0 0
      %7345 = vmatpush2.bf16.msra.mxu0 %v5603
      %7346 = vmatprep.mubr.bf16.mxu0 %v2586
      %7347 = vmatmul.mubr.bf16.gmra.mxu0 %v2585
      %v7348 = vpop.f32.mrf.mxu0
      %v7349 = vadd.f32 %v7300, %v7348
      %v7350 = vpop.f32.mrf.mxu0
      %v7351 = vpop.f32.mrf.mxu0
      %v7352 = vadd.f32 %v7303, %v7351
      %v7353 = vpop.f32.mrf.mxu0
      %7354 = vmatprep.mubr.bf16.mxu0 %v2665
      %7355 = vmatmul.mubr.bf16.gmra.mxu0 %v2664
      %v7356 = vpop.f32.mrf.mxu0
      %v7357 = vadd.f32 %v7308, %v7356
      %v7358 = vpop.f32.mrf.mxu0
      %v7359 = vpop.f32.mrf.mxu0
      %v7360 = vadd.f32 %v7311, %v7359
      %v7361 = vpop.f32.mrf.mxu0
      %7362 = vdwg.mxu0
      %7363 = vmatprep.subr.bf16.mxu0 0
      %7364 = vmatpush1.bf16.msra.mxu0 %v5618
      %7365 = vmatprep.subr.bf16.mxu0 0
      %7366 = vmatpush1.bf16.msra.mxu0 %v5617
      %7367 = vmatprep.subr.bf16.mxu0 0
      %7368 = vmatpush1.bf16.msra.mxu0 %v5616
      %7369 = vmatprep.subr.bf16.mxu0 0
      %7370 = vmatpush1.bf16.msra.mxu0 %v5615
      %7371 = vmatprep.subr.bf16.mxu0 0
      %7372 = vmatpush1.bf16.msra.mxu0 %v5614
      %7373 = vmatprep.subr.bf16.mxu0 0
      %7374 = vmatpush1.bf16.msra.mxu0 %v5613
      %7375 = vmatprep.subr.bf16.mxu0 0
      %7376 = vmatpush1.bf16.msra.mxu0 %v5612
      %7377 = vmatprep.subr.bf16.mxu0 0
      %7378 = vmatpush1.bf16.msra.mxu0 %v5611
      %7379 = vmatprep.subr.bf16.mxu0 0
      %7380 = vmatpush2.bf16.msra.mxu0 %v5626
      %7381 = vmatprep.subr.bf16.mxu0 0
      %7382 = vmatpush2.bf16.msra.mxu0 %v5625
      %7383 = vmatprep.subr.bf16.mxu0 0
      %7384 = vmatpush2.bf16.msra.mxu0 %v5624
      %7385 = vmatprep.subr.bf16.mxu0 0
      %7386 = vmatpush2.bf16.msra.mxu0 %v5623
      %7387 = vmatprep.subr.bf16.mxu0 0
      %7388 = vmatpush2.bf16.msra.mxu0 %v5622
      %7389 = vmatprep.subr.bf16.mxu0 0
      %7390 = vmatpush2.bf16.msra.mxu0 %v5621
      %7391 = vmatprep.subr.bf16.mxu0 0
      %7392 = vmatpush2.bf16.msra.mxu0 %v5620
      %7393 = vmatprep.subr.bf16.mxu0 0
      %7394 = vmatpush2.bf16.msra.mxu0 %v5619
      %7395 = vmatprep.mubr.bf16.mxu0 %v2588
      %7396 = vmatmul.mubr.bf16.gmra.mxu0 %v2587
      %v7397 = vpop.f32.mrf.mxu0
      %v7398 = vadd.f32 %v7349, %v7397
      %v7399 = vpop.f32.mrf.mxu0
      %v7400 = vpop.f32.mrf.mxu0
      %v7401 = vadd.f32 %v7352, %v7400
      %v7402 = vpop.f32.mrf.mxu0
      %7403 = vmatprep.mubr.bf16.mxu0 %v2667
      %7404 = vmatmul.mubr.bf16.gmra.mxu0 %v2666
      %v7405 = vpop.f32.mrf.mxu0
      %v7406 = vadd.f32 %v7357, %v7405
      %v7407 = vpop.f32.mrf.mxu0
      %v7408 = vpop.f32.mrf.mxu0
      %v7409 = vadd.f32 %v7360, %v7408
      %v7410 = vpop.f32.mrf.mxu0
      %7411 = vdwg.mxu0
      %7412 = vmatprep.subr.bf16.mxu0 0
      %7413 = vmatpush1.bf16.msra.mxu0 %v5634
      %7414 = vmatprep.subr.bf16.mxu0 0
      %7415 = vmatpush1.bf16.msra.mxu0 %v5633
      %7416 = vmatprep.subr.bf16.mxu0 0
      %7417 = vmatpush1.bf16.msra.mxu0 %v5632
      %7418 = vmatprep.subr.bf16.mxu0 0
      %7419 = vmatpush1.bf16.msra.mxu0 %v5631
      %7420 = vmatprep.subr.bf16.mxu0 0
      %7421 = vmatpush1.bf16.msra.mxu0 %v5630
      %7422 = vmatprep.subr.bf16.mxu0 0
      %7423 = vmatpush1.bf16.msra.mxu0 %v5629
      %7424 = vmatprep.subr.bf16.mxu0 0
      %7425 = vmatpush1.bf16.msra.mxu0 %v5628
      %7426 = vmatprep.subr.bf16.mxu0 0
      %7427 = vmatpush1.bf16.msra.mxu0 %v5627
      %7428 = vmatprep.subr.bf16.mxu0 0
      %7429 = vmatpush2.bf16.msra.mxu0 %v5642
      %7430 = vmatprep.subr.bf16.mxu0 0
      %7431 = vmatpush2.bf16.msra.mxu0 %v5641
      %7432 = vmatprep.subr.bf16.mxu0 0
      %7433 = vmatpush2.bf16.msra.mxu0 %v5640
      %7434 = vmatprep.subr.bf16.mxu0 0
      %7435 = vmatpush2.bf16.msra.mxu0 %v5639
      %7436 = vmatprep.subr.bf16.mxu0 0
      %7437 = vmatpush2.bf16.msra.mxu0 %v5638
      %7438 = vmatprep.subr.bf16.mxu0 0
      %7439 = vmatpush2.bf16.msra.mxu0 %v5637
      %7440 = vmatprep.subr.bf16.mxu0 0
      %7441 = vmatpush2.bf16.msra.mxu0 %v5636
      %7442 = vmatprep.subr.bf16.mxu0 0
      %7443 = vmatpush2.bf16.msra.mxu0 %v5635
      %7444 = vmatprep.mubr.bf16.mxu0 %v2590
      %7445 = vmatmul.mubr.bf16.gmra.mxu0 %v2589
      %v7446 = vpop.f32.mrf.mxu0
      %v7447 = vadd.f32 %v7398, %v7446
      %v7448 = vpop.f32.mrf.mxu0
      %v7449 = vpop.f32.mrf.mxu0
      %v7450 = vadd.f32 %v7401, %v7449
      %v7451 = vpop.f32.mrf.mxu0
      %7452 = vmatprep.mubr.bf16.mxu0 %v2669
      %7453 = vmatmul.mubr.bf16.gmra.mxu0 %v2668
      %v7454 = vpop.f32.mrf.mxu0
      %v7455 = vadd.f32 %v7406, %v7454
      %v7456 = vpop.f32.mrf.mxu0
      %v7457 = vpop.f32.mrf.mxu0
      %v7458 = vadd.f32 %v7409, %v7457
      %v7459 = vpop.f32.mrf.mxu0
      %7460 = vdwg.mxu0
      %7461 = vmatprep.subr.bf16.mxu0 0
      %7462 = vmatpush1.bf16.msra.mxu0 %v5650
      %7463 = vmatprep.subr.bf16.mxu0 0
      %7464 = vmatpush1.bf16.msra.mxu0 %v5649
      %7465 = vmatprep.subr.bf16.mxu0 0
      %7466 = vmatpush1.bf16.msra.mxu0 %v5648
      %7467 = vmatprep.subr.bf16.mxu0 0
      %7468 = vmatpush1.bf16.msra.mxu0 %v5647
      %7469 = vmatprep.subr.bf16.mxu0 0
      %7470 = vmatpush1.bf16.msra.mxu0 %v5646
      %7471 = vmatprep.subr.bf16.mxu0 0
      %7472 = vmatpush1.bf16.msra.mxu0 %v5645
      %7473 = vmatprep.subr.bf16.mxu0 0
      %7474 = vmatpush1.bf16.msra.mxu0 %v5644
      %7475 = vmatprep.subr.bf16.mxu0 0
      %7476 = vmatpush1.bf16.msra.mxu0 %v5643
      %7477 = vmatprep.subr.bf16.mxu0 0
      %7478 = vmatpush2.bf16.msra.mxu0 %v5658
      %7479 = vmatprep.subr.bf16.mxu0 0
      %7480 = vmatpush2.bf16.msra.mxu0 %v5657
      %7481 = vmatprep.subr.bf16.mxu0 0
      %7482 = vmatpush2.bf16.msra.mxu0 %v5656
      %7483 = vmatprep.subr.bf16.mxu0 0
      %7484 = vmatpush2.bf16.msra.mxu0 %v5655
      %7485 = vmatprep.subr.bf16.mxu0 0
      %7486 = vmatpush2.bf16.msra.mxu0 %v5654
      %7487 = vmatprep.subr.bf16.mxu0 0
      %7488 = vmatpush2.bf16.msra.mxu0 %v5653
      %7489 = vmatprep.subr.bf16.mxu0 0
      %7490 = vmatpush2.bf16.msra.mxu0 %v5652
      %7491 = vmatprep.subr.bf16.mxu0 0
      %7492 = vmatpush2.bf16.msra.mxu0 %v5651
      %7493 = vmatprep.mubr.bf16.mxu0 %v2592
      %7494 = vmatmul.mubr.bf16.gmra.mxu0 %v2591
      %v7495 = vpop.f32.mrf.mxu0
      %v7496 = vadd.f32 %v7447, %v7495
      %v7497 = vpop.f32.mrf.mxu0
      %v7498 = vpop.f32.mrf.mxu0
      %v7499 = vadd.f32 %v7450, %v7498
      %v7500 = vpop.f32.mrf.mxu0
      %7501 = vmatprep.mubr.bf16.mxu0 %v2671
      %7502 = vmatmul.mubr.bf16.gmra.mxu0 %v2670
      %v7503 = vpop.f32.mrf.mxu0
      %v7504 = vadd.f32 %v7455, %v7503
      %v7505 = vpop.f32.mrf.mxu0
      %v7506 = vpop.f32.mrf.mxu0
      %v7507 = vadd.f32 %v7458, %v7506
      %v7508 = vpop.f32.mrf.mxu0
      %7509 = vdwg.mxu0
      %7510 = vmatprep.subr.bf16.mxu0 0
      %7511 = vmatpush1.bf16.msra.mxu0 %v5666
      %7512 = vmatprep.subr.bf16.mxu0 0
      %7513 = vmatpush1.bf16.msra.mxu0 %v5665
      %7514 = vmatprep.subr.bf16.mxu0 0
      %7515 = vmatpush1.bf16.msra.mxu0 %v5664
      %7516 = vmatprep.subr.bf16.mxu0 0
      %7517 = vmatpush1.bf16.msra.mxu0 %v5663
      %7518 = vmatprep.subr.bf16.mxu0 0
      %7519 = vmatpush1.bf16.msra.mxu0 %v5662
      %7520 = vmatprep.subr.bf16.mxu0 0
      %7521 = vmatpush1.bf16.msra.mxu0 %v5661
      %7522 = vmatprep.subr.bf16.mxu0 0
      %7523 = vmatpush1.bf16.msra.mxu0 %v5660
      %7524 = vmatprep.subr.bf16.mxu0 0
      %7525 = vmatpush1.bf16.msra.mxu0 %v5659
      %7526 = vmatprep.subr.bf16.mxu0 0
      %7527 = vmatpush2.bf16.msra.mxu0 %v5674
      %7528 = vmatprep.subr.bf16.mxu0 0
      %7529 = vmatpush2.bf16.msra.mxu0 %v5673
      %7530 = vmatprep.subr.bf16.mxu0 0
      %7531 = vmatpush2.bf16.msra.mxu0 %v5672
      %7532 = vmatprep.subr.bf16.mxu0 0
      %7533 = vmatpush2.bf16.msra.mxu0 %v5671
      %7534 = vmatprep.subr.bf16.mxu0 0
      %7535 = vmatpush2.bf16.msra.mxu0 %v5670
      %7536 = vmatprep.subr.bf16.mxu0 0
      %7537 = vmatpush2.bf16.msra.mxu0 %v5669
      %7538 = vmatprep.subr.bf16.mxu0 0
      %7539 = vmatpush2.bf16.msra.mxu0 %v5668
      %7540 = vmatprep.subr.bf16.mxu0 0
      %7541 = vmatpush2.bf16.msra.mxu0 %v5667
      %7542 = vmatprep.mubr.bf16.mxu0 %v2594
      %7543 = vmatmul.mubr.bf16.gmra.mxu0 %v2593
      %v7544 = vpop.f32.mrf.mxu0
      %v7545 = vadd.f32 %v7496, %v7544
      %v7546 = vpop.f32.mrf.mxu0
      %v7547 = vpop.f32.mrf.mxu0
      %v7548 = vadd.f32 %v7499, %v7547
      %v7549 = vpop.f32.mrf.mxu0
      %7550 = vmatprep.mubr.bf16.mxu0 %v2673
      %7551 = vmatmul.mubr.bf16.gmra.mxu0 %v2672
      %v7552 = vpop.f32.mrf.mxu0
      %v7553 = vadd.f32 %v7504, %v7552
      %v7554 = vpop.f32.mrf.mxu0
      %v7555 = vpop.f32.mrf.mxu0
      %v7556 = vadd.f32 %v7507, %v7555
      %v7557 = vpop.f32.mrf.mxu0
      %7558 = vdwg.mxu0
      %7559 = vmatprep.subr.bf16.mxu0 0
      %7560 = vmatpush1.bf16.msra.mxu0 %v5682
      %7561 = vmatprep.subr.bf16.mxu0 0
      %7562 = vmatpush1.bf16.msra.mxu0 %v5681
      %7563 = vmatprep.subr.bf16.mxu0 0
      %7564 = vmatpush1.bf16.msra.mxu0 %v5680
      %7565 = vmatprep.subr.bf16.mxu0 0
      %7566 = vmatpush1.bf16.msra.mxu0 %v5679
      %7567 = vmatprep.subr.bf16.mxu0 0
      %7568 = vmatpush1.bf16.msra.mxu0 %v5678
      %7569 = vmatprep.subr.bf16.mxu0 0
      %7570 = vmatpush1.bf16.msra.mxu0 %v5677
      %7571 = vmatprep.subr.bf16.mxu0 0
      %7572 = vmatpush1.bf16.msra.mxu0 %v5676
      %7573 = vmatprep.subr.bf16.mxu0 0
      %7574 = vmatpush1.bf16.msra.mxu0 %v5675
      %7575 = vmatprep.subr.bf16.mxu0 0
      %7576 = vmatpush2.bf16.msra.mxu0 %v5690
      %7577 = vmatprep.subr.bf16.mxu0 0
      %7578 = vmatpush2.bf16.msra.mxu0 %v5689
      %7579 = vmatprep.subr.bf16.mxu0 0
      %7580 = vmatpush2.bf16.msra.mxu0 %v5688
      %7581 = vmatprep.subr.bf16.mxu0 0
      %7582 = vmatpush2.bf16.msra.mxu0 %v5687
      %7583 = vmatprep.subr.bf16.mxu0 0
      %7584 = vmatpush2.bf16.msra.mxu0 %v5686
      %7585 = vmatprep.subr.bf16.mxu0 0
      %7586 = vmatpush2.bf16.msra.mxu0 %v5685
      %7587 = vmatprep.subr.bf16.mxu0 0
      %7588 = vmatpush2.bf16.msra.mxu0 %v5684
      %7589 = vmatprep.subr.bf16.mxu0 0
      %7590 = vmatpush2.bf16.msra.mxu0 %v5683
      %7591 = vmatprep.mubr.bf16.mxu0 %v2596
      %7592 = vmatmul.mubr.bf16.gmra.mxu0 %v2595
      %v7593 = vpop.f32.mrf.mxu0
      %v7594 = vadd.f32 %v7545, %v7593
      %v7595 = vpop.f32.mrf.mxu0
      %v7596 = vpop.f32.mrf.mxu0
      %v7597 = vadd.f32 %v7548, %v7596
      %v7598 = vpop.f32.mrf.mxu0
      %7599 = vmatprep.mubr.bf16.mxu0 %v2675
      %7600 = vmatmul.mubr.bf16.gmra.mxu0 %v2674
      %v7601 = vpop.f32.mrf.mxu0
      %v7602 = vadd.f32 %v7553, %v7601
      %v7603 = vpop.f32.mrf.mxu0
      %v7604 = vpop.f32.mrf.mxu0
      %v7605 = vadd.f32 %v7556, %v7604
      %v7606 = vpop.f32.mrf.mxu0
      %7607 = vdwg.mxu0
      %7608 = vmatprep.subr.bf16.mxu0 0
      %7609 = vmatpush1.bf16.msra.mxu0 %v5698
      %7610 = vmatprep.subr.bf16.mxu0 0
      %7611 = vmatpush1.bf16.msra.mxu0 %v5697
      %7612 = vmatprep.subr.bf16.mxu0 0
      %7613 = vmatpush1.bf16.msra.mxu0 %v5696
      %7614 = vmatprep.subr.bf16.mxu0 0
      %7615 = vmatpush1.bf16.msra.mxu0 %v5695
      %7616 = vmatprep.subr.bf16.mxu0 0
      %7617 = vmatpush1.bf16.msra.mxu0 %v5694
      %7618 = vmatprep.subr.bf16.mxu0 0
      %7619 = vmatpush1.bf16.msra.mxu0 %v5693
      %7620 = vmatprep.subr.bf16.mxu0 0
      %7621 = vmatpush1.bf16.msra.mxu0 %v5692
      %7622 = vmatprep.subr.bf16.mxu0 0
      %7623 = vmatpush1.bf16.msra.mxu0 %v5691
      %7624 = vmatprep.subr.bf16.mxu0 0
      %7625 = vmatpush2.bf16.msra.mxu0 %v5706
      %7626 = vmatprep.subr.bf16.mxu0 0
      %7627 = vmatpush2.bf16.msra.mxu0 %v5705
      %7628 = vmatprep.subr.bf16.mxu0 0
      %7629 = vmatpush2.bf16.msra.mxu0 %v5704
      %7630 = vmatprep.subr.bf16.mxu0 0
      %7631 = vmatpush2.bf16.msra.mxu0 %v5703
      %7632 = vmatprep.subr.bf16.mxu0 0
      %7633 = vmatpush2.bf16.msra.mxu0 %v5702
      %7634 = vmatprep.subr.bf16.mxu0 0
      %7635 = vmatpush2.bf16.msra.mxu0 %v5701
      %7636 = vmatprep.subr.bf16.mxu0 0
      %7637 = vmatpush2.bf16.msra.mxu0 %v5700
      %7638 = vmatprep.subr.bf16.mxu0 0
      %7639 = vmatpush2.bf16.msra.mxu0 %v5699
      %7640 = vmatprep.mubr.bf16.mxu0 %v2598
      %7641 = vmatmul.mubr.bf16.gmra.mxu0 %v2597
      %v7642 = vpop.f32.mrf.mxu0
      %v7643 = vadd.f32 %v7594, %v7642
      %v7644 = vpop.f32.mrf.mxu0
      %v7645 = vpop.f32.mrf.mxu0
      %v7646 = vadd.f32 %v7597, %v7645
      %v7647 = vpop.f32.mrf.mxu0
      %7648 = vmatprep.mubr.bf16.mxu0 %v2677
      %7649 = vmatmul.mubr.bf16.gmra.mxu0 %v2676
      %v7650 = vpop.f32.mrf.mxu0
      %v7651 = vadd.f32 %v7602, %v7650
      %v7652 = vpop.f32.mrf.mxu0
      %v7653 = vpop.f32.mrf.mxu0
      %v7654 = vadd.f32 %v7605, %v7653
      %v7655 = vpop.f32.mrf.mxu0
      %7656 = vdwg.mxu0
      %7657 = vmatprep.subr.bf16.mxu0 0
      %7658 = vmatpush1.bf16.msra.mxu0 %v5714
      %7659 = vmatprep.subr.bf16.mxu0 0
      %7660 = vmatpush1.bf16.msra.mxu0 %v5713
      %7661 = vmatprep.subr.bf16.mxu0 0
      %7662 = vmatpush1.bf16.msra.mxu0 %v5712
      %7663 = vmatprep.subr.bf16.mxu0 0
      %7664 = vmatpush1.bf16.msra.mxu0 %v5711
      %7665 = vmatprep.subr.bf16.mxu0 0
      %7666 = vmatpush1.bf16.msra.mxu0 %v5710
      %7667 = vmatprep.subr.bf16.mxu0 0
      %7668 = vmatpush1.bf16.msra.mxu0 %v5709
      %7669 = vmatprep.subr.bf16.mxu0 0
      %7670 = vmatpush1.bf16.msra.mxu0 %v5708
      %7671 = vmatprep.subr.bf16.mxu0 0
      %7672 = vmatpush1.bf16.msra.mxu0 %v5707
      %7673 = vmatprep.subr.bf16.mxu0 0
      %7674 = vmatpush2.bf16.msra.mxu0 %v5722
      %7675 = vmatprep.subr.bf16.mxu0 0
      %7676 = vmatpush2.bf16.msra.mxu0 %v5721
      %7677 = vmatprep.subr.bf16.mxu0 0
      %7678 = vmatpush2.bf16.msra.mxu0 %v5720
      %7679 = vmatprep.subr.bf16.mxu0 0
      %7680 = vmatpush2.bf16.msra.mxu0 %v5719
      %7681 = vmatprep.subr.bf16.mxu0 0
      %7682 = vmatpush2.bf16.msra.mxu0 %v5718
      %7683 = vmatprep.subr.bf16.mxu0 0
      %7684 = vmatpush2.bf16.msra.mxu0 %v5717
      %7685 = vmatprep.subr.bf16.mxu0 0
      %7686 = vmatpush2.bf16.msra.mxu0 %v5716
      %7687 = vmatprep.subr.bf16.mxu0 0
      %7688 = vmatpush2.bf16.msra.mxu0 %v5715
      %7689 = vmatprep.mubr.bf16.mxu0 %v2600
      %7690 = vmatmul.mubr.bf16.gmra.mxu0 %v2599
      %v7691 = vpop.f32.mrf.mxu0
      %v7692 = vadd.f32 %v7643, %v7691
      %v7693 = vpop.f32.mrf.mxu0
      %v7694 = vpop.f32.mrf.mxu0
      %v7695 = vadd.f32 %v7646, %v7694
      %v7696 = vpop.f32.mrf.mxu0
      %7697 = vmatprep.mubr.bf16.mxu0 %v2679
      %7698 = vmatmul.mubr.bf16.gmra.mxu0 %v2678
      %v7699 = vpop.f32.mrf.mxu0
      %v7700 = vadd.f32 %v7651, %v7699
      %v7701 = vpop.f32.mrf.mxu0
      %v7702 = vpop.f32.mrf.mxu0
      %v7703 = vadd.f32 %v7654, %v7702
      %v7704 = vpop.f32.mrf.mxu0
      %7705 = vdwg.mxu0
      %7706 = vmatprep.subr.bf16.mxu0 0
      %7707 = vmatpush1.bf16.msra.mxu0 %v5730
      %7708 = vmatprep.subr.bf16.mxu0 0
      %7709 = vmatpush1.bf16.msra.mxu0 %v5729
      %7710 = vmatprep.subr.bf16.mxu0 0
      %7711 = vmatpush1.bf16.msra.mxu0 %v5728
      %7712 = vmatprep.subr.bf16.mxu0 0
      %7713 = vmatpush1.bf16.msra.mxu0 %v5727
      %7714 = vmatprep.subr.bf16.mxu0 0
      %7715 = vmatpush1.bf16.msra.mxu0 %v5726
      %7716 = vmatprep.subr.bf16.mxu0 0
      %7717 = vmatpush1.bf16.msra.mxu0 %v5725
      %7718 = vmatprep.subr.bf16.mxu0 0
      %7719 = vmatpush1.bf16.msra.mxu0 %v5724
      %7720 = vmatprep.subr.bf16.mxu0 0
      %7721 = vmatpush1.bf16.msra.mxu0 %v5723
      %7722 = vmatprep.subr.bf16.mxu0 0
      %7723 = vmatpush2.bf16.msra.mxu0 %v5738
      %7724 = vmatprep.subr.bf16.mxu0 0
      %7725 = vmatpush2.bf16.msra.mxu0 %v5737
      %7726 = vmatprep.subr.bf16.mxu0 0
      %7727 = vmatpush2.bf16.msra.mxu0 %v5736
      %7728 = vmatprep.subr.bf16.mxu0 0
      %7729 = vmatpush2.bf16.msra.mxu0 %v5735
      %7730 = vmatprep.subr.bf16.mxu0 0
      %7731 = vmatpush2.bf16.msra.mxu0 %v5734
      %7732 = vmatprep.subr.bf16.mxu0 0
      %7733 = vmatpush2.bf16.msra.mxu0 %v5733
      %7734 = vmatprep.subr.bf16.mxu0 0
      %7735 = vmatpush2.bf16.msra.mxu0 %v5732
      %7736 = vmatprep.subr.bf16.mxu0 0
      %7737 = vmatpush2.bf16.msra.mxu0 %v5731
      %7738 = vmatprep.mubr.bf16.mxu0 %v2602
      %7739 = vmatmul.mubr.bf16.gmra.mxu0 %v2601
      %v7740 = vpop.f32.mrf.mxu0
      %v7741 = vadd.f32 %v7692, %v7740
      %v7742 = vpop.f32.mrf.mxu0
      %v7743 = vpop.f32.mrf.mxu0
      %v7744 = vadd.f32 %v7695, %v7743
      %v7745 = vpop.f32.mrf.mxu0
      %7746 = vmatprep.mubr.bf16.mxu0 %v2681
      %7747 = vmatmul.mubr.bf16.gmra.mxu0 %v2680
      %v7748 = vpop.f32.mrf.mxu0
      %v7749 = vadd.f32 %v7700, %v7748
      %v7750 = vpop.f32.mrf.mxu0
      %v7751 = vpop.f32.mrf.mxu0
      %v7752 = vadd.f32 %v7703, %v7751
      %v7753 = vpop.f32.mrf.mxu0
      %7754 = vdwg.mxu0
      %7755 = vmatprep.subr.bf16.mxu0 0
      %7756 = vmatpush1.bf16.msra.mxu0 %v5746
      %7757 = vmatprep.subr.bf16.mxu0 0
      %7758 = vmatpush1.bf16.msra.mxu0 %v5745
      %7759 = vmatprep.subr.bf16.mxu0 0
      %7760 = vmatpush1.bf16.msra.mxu0 %v5744
      %7761 = vmatprep.subr.bf16.mxu0 0
      %7762 = vmatpush1.bf16.msra.mxu0 %v5743
      %7763 = vmatprep.subr.bf16.mxu0 0
      %7764 = vmatpush1.bf16.msra.mxu0 %v5742
      %7765 = vmatprep.subr.bf16.mxu0 0
      %7766 = vmatpush1.bf16.msra.mxu0 %v5741
      %7767 = vmatprep.subr.bf16.mxu0 0
      %7768 = vmatpush1.bf16.msra.mxu0 %v5740
      %7769 = vmatprep.subr.bf16.mxu0 0
      %7770 = vmatpush1.bf16.msra.mxu0 %v5739
      %7771 = vmatprep.subr.bf16.mxu0 0
      %7772 = vmatpush2.bf16.msra.mxu0 %v5754
      %7773 = vmatprep.subr.bf16.mxu0 0
      %7774 = vmatpush2.bf16.msra.mxu0 %v5753
      %7775 = vmatprep.subr.bf16.mxu0 0
      %7776 = vmatpush2.bf16.msra.mxu0 %v5752
      %7777 = vmatprep.subr.bf16.mxu0 0
      %7778 = vmatpush2.bf16.msra.mxu0 %v5751
      %7779 = vmatprep.subr.bf16.mxu0 0
      %7780 = vmatpush2.bf16.msra.mxu0 %v5750
      %7781 = vmatprep.subr.bf16.mxu0 0
      %7782 = vmatpush2.bf16.msra.mxu0 %v5749
      %7783 = vmatprep.subr.bf16.mxu0 0
      %7784 = vmatpush2.bf16.msra.mxu0 %v5748
      %7785 = vmatprep.subr.bf16.mxu0 0
      %7786 = vmatpush2.bf16.msra.mxu0 %v5747
      %7787 = vmatprep.mubr.bf16.mxu0 %v2604
      %7788 = vmatmul.mubr.bf16.gmra.mxu0 %v2603
      %v7789 = vpop.f32.mrf.mxu0
      %v7790 = vadd.f32 %v7741, %v7789
      %v7791 = vpop.f32.mrf.mxu0
      %v7792 = vpop.f32.mrf.mxu0
      %v7793 = vadd.f32 %v7744, %v7792
      %v7794 = vpop.f32.mrf.mxu0
      %7795 = vmatprep.mubr.bf16.mxu0 %v2683
      %7796 = vmatmul.mubr.bf16.gmra.mxu0 %v2682
      %v7797 = vpop.f32.mrf.mxu0
      %v7798 = vadd.f32 %v7749, %v7797
      %v7799 = vpop.f32.mrf.mxu0
      %v7800 = vpop.f32.mrf.mxu0
      %v7801 = vadd.f32 %v7752, %v7800
      %v7802 = vpop.f32.mrf.mxu0
      %7803 = vdwg.mxu0
      %7804 = vmatprep.subr.bf16.mxu0 0
      %7805 = vmatpush1.bf16.msra.mxu0 %v5762
      %7806 = vmatprep.subr.bf16.mxu0 0
      %7807 = vmatpush1.bf16.msra.mxu0 %v5761
      %7808 = vmatprep.subr.bf16.mxu0 0
      %7809 = vmatpush1.bf16.msra.mxu0 %v5760
      %7810 = vmatprep.subr.bf16.mxu0 0
      %7811 = vmatpush1.bf16.msra.mxu0 %v5759
      %7812 = vmatprep.subr.bf16.mxu0 0
      %7813 = vmatpush1.bf16.msra.mxu0 %v5758
      %7814 = vmatprep.subr.bf16.mxu0 0
      %7815 = vmatpush1.bf16.msra.mxu0 %v5757
      %7816 = vmatprep.subr.bf16.mxu0 0
      %7817 = vmatpush1.bf16.msra.mxu0 %v5756
      %7818 = vmatprep.subr.bf16.mxu0 0
      %7819 = vmatpush1.bf16.msra.mxu0 %v5755
      %7820 = vmatprep.subr.bf16.mxu0 0
      %7821 = vmatpush2.bf16.msra.mxu0 %v5770
      %7822 = vmatprep.subr.bf16.mxu0 0
      %7823 = vmatpush2.bf16.msra.mxu0 %v5769
      %7824 = vmatprep.subr.bf16.mxu0 0
      %7825 = vmatpush2.bf16.msra.mxu0 %v5768
      %7826 = vmatprep.subr.bf16.mxu0 0
      %7827 = vmatpush2.bf16.msra.mxu0 %v5767
      %7828 = vmatprep.subr.bf16.mxu0 0
      %7829 = vmatpush2.bf16.msra.mxu0 %v5766
      %7830 = vmatprep.subr.bf16.mxu0 0
      %7831 = vmatpush2.bf16.msra.mxu0 %v5765
      %7832 = vmatprep.subr.bf16.mxu0 0
      %7833 = vmatpush2.bf16.msra.mxu0 %v5764
      %7834 = vmatprep.subr.bf16.mxu0 0
      %7835 = vmatpush2.bf16.msra.mxu0 %v5763
      %7836 = vmatprep.mubr.bf16.mxu0 %v2606
      %7837 = vmatmul.mubr.bf16.gmra.mxu0 %v2605
      %v7838 = vpop.f32.mrf.mxu0
      %v7839 = vadd.f32 %v7790, %v7838
      %v7840 = vpop.f32.mrf.mxu0
      %v7841 = vpop.f32.mrf.mxu0
      %v7842 = vadd.f32 %v7793, %v7841
      %v7843 = vpop.f32.mrf.mxu0
      %7844 = vmatprep.mubr.bf16.mxu0 %v2685
      %7845 = vmatmul.mubr.bf16.gmra.mxu0 %v2684
      %v7846 = vpop.f32.mrf.mxu0
      %v7847 = vadd.f32 %v7798, %v7846
      %v7848 = vpop.f32.mrf.mxu0
      %v7849 = vpop.f32.mrf.mxu0
      %v7850 = vadd.f32 %v7801, %v7849
      %v7851 = vpop.f32.mrf.mxu0
      %7852 = vdwg.mxu0
      %7853 = vmatprep.subr.bf16.mxu0 0
      %7854 = vmatpush1.bf16.msra.mxu0 %v5778
      %7855 = vmatprep.subr.bf16.mxu0 0
      %7856 = vmatpush1.bf16.msra.mxu0 %v5777
      %7857 = vmatprep.subr.bf16.mxu0 0
      %7858 = vmatpush1.bf16.msra.mxu0 %v5776
      %7859 = vmatprep.subr.bf16.mxu0 0
      %7860 = vmatpush1.bf16.msra.mxu0 %v5775
      %7861 = vmatprep.subr.bf16.mxu0 0
      %7862 = vmatpush1.bf16.msra.mxu0 %v5774
      %7863 = vmatprep.subr.bf16.mxu0 0
      %7864 = vmatpush1.bf16.msra.mxu0 %v5773
      %7865 = vmatprep.subr.bf16.mxu0 0
      %7866 = vmatpush1.bf16.msra.mxu0 %v5772
      %7867 = vmatprep.subr.bf16.mxu0 0
      %7868 = vmatpush1.bf16.msra.mxu0 %v5771
      %7869 = vmatprep.subr.bf16.mxu0 0
      %7870 = vmatpush2.bf16.msra.mxu0 %v5786
      %7871 = vmatprep.subr.bf16.mxu0 0
      %7872 = vmatpush2.bf16.msra.mxu0 %v5785
      %7873 = vmatprep.subr.bf16.mxu0 0
      %7874 = vmatpush2.bf16.msra.mxu0 %v5784
      %7875 = vmatprep.subr.bf16.mxu0 0
      %7876 = vmatpush2.bf16.msra.mxu0 %v5783
      %7877 = vmatprep.subr.bf16.mxu0 0
      %7878 = vmatpush2.bf16.msra.mxu0 %v5782
      %7879 = vmatprep.subr.bf16.mxu0 0
      %7880 = vmatpush2.bf16.msra.mxu0 %v5781
      %7881 = vmatprep.subr.bf16.mxu0 0
      %7882 = vmatpush2.bf16.msra.mxu0 %v5780
      %7883 = vmatprep.subr.bf16.mxu0 0
      %7884 = vmatpush2.bf16.msra.mxu0 %v5779
      %7885 = vmatprep.mubr.bf16.mxu0 %v2608
      %7886 = vmatmul.mubr.bf16.gmra.mxu0 %v2607
      %v7887 = vpop.f32.mrf.mxu0
      %v7888 = vadd.f32 %v7839, %v7887
      %v7889 = vpop.f32.mrf.mxu0
      %v7890 = vpop.f32.mrf.mxu0
      %v7891 = vadd.f32 %v7842, %v7890
      %v7892 = vpop.f32.mrf.mxu0
      %7893 = vmatprep.mubr.bf16.mxu0 %v2687
      %7894 = vmatmul.mubr.bf16.gmra.mxu0 %v2686
      %v7895 = vpop.f32.mrf.mxu0
      %v7896 = vadd.f32 %v7847, %v7895
      %v7897 = vpop.f32.mrf.mxu0
      %v7898 = vpop.f32.mrf.mxu0
      %v7899 = vadd.f32 %v7850, %v7898
      %v7900 = vpop.f32.mrf.mxu0
      %7901 = vdwg.mxu0
      %7902 = vmatprep.subr.bf16.mxu0 0
      %7903 = vmatpush1.bf16.msra.mxu0 %v5794
      %7904 = vmatprep.subr.bf16.mxu0 0
      %7905 = vmatpush1.bf16.msra.mxu0 %v5793
      %7906 = vmatprep.subr.bf16.mxu0 0
      %7907 = vmatpush1.bf16.msra.mxu0 %v5792
      %7908 = vmatprep.subr.bf16.mxu0 0
      %7909 = vmatpush1.bf16.msra.mxu0 %v5791
      %7910 = vmatprep.subr.bf16.mxu0 0
      %7911 = vmatpush1.bf16.msra.mxu0 %v5790
      %7912 = vmatprep.subr.bf16.mxu0 0
      %7913 = vmatpush1.bf16.msra.mxu0 %v5789
      %7914 = vmatprep.subr.bf16.mxu0 0
      %7915 = vmatpush1.bf16.msra.mxu0 %v5788
      %7916 = vmatprep.subr.bf16.mxu0 0
      %7917 = vmatpush1.bf16.msra.mxu0 %v5787
      %7918 = vmatprep.subr.bf16.mxu0 0
      %7919 = vmatpush2.bf16.msra.mxu0 %v5802
      %7920 = vmatprep.subr.bf16.mxu0 0
      %7921 = vmatpush2.bf16.msra.mxu0 %v5801
      %7922 = vmatprep.subr.bf16.mxu0 0
      %7923 = vmatpush2.bf16.msra.mxu0 %v5800
      %7924 = vmatprep.subr.bf16.mxu0 0
      %7925 = vmatpush2.bf16.msra.mxu0 %v5799
      %7926 = vmatprep.subr.bf16.mxu0 0
      %7927 = vmatpush2.bf16.msra.mxu0 %v5798
      %7928 = vmatprep.subr.bf16.mxu0 0
      %7929 = vmatpush2.bf16.msra.mxu0 %v5797
      %7930 = vmatprep.subr.bf16.mxu0 0
      %7931 = vmatpush2.bf16.msra.mxu0 %v5796
      %7932 = vmatprep.subr.bf16.mxu0 0
      %7933 = vmatpush2.bf16.msra.mxu0 %v5795
      %7934 = vmatprep.mubr.bf16.mxu0 %v2610
      %7935 = vmatmul.mubr.bf16.gmra.mxu0 %v2609
      %v7936 = vpop.f32.mrf.mxu0
      %v7937 = vadd.f32 %v7888, %v7936
      %v7938 = vpop.f32.mrf.mxu0
      %v7939 = vpop.f32.mrf.mxu0
      %v7940 = vadd.f32 %v7891, %v7939
      %v7941 = vpop.f32.mrf.mxu0
      %7942 = vmatprep.mubr.bf16.mxu0 %v2689
      %7943 = vmatmul.mubr.bf16.gmra.mxu0 %v2688
      %v7944 = vpop.f32.mrf.mxu0
      %v7945 = vadd.f32 %v7896, %v7944
      %v7946 = vpop.f32.mrf.mxu0
      %v7947 = vpop.f32.mrf.mxu0
      %v7948 = vadd.f32 %v7899, %v7947
      %v7949 = vpop.f32.mrf.mxu0
      %7950 = vdwg.mxu0
      %7951 = vmatprep.subr.bf16.mxu0 0
      %7952 = vmatpush1.bf16.msra.mxu0 %v5810
      %7953 = vmatprep.subr.bf16.mxu0 0
      %7954 = vmatpush1.bf16.msra.mxu0 %v5809
      %7955 = vmatprep.subr.bf16.mxu0 0
      %7956 = vmatpush1.bf16.msra.mxu0 %v5808
      %7957 = vmatprep.subr.bf16.mxu0 0
      %7958 = vmatpush1.bf16.msra.mxu0 %v5807
      %7959 = vmatprep.subr.bf16.mxu0 0
      %7960 = vmatpush1.bf16.msra.mxu0 %v5806
      %7961 = vmatprep.subr.bf16.mxu0 0
      %7962 = vmatpush1.bf16.msra.mxu0 %v5805
      %7963 = vmatprep.subr.bf16.mxu0 0
      %7964 = vmatpush1.bf16.msra.mxu0 %v5804
      %7965 = vmatprep.subr.bf16.mxu0 0
      %7966 = vmatpush1.bf16.msra.mxu0 %v5803
      %7967 = vmatprep.subr.bf16.mxu0 0
      %7968 = vmatpush2.bf16.msra.mxu0 %v5818
      %7969 = vmatprep.subr.bf16.mxu0 0
      %7970 = vmatpush2.bf16.msra.mxu0 %v5817
      %7971 = vmatprep.subr.bf16.mxu0 0
      %7972 = vmatpush2.bf16.msra.mxu0 %v5816
      %7973 = vmatprep.subr.bf16.mxu0 0
      %7974 = vmatpush2.bf16.msra.mxu0 %v5815
      %7975 = vmatprep.subr.bf16.mxu0 0
      %7976 = vmatpush2.bf16.msra.mxu0 %v5814
      %7977 = vmatprep.subr.bf16.mxu0 0
      %7978 = vmatpush2.bf16.msra.mxu0 %v5813
      %7979 = vmatprep.subr.bf16.mxu0 0
      %7980 = vmatpush2.bf16.msra.mxu0 %v5812
      %7981 = vmatprep.subr.bf16.mxu0 0
      %7982 = vmatpush2.bf16.msra.mxu0 %v5811
      %7983 = vmatprep.mubr.bf16.mxu0 %v2612
      %7984 = vmatmul.mubr.bf16.gmra.mxu0 %v2611
      %v7985 = vpop.f32.mrf.mxu0
      %v7986 = vadd.f32 %v7937, %v7985
      %v7987 = vpop.f32.mrf.mxu0
      %v7988 = vpop.f32.mrf.mxu0
      %v7989 = vadd.f32 %v7940, %v7988
      %v7990 = vpop.f32.mrf.mxu0
      %7991 = vmatprep.mubr.bf16.mxu0 %v2691
      %7992 = vmatmul.mubr.bf16.gmra.mxu0 %v2690
      %v7993 = vpop.f32.mrf.mxu0
      %v7994 = vadd.f32 %v7945, %v7993
      %v7995 = vpop.f32.mrf.mxu0
      %v7996 = vpop.f32.mrf.mxu0
      %v7997 = vadd.f32 %v7948, %v7996
      %v7998 = vpop.f32.mrf.mxu0
      %7999 = vdwg.mxu0
      %8000 = vmatprep.subr.bf16.mxu0 0
      %8001 = vmatpush1.bf16.msra.mxu0 %v5826
      %8002 = vmatprep.subr.bf16.mxu0 0
      %8003 = vmatpush1.bf16.msra.mxu0 %v5825
      %8004 = vmatprep.subr.bf16.mxu0 0
      %8005 = vmatpush1.bf16.msra.mxu0 %v5824
      %8006 = vmatprep.subr.bf16.mxu0 0
      %8007 = vmatpush1.bf16.msra.mxu0 %v5823
      %8008 = vmatprep.subr.bf16.mxu0 0
      %8009 = vmatpush1.bf16.msra.mxu0 %v5822
      %8010 = vmatprep.subr.bf16.mxu0 0
      %8011 = vmatpush1.bf16.msra.mxu0 %v5821
      %8012 = vmatprep.subr.bf16.mxu0 0
      %8013 = vmatpush1.bf16.msra.mxu0 %v5820
      %8014 = vmatprep.subr.bf16.mxu0 0
      %8015 = vmatpush1.bf16.msra.mxu0 %v5819
      %8016 = vmatprep.subr.bf16.mxu0 0
      %8017 = vmatpush2.bf16.msra.mxu0 %v5834
      %8018 = vmatprep.subr.bf16.mxu0 0
      %8019 = vmatpush2.bf16.msra.mxu0 %v5833
      %8020 = vmatprep.subr.bf16.mxu0 0
      %8021 = vmatpush2.bf16.msra.mxu0 %v5832
      %8022 = vmatprep.subr.bf16.mxu0 0
      %8023 = vmatpush2.bf16.msra.mxu0 %v5831
      %8024 = vmatprep.subr.bf16.mxu0 0
      %8025 = vmatpush2.bf16.msra.mxu0 %v5830
      %8026 = vmatprep.subr.bf16.mxu0 0
      %8027 = vmatpush2.bf16.msra.mxu0 %v5829
      %8028 = vmatprep.subr.bf16.mxu0 0
      %8029 = vmatpush2.bf16.msra.mxu0 %v5828
      %8030 = vmatprep.subr.bf16.mxu0 0
      %8031 = vmatpush2.bf16.msra.mxu0 %v5827
      %8032 = vmatprep.mubr.bf16.mxu0 %v2614
      %8033 = vmatmul.mubr.bf16.gmra.mxu0 %v2613
      %v8034 = vpop.f32.mrf.mxu0
      %v8035 = vadd.f32 %v7986, %v8034
      %v8036 = vpop.f32.mrf.mxu0
      %v8037 = vpop.f32.mrf.mxu0
      %v8038 = vadd.f32 %v7989, %v8037
      %v8039 = vpop.f32.mrf.mxu0
      %8040 = vmatprep.mubr.bf16.mxu0 %v2693
      %8041 = vmatmul.mubr.bf16.gmra.mxu0 %v2692
      %v8042 = vpop.f32.mrf.mxu0
      %v8043 = vadd.f32 %v7994, %v8042
      %v8044 = vpop.f32.mrf.mxu0
      %v8045 = vpop.f32.mrf.mxu0
      %v8046 = vadd.f32 %v7997, %v8045
      %v8047 = vpop.f32.mrf.mxu0
      %8048 = vdwg.mxu0
      %8049 = vmatprep.subr.bf16.mxu0 0
      %8050 = vmatpush1.bf16.msra.mxu0 %v5842
      %8051 = vmatprep.subr.bf16.mxu0 0
      %8052 = vmatpush1.bf16.msra.mxu0 %v5841
      %8053 = vmatprep.subr.bf16.mxu0 0
      %8054 = vmatpush1.bf16.msra.mxu0 %v5840
      %8055 = vmatprep.subr.bf16.mxu0 0
      %8056 = vmatpush1.bf16.msra.mxu0 %v5839
      %8057 = vmatprep.subr.bf16.mxu0 0
      %8058 = vmatpush1.bf16.msra.mxu0 %v5838
      %8059 = vmatprep.subr.bf16.mxu0 0
      %8060 = vmatpush1.bf16.msra.mxu0 %v5837
      %8061 = vmatprep.subr.bf16.mxu0 0
      %8062 = vmatpush1.bf16.msra.mxu0 %v5836
      %8063 = vmatprep.subr.bf16.mxu0 0
      %8064 = vmatpush1.bf16.msra.mxu0 %v5835
      %8065 = vmatprep.subr.bf16.mxu0 0
      %8066 = vmatpush2.bf16.msra.mxu0 %v5850
      %8067 = vmatprep.subr.bf16.mxu0 0
      %8068 = vmatpush2.bf16.msra.mxu0 %v5849
      %8069 = vmatprep.subr.bf16.mxu0 0
      %8070 = vmatpush2.bf16.msra.mxu0 %v5848
      %8071 = vmatprep.subr.bf16.mxu0 0
      %8072 = vmatpush2.bf16.msra.mxu0 %v5847
      %8073 = vmatprep.subr.bf16.mxu0 0
      %8074 = vmatpush2.bf16.msra.mxu0 %v5846
      %8075 = vmatprep.subr.bf16.mxu0 0
      %8076 = vmatpush2.bf16.msra.mxu0 %v5845
      %8077 = vmatprep.subr.bf16.mxu0 0
      %8078 = vmatpush2.bf16.msra.mxu0 %v5844
      %8079 = vmatprep.subr.bf16.mxu0 0
      %8080 = vmatpush2.bf16.msra.mxu0 %v5843
      %8081 = vmatprep.mubr.bf16.mxu0 %v2616
      %8082 = vmatmul.mubr.bf16.gmra.mxu0 %v2615
      %v8083 = vpop.f32.mrf.mxu0
      %v8084 = vadd.f32 %v8035, %v8083
      %v8085 = vpop.f32.mrf.mxu0
      %v8086 = vpop.f32.mrf.mxu0
      %v8087 = vadd.f32 %v8038, %v8086
      %v8088 = vpop.f32.mrf.mxu0
      %8089 = vmatprep.mubr.bf16.mxu0 %v2695
      %8090 = vmatmul.mubr.bf16.gmra.mxu0 %v2694
      %v8091 = vpop.f32.mrf.mxu0
      %v8092 = vadd.f32 %v8043, %v8091
      %v8093 = vpop.f32.mrf.mxu0
      %v8094 = vpop.f32.mrf.mxu0
      %v8095 = vadd.f32 %v8046, %v8094
      %v8096 = vpop.f32.mrf.mxu0
      %8097 = vdwg.mxu0
      %8098 = vmatprep.subr.bf16.mxu0 0
      %8099 = vmatpush1.bf16.msra.mxu0 %v5858
      %8100 = vmatprep.subr.bf16.mxu0 0
      %8101 = vmatpush1.bf16.msra.mxu0 %v5857
      %8102 = vmatprep.subr.bf16.mxu0 0
      %8103 = vmatpush1.bf16.msra.mxu0 %v5856
      %8104 = vmatprep.subr.bf16.mxu0 0
      %8105 = vmatpush1.bf16.msra.mxu0 %v5855
      %8106 = vmatprep.subr.bf16.mxu0 0
      %8107 = vmatpush1.bf16.msra.mxu0 %v5854
      %8108 = vmatprep.subr.bf16.mxu0 0
      %8109 = vmatpush1.bf16.msra.mxu0 %v5853
      %8110 = vmatprep.subr.bf16.mxu0 0
      %8111 = vmatpush1.bf16.msra.mxu0 %v5852
      %8112 = vmatprep.subr.bf16.mxu0 0
      %8113 = vmatpush1.bf16.msra.mxu0 %v5851
      %8114 = vmatprep.subr.bf16.mxu0 0
      %8115 = vmatpush2.bf16.msra.mxu0 %v5866
      %8116 = vmatprep.subr.bf16.mxu0 0
      %8117 = vmatpush2.bf16.msra.mxu0 %v5865
      %8118 = vmatprep.subr.bf16.mxu0 0
      %8119 = vmatpush2.bf16.msra.mxu0 %v5864
      %8120 = vmatprep.subr.bf16.mxu0 0
      %8121 = vmatpush2.bf16.msra.mxu0 %v5863
      %8122 = vmatprep.subr.bf16.mxu0 0
      %8123 = vmatpush2.bf16.msra.mxu0 %v5862
      %8124 = vmatprep.subr.bf16.mxu0 0
      %8125 = vmatpush2.bf16.msra.mxu0 %v5861
      %8126 = vmatprep.subr.bf16.mxu0 0
      %8127 = vmatpush2.bf16.msra.mxu0 %v5860
      %8128 = vmatprep.subr.bf16.mxu0 0
      %8129 = vmatpush2.bf16.msra.mxu0 %v5859
      %8130 = vmatprep.mubr.bf16.mxu0 %v2618
      %8131 = vmatmul.mubr.bf16.gmra.mxu0 %v2617
      %v8132 = vpop.f32.mrf.mxu0
      %v8133 = vadd.f32 %v8084, %v8132
      %v8134 = vpop.f32.mrf.mxu0
      %v8135 = vpop.f32.mrf.mxu0
      %v8136 = vadd.f32 %v8087, %v8135
      %v8137 = vpop.f32.mrf.mxu0
      %8138 = vmatprep.mubr.bf16.mxu0 %v2697
      %8139 = vmatmul.mubr.bf16.gmra.mxu0 %v2696
      %v8140 = vpop.f32.mrf.mxu0
      %v8141 = vadd.f32 %v8092, %v8140
      %v8142 = vpop.f32.mrf.mxu0
      %v8143 = vpop.f32.mrf.mxu0
      %v8144 = vadd.f32 %v8095, %v8143
      %v8145 = vpop.f32.mrf.mxu0
      %8146 = vdwg.mxu0
      %8147 = vmatprep.subr.bf16.mxu0 0
      %8148 = vmatpush1.bf16.msra.mxu0 %v5874
      %8149 = vmatprep.subr.bf16.mxu0 0
      %8150 = vmatpush1.bf16.msra.mxu0 %v5873
      %8151 = vmatprep.subr.bf16.mxu0 0
      %8152 = vmatpush1.bf16.msra.mxu0 %v5872
      %8153 = vmatprep.subr.bf16.mxu0 0
      %8154 = vmatpush1.bf16.msra.mxu0 %v5871
      %8155 = vmatprep.subr.bf16.mxu0 0
      %8156 = vmatpush1.bf16.msra.mxu0 %v5870
      %8157 = vmatprep.subr.bf16.mxu0 0
      %8158 = vmatpush1.bf16.msra.mxu0 %v5869
      %8159 = vmatprep.subr.bf16.mxu0 0
      %8160 = vmatpush1.bf16.msra.mxu0 %v5868
      %8161 = vmatprep.subr.bf16.mxu0 0
      %8162 = vmatpush1.bf16.msra.mxu0 %v5867
      %8163 = vmatprep.subr.bf16.mxu0 0
      %8164 = vmatpush2.bf16.msra.mxu0 %v5882
      %8165 = vmatprep.subr.bf16.mxu0 0
      %8166 = vmatpush2.bf16.msra.mxu0 %v5881
      %8167 = vmatprep.subr.bf16.mxu0 0
      %8168 = vmatpush2.bf16.msra.mxu0 %v5880
      %8169 = vmatprep.subr.bf16.mxu0 0
      %8170 = vmatpush2.bf16.msra.mxu0 %v5879
      %8171 = vmatprep.subr.bf16.mxu0 0
      %8172 = vmatpush2.bf16.msra.mxu0 %v5878
      %8173 = vmatprep.subr.bf16.mxu0 0
      %8174 = vmatpush2.bf16.msra.mxu0 %v5877
      %8175 = vmatprep.subr.bf16.mxu0 0
      %8176 = vmatpush2.bf16.msra.mxu0 %v5876
      %8177 = vmatprep.subr.bf16.mxu0 0
      %8178 = vmatpush2.bf16.msra.mxu0 %v5875
      %8179 = vmatprep.mubr.bf16.mxu0 %v2620
      %8180 = vmatmul.mubr.bf16.gmra.mxu0 %v2619
      %v8181 = vpop.f32.mrf.mxu0
      %v8182 = vadd.f32 %v8133, %v8181
      %v8183 = vpop.f32.mrf.mxu0
      %v8184 = vpop.f32.mrf.mxu0
      %v8185 = vadd.f32 %v8136, %v8184
      %v8186 = vpop.f32.mrf.mxu0
      %8187 = vmatprep.mubr.bf16.mxu0 %v2699
      %8188 = vmatmul.mubr.bf16.gmra.mxu0 %v2698
      %v8189 = vpop.f32.mrf.mxu0
      %v8190 = vadd.f32 %v8141, %v8189
      %v8191 = vpop.f32.mrf.mxu0
      %v8192 = vpop.f32.mrf.mxu0
      %v8193 = vadd.f32 %v8144, %v8192
      %v8194 = vpop.f32.mrf.mxu0
      %8195 = vdwg.mxu0
      %8196 = vmatprep.subr.bf16.mxu0 0
      %8197 = vmatpush1.bf16.msra.mxu0 %v5890
      %8198 = vmatprep.subr.bf16.mxu0 0
      %8199 = vmatpush1.bf16.msra.mxu0 %v5889
      %8200 = vmatprep.subr.bf16.mxu0 0
      %8201 = vmatpush1.bf16.msra.mxu0 %v5888
      %8202 = vmatprep.subr.bf16.mxu0 0
      %8203 = vmatpush1.bf16.msra.mxu0 %v5887
      %8204 = vmatprep.subr.bf16.mxu0 0
      %8205 = vmatpush1.bf16.msra.mxu0 %v5886
      %8206 = vmatprep.subr.bf16.mxu0 0
      %8207 = vmatpush1.bf16.msra.mxu0 %v5885
      %8208 = vmatprep.subr.bf16.mxu0 0
      %8209 = vmatpush1.bf16.msra.mxu0 %v5884
      %8210 = vmatprep.subr.bf16.mxu0 0
      %8211 = vmatpush1.bf16.msra.mxu0 %v5883
      %8212 = vmatprep.subr.bf16.mxu0 0
      %8213 = vmatpush2.bf16.msra.mxu0 %v5898
      %8214 = vmatprep.subr.bf16.mxu0 0
      %8215 = vmatpush2.bf16.msra.mxu0 %v5897
      %8216 = vmatprep.subr.bf16.mxu0 0
      %8217 = vmatpush2.bf16.msra.mxu0 %v5896
      %8218 = vmatprep.subr.bf16.mxu0 0
      %8219 = vmatpush2.bf16.msra.mxu0 %v5895
      %8220 = vmatprep.subr.bf16.mxu0 0
      %8221 = vmatpush2.bf16.msra.mxu0 %v5894
      %8222 = vmatprep.subr.bf16.mxu0 0
      %8223 = vmatpush2.bf16.msra.mxu0 %v5893
      %8224 = vmatprep.subr.bf16.mxu0 0
      %8225 = vmatpush2.bf16.msra.mxu0 %v5892
      %8226 = vmatprep.subr.bf16.mxu0 0
      %8227 = vmatpush2.bf16.msra.mxu0 %v5891
      %8228 = vmatprep.mubr.bf16.mxu0 %v2622
      %8229 = vmatmul.mubr.bf16.gmra.mxu0 %v2621
      %v8230 = vpop.f32.mrf.mxu0
      %v8231 = vadd.f32 %v8182, %v8230
      %v8232 = vpop.f32.mrf.mxu0
      %v8233 = vpop.f32.mrf.mxu0
      %v8234 = vadd.f32 %v8185, %v8233
      %v8235 = vpop.f32.mrf.mxu0
      %8236 = vmatprep.mubr.bf16.mxu0 %v2701
      %8237 = vmatmul.mubr.bf16.gmra.mxu0 %v2700
      %v8238 = vpop.f32.mrf.mxu0
      %v8239 = vadd.f32 %v8190, %v8238
      %v8240 = vpop.f32.mrf.mxu0
      %v8241 = vpop.f32.mrf.mxu0
      %v8242 = vadd.f32 %v8193, %v8241
      %v8243 = vpop.f32.mrf.mxu0
      %8244 = vdwg.mxu0
      %8245 = vmatprep.subr.bf16.mxu0 0
      %8246 = vmatpush1.bf16.msra.mxu0 %v5906
      %8247 = vmatprep.subr.bf16.mxu0 0
      %8248 = vmatpush1.bf16.msra.mxu0 %v5905
      %8249 = vmatprep.subr.bf16.mxu0 0
      %8250 = vmatpush1.bf16.msra.mxu0 %v5904
      %8251 = vmatprep.subr.bf16.mxu0 0
      %8252 = vmatpush1.bf16.msra.mxu0 %v5903
      %8253 = vmatprep.subr.bf16.mxu0 0
      %8254 = vmatpush1.bf16.msra.mxu0 %v5902
      %8255 = vmatprep.subr.bf16.mxu0 0
      %8256 = vmatpush1.bf16.msra.mxu0 %v5901
      %8257 = vmatprep.subr.bf16.mxu0 0
      %8258 = vmatpush1.bf16.msra.mxu0 %v5900
      %8259 = vmatprep.subr.bf16.mxu0 0
      %8260 = vmatpush1.bf16.msra.mxu0 %v5899
      %8261 = vmatprep.subr.bf16.mxu0 0
      %8262 = vmatpush2.bf16.msra.mxu0 %v5914
      %8263 = vmatprep.subr.bf16.mxu0 0
      %8264 = vmatpush2.bf16.msra.mxu0 %v5913
      %8265 = vmatprep.subr.bf16.mxu0 0
      %8266 = vmatpush2.bf16.msra.mxu0 %v5912
      %8267 = vmatprep.subr.bf16.mxu0 0
      %8268 = vmatpush2.bf16.msra.mxu0 %v5911
      %8269 = vmatprep.subr.bf16.mxu0 0
      %8270 = vmatpush2.bf16.msra.mxu0 %v5910
      %8271 = vmatprep.subr.bf16.mxu0 0
      %8272 = vmatpush2.bf16.msra.mxu0 %v5909
      %8273 = vmatprep.subr.bf16.mxu0 0
      %8274 = vmatpush2.bf16.msra.mxu0 %v5908
      %8275 = vmatprep.subr.bf16.mxu0 0
      %8276 = vmatpush2.bf16.msra.mxu0 %v5907
      %8277 = vmatprep.mubr.bf16.mxu0 %v2624
      %8278 = vmatmul.mubr.bf16.gmra.mxu0 %v2623
      %v8279 = vpop.f32.mrf.mxu0
      %v8280 = vadd.f32 %v8231, %v8279
      %v8281 = vpop.f32.mrf.mxu0
      %v8282 = vpop.f32.mrf.mxu0
      %v8283 = vadd.f32 %v8234, %v8282
      %v8284 = vpop.f32.mrf.mxu0
      %8285 = vmatprep.mubr.bf16.mxu0 %v2703
      %8286 = vmatmul.mubr.bf16.gmra.mxu0 %v2702
      %v8287 = vpop.f32.mrf.mxu0
      %v8288 = vadd.f32 %v8239, %v8287
      %v8289 = vpop.f32.mrf.mxu0
      %v8290 = vpop.f32.mrf.mxu0
      %v8291 = vadd.f32 %v8242, %v8290
      %v8292 = vpop.f32.mrf.mxu0
      %8293 = vdwg.mxu0
      %8294 = vmatprep.subr.bf16.mxu0 0
      %8295 = vmatpush1.bf16.msra.mxu0 %v5922
      %8296 = vmatprep.subr.bf16.mxu0 0
      %8297 = vmatpush1.bf16.msra.mxu0 %v5921
      %8298 = vmatprep.subr.bf16.mxu0 0
      %8299 = vmatpush1.bf16.msra.mxu0 %v5920
      %8300 = vmatprep.subr.bf16.mxu0 0
      %8301 = vmatpush1.bf16.msra.mxu0 %v5919
      %8302 = vmatprep.subr.bf16.mxu0 0
      %8303 = vmatpush1.bf16.msra.mxu0 %v5918
      %8304 = vmatprep.subr.bf16.mxu0 0
      %8305 = vmatpush1.bf16.msra.mxu0 %v5917
      %8306 = vmatprep.subr.bf16.mxu0 0
      %8307 = vmatpush1.bf16.msra.mxu0 %v5916
      %8308 = vmatprep.subr.bf16.mxu0 0
      %8309 = vmatpush1.bf16.msra.mxu0 %v5915
      %8310 = vmatprep.subr.bf16.mxu0 0
      %8311 = vmatpush2.bf16.msra.mxu0 %v5930
      %8312 = vmatprep.subr.bf16.mxu0 0
      %8313 = vmatpush2.bf16.msra.mxu0 %v5929
      %8314 = vmatprep.subr.bf16.mxu0 0
      %8315 = vmatpush2.bf16.msra.mxu0 %v5928
      %8316 = vmatprep.subr.bf16.mxu0 0
      %8317 = vmatpush2.bf16.msra.mxu0 %v5927
      %8318 = vmatprep.subr.bf16.mxu0 0
      %8319 = vmatpush2.bf16.msra.mxu0 %v5926
      %8320 = vmatprep.subr.bf16.mxu0 0
      %8321 = vmatpush2.bf16.msra.mxu0 %v5925
      %8322 = vmatprep.subr.bf16.mxu0 0
      %8323 = vmatpush2.bf16.msra.mxu0 %v5924
      %8324 = vmatprep.subr.bf16.mxu0 0
      %8325 = vmatpush2.bf16.msra.mxu0 %v5923
      %8326 = vmatprep.mubr.bf16.mxu0 %v2626
      %8327 = vmatmul.mubr.bf16.gmra.mxu0 %v2625
      %v8328 = vpop.f32.mrf.mxu0
      %v8329 = vadd.f32 %v8280, %v8328
      %v8330 = vpop.f32.mrf.mxu0
      %v8331 = vpop.f32.mrf.mxu0
      %v8332 = vadd.f32 %v8283, %v8331
      %v8333 = vpop.f32.mrf.mxu0
      %8334 = vmatprep.mubr.bf16.mxu0 %v2705
      %8335 = vmatmul.mubr.bf16.gmra.mxu0 %v2704
      %v8336 = vpop.f32.mrf.mxu0
      %v8337 = vadd.f32 %v8288, %v8336
      %v8338 = vpop.f32.mrf.mxu0
      %v8339 = vpop.f32.mrf.mxu0
      %v8340 = vadd.f32 %v8291, %v8339
      %v8341 = vpop.f32.mrf.mxu0
      %8342 = vdwg.mxu0
      %8343 = vmatprep.subr.bf16.mxu0 0
      %8344 = vmatpush1.bf16.msra.mxu0 %v5938
      %8345 = vmatprep.subr.bf16.mxu0 0
      %8346 = vmatpush1.bf16.msra.mxu0 %v5937
      %8347 = vmatprep.subr.bf16.mxu0 0
      %8348 = vmatpush1.bf16.msra.mxu0 %v5936
      %8349 = vmatprep.subr.bf16.mxu0 0
      %8350 = vmatpush1.bf16.msra.mxu0 %v5935
      %8351 = vmatprep.subr.bf16.mxu0 0
      %8352 = vmatpush1.bf16.msra.mxu0 %v5934
      %8353 = vmatprep.subr.bf16.mxu0 0
      %8354 = vmatpush1.bf16.msra.mxu0 %v5933
      %8355 = vmatprep.subr.bf16.mxu0 0
      %8356 = vmatpush1.bf16.msra.mxu0 %v5932
      %8357 = vmatprep.subr.bf16.mxu0 0
      %8358 = vmatpush1.bf16.msra.mxu0 %v5931
      %8359 = vmatprep.subr.bf16.mxu0 0
      %8360 = vmatpush2.bf16.msra.mxu0 %v5946
      %8361 = vmatprep.subr.bf16.mxu0 0
      %8362 = vmatpush2.bf16.msra.mxu0 %v5945
      %8363 = vmatprep.subr.bf16.mxu0 0
      %8364 = vmatpush2.bf16.msra.mxu0 %v5944
      %8365 = vmatprep.subr.bf16.mxu0 0
      %8366 = vmatpush2.bf16.msra.mxu0 %v5943
      %8367 = vmatprep.subr.bf16.mxu0 0
      %8368 = vmatpush2.bf16.msra.mxu0 %v5942
      %8369 = vmatprep.subr.bf16.mxu0 0
      %8370 = vmatpush2.bf16.msra.mxu0 %v5941
      %8371 = vmatprep.subr.bf16.mxu0 0
      %8372 = vmatpush2.bf16.msra.mxu0 %v5940
      %8373 = vmatprep.subr.bf16.mxu0 0
      %8374 = vmatpush2.bf16.msra.mxu0 %v5939
      %8375 = vmatprep.mubr.bf16.mxu0 %v2628
      %8376 = vmatmul.mubr.bf16.gmra.mxu0 %v2627
      %v8377 = vpop.f32.mrf.mxu0
      %v8378 = vadd.f32 %v8329, %v8377
      %v8379 = vpop.f32.mrf.mxu0
      %v8380 = vpop.f32.mrf.mxu0
      %v8381 = vadd.f32 %v8332, %v8380
      %v8382 = vpop.f32.mrf.mxu0
      %8383 = vmatprep.mubr.bf16.mxu0 %v2707
      %8384 = vmatmul.mubr.bf16.gmra.mxu0 %v2706
      %v8385 = vpop.f32.mrf.mxu0
      %v8386 = vadd.f32 %v8337, %v8385
      %v8387 = vpop.f32.mrf.mxu0
      %v8388 = vpop.f32.mrf.mxu0
      %v8389 = vadd.f32 %v8340, %v8388
      %v8390 = vpop.f32.mrf.mxu0
      %8391 = vdwg.mxu0
      %8392 = vmatprep.subr.bf16.mxu0 0
      %8393 = vmatpush1.bf16.msra.mxu0 %v5954
      %8394 = vmatprep.subr.bf16.mxu0 0
      %8395 = vmatpush1.bf16.msra.mxu0 %v5953
      %8396 = vmatprep.subr.bf16.mxu0 0
      %8397 = vmatpush1.bf16.msra.mxu0 %v5952
      %8398 = vmatprep.subr.bf16.mxu0 0
      %8399 = vmatpush1.bf16.msra.mxu0 %v5951
      %8400 = vmatprep.subr.bf16.mxu0 0
      %8401 = vmatpush1.bf16.msra.mxu0 %v5950
      %8402 = vmatprep.subr.bf16.mxu0 0
      %8403 = vmatpush1.bf16.msra.mxu0 %v5949
      %8404 = vmatprep.subr.bf16.mxu0 0
      %8405 = vmatpush1.bf16.msra.mxu0 %v5948
      %8406 = vmatprep.subr.bf16.mxu0 0
      %8407 = vmatpush1.bf16.msra.mxu0 %v5947
      %8408 = vmatprep.subr.bf16.mxu0 0
      %8409 = vmatpush2.bf16.msra.mxu0 %v5962
      %8410 = vmatprep.subr.bf16.mxu0 0
      %8411 = vmatpush2.bf16.msra.mxu0 %v5961
      %8412 = vmatprep.subr.bf16.mxu0 0
      %8413 = vmatpush2.bf16.msra.mxu0 %v5960
      %8414 = vmatprep.subr.bf16.mxu0 0
      %8415 = vmatpush2.bf16.msra.mxu0 %v5959
      %8416 = vmatprep.subr.bf16.mxu0 0
      %8417 = vmatpush2.bf16.msra.mxu0 %v5958
      %8418 = vmatprep.subr.bf16.mxu0 0
      %8419 = vmatpush2.bf16.msra.mxu0 %v5957
      %8420 = vmatprep.subr.bf16.mxu0 0
      %8421 = vmatpush2.bf16.msra.mxu0 %v5956
      %8422 = vmatprep.subr.bf16.mxu0 0
      %8423 = vmatpush2.bf16.msra.mxu0 %v5955
      %8424 = vmatprep.mubr.bf16.mxu0 %v2630
      %8425 = vmatmul.mubr.bf16.gmra.mxu0 %v2629
      %v8426 = vpop.f32.mrf.mxu0
      %v8427 = vadd.f32 %v8378, %v8426
      %v8428 = vpop.f32.mrf.mxu0
      %v8429 = vpop.f32.mrf.mxu0
      %v8430 = vadd.f32 %v8381, %v8429
      %v8431 = vpop.f32.mrf.mxu0
      %8432 = vmatprep.mubr.bf16.mxu0 %v2709
      %8433 = vmatmul.mubr.bf16.gmra.mxu0 %v2708
      %v8434 = vpop.f32.mrf.mxu0
      %v8435 = vadd.f32 %v8386, %v8434
      %v8436 = vpop.f32.mrf.mxu0
      %v8437 = vpop.f32.mrf.mxu0
      %v8438 = vadd.f32 %v8389, %v8437
      %v8439 = vpop.f32.mrf.mxu0
      %8440 = vdwg.mxu0
      %8441 = vmatprep.subr.bf16.mxu0 0
      %8442 = vmatpush1.bf16.msra.mxu0 %v5970
      %8443 = vmatprep.subr.bf16.mxu0 0
      %8444 = vmatpush1.bf16.msra.mxu0 %v5969
      %8445 = vmatprep.subr.bf16.mxu0 0
      %8446 = vmatpush1.bf16.msra.mxu0 %v5968
      %8447 = vmatprep.subr.bf16.mxu0 0
      %8448 = vmatpush1.bf16.msra.mxu0 %v5967
      %8449 = vmatprep.subr.bf16.mxu0 0
      %8450 = vmatpush1.bf16.msra.mxu0 %v5966
      %8451 = vmatprep.subr.bf16.mxu0 0
      %8452 = vmatpush1.bf16.msra.mxu0 %v5965
      %8453 = vmatprep.subr.bf16.mxu0 0
      %8454 = vmatpush1.bf16.msra.mxu0 %v5964
      %8455 = vmatprep.subr.bf16.mxu0 0
      %8456 = vmatpush1.bf16.msra.mxu0 %v5963
      %8457 = vmatprep.subr.bf16.mxu0 0
      %8458 = vmatpush2.bf16.msra.mxu0 %v5978
      %8459 = vmatprep.subr.bf16.mxu0 0
      %8460 = vmatpush2.bf16.msra.mxu0 %v5977
      %8461 = vmatprep.subr.bf16.mxu0 0
      %8462 = vmatpush2.bf16.msra.mxu0 %v5976
      %8463 = vmatprep.subr.bf16.mxu0 0
      %8464 = vmatpush2.bf16.msra.mxu0 %v5975
      %8465 = vmatprep.subr.bf16.mxu0 0
      %8466 = vmatpush2.bf16.msra.mxu0 %v5974
      %8467 = vmatprep.subr.bf16.mxu0 0
      %8468 = vmatpush2.bf16.msra.mxu0 %v5973
      %8469 = vmatprep.subr.bf16.mxu0 0
      %8470 = vmatpush2.bf16.msra.mxu0 %v5972
      %8471 = vmatprep.subr.bf16.mxu0 0
      %8472 = vmatpush2.bf16.msra.mxu0 %v5971
      %8473 = vmatprep.mubr.bf16.mxu0 %v2632
      %8474 = vmatmul.mubr.bf16.gmra.mxu0 %v2631
      %v8475 = vpop.f32.mrf.mxu0
      %v8476 = vadd.f32 %v8427, %v8475
      %v8477 = vpop.f32.mrf.mxu0
      %v8478 = vpop.f32.mrf.mxu0
      %v8479 = vadd.f32 %v8430, %v8478
      %v8480 = vpop.f32.mrf.mxu0
      %8481 = vmatprep.mubr.bf16.mxu0 %v2711
      %8482 = vmatmul.mubr.bf16.gmra.mxu0 %v2710
      %v8483 = vpop.f32.mrf.mxu0
      %v8484 = vadd.f32 %v8435, %v8483
      %v8485 = vpop.f32.mrf.mxu0
      %v8486 = vpop.f32.mrf.mxu0
      %v8487 = vadd.f32 %v8438, %v8486
      %v8488 = vpop.f32.mrf.mxu0
      %8489 = vdwg.mxu0
      %8490 = vmatprep.subr.bf16.mxu0 0
      %8491 = vmatpush1.bf16.msra.mxu0 %v5986
      %8492 = vmatprep.subr.bf16.mxu0 0
      %8493 = vmatpush1.bf16.msra.mxu0 %v5985
      %8494 = vmatprep.subr.bf16.mxu0 0
      %8495 = vmatpush1.bf16.msra.mxu0 %v5984
      %8496 = vmatprep.subr.bf16.mxu0 0
      %8497 = vmatpush1.bf16.msra.mxu0 %v5983
      %8498 = vmatprep.subr.bf16.mxu0 0
      %8499 = vmatpush1.bf16.msra.mxu0 %v5982
      %8500 = vmatprep.subr.bf16.mxu0 0
      %8501 = vmatpush1.bf16.msra.mxu0 %v5981
      %8502 = vmatprep.subr.bf16.mxu0 0
      %8503 = vmatpush1.bf16.msra.mxu0 %v5980
      %8504 = vmatprep.subr.bf16.mxu0 0
      %8505 = vmatpush1.bf16.msra.mxu0 %v5979
      %8506 = vmatprep.subr.bf16.mxu0 0
      %8507 = vmatpush2.bf16.msra.mxu0 %v5994
      %8508 = vmatprep.subr.bf16.mxu0 0
      %8509 = vmatpush2.bf16.msra.mxu0 %v5993
      %8510 = vmatprep.subr.bf16.mxu0 0
      %8511 = vmatpush2.bf16.msra.mxu0 %v5992
      %8512 = vmatprep.subr.bf16.mxu0 0
      %8513 = vmatpush2.bf16.msra.mxu0 %v5991
      %8514 = vmatprep.subr.bf16.mxu0 0
      %8515 = vmatpush2.bf16.msra.mxu0 %v5990
      %8516 = vmatprep.subr.bf16.mxu0 0
      %8517 = vmatpush2.bf16.msra.mxu0 %v5989
      %8518 = vmatprep.subr.bf16.mxu0 0
      %8519 = vmatpush2.bf16.msra.mxu0 %v5988
      %8520 = vmatprep.subr.bf16.mxu0 0
      %8521 = vmatpush2.bf16.msra.mxu0 %v5987
      %8522 = vmatprep.mubr.bf16.mxu0 %v2634
      %8523 = vmatmul.mubr.bf16.gmra.mxu0 %v2633
      %v8524 = vpop.f32.mrf.mxu0
      %v8525 = vadd.f32 %v8476, %v8524
      %v8526 = vpop.f32.mrf.mxu0
      %v8527 = vpop.f32.mrf.mxu0
      %v8528 = vadd.f32 %v8479, %v8527
      %v8529 = vpop.f32.mrf.mxu0
      %8530 = vmatprep.mubr.bf16.mxu0 %v2713
      %8531 = vmatmul.mubr.bf16.gmra.mxu0 %v2712
      %v8532 = vpop.f32.mrf.mxu0
      %v8533 = vadd.f32 %v8484, %v8532
      %v8534 = vpop.f32.mrf.mxu0
      %v8535 = vpop.f32.mrf.mxu0
      %v8536 = vadd.f32 %v8487, %v8535
      %v8537 = vpop.f32.mrf.mxu0
      %8538 = vdwg.mxu0
      %8539 = vmatprep.subr.bf16.mxu0 0
      %8540 = vmatpush1.bf16.msra.mxu0 0
      %8541 = vmatprep.subr.bf16.mxu0 0
      %8542 = vmatpush1.bf16.msra.mxu0 0
      %8543 = vmatprep.subr.bf16.mxu0 0
      %8544 = vmatpush1.bf16.msra.mxu0 0
      %8545 = vmatprep.subr.bf16.mxu0 0
      %8546 = vmatpush1.bf16.msra.mxu0 0
      %8547 = vmatprep.subr.bf16.mxu0 0
      %8548 = vmatpush1.bf16.msra.mxu0 0
      %8549 = vmatprep.subr.bf16.mxu0 0
      %8550 = vmatpush1.bf16.msra.mxu0 0
      %8551 = vmatprep.subr.bf16.mxu0 0
      %8552 = vmatpush1.bf16.msra.mxu0 0
      %8553 = vmatprep.subr.bf16.mxu0 0
      %8554 = vmatpush1.bf16.msra.mxu0 %v5995
      %8555 = vmatprep.subr.bf16.mxu0 0
      %8556 = vmatpush2.bf16.msra.mxu0 0
      %8557 = vmatprep.subr.bf16.mxu0 0
      %8558 = vmatpush2.bf16.msra.mxu0 0
      %8559 = vmatprep.subr.bf16.mxu0 0
      %8560 = vmatpush2.bf16.msra.mxu0 0
      %8561 = vmatprep.subr.bf16.mxu0 0
      %8562 = vmatpush2.bf16.msra.mxu0 0
      %8563 = vmatprep.subr.bf16.mxu0 0
      %8564 = vmatpush2.bf16.msra.mxu0 0
      %8565 = vmatprep.subr.bf16.mxu0 0
      %8566 = vmatpush2.bf16.msra.mxu0 0
      %8567 = vmatprep.subr.bf16.mxu0 0
      %8568 = vmatpush2.bf16.msra.mxu0 0
      %8569 = vmatprep.subr.bf16.mxu0 0
      %8570 = vmatpush2.bf16.msra.mxu0 0
      %8571 = vmatprep.mubr.bf16.mxu0 0
      %8572 = vmatmul.mubr.bf16.gmra.mxu0 %v6623
      %v8573 = vpop.f32.mrf.mxu0
      %v8574 = vadd.f32 %v8525, %v8573
      %v8575 = vpop.f32.mrf.mxu0
      %v8576 = vpop.f32.mrf.mxu0
      %v8577 = vadd.f32 %v8528, %v8576
      %v8578 = vpop.f32.mrf.mxu0
      %8579 = vmatprep.mubr.bf16.mxu0 0
      %8580 = vmatmul.mubr.bf16.gmra.mxu0 %v6626
      %v8581 = vpop.f32.mrf.mxu0
      %v8582 = vadd.f32 %v8533, %v8581
      %v8583 = vpop.f32.mrf.mxu0
      %v8584 = vpop.f32.mrf.mxu0
      %v8585 = vadd.f32 %v8536, %v8584
      %v8586 = vpop.f32.mrf.mxu0
      %8587 = vdwg.mxu0
      %v8588 = vmax.f32 %v8574, 0.0
      %v8589 = vmax.f32 %v8577, 0.0
      %v8590 = vmax.f32 %v8582, 0.0
      %v8591 = vmax.f32 %v8585, 0.0
      %v8592 = vld [vmem:[%s3] sm:$0xff]
      %v8593 = vld [vmem:[%s3 + $0x8] sm:$0xff]
      %v8594 = vld [vmem:[%s3 + $0x10] sm:$0xff]
      %v8595 = vld [vmem:[%s3 + $0x18] sm:$0xff]
      %v8596 = vld [vmem:[%s3 + $0x20] sm:$0xff]
      %v8597 = vld [vmem:[%s3 + $0x28] sm:$0xff]
      %v8598 = vld [vmem:[%s3 + $0x30] sm:$0xff]
      %v8599 = vld [vmem:[%s3 + $0x38] sm:$0xff]
      %v8600 = vld [vmem:[%s4] sm:$0x1]
      %v8602 = vlaneseq
      %v8603 = vshrl.u32 %v8602, 7
      %v8604 = vsub.s32 0, %v8603
      %v8605 = vrot.slane %v8600, %v8604
      %vm8607 = vcmask 523264
      %v8609 = vsel %vm8607, %v8588, 0
      %v8612 = vsel %vm8607, %v8589, 0
      %v8615 = vsel %vm8607, %v8590, 0
      %v8618 = vsel %vm8607, %v8591, 0
      %8620 = vmatprep.subr.mxu0 0.0
      %8621 = vmatpush1.msra.mxu0 0.0
      %8622 = vmatprep.subr.mxu0 0.0
      %8623 = vmatpush1.msra.mxu0 0.0
      %8624 = vmatprep.subr.mxu0 0.0
      %8625 = vmatpush1.msra.mxu0 0.0
      %8626 = vmatprep.subr.mxu0 0.0
      %8627 = vmatpush1.msra.mxu0 0.0
      %8628 = vmatprep.subr.mxu0 0.0
      %8629 = vmatpush1.msra.mxu0 0.0
      %8630 = vmatprep.subr.mxu0 0.0
      %8631 = vmatpush1.msra.mxu0 0.0
      %8632 = vmatprep.subr.mxu0 0.0
      %8633 = vmatpush1.msra.mxu0 0.0
      %8634 = vmatprep.subr.mxu0 0.0
      %8635 = vmatpush1.msra.mxu0 0.0
      %8636 = vmatprep.subr.mxu0 0.0
      %8637 = vmatpush1.msra.mxu0 %v8599
      %8638 = vmatprep.subr.mxu0 0.0
      %8639 = vmatpush1.msra.mxu0 %v8598
      %8640 = vmatprep.subr.mxu0 0.0
      %8641 = vmatpush1.msra.mxu0 %v8597
      %8642 = vmatprep.subr.mxu0 0.0
      %8643 = vmatpush1.msra.mxu0 %v8596
      %8644 = vmatprep.subr.mxu0 0.0
      %8645 = vmatpush1.msra.mxu0 %v8595
      %8646 = vmatprep.subr.mxu0 0.0
      %8647 = vmatpush1.msra.mxu0 %v8594
      %8648 = vmatprep.subr.mxu0 0.0
      %8649 = vmatpush1.msra.mxu0 %v8593
      %8650 = vmatprep.subr.mxu0 0.0
      %8651 = vmatpush1.msra.mxu0 %v8592
      %8652 = vmatprep.subr.mxu0 0.0
      %8653 = vmatpush2.msra.mxu0 0.0
      %8654 = vmatprep.subr.mxu0 0.0
      %8655 = vmatpush2.msra.mxu0 0.0
      %8656 = vmatprep.subr.mxu0 0.0
      %8657 = vmatpush2.msra.mxu0 0.0
      %8658 = vmatprep.subr.mxu0 0.0
      %8659 = vmatpush2.msra.mxu0 0.0
      %8660 = vmatprep.subr.mxu0 0.0
      %8661 = vmatpush2.msra.mxu0 0.0
      %8662 = vmatprep.subr.mxu0 0.0
      %8663 = vmatpush2.msra.mxu0 0.0
      %8664 = vmatprep.subr.mxu0 0.0
      %8665 = vmatpush2.msra.mxu0 0.0
      %8666 = vmatprep.subr.mxu0 0.0
      %8667 = vmatpush2.msra.mxu0 0.0
      %8668 = vmatprep.subr.mxu0 0.0
      %8669 = vmatpush2.msra.mxu0 0.0
      %8670 = vmatprep.subr.mxu0 0.0
      %8671 = vmatpush2.msra.mxu0 0.0
      %8672 = vmatprep.subr.mxu0 0.0
      %8673 = vmatpush2.msra.mxu0 0.0
      %8674 = vmatprep.subr.mxu0 0.0
      %8675 = vmatpush2.msra.mxu0 0.0
      %8676 = vmatprep.subr.mxu0 0.0
      %8677 = vmatpush2.msra.mxu0 0.0
      %8678 = vmatprep.subr.mxu0 0.0
      %8679 = vmatpush2.msra.mxu0 0.0
      %8680 = vmatprep.subr.mxu0 0.0
      %8681 = vmatpush2.msra.mxu0 0.0
      %8682 = vmatprep.subr.mxu0 0.0
      %8683 = vmatpush2.msra.mxu0 0.0
      %8684 = vmatprep.mubr.f32.mxu0 0.0
      %8685 = vmatmul.mubr.f32.gmra.mxu0 %v8609
      %v8686 = vpop.f32.mrf.mxu0
      %v8687 = vadd.f32 %v8605, %v8686
      %v8688 = vpop.f32.mrf.mxu0
      %8689 = vmatprep.mubr.f32.mxu0 0.0
      %8690 = vmatmul.mubr.f32.gmra.mxu0 %v8612
      %v8691 = vpop.f32.mrf.mxu0
      %v8692 = vadd.f32 %v8605, %v8691
      %v8693 = vpop.f32.mrf.mxu0
      %8694 = vmatprep.mubr.f32.mxu0 0.0
      %8695 = vmatmul.mubr.f32.gmra.mxu0 %v8615
      %v8696 = vpop.f32.mrf.mxu0
      %v8697 = vadd.f32 %v8605, %v8696
      %v8698 = vpop.f32.mrf.mxu0
      %8699 = vmatprep.mubr.f32.mxu0 0.0
      %8700 = vmatmul.mubr.f32.gmra.mxu0 %v8618
      %v8701 = vpop.f32.mrf.mxu0
      %v8702 = vadd.f32 %v8605, %v8701
      %v8703 = vpop.f32.mrf.mxu0
      %8704 = vdwg.mxu0
      %v8705 = vmax.f32 %v8687, 0.0
      %v8706 = vmax.f32 %v8692, 0.0
      %v8707 = vmax.f32 %v8697, 0.0
      %v8708 = vmax.f32 %v8702, 0.0
      %v8709 = vld [vmem:[%s5] sm:$0xff]
      %v8710 = vld [vmem:[%s5 + $0x8] sm:$0xff]
      %v8711 = vld [vmem:[%s5 + $0x10] sm:$0xff]
      %v8712 = vld [vmem:[%s5 + $0x18] sm:$0xff]
      %v8713 = vld [vmem:[%s5 + $0x20] sm:$0xff]
      %v8714 = vld [vmem:[%s5 + $0x28] sm:$0xff]
      %v8715 = vld [vmem:[%s5 + $0x30] sm:$0xff]
      %v8716 = vld [vmem:[%s5 + $0x38] sm:$0xff]
      %v8717 = vld [vmem:[%s6] sm:$0x1]
      %v8719 = vlaneseq
      %v8720 = vshrl.u32 %v8719, 7
      %v8721 = vsub.s32 0, %v8720
      %v8722 = vrot.slane %v8717, %v8721
      %v8725 = vsel %vm8607, %v8705, 0
      %v8728 = vsel %vm8607, %v8706, 0
      %v8731 = vsel %vm8607, %v8707, 0
      %v8734 = vsel %vm8607, %v8708, 0
      %8736 = vmatprep.subr.mxu0 0.0
      %8737 = vmatpush1.msra.mxu0 0.0
      %8738 = vmatprep.subr.mxu0 0.0
      %8739 = vmatpush1.msra.mxu0 0.0
      %8740 = vmatprep.subr.mxu0 0.0
      %8741 = vmatpush1.msra.mxu0 0.0
      %8742 = vmatprep.subr.mxu0 0.0
      %8743 = vmatpush1.msra.mxu0 0.0
      %8744 = vmatprep.subr.mxu0 0.0
      %8745 = vmatpush1.msra.mxu0 0.0
      %8746 = vmatprep.subr.mxu0 0.0
      %8747 = vmatpush1.msra.mxu0 0.0
      %8748 = vmatprep.subr.mxu0 0.0
      %8749 = vmatpush1.msra.mxu0 0.0
      %8750 = vmatprep.subr.mxu0 0.0
      %8751 = vmatpush1.msra.mxu0 0.0
      %8752 = vmatprep.subr.mxu0 0.0
      %8753 = vmatpush1.msra.mxu0 %v8716
      %8754 = vmatprep.subr.mxu0 0.0
      %8755 = vmatpush1.msra.mxu0 %v8715
      %8756 = vmatprep.subr.mxu0 0.0
      %8757 = vmatpush1.msra.mxu0 %v8714
      %8758 = vmatprep.subr.mxu0 0.0
      %8759 = vmatpush1.msra.mxu0 %v8713
      %8760 = vmatprep.subr.mxu0 0.0
      %8761 = vmatpush1.msra.mxu0 %v8712
      %8762 = vmatprep.subr.mxu0 0.0
      %8763 = vmatpush1.msra.mxu0 %v8711
      %8764 = vmatprep.subr.mxu0 0.0
      %8765 = vmatpush1.msra.mxu0 %v8710
      %8766 = vmatprep.subr.mxu0 0.0
      %8767 = vmatpush1.msra.mxu0 %v8709
      %8768 = vmatprep.subr.mxu0 0.0
      %8769 = vmatpush2.msra.mxu0 0.0
      %8770 = vmatprep.subr.mxu0 0.0
      %8771 = vmatpush2.msra.mxu0 0.0
      %8772 = vmatprep.subr.mxu0 0.0
      %8773 = vmatpush2.msra.mxu0 0.0
      %8774 = vmatprep.subr.mxu0 0.0
      %8775 = vmatpush2.msra.mxu0 0.0
      %8776 = vmatprep.subr.mxu0 0.0
      %8777 = vmatpush2.msra.mxu0 0.0
      %8778 = vmatprep.subr.mxu0 0.0
      %8779 = vmatpush2.msra.mxu0 0.0
      %8780 = vmatprep.subr.mxu0 0.0
      %8781 = vmatpush2.msra.mxu0 0.0
      %8782 = vmatprep.subr.mxu0 0.0
      %8783 = vmatpush2.msra.mxu0 0.0
      %8784 = vmatprep.subr.mxu0 0.0
      %8785 = vmatpush2.msra.mxu0 0.0
      %8786 = vmatprep.subr.mxu0 0.0
      %8787 = vmatpush2.msra.mxu0 0.0
      %8788 = vmatprep.subr.mxu0 0.0
      %8789 = vmatpush2.msra.mxu0 0.0
      %8790 = vmatprep.subr.mxu0 0.0
      %8791 = vmatpush2.msra.mxu0 0.0
      %8792 = vmatprep.subr.mxu0 0.0
      %8793 = vmatpush2.msra.mxu0 0.0
      %8794 = vmatprep.subr.mxu0 0.0
      %8795 = vmatpush2.msra.mxu0 0.0
      %8796 = vmatprep.subr.mxu0 0.0
      %8797 = vmatpush2.msra.mxu0 0.0
      %8798 = vmatprep.subr.mxu0 0.0
      %8799 = vmatpush2.msra.mxu0 0.0
      %8800 = vmatprep.mubr.f32.mxu0 0.0
      %8801 = vmatmul.mubr.f32.gmra.mxu0 %v8725
      %v8802 = vpop.f32.mrf.mxu0
      %v8803 = vadd.f32 %v8722, %v8802
      %v8804 = vpop.f32.mrf.mxu0
      %8805 = vmatprep.mubr.f32.mxu0 0.0
      %8806 = vmatmul.mubr.f32.gmra.mxu0 %v8728
      %v8807 = vpop.f32.mrf.mxu0
      %v8808 = vadd.f32 %v8722, %v8807
      %v8809 = vpop.f32.mrf.mxu0
      %8810 = vmatprep.mubr.f32.mxu0 0.0
      %8811 = vmatmul.mubr.f32.gmra.mxu0 %v8731
      %v8812 = vpop.f32.mrf.mxu0
      %v8813 = vadd.f32 %v8722, %v8812
      %v8814 = vpop.f32.mrf.mxu0
      %8815 = vmatprep.mubr.f32.mxu0 0.0
      %8816 = vmatmul.mubr.f32.gmra.mxu0 %v8734
      %v8817 = vpop.f32.mrf.mxu0
      %v8818 = vadd.f32 %v8722, %v8817
      %v8819 = vpop.f32.mrf.mxu0
      %8820 = vdwg.mxu0
      %v8821 = vmax.f32 %v8803, 0.0
      %v8822 = vmax.f32 %v8808, 0.0
      %v8823 = vmax.f32 %v8813, 0.0
      %v8824 = vmax.f32 %v8818, 0.0
      %v8825 = vld [vmem:[%s7] sm:$0xff]
      %v8826 = vld [vmem:[%s7 + $0x8] sm:$0xff]
      %v8827 = vld [vmem:[%s7 + $0x10] sm:$0xff]
      %v8828 = vld [vmem:[%s7 + $0x18] sm:$0xff]
      %v8829 = vld [vmem:[%s7 + $0x20] sm:$0xff]
      %v8830 = vld [vmem:[%s7 + $0x28] sm:$0xff]
      %v8831 = vld [vmem:[%s7 + $0x30] sm:$0xff]
      %v8832 = vld [vmem:[%s7 + $0x38] sm:$0xff]
      %v8833 = vld [vmem:[%s8] sm:$0x1]
      %v8835 = vlaneseq
      %v8836 = vshrl.u32 %v8835, 7
      %v8837 = vsub.s32 0, %v8836
      %v8838 = vrot.slane %v8833, %v8837
      %v8841 = vsel %vm8607, %v8821, 0
      %v8844 = vsel %vm8607, %v8822, 0
      %v8847 = vsel %vm8607, %v8823, 0
      %v8850 = vsel %vm8607, %v8824, 0
      %8852 = vmatprep.subr.mxu0 0.0
      %8853 = vmatpush1.msra.mxu0 0.0
      %8854 = vmatprep.subr.mxu0 0.0
      %8855 = vmatpush1.msra.mxu0 0.0
      %8856 = vmatprep.subr.mxu0 0.0
      %8857 = vmatpush1.msra.mxu0 0.0
      %8858 = vmatprep.subr.mxu0 0.0
      %8859 = vmatpush1.msra.mxu0 0.0
      %8860 = vmatprep.subr.mxu0 0.0
      %8861 = vmatpush1.msra.mxu0 0.0
      %8862 = vmatprep.subr.mxu0 0.0
      %8863 = vmatpush1.msra.mxu0 0.0
      %8864 = vmatprep.subr.mxu0 0.0
      %8865 = vmatpush1.msra.mxu0 0.0
      %8866 = vmatprep.subr.mxu0 0.0
      %8867 = vmatpush1.msra.mxu0 0.0
      %8868 = vmatprep.subr.mxu0 0.0
      %8869 = vmatpush1.msra.mxu0 %v8832
      %8870 = vmatprep.subr.mxu0 0.0
      %8871 = vmatpush1.msra.mxu0 %v8831
      %8872 = vmatprep.subr.mxu0 0.0
      %8873 = vmatpush1.msra.mxu0 %v8830
      %8874 = vmatprep.subr.mxu0 0.0
      %8875 = vmatpush1.msra.mxu0 %v8829
      %8876 = vmatprep.subr.mxu0 0.0
      %8877 = vmatpush1.msra.mxu0 %v8828
      %8878 = vmatprep.subr.mxu0 0.0
      %8879 = vmatpush1.msra.mxu0 %v8827
      %8880 = vmatprep.subr.mxu0 0.0
      %8881 = vmatpush1.msra.mxu0 %v8826
      %8882 = vmatprep.subr.mxu0 0.0
      %8883 = vmatpush1.msra.mxu0 %v8825
      %8884 = vmatprep.subr.mxu0 0.0
      %8885 = vmatpush2.msra.mxu0 0.0
      %8886 = vmatprep.subr.mxu0 0.0
      %8887 = vmatpush2.msra.mxu0 0.0
      %8888 = vmatprep.subr.mxu0 0.0
      %8889 = vmatpush2.msra.mxu0 0.0
      %8890 = vmatprep.subr.mxu0 0.0
      %8891 = vmatpush2.msra.mxu0 0.0
      %8892 = vmatprep.subr.mxu0 0.0
      %8893 = vmatpush2.msra.mxu0 0.0
      %8894 = vmatprep.subr.mxu0 0.0
      %8895 = vmatpush2.msra.mxu0 0.0
      %8896 = vmatprep.subr.mxu0 0.0
      %8897 = vmatpush2.msra.mxu0 0.0
      %8898 = vmatprep.subr.mxu0 0.0
      %8899 = vmatpush2.msra.mxu0 0.0
      %8900 = vmatprep.subr.mxu0 0.0
      %8901 = vmatpush2.msra.mxu0 0.0
      %8902 = vmatprep.subr.mxu0 0.0
      %8903 = vmatpush2.msra.mxu0 0.0
      %8904 = vmatprep.subr.mxu0 0.0
      %8905 = vmatpush2.msra.mxu0 0.0
      %8906 = vmatprep.subr.mxu0 0.0
      %8907 = vmatpush2.msra.mxu0 0.0
      %8908 = vmatprep.subr.mxu0 0.0
      %8909 = vmatpush2.msra.mxu0 0.0
      %8910 = vmatprep.subr.mxu0 0.0
      %8911 = vmatpush2.msra.mxu0 0.0
      %8912 = vmatprep.subr.mxu0 0.0
      %8913 = vmatpush2.msra.mxu0 0.0
      %8914 = vmatprep.subr.mxu0 0.0
      %8915 = vmatpush2.msra.mxu0 0.0
      %8916 = vmatprep.mubr.f32.mxu0 0.0
      %8917 = vmatmul.mubr.f32.gmra.mxu0 %v8841
      %v8918 = vpop.f32.mrf.mxu0
      %v8919 = vadd.f32 %v8838, %v8918
      %v8920 = vpop.f32.mrf.mxu0
      %8921 = vmatprep.mubr.f32.mxu0 0.0
      %8922 = vmatmul.mubr.f32.gmra.mxu0 %v8844
      %v8923 = vpop.f32.mrf.mxu0
      %v8924 = vadd.f32 %v8838, %v8923
      %v8925 = vpop.f32.mrf.mxu0
      %8926 = vmatprep.mubr.f32.mxu0 0.0
      %8927 = vmatmul.mubr.f32.gmra.mxu0 %v8847
      %v8928 = vpop.f32.mrf.mxu0
      %v8929 = vadd.f32 %v8838, %v8928
      %v8930 = vpop.f32.mrf.mxu0
      %8931 = vmatprep.mubr.f32.mxu0 0.0
      %8932 = vmatmul.mubr.f32.gmra.mxu0 %v8850
      %v8933 = vpop.f32.mrf.mxu0
      %v8934 = vadd.f32 %v8838, %v8933
      %v8935 = vpop.f32.mrf.mxu0
      %8936 = vdwg.mxu0
      %v8937 = vmax.f32 %v8919, 0.0
      %v8938 = vmax.f32 %v8924, 0.0
      %v8939 = vmax.f32 %v8929, 0.0
      %v8940 = vmax.f32 %v8934, 0.0
      %v8941 = vld [vmem:[%s9] sm:$0xff]
      %v8942 = vld [vmem:[%s9 + $0x8] sm:$0xff]
      %v8943 = vld [vmem:[%s9 + $0x10] sm:$0xff]
      %v8944 = vld [vmem:[%s9 + $0x18] sm:$0xff]
      %v8945 = vld [vmem:[%s9 + $0x20] sm:$0xff]
      %v8946 = vld [vmem:[%s9 + $0x28] sm:$0xff]
      %v8947 = vld [vmem:[%s9 + $0x30] sm:$0xff]
      %v8948 = vld [vmem:[%s9 + $0x38] sm:$0xff]
      %v8949 = vld [vmem:[%s10] sm:$0x1]
      %v8951 = vlaneseq
      %v8952 = vshrl.u32 %v8951, 7
      %v8953 = vsub.s32 0, %v8952
      %v8954 = vrot.slane %v8949, %v8953
      %v8957 = vsel %vm8607, %v8937, 0
      %v8960 = vsel %vm8607, %v8938, 0
      %v8963 = vsel %vm8607, %v8939, 0
      %v8966 = vsel %vm8607, %v8940, 0
      %8968 = vmatprep.subr.mxu0 0.0
      %8969 = vmatpush1.msra.mxu0 0.0
      %8970 = vmatprep.subr.mxu0 0.0
      %8971 = vmatpush1.msra.mxu0 0.0
      %8972 = vmatprep.subr.mxu0 0.0
      %8973 = vmatpush1.msra.mxu0 0.0
      %8974 = vmatprep.subr.mxu0 0.0
      %8975 = vmatpush1.msra.mxu0 0.0
      %8976 = vmatprep.subr.mxu0 0.0
      %8977 = vmatpush1.msra.mxu0 0.0
      %8978 = vmatprep.subr.mxu0 0.0
      %8979 = vmatpush1.msra.mxu0 0.0
      %8980 = vmatprep.subr.mxu0 0.0
      %8981 = vmatpush1.msra.mxu0 0.0
      %8982 = vmatprep.subr.mxu0 0.0
      %8983 = vmatpush1.msra.mxu0 0.0
      %8984 = vmatprep.subr.mxu0 0.0
      %8985 = vmatpush1.msra.mxu0 %v8948
      %8986 = vmatprep.subr.mxu0 0.0
      %8987 = vmatpush1.msra.mxu0 %v8947
      %8988 = vmatprep.subr.mxu0 0.0
      %8989 = vmatpush1.msra.mxu0 %v8946
      %8990 = vmatprep.subr.mxu0 0.0
      %8991 = vmatpush1.msra.mxu0 %v8945
      %8992 = vmatprep.subr.mxu0 0.0
      %8993 = vmatpush1.msra.mxu0 %v8944
      %8994 = vmatprep.subr.mxu0 0.0
      %8995 = vmatpush1.msra.mxu0 %v8943
      %8996 = vmatprep.subr.mxu0 0.0
      %8997 = vmatpush1.msra.mxu0 %v8942
      %8998 = vmatprep.subr.mxu0 0.0
      %8999 = vmatpush1.msra.mxu0 %v8941
      %9000 = vmatprep.subr.mxu0 0.0
      %9001 = vmatpush2.msra.mxu0 0.0
      %9002 = vmatprep.subr.mxu0 0.0
      %9003 = vmatpush2.msra.mxu0 0.0
      %9004 = vmatprep.subr.mxu0 0.0
      %9005 = vmatpush2.msra.mxu0 0.0
      %9006 = vmatprep.subr.mxu0 0.0
      %9007 = vmatpush2.msra.mxu0 0.0
      %9008 = vmatprep.subr.mxu0 0.0
      %9009 = vmatpush2.msra.mxu0 0.0
      %9010 = vmatprep.subr.mxu0 0.0
      %9011 = vmatpush2.msra.mxu0 0.0
      %9012 = vmatprep.subr.mxu0 0.0
      %9013 = vmatpush2.msra.mxu0 0.0
      %9014 = vmatprep.subr.mxu0 0.0
      %9015 = vmatpush2.msra.mxu0 0.0
      %9016 = vmatprep.subr.mxu0 0.0
      %9017 = vmatpush2.msra.mxu0 0.0
      %9018 = vmatprep.subr.mxu0 0.0
      %9019 = vmatpush2.msra.mxu0 0.0
      %9020 = vmatprep.subr.mxu0 0.0
      %9021 = vmatpush2.msra.mxu0 0.0
      %9022 = vmatprep.subr.mxu0 0.0
      %9023 = vmatpush2.msra.mxu0 0.0
      %9024 = vmatprep.subr.mxu0 0.0
      %9025 = vmatpush2.msra.mxu0 0.0
      %9026 = vmatprep.subr.mxu0 0.0
      %9027 = vmatpush2.msra.mxu0 0.0
      %9028 = vmatprep.subr.mxu0 0.0
      %9029 = vmatpush2.msra.mxu0 0.0
      %9030 = vmatprep.subr.mxu0 0.0
      %9031 = vmatpush2.msra.mxu0 0.0
      %9032 = vmatprep.mubr.f32.mxu0 0.0
      %9033 = vmatmul.mubr.f32.gmra.mxu0 %v8957
      %v9034 = vpop.f32.mrf.mxu0
      %v9035 = vadd.f32 %v8954, %v9034
      %v9036 = vpop.f32.mrf.mxu0
      %9037 = vmatprep.mubr.f32.mxu0 0.0
      %9038 = vmatmul.mubr.f32.gmra.mxu0 %v8960
      %v9039 = vpop.f32.mrf.mxu0
      %v9040 = vadd.f32 %v8954, %v9039
      %v9041 = vpop.f32.mrf.mxu0
      %9042 = vmatprep.mubr.f32.mxu0 0.0
      %9043 = vmatmul.mubr.f32.gmra.mxu0 %v8963
      %v9044 = vpop.f32.mrf.mxu0
      %v9045 = vadd.f32 %v8954, %v9044
      %v9046 = vpop.f32.mrf.mxu0
      %9047 = vmatprep.mubr.f32.mxu0 0.0
      %9048 = vmatmul.mubr.f32.gmra.mxu0 %v8966
      %v9049 = vpop.f32.mrf.mxu0
      %v9050 = vadd.f32 %v8954, %v9049
      %v9051 = vpop.f32.mrf.mxu0
      %9052 = vdwg.mxu0
      %v9053 = vmax.f32 %v9035, 0.0
      %v9054 = vmax.f32 %v9040, 0.0
      %v9055 = vmax.f32 %v9045, 0.0
      %v9056 = vmax.f32 %v9050, 0.0
      %v9057 = vld [vmem:[%s11] sm:$0xff]
      %v9058 = vld [vmem:[%s11 + $0x8] sm:$0xff]
      %v9059 = vld [vmem:[%s11 + $0x10] sm:$0xff]
      %v9060 = vld [vmem:[%s11 + $0x18] sm:$0xff]
      %v9061 = vld [vmem:[%s11 + $0x20] sm:$0xff]
      %v9062 = vld [vmem:[%s11 + $0x28] sm:$0xff]
      %v9063 = vld [vmem:[%s11 + $0x30] sm:$0xff]
      %v9064 = vld [vmem:[%s11 + $0x38] sm:$0xff]
      %v9065 = vld [vmem:[%s12] sm:$0x1]
      %v9067 = vlaneseq
      %v9068 = vshrl.u32 %v9067, 7
      %v9069 = vsub.s32 0, %v9068
      %v9070 = vrot.slane %v9065, %v9069
      %v9073 = vsel %vm8607, %v9053, 0
      %v9076 = vsel %vm8607, %v9054, 0
      %v9079 = vsel %vm8607, %v9055, 0
      %v9082 = vsel %vm8607, %v9056, 0
      %9084 = vmatprep.subr.mxu0 0.0
      %9085 = vmatpush1.msra.mxu0 0.0
      %9086 = vmatprep.subr.mxu0 0.0
      %9087 = vmatpush1.msra.mxu0 0.0
      %9088 = vmatprep.subr.mxu0 0.0
      %9089 = vmatpush1.msra.mxu0 0.0
      %9090 = vmatprep.subr.mxu0 0.0
      %9091 = vmatpush1.msra.mxu0 0.0
      %9092 = vmatprep.subr.mxu0 0.0
      %9093 = vmatpush1.msra.mxu0 0.0
      %9094 = vmatprep.subr.mxu0 0.0
      %9095 = vmatpush1.msra.mxu0 0.0
      %9096 = vmatprep.subr.mxu0 0.0
      %9097 = vmatpush1.msra.mxu0 0.0
      %9098 = vmatprep.subr.mxu0 0.0
      %9099 = vmatpush1.msra.mxu0 0.0
      %9100 = vmatprep.subr.mxu0 0.0
      %9101 = vmatpush1.msra.mxu0 %v9064
      %9102 = vmatprep.subr.mxu0 0.0
      %9103 = vmatpush1.msra.mxu0 %v9063
      %9104 = vmatprep.subr.mxu0 0.0
      %9105 = vmatpush1.msra.mxu0 %v9062
      %9106 = vmatprep.subr.mxu0 0.0
      %9107 = vmatpush1.msra.mxu0 %v9061
      %9108 = vmatprep.subr.mxu0 0.0
      %9109 = vmatpush1.msra.mxu0 %v9060
      %9110 = vmatprep.subr.mxu0 0.0
      %9111 = vmatpush1.msra.mxu0 %v9059
      %9112 = vmatprep.subr.mxu0 0.0
      %9113 = vmatpush1.msra.mxu0 %v9058
      %9114 = vmatprep.subr.mxu0 0.0
      %9115 = vmatpush1.msra.mxu0 %v9057
      %9116 = vmatprep.subr.mxu0 0.0
      %9117 = vmatpush2.msra.mxu0 0.0
      %9118 = vmatprep.subr.mxu0 0.0
      %9119 = vmatpush2.msra.mxu0 0.0
      %9120 = vmatprep.subr.mxu0 0.0
      %9121 = vmatpush2.msra.mxu0 0.0
      %9122 = vmatprep.subr.mxu0 0.0
      %9123 = vmatpush2.msra.mxu0 0.0
      %9124 = vmatprep.subr.mxu0 0.0
      %9125 = vmatpush2.msra.mxu0 0.0
      %9126 = vmatprep.subr.mxu0 0.0
      %9127 = vmatpush2.msra.mxu0 0.0
      %9128 = vmatprep.subr.mxu0 0.0
      %9129 = vmatpush2.msra.mxu0 0.0
      %9130 = vmatprep.subr.mxu0 0.0
      %9131 = vmatpush2.msra.mxu0 0.0
      %9132 = vmatprep.subr.mxu0 0.0
      %9133 = vmatpush2.msra.mxu0 0.0
      %9134 = vmatprep.subr.mxu0 0.0
      %9135 = vmatpush2.msra.mxu0 0.0
      %9136 = vmatprep.subr.mxu0 0.0
      %9137 = vmatpush2.msra.mxu0 0.0
      %9138 = vmatprep.subr.mxu0 0.0
      %9139 = vmatpush2.msra.mxu0 0.0
      %9140 = vmatprep.subr.mxu0 0.0
      %9141 = vmatpush2.msra.mxu0 0.0
      %9142 = vmatprep.subr.mxu0 0.0
      %9143 = vmatpush2.msra.mxu0 0.0
      %9144 = vmatprep.subr.mxu0 0.0
      %9145 = vmatpush2.msra.mxu0 0.0
      %9146 = vmatprep.subr.mxu0 0.0
      %9147 = vmatpush2.msra.mxu0 0.0
      %9148 = vmatprep.mubr.f32.mxu0 0.0
      %9149 = vmatmul.mubr.f32.gmra.mxu0 %v9073
      %v9150 = vpop.f32.mrf.mxu0
      %v9151 = vadd.f32 %v9070, %v9150
      %v9152 = vpop.f32.mrf.mxu0
      %9153 = vmatprep.mubr.f32.mxu0 0.0
      %9154 = vmatmul.mubr.f32.gmra.mxu0 %v9076
      %v9155 = vpop.f32.mrf.mxu0
      %v9156 = vadd.f32 %v9070, %v9155
      %v9157 = vpop.f32.mrf.mxu0
      %9158 = vmatprep.mubr.f32.mxu0 0.0
      %9159 = vmatmul.mubr.f32.gmra.mxu0 %v9079
      %v9160 = vpop.f32.mrf.mxu0
      %v9161 = vadd.f32 %v9070, %v9160
      %v9162 = vpop.f32.mrf.mxu0
      %9163 = vmatprep.mubr.f32.mxu0 0.0
      %9164 = vmatmul.mubr.f32.gmra.mxu0 %v9082
      %v9165 = vpop.f32.mrf.mxu0
      %v9166 = vadd.f32 %v9070, %v9165
      %v9167 = vpop.f32.mrf.mxu0
      %9168 = vdwg.mxu0
      %v9169 = vmax.f32 %v9151, 0.0
      %v9170 = vmax.f32 %v9156, 0.0
      %v9171 = vmax.f32 %v9161, 0.0
      %v9172 = vmax.f32 %v9166, 0.0
      %v9173 = vld [vmem:[%s13] sm:$0xff]
      %v9174 = vld [vmem:[%s13 + $0x8] sm:$0xff]
      %v9175 = vld [vmem:[%s13 + $0x10] sm:$0xff]
      %v9176 = vld [vmem:[%s13 + $0x18] sm:$0xff]
      %v9177 = vld [vmem:[%s13 + $0x20] sm:$0xff]
      %v9178 = vld [vmem:[%s13 + $0x28] sm:$0xff]
      %v9179 = vld [vmem:[%s13 + $0x30] sm:$0xff]
      %v9180 = vld [vmem:[%s13 + $0x38] sm:$0xff]
      %v9181 = vld [vmem:[%s14] sm:$0x1]
      %v9183 = vlaneseq
      %v9184 = vshrl.u32 %v9183, 7
      %v9185 = vsub.s32 0, %v9184
      %v9186 = vrot.slane %v9181, %v9185
      %v9189 = vsel %vm8607, %v9169, 0
      %v9192 = vsel %vm8607, %v9170, 0
      %v9195 = vsel %vm8607, %v9171, 0
      %v9198 = vsel %vm8607, %v9172, 0
      %9200 = vmatprep.subr.mxu0 0.0
      %9201 = vmatpush1.msra.mxu0 0.0
      %9202 = vmatprep.subr.mxu0 0.0
      %9203 = vmatpush1.msra.mxu0 0.0
      %9204 = vmatprep.subr.mxu0 0.0
      %9205 = vmatpush1.msra.mxu0 0.0
      %9206 = vmatprep.subr.mxu0 0.0
      %9207 = vmatpush1.msra.mxu0 0.0
      %9208 = vmatprep.subr.mxu0 0.0
      %9209 = vmatpush1.msra.mxu0 0.0
      %9210 = vmatprep.subr.mxu0 0.0
      %9211 = vmatpush1.msra.mxu0 0.0
      %9212 = vmatprep.subr.mxu0 0.0
      %9213 = vmatpush1.msra.mxu0 0.0
      %9214 = vmatprep.subr.mxu0 0.0
      %9215 = vmatpush1.msra.mxu0 0.0
      %9216 = vmatprep.subr.mxu0 0.0
      %9217 = vmatpush1.msra.mxu0 %v9180
      %9218 = vmatprep.subr.mxu0 0.0
      %9219 = vmatpush1.msra.mxu0 %v9179
      %9220 = vmatprep.subr.mxu0 0.0
      %9221 = vmatpush1.msra.mxu0 %v9178
      %9222 = vmatprep.subr.mxu0 0.0
      %9223 = vmatpush1.msra.mxu0 %v9177
      %9224 = vmatprep.subr.mxu0 0.0
      %9225 = vmatpush1.msra.mxu0 %v9176
      %9226 = vmatprep.subr.mxu0 0.0
      %9227 = vmatpush1.msra.mxu0 %v9175
      %9228 = vmatprep.subr.mxu0 0.0
      %9229 = vmatpush1.msra.mxu0 %v9174
      %9230 = vmatprep.subr.mxu0 0.0
      %9231 = vmatpush1.msra.mxu0 %v9173
      %9232 = vmatprep.subr.mxu0 0.0
      %9233 = vmatpush2.msra.mxu0 0.0
      %9234 = vmatprep.subr.mxu0 0.0
      %9235 = vmatpush2.msra.mxu0 0.0
      %9236 = vmatprep.subr.mxu0 0.0
      %9237 = vmatpush2.msra.mxu0 0.0
      %9238 = vmatprep.subr.mxu0 0.0
      %9239 = vmatpush2.msra.mxu0 0.0
      %9240 = vmatprep.subr.mxu0 0.0
      %9241 = vmatpush2.msra.mxu0 0.0
      %9242 = vmatprep.subr.mxu0 0.0
      %9243 = vmatpush2.msra.mxu0 0.0
      %9244 = vmatprep.subr.mxu0 0.0
      %9245 = vmatpush2.msra.mxu0 0.0
      %9246 = vmatprep.subr.mxu0 0.0
      %9247 = vmatpush2.msra.mxu0 0.0
      %9248 = vmatprep.subr.mxu0 0.0
      %9249 = vmatpush2.msra.mxu0 0.0
      %9250 = vmatprep.subr.mxu0 0.0
      %9251 = vmatpush2.msra.mxu0 0.0
      %9252 = vmatprep.subr.mxu0 0.0
      %9253 = vmatpush2.msra.mxu0 0.0
      %9254 = vmatprep.subr.mxu0 0.0
      %9255 = vmatpush2.msra.mxu0 0.0
      %9256 = vmatprep.subr.mxu0 0.0
      %9257 = vmatpush2.msra.mxu0 0.0
      %9258 = vmatprep.subr.mxu0 0.0
      %9259 = vmatpush2.msra.mxu0 0.0
      %9260 = vmatprep.subr.mxu0 0.0
      %9261 = vmatpush2.msra.mxu0 0.0
      %9262 = vmatprep.subr.mxu0 0.0
      %9263 = vmatpush2.msra.mxu0 0.0
      %9264 = vmatprep.mubr.f32.mxu0 0.0
      %9265 = vmatmul.mubr.f32.gmra.mxu0 %v9189
      %v9266 = vpop.f32.mrf.mxu0
      %v9267 = vadd.f32 %v9186, %v9266
      %v9268 = vpop.f32.mrf.mxu0
      %9269 = vmatprep.mubr.f32.mxu0 0.0
      %9270 = vmatmul.mubr.f32.gmra.mxu0 %v9192
      %v9271 = vpop.f32.mrf.mxu0
      %v9272 = vadd.f32 %v9186, %v9271
      %v9273 = vpop.f32.mrf.mxu0
      %9274 = vmatprep.mubr.f32.mxu0 0.0
      %9275 = vmatmul.mubr.f32.gmra.mxu0 %v9195
      %v9276 = vpop.f32.mrf.mxu0
      %v9277 = vadd.f32 %v9186, %v9276
      %v9278 = vpop.f32.mrf.mxu0
      %9279 = vmatprep.mubr.f32.mxu0 0.0
      %9280 = vmatmul.mubr.f32.gmra.mxu0 %v9198
      %v9281 = vpop.f32.mrf.mxu0
      %v9282 = vadd.f32 %v9186, %v9281
      %v9283 = vpop.f32.mrf.mxu0
      %9284 = vdwg.mxu0
      %v9285 = vmax.f32 %v9267, 0.0
      %v9286 = vmax.f32 %v9272, 0.0
      %v9287 = vmax.f32 %v9277, 0.0
      %v9288 = vmax.f32 %v9282, 0.0
      %v9289 = vld [vmem:[%s15] sm:$0xff]
      %v9290 = vld [vmem:[%s15 + $0x8] sm:$0xff]
      %v9291 = vld [vmem:[%s15 + $0x10] sm:$0xff]
      %v9292 = vld [vmem:[%s15 + $0x18] sm:$0xff]
      %v9293 = vld [vmem:[%s15 + $0x20] sm:$0xff]
      %v9294 = vld [vmem:[%s15 + $0x28] sm:$0xff]
      %v9295 = vld [vmem:[%s15 + $0x30] sm:$0xff]
      %v9296 = vld [vmem:[%s15 + $0x38] sm:$0xff]
      %v9297 = vld [vmem:[%s16] sm:$0x1]
      %v9299 = vlaneseq
      %v9300 = vshrl.u32 %v9299, 7
      %v9301 = vsub.s32 0, %v9300
      %v9302 = vrot.slane %v9297, %v9301
      %v9305 = vsel %vm8607, %v9285, 0
      %v9308 = vsel %vm8607, %v9286, 0
      %v9311 = vsel %vm8607, %v9287, 0
      %v9314 = vsel %vm8607, %v9288, 0
      %9316 = vmatprep.subr.mxu0 0.0
      %9317 = vmatpush1.msra.mxu0 0.0
      %9318 = vmatprep.subr.mxu0 0.0
      %9319 = vmatpush1.msra.mxu0 0.0
      %9320 = vmatprep.subr.mxu0 0.0
      %9321 = vmatpush1.msra.mxu0 0.0
      %9322 = vmatprep.subr.mxu0 0.0
      %9323 = vmatpush1.msra.mxu0 0.0
      %9324 = vmatprep.subr.mxu0 0.0
      %9325 = vmatpush1.msra.mxu0 0.0
      %9326 = vmatprep.subr.mxu0 0.0
      %9327 = vmatpush1.msra.mxu0 0.0
      %9328 = vmatprep.subr.mxu0 0.0
      %9329 = vmatpush1.msra.mxu0 0.0
      %9330 = vmatprep.subr.mxu0 0.0
      %9331 = vmatpush1.msra.mxu0 0.0
      %9332 = vmatprep.subr.mxu0 0.0
      %9333 = vmatpush1.msra.mxu0 %v9296
      %9334 = vmatprep.subr.mxu0 0.0
      %9335 = vmatpush1.msra.mxu0 %v9295
      %9336 = vmatprep.subr.mxu0 0.0
      %9337 = vmatpush1.msra.mxu0 %v9294
      %9338 = vmatprep.subr.mxu0 0.0
      %9339 = vmatpush1.msra.mxu0 %v9293
      %9340 = vmatprep.subr.mxu0 0.0
      %9341 = vmatpush1.msra.mxu0 %v9292
      %9342 = vmatprep.subr.mxu0 0.0
      %9343 = vmatpush1.msra.mxu0 %v9291
      %9344 = vmatprep.subr.mxu0 0.0
      %9345 = vmatpush1.msra.mxu0 %v9290
      %9346 = vmatprep.subr.mxu0 0.0
      %9347 = vmatpush1.msra.mxu0 %v9289
      %9348 = vmatprep.subr.mxu0 0.0
      %9349 = vmatpush2.msra.mxu0 0.0
      %9350 = vmatprep.subr.mxu0 0.0
      %9351 = vmatpush2.msra.mxu0 0.0
      %9352 = vmatprep.subr.mxu0 0.0
      %9353 = vmatpush2.msra.mxu0 0.0
      %9354 = vmatprep.subr.mxu0 0.0
      %9355 = vmatpush2.msra.mxu0 0.0
      %9356 = vmatprep.subr.mxu0 0.0
      %9357 = vmatpush2.msra.mxu0 0.0
      %9358 = vmatprep.subr.mxu0 0.0
      %9359 = vmatpush2.msra.mxu0 0.0
      %9360 = vmatprep.subr.mxu0 0.0
      %9361 = vmatpush2.msra.mxu0 0.0
      %9362 = vmatprep.subr.mxu0 0.0
      %9363 = vmatpush2.msra.mxu0 0.0
      %9364 = vmatprep.subr.mxu0 0.0
      %9365 = vmatpush2.msra.mxu0 0.0
      %9366 = vmatprep.subr.mxu0 0.0
      %9367 = vmatpush2.msra.mxu0 0.0
      %9368 = vmatprep.subr.mxu0 0.0
      %9369 = vmatpush2.msra.mxu0 0.0
      %9370 = vmatprep.subr.mxu0 0.0
      %9371 = vmatpush2.msra.mxu0 0.0
      %9372 = vmatprep.subr.mxu0 0.0
      %9373 = vmatpush2.msra.mxu0 0.0
      %9374 = vmatprep.subr.mxu0 0.0
      %9375 = vmatpush2.msra.mxu0 0.0
      %9376 = vmatprep.subr.mxu0 0.0
      %9377 = vmatpush2.msra.mxu0 0.0
      %9378 = vmatprep.subr.mxu0 0.0
      %9379 = vmatpush2.msra.mxu0 0.0
      %9380 = vmatprep.mubr.f32.mxu0 0.0
      %9381 = vmatmul.mubr.f32.gmra.mxu0 %v9305
      %v9382 = vpop.f32.mrf.mxu0
      %v9383 = vadd.f32 %v9302, %v9382
      %v9384 = vpop.f32.mrf.mxu0
      %9385 = vmatprep.mubr.f32.mxu0 0.0
      %9386 = vmatmul.mubr.f32.gmra.mxu0 %v9308
      %v9387 = vpop.f32.mrf.mxu0
      %v9388 = vadd.f32 %v9302, %v9387
      %v9389 = vpop.f32.mrf.mxu0
      %9390 = vmatprep.mubr.f32.mxu0 0.0
      %9391 = vmatmul.mubr.f32.gmra.mxu0 %v9311
      %v9392 = vpop.f32.mrf.mxu0
      %v9393 = vadd.f32 %v9302, %v9392
      %v9394 = vpop.f32.mrf.mxu0
      %9395 = vmatprep.mubr.f32.mxu0 0.0
      %9396 = vmatmul.mubr.f32.gmra.mxu0 %v9314
      %v9397 = vpop.f32.mrf.mxu0
      %v9398 = vadd.f32 %v9302, %v9397
      %v9399 = vpop.f32.mrf.mxu0
      %9400 = vdwg.mxu0
      %v9401 = vmax.f32 %v9383, 0.0
      %v9402 = vmax.f32 %v9388, 0.0
      %v9403 = vmax.f32 %v9393, 0.0
      %v9404 = vmax.f32 %v9398, 0.0
      %v9405 = vld [vmem:[%s17] sm:$0xff]
      %v9406 = vld [vmem:[%s17 + $0x8] sm:$0xff]
      %v9407 = vld [vmem:[%s17 + $0x10] sm:$0xff]
      %v9408 = vld [vmem:[%s17 + $0x18] sm:$0xff]
      %v9409 = vld [vmem:[%s17 + $0x20] sm:$0xff]
      %v9410 = vld [vmem:[%s17 + $0x28] sm:$0xff]
      %v9411 = vld [vmem:[%s17 + $0x30] sm:$0xff]
      %v9412 = vld [vmem:[%s17 + $0x38] sm:$0xff]
      %v9413 = vld [vmem:[%s18] sm:$0x1]
      %v9415 = vlaneseq
      %v9416 = vshrl.u32 %v9415, 7
      %v9417 = vsub.s32 0, %v9416
      %v9418 = vrot.slane %v9413, %v9417
      %v9421 = vsel %vm8607, %v9401, 0
      %v9424 = vsel %vm8607, %v9402, 0
      %v9427 = vsel %vm8607, %v9403, 0
      %v9430 = vsel %vm8607, %v9404, 0
      %9432 = vmatprep.subr.mxu0 0.0
      %9433 = vmatpush1.msra.mxu0 0.0
      %9434 = vmatprep.subr.mxu0 0.0
      %9435 = vmatpush1.msra.mxu0 0.0
      %9436 = vmatprep.subr.mxu0 0.0
      %9437 = vmatpush1.msra.mxu0 0.0
      %9438 = vmatprep.subr.mxu0 0.0
      %9439 = vmatpush1.msra.mxu0 0.0
      %9440 = vmatprep.subr.mxu0 0.0
      %9441 = vmatpush1.msra.mxu0 0.0
      %9442 = vmatprep.subr.mxu0 0.0
      %9443 = vmatpush1.msra.mxu0 0.0
      %9444 = vmatprep.subr.mxu0 0.0
      %9445 = vmatpush1.msra.mxu0 0.0
      %9446 = vmatprep.subr.mxu0 0.0
      %9447 = vmatpush1.msra.mxu0 0.0
      %9448 = vmatprep.subr.mxu0 0.0
      %9449 = vmatpush1.msra.mxu0 %v9412
      %9450 = vmatprep.subr.mxu0 0.0
      %9451 = vmatpush1.msra.mxu0 %v9411
      %9452 = vmatprep.subr.mxu0 0.0
      %9453 = vmatpush1.msra.mxu0 %v9410
      %9454 = vmatprep.subr.mxu0 0.0
      %9455 = vmatpush1.msra.mxu0 %v9409
      %9456 = vmatprep.subr.mxu0 0.0
      %9457 = vmatpush1.msra.mxu0 %v9408
      %9458 = vmatprep.subr.mxu0 0.0
      %9459 = vmatpush1.msra.mxu0 %v9407
      %9460 = vmatprep.subr.mxu0 0.0
      %9461 = vmatpush1.msra.mxu0 %v9406
      %9462 = vmatprep.subr.mxu0 0.0
      %9463 = vmatpush1.msra.mxu0 %v9405
      %9464 = vmatprep.subr.mxu0 0.0
      %9465 = vmatpush2.msra.mxu0 0.0
      %9466 = vmatprep.subr.mxu0 0.0
      %9467 = vmatpush2.msra.mxu0 0.0
      %9468 = vmatprep.subr.mxu0 0.0
      %9469 = vmatpush2.msra.mxu0 0.0
      %9470 = vmatprep.subr.mxu0 0.0
      %9471 = vmatpush2.msra.mxu0 0.0
      %9472 = vmatprep.subr.mxu0 0.0
      %9473 = vmatpush2.msra.mxu0 0.0
      %9474 = vmatprep.subr.mxu0 0.0
      %9475 = vmatpush2.msra.mxu0 0.0
      %9476 = vmatprep.subr.mxu0 0.0
      %9477 = vmatpush2.msra.mxu0 0.0
      %9478 = vmatprep.subr.mxu0 0.0
      %9479 = vmatpush2.msra.mxu0 0.0
      %9480 = vmatprep.subr.mxu0 0.0
      %9481 = vmatpush2.msra.mxu0 0.0
      %9482 = vmatprep.subr.mxu0 0.0
      %9483 = vmatpush2.msra.mxu0 0.0
      %9484 = vmatprep.subr.mxu0 0.0
      %9485 = vmatpush2.msra.mxu0 0.0
      %9486 = vmatprep.subr.mxu0 0.0
      %9487 = vmatpush2.msra.mxu0 0.0
      %9488 = vmatprep.subr.mxu0 0.0
      %9489 = vmatpush2.msra.mxu0 0.0
      %9490 = vmatprep.subr.mxu0 0.0
      %9491 = vmatpush2.msra.mxu0 0.0
      %9492 = vmatprep.subr.mxu0 0.0
      %9493 = vmatpush2.msra.mxu0 0.0
      %9494 = vmatprep.subr.mxu0 0.0
      %9495 = vmatpush2.msra.mxu0 0.0
      %9496 = vmatprep.mubr.f32.mxu0 0.0
      %9497 = vmatmul.mubr.f32.gmra.mxu0 %v9421
      %v9498 = vpop.f32.mrf.mxu0
      %v9499 = vadd.f32 %v9418, %v9498
      %v9500 = vpop.f32.mrf.mxu0
      %9501 = vmatprep.mubr.f32.mxu0 0.0
      %9502 = vmatmul.mubr.f32.gmra.mxu0 %v9424
      %v9503 = vpop.f32.mrf.mxu0
      %v9504 = vadd.f32 %v9418, %v9503
      %v9505 = vpop.f32.mrf.mxu0
      %9506 = vmatprep.mubr.f32.mxu0 0.0
      %9507 = vmatmul.mubr.f32.gmra.mxu0 %v9427
      %v9508 = vpop.f32.mrf.mxu0
      %v9509 = vadd.f32 %v9418, %v9508
      %v9510 = vpop.f32.mrf.mxu0
      %9511 = vmatprep.mubr.f32.mxu0 0.0
      %9512 = vmatmul.mubr.f32.gmra.mxu0 %v9430
      %v9513 = vpop.f32.mrf.mxu0
      %v9514 = vadd.f32 %v9418, %v9513
      %v9515 = vpop.f32.mrf.mxu0
      %9516 = vdwg.mxu0
      %v9517 = vmax.f32 %v9499, 0.0
      %v9518 = vmax.f32 %v9504, 0.0
      %v9519 = vmax.f32 %v9509, 0.0
      %v9520 = vmax.f32 %v9514, 0.0
      %v9521 = vld [vmem:[%s19] sm:$0xff]
      %v9522 = vld [vmem:[%s19 + $0x8] sm:$0xff]
      %v9523 = vld [vmem:[%s19 + $0x10] sm:$0xff]
      %v9524 = vld [vmem:[%s19 + $0x18] sm:$0xff]
      %v9525 = vld [vmem:[%s19 + $0x20] sm:$0xff]
      %v9526 = vld [vmem:[%s19 + $0x28] sm:$0xff]
      %v9527 = vld [vmem:[%s19 + $0x30] sm:$0xff]
      %v9528 = vld [vmem:[%s19 + $0x38] sm:$0xff]
      %v9529 = vld [vmem:[%s20] sm:$0x1]
      %v9531 = vlaneseq
      %v9532 = vshrl.u32 %v9531, 7
      %v9533 = vsub.s32 0, %v9532
      %v9534 = vrot.slane %v9529, %v9533
      %v9537 = vsel %vm8607, %v9517, 0
      %v9540 = vsel %vm8607, %v9518, 0
      %v9543 = vsel %vm8607, %v9519, 0
      %v9546 = vsel %vm8607, %v9520, 0
      %9548 = vmatprep.subr.mxu0 0.0
      %9549 = vmatpush1.msra.mxu0 0.0
      %9550 = vmatprep.subr.mxu0 0.0
      %9551 = vmatpush1.msra.mxu0 0.0
      %9552 = vmatprep.subr.mxu0 0.0
      %9553 = vmatpush1.msra.mxu0 0.0
      %9554 = vmatprep.subr.mxu0 0.0
      %9555 = vmatpush1.msra.mxu0 0.0
      %9556 = vmatprep.subr.mxu0 0.0
      %9557 = vmatpush1.msra.mxu0 0.0
      %9558 = vmatprep.subr.mxu0 0.0
      %9559 = vmatpush1.msra.mxu0 0.0
      %9560 = vmatprep.subr.mxu0 0.0
      %9561 = vmatpush1.msra.mxu0 0.0
      %9562 = vmatprep.subr.mxu0 0.0
      %9563 = vmatpush1.msra.mxu0 0.0
      %9564 = vmatprep.subr.mxu0 0.0
      %9565 = vmatpush1.msra.mxu0 %v9528
      %9566 = vmatprep.subr.mxu0 0.0
      %9567 = vmatpush1.msra.mxu0 %v9527
      %9568 = vmatprep.subr.mxu0 0.0
      %9569 = vmatpush1.msra.mxu0 %v9526
      %9570 = vmatprep.subr.mxu0 0.0
      %9571 = vmatpush1.msra.mxu0 %v9525
      %9572 = vmatprep.subr.mxu0 0.0
      %9573 = vmatpush1.msra.mxu0 %v9524
      %9574 = vmatprep.subr.mxu0 0.0
      %9575 = vmatpush1.msra.mxu0 %v9523
      %9576 = vmatprep.subr.mxu0 0.0
      %9577 = vmatpush1.msra.mxu0 %v9522
      %9578 = vmatprep.subr.mxu0 0.0
      %9579 = vmatpush1.msra.mxu0 %v9521
      %9580 = vmatprep.subr.mxu0 0.0
      %9581 = vmatpush2.msra.mxu0 0.0
      %9582 = vmatprep.subr.mxu0 0.0
      %9583 = vmatpush2.msra.mxu0 0.0
      %9584 = vmatprep.subr.mxu0 0.0
      %9585 = vmatpush2.msra.mxu0 0.0
      %9586 = vmatprep.subr.mxu0 0.0
      %9587 = vmatpush2.msra.mxu0 0.0
      %9588 = vmatprep.subr.mxu0 0.0
      %9589 = vmatpush2.msra.mxu0 0.0
      %9590 = vmatprep.subr.mxu0 0.0
      %9591 = vmatpush2.msra.mxu0 0.0
      %9592 = vmatprep.subr.mxu0 0.0
      %9593 = vmatpush2.msra.mxu0 0.0
      %9594 = vmatprep.subr.mxu0 0.0
      %9595 = vmatpush2.msra.mxu0 0.0
      %9596 = vmatprep.subr.mxu0 0.0
      %9597 = vmatpush2.msra.mxu0 0.0
      %9598 = vmatprep.subr.mxu0 0.0
      %9599 = vmatpush2.msra.mxu0 0.0
      %9600 = vmatprep.subr.mxu0 0.0
      %9601 = vmatpush2.msra.mxu0 0.0
      %9602 = vmatprep.subr.mxu0 0.0
      %9603 = vmatpush2.msra.mxu0 0.0
      %9604 = vmatprep.subr.mxu0 0.0
      %9605 = vmatpush2.msra.mxu0 0.0
      %9606 = vmatprep.subr.mxu0 0.0
      %9607 = vmatpush2.msra.mxu0 0.0
      %9608 = vmatprep.subr.mxu0 0.0
      %9609 = vmatpush2.msra.mxu0 0.0
      %9610 = vmatprep.subr.mxu0 0.0
      %9611 = vmatpush2.msra.mxu0 0.0
      %9612 = vmatprep.mubr.f32.mxu0 0.0
      %9613 = vmatmul.mubr.f32.gmra.mxu0 %v9537
      %v9614 = vpop.f32.mrf.mxu0
      %v9615 = vadd.f32 %v9534, %v9614
      %v9616 = vpop.f32.mrf.mxu0
      %9617 = vmatprep.mubr.f32.mxu0 0.0
      %9618 = vmatmul.mubr.f32.gmra.mxu0 %v9540
      %v9619 = vpop.f32.mrf.mxu0
      %v9620 = vadd.f32 %v9534, %v9619
      %v9621 = vpop.f32.mrf.mxu0
      %9622 = vmatprep.mubr.f32.mxu0 0.0
      %9623 = vmatmul.mubr.f32.gmra.mxu0 %v9543
      %v9624 = vpop.f32.mrf.mxu0
      %v9625 = vadd.f32 %v9534, %v9624
      %v9626 = vpop.f32.mrf.mxu0
      %9627 = vmatprep.mubr.f32.mxu0 0.0
      %9628 = vmatmul.mubr.f32.gmra.mxu0 %v9546
      %v9629 = vpop.f32.mrf.mxu0
      %v9630 = vadd.f32 %v9534, %v9629
      %v9631 = vpop.f32.mrf.mxu0
      %9632 = vdwg.mxu0
      %vm9633 = vcmask 23552
      %v9634 = vsel %vm9633, %v9615, -inf
      %9635 = vmax.xlane.f32.xlu0 %v9634
      %v9636 = vpop.xlane.xlu0 %9635
      %v9637 = vsel %vm9633, %v9620, -inf
      %9638 = vmax.xlane.f32.xlu0 %v9637
      %v9639 = vpop.xlane.xlu0 %9638
      %v9640 = vsel %vm9633, %v9625, -inf
      %9641 = vmax.xlane.f32.xlu0 %v9640
      %v9642 = vpop.xlane.xlu0 %9641
      %v9643 = vsel %vm9633, %v9630, -inf
      %9644 = vmax.xlane.f32.xlu0 %v9643
      %v9645 = vpop.xlane.xlu0 %9644
      %v9646 = vsub.f32 %v9615, %v9636
      %v9647 = vsub.f32 %v9620, %v9639
      %v9648 = vsub.f32 %v9625, %v9642
      %v9649 = vsub.f32 %v9630, %v9645
      %v9650 = vmul.f32 %v9646, 1.442695
      %v9651 = vpow.pop %v9650
      %v9652 = vmul.f32 %v9647, 1.442695
      %v9653 = vpow.pop %v9652
      %v9654 = vmul.f32 %v9648, 1.442695
      %v9655 = vpow.pop %v9654
      %v9656 = vmul.f32 %v9649, 1.442695
      %v9657 = vpow.pop %v9656
      %v9658 = vsel %vm9633, %v9651, 0.0
      %9659 = vadd.xlane.f32.xlu0 %v9658
      %v9660 = vpop.xlane.xlu0 %9659
      %v9661 = vsel %vm9633, %v9653, 0.0
      %9662 = vadd.xlane.f32.xlu0 %v9661
      %v9663 = vpop.xlane.xlu0 %9662
      %v9664 = vsel %vm9633, %v9655, 0.0
      %9665 = vadd.xlane.f32.xlu0 %v9664
      %v9666 = vpop.xlane.xlu0 %9665
      %v9667 = vsel %vm9633, %v9657, 0.0
      %9668 = vadd.xlane.f32.xlu0 %v9667
      %v9669 = vpop.xlane.xlu0 %9668
      %v9670 = vlog2.pop %v9660
      %v9671 = vmul.f32 %v9670, 0.6931472
      %v9672 = vlog2.pop %v9663
      %v9673 = vmul.f32 %v9672, 0.6931472
      %v9674 = vlog2.pop %v9666
      %v9675 = vmul.f32 %v9674, 0.6931472
      %v9676 = vlog2.pop %v9669
      %v9677 = vmul.f32 %v9676, 0.6931472
      %v9678 = vadd.f32 %v9671, %v9636
      %v9679 = vadd.f32 %v9673, %v9639
      %v9680 = vadd.f32 %v9675, %v9642
      %v9681 = vadd.f32 %v9677, %v9645
      %v9682 = vsub.f32 %v9615, %v9678
      %v9683 = vsub.f32 %v9620, %v9679
      %v9684 = vsub.f32 %v9625, %v9680
      %v9685 = vsub.f32 %v9630, %v9681
      %9686 = vst.msk [vmem:[%s661] sm:$0xff] %vm9633, %v9682
      %9687 = vst.msk [vmem:[%s661 + $0x8] sm:$0xff] %vm9633, %v9683
      %9688 = vst.msk [vmem:[%s661 + $0x10] sm:$0xff] %vm9633, %v9684
      %9689 = vst.msk [vmem:[%s661 + $0x18] sm:$0xff] %vm9633, %v9685
      %s9690 = smul.u32 4, %s32
      %p9691 = scmp.lt.s32.totalorder %s9690, 7
      %s9692 = scalar_select %p9691, %s9690, 7
      %s9693 = smul.addr %s9692, 8
      %s9694 = scalar_lea.vmem %s21, %s9693
      // Predicated region
      $region105: #{mlp_forward.1} parent=103 // pred_check
        %p9695 = pneg %p496
      $region106: #{mlp_forward.1} parent=103 // pred_check_branch
        %9697 = sbr.rel (%p9695) target = $region108
      $region107: #{mlp_forward.1} parent=103 // pred_region
        %s9698 = smul.u32 4, %s32
      $region108: #{mlp_forward.1} parent=103 // pred_fallthru
        _
    $region104: #{mlp_forward.1} parent=5 // pred_fallthru
      _
    %p9699 = scmp.le.s32.totalorder 2, %s27
    // Predicated region
    $region109: #{mlp_forward.1} parent=5 // pred_check
      %p9700 = pneg %p9699
    $region110: #{mlp_forward.1} parent=5 // pred_check_branch
      %9702 = sbr.rel (%p9700) target = $region112
    $region111: #{mlp_forward.1} parent=5 // pred_region
      %s9703 = ssub.s32 %s27, 2
      // Predicated region
      $region113: #{mlp_forward.1} parent=111 // pred_check
        %p9704 = pneg %p502
      $region114: #{mlp_forward.1} parent=111 // pred_check_branch
        %9706 = sbr.rel (%p9704) target = $region116
      $region115: #{mlp_forward.1} parent=111 // pred_region
        %s9707 = smul.u32 4, %s33
        %p9708 = scmp.lt.s32.totalorder %s9707, 7
        %s9709 = scalar_select %p9708, %s9707, 7
        %s9710 = smul.addr %s9709, 8
        %s9711 = scalar_lea.vmem %s21, %s9710
      $region116: #{mlp_forward.1} parent=111 // pred_fallthru
        _
    $region112: #{mlp_forward.1} parent=5 // pred_fallthru
      _
  $region6: #{mlp_forward.1} parent=0 // loop_footer
    %s31 = sadd.s32 1, %s27
  $region7: #{mlp_forward.1} parent=0 // loop_footer_branch
    %26 = sbr.rel target = $region3
  $region8: #{mlp_forward.1} parent=0 // loop_exit
    _

</llo_original>
